<compile_context>
chip_gen: v7x
topology: tpu7x:2x2x1
jax: 0.10.0
libtpu: 0.0.40
codegen_flags: <defaults>
</compile_context>

<pallas_src>
import functools

import numpy as np
import jax
import jax.numpy as jnp
from jax.experimental import pallas as pl
from jax.experimental.pallas import tpu as pltpu

# Keep f32 matmul/conv numerics faithful to the PyTorch reference on both the
# Pallas (MXU) path and the pure-JAX reference used for validation.
jax.config.update("jax_default_matmul_precision", "highest")


# ------------------------------ fused kernel -------------------------------

def _lenet5_kernel(x_ref, t1_ref, b1_ref, pw1_ref, ph1_ref,
                   t2_ref, b2_ref, pw2_ref, ph2_ref,
                   wfc1_ref, bfc1_ref, wfc2_ref, bfc2_ref,
                   wfc3_ref, bfc3_ref, o_ref, *, num_classes):
    f32 = jnp.float32
    xp = x_ref[0]                                             # [32, 32] padded image

    # ---- conv1 (1->6, 5x5, pad=2) as ONE matmul against a Toeplitz weight.
    # lhs1[oh, ki*32 + iw] = xp[oh + ki, iw]
    lhs1 = jnp.concatenate([xp[ki:ki + 28, :] for ki in range(5)], axis=1)      # [28,160]
    c1 = jnp.dot(lhs1, t1_ref[...], preferred_element_type=f32) + b1_ref[...]   # [28,168]
    c1 = jnp.maximum(c1, 0.0)
    # ---- pool1: 2x2 avg pool == PH1 @ (c1 @ PW1), 0.5-valued pooling matrices.
    p1 = jnp.dot(ph1_ref[...],
                 jnp.dot(c1, pw1_ref[...], preferred_element_type=f32),
                 preferred_element_type=f32)                  # [14, 84]  (h, w*6+c)

    # ---- conv2 (6->16, 5x5, valid) as ONE matmul.
    # lhs2[oh, ki*84 + (iw*6+ic)] = p1[oh + ki, iw*6+ic]
    lhs2 = jnp.concatenate([p1[ki:ki + 10, :] for ki in range(5)], axis=1)      # [10,420]
    c2 = jnp.dot(lhs2, t2_ref[...], preferred_element_type=f32) + b2_ref[...]   # [10,160]
    c2 = jnp.maximum(c2, 0.0)
    # ---- pool2.
    p2 = jnp.dot(ph2_ref[...],
                 jnp.dot(c2, pw2_ref[...], preferred_element_type=f32),
                 preferred_element_type=f32)                  # [5, 80]   (h, w*16+c)

    # ---- fc1: NCHW flatten folded into the packed weight [400, 128].
    p2flat = jnp.concatenate([p2[h:h + 1, :] for h in range(5)], axis=1)        # [1, 400]
    y = jnp.dot(p2flat, wfc1_ref[...], preferred_element_type=f32) + bfc1_ref[...]
    y = jnp.maximum(y, 0.0)                                   # [1, 128] (120 real)

    # ---- fc2 (padded to 128 lanes; padded inputs/weights are exactly 0).
    y = jnp.dot(y, wfc2_ref[...], preferred_element_type=f32) + bfc2_ref[...]
    y = jnp.maximum(y, 0.0)                                   # [1, 128] (84 real)

    # ---- fc3 + masked log-softmax over the real classes only.
    z = jnp.dot(y, wfc3_ref[...], preferred_element_type=f32) + bfc3_ref[...]   # [1,128]
    lane = jax.lax.broadcasted_iota(jnp.int32, z.shape, 1)
    z = jnp.where(lane < num_classes, z, -1e30)
    m = jnp.max(z, axis=-1, keepdims=True)
    zs = z - m
    lse = jnp.log(jnp.sum(jnp.exp(zs), axis=-1, keepdims=True))
    # Lane-dense (128-wide) store; real classes are sliced out in the wrapper.
    o_ref[0] = zs - lse


# ------------------------------ entry point --------------------------------

def lenet5_forward(x_nchw, packed, num_classes):
    """x_nchw: [B, 1, 28, 28] float32 (PyTorch convention)."""
    B = x_nchw.shape[0]
    x = x_nchw.reshape(B, 28, 28).astype(jnp.float32)         # IC=1: transpose-free
    xp = jnp.pad(x, ((0, 0), (2, 2), (2, 2)))                 # conv1 padding=2 -> [B,32,32]

    kernel = functools.partial(_lenet5_kernel, num_classes=num_classes)

    def resident(shape):  # whole-array, VMEM-resident across all grid steps
        n = len(shape)
        return pl.BlockSpec(shape, lambda b, _n=n: (0,) * _n)

    in_specs = [
        pl.BlockSpec((1, 32, 32), lambda b: (b, 0, 0)),        # per-image input
        resident((160, 168)), resident((1, 168)),              # conv1 Toeplitz + bias row
        resident((168, 84)), resident((14, 28)),               # pool1 matrices
        resident((420, 160)), resident((1, 160)),              # conv2 Toeplitz + bias row
        resident((160, 80)), resident((5, 10)),                # pool2 matrices
        resident((400, 128)), resident((1, 128)),              # fc1 packed (+flatten) + bias
        resident((128, 128)), resident((1, 128)),              # fc2
        resident((128, 128)), resident((1, 128)),              # fc3
    ]

    out = pl.pallas_call(
        kernel,
        out_shape=jax.ShapeDtypeStruct((B, 1, 128), jnp.float32),
        grid=(B,),
        in_specs=in_specs,
        out_specs=pl.BlockSpec((1, 1, 128), lambda b: (b, 0, 0)),
        compiler_params=pltpu.CompilerParams(
            dimension_semantics=("parallel",)),
    )(xp,
      packed["t1"], packed["b1r"], packed["pw1"], packed["ph1"],
      packed["t2"], packed["b2r"], packed["pw2"], packed["ph2"],
      packed["wfc1p"], packed["bfc1p"], packed["wfc2p"], packed["bfc2p"],
      packed["wfc3p"], packed["bfc3p"])
    return out.reshape(B, 128)[:, :num_classes]


# --------------------------- weight pre-packing -----------------------------

def pack_params(p, num_classes):
    """Pack PyTorch-layout LeNet5 params into MXU/lane-friendly matrices."""
    assert num_classes <= 128
    w1 = np.asarray(p["w1"], np.float32)      # [6, 1, 5, 5]
    w2 = np.asarray(p["w2"], np.float32)      # [16, 6, 5, 5]

    # conv1 Toeplitz: t1[ki*32 + (ow+kj), ow*6 + oc] = w1[oc, 0, ki, kj]
    t1 = np.zeros((5 * 32, 28 * 6), np.float32)
    ki, kj, ow, oc = np.meshgrid(np.arange(5), np.arange(5),
                                 np.arange(28), np.arange(6), indexing="ij")
    t1[(ki * 32 + ow + kj).ravel(), (ow * 6 + oc).ravel()] = \
        w1[oc.ravel(), 0, ki.ravel(), kj.ravel()]

    # conv2 Toeplitz: t2[ki*84 + (ow+kj)*6 + ic, ow*16 + oc] = w2[oc, ic, ki, kj]
    t2 = np.zeros((5 * 84, 10 * 16), np.float32)
    ki, kj, ow, ic, oc = np.meshgrid(np.arange(5), np.arange(5), np.arange(10),
                                     np.arange(6), np.arange(16), indexing="ij")
    t2[(ki * 84 + (ow + kj) * 6 + ic).ravel(), (ow * 16 + oc).ravel()] = \
        w2[oc.ravel(), ic.ravel(), ki.ravel(), kj.ravel()]

    b1r = np.tile(np.asarray(p["b1"], np.float32), 28)[None, :]    # [1,168] col=(ow,oc)
    b2r = np.tile(np.asarray(p["b2"], np.float32), 10)[None, :]    # [1,160] col=(ow,oc)

    def pool_rows(n):                          # [n/2, n], left-multiply H-pool
        m = np.zeros((n // 2, n), np.float32)
        i = np.arange(n // 2)
        m[i, 2 * i] = 0.5
        m[i, 2 * i + 1] = 0.5
        return m

    def pool_cols(nw, nc_):                    # [(nw*nc_), (nw/2)*nc_], right-multiply W-pool
        m = np.zeros((nw * nc_, (nw // 2) * nc_), np.float32)
        w, c = np.meshgrid(np.arange(nw), np.arange(nc_), indexing="ij")
        m[(w * nc_ + c).ravel(), ((w // 2) * nc_ + c).ravel()] = 0.5
        return m

    ph1, pw1 = pool_rows(28), pool_cols(28, 6)     # [14,28], [168,84]
    ph2, pw2 = pool_rows(10), pool_cols(10, 16)    # [5,10],  [160,80]

    # fc1: fold PyTorch NCHW flatten (n = c*25 + h*5 + w) into the weight and
    # zero-pad the 120 outputs to 128 lanes. Kernel packed index = h*80+w*16+c.
    h, w, c = np.meshgrid(np.arange(5), np.arange(5), np.arange(16), indexing="ij")
    perm = np.zeros(400, np.int64)
    perm[(h * 80 + w * 16 + c).ravel()] = (c * 25 + h * 5 + w).ravel()
    wfc1p = np.zeros((400, 128), np.float32)
    wfc1p[:, :120] = np.asarray(p["wfc1"], np.float32).T[perm]     # wfc1: [120,400]
    bfc1p = np.zeros((1, 128), np.float32)
    bfc1p[0, :120] = np.asarray(p["bfc1"], np.float32)

    wfc2p = np.zeros((128, 128), np.float32)
    wfc2p[:120, :84] = np.asarray(p["wfc2"], np.float32).T         # wfc2: [84,120]
    bfc2p = np.zeros((1, 128), np.float32)
    bfc2p[0, :84] = np.asarray(p["bfc2"], np.float32)

    wfc3p = np.zeros((128, 128), np.float32)
    wfc3p[:84, :num_classes] = np.asarray(p["wfc3"], np.float32).T  # wfc3: [nc,84]
    bfc3p = np.zeros((1, 128), np.float32)
    bfc3p[0, :num_classes] = np.asarray(p["bfc3"], np.float32)

    packed = dict(t1=t1, b1r=b1r, pw1=pw1, ph1=ph1,
                  t2=t2, b2r=b2r, pw2=pw2, ph2=ph2,
                  wfc1p=wfc1p, bfc1p=bfc1p, wfc2p=wfc2p, bfc2p=bfc2p,
                  wfc3p=wfc3p, bfc3p=bfc3p)
    return {k: jnp.asarray(v) for k, v in packed.items()}


# ----------------------- init + pure-JAX reference --------------------------

def init_params(key, num_classes):
    ks = jax.random.split(key, 10)

    def u(k, shape, fan_in):
        bound = 1.0 / (fan_in ** 0.5)
        return jax.random.uniform(k, shape, jnp.float32, -bound, bound)

    return dict(
        w1=u(ks[0], (6, 1, 5, 5), 1 * 5 * 5),   b1=u(ks[1], (6,), 1 * 5 * 5),
        w2=u(ks[2], (16, 6, 5, 5), 6 * 5 * 5),  b2=u(ks[3], (16,), 6 * 5 * 5),
        wfc1=u(ks[4], (120, 400), 400),         bfc1=u(ks[5], (120,), 400),
        wfc2=u(ks[6], (84, 120), 120),          bfc2=u(ks[7], (84,), 120),
        wfc3=u(ks[8], (num_classes, 84), 84),   bfc3=u(ks[9], (num_classes,), 84),
    )


def lenet5_reference(x, p):
    """Plain XLA implementation matching the PyTorch module (for validation)."""
    dn = ("NCHW", "OIHW", "NCHW")
    y = jax.lax.conv_general_dilated(x, p["w1"], (1, 1), ((2, 2), (2, 2)),
                                     dimension_numbers=dn)
    y = jax.nn.relu(y + p["b1"][None, :, None, None])
    y = jax.lax.reduce_window(y, 0.0, jax.lax.add, (1, 1, 2, 2), (1, 1, 2, 2),
                              "VALID") * 0.25
    y = jax.lax.conv_general_dilated(y, p["w2"], (1, 1), "VALID",
                                     dimension_numbers=dn)
    y = jax.nn.relu(y + p["b2"][None, :, None, None])
    y = jax.lax.reduce_window(y, 0.0, jax.lax.add, (1, 1, 2, 2), (1, 1, 2, 2),
                              "VALID") * 0.25
    y = y.reshape(y.shape[0], -1)                                  # NCHW flatten
    y = jax.nn.relu(y @ p["wfc1"].T + p["bfc1"])
    y = jax.nn.relu(y @ p["wfc2"].T + p["bfc2"])
    z = y @ p["wfc3"].T + p["bfc3"]
    return jax.nn.log_softmax(z, axis=-1)


# ---------------------------------- main ------------------------------------

if __name__ == "__main__":
    num_classes = 10
    batch = 2
    key = jax.random.PRNGKey(0)
    k_x, k_p = jax.random.split(key)

    # LeNet5's fc1 (16*5*5 inputs) fixes the spatial size to 28x28, 1 channel.
    x = jax.random.normal(k_x, (batch, 1, 28, 28), dtype=jnp.float32)
    params = init_params(k_p, num_classes)
    packed = pack_params(params, num_classes)

    fwd = jax.jit(lambda xx, pp: lenet5_forward(xx, pp, num_classes))
    out = jax.block_until_ready(fwd(x, packed))

    assert out.shape == (batch, num_classes), out.shape
    assert bool(jnp.all(jnp.isfinite(out)))
    # log_softmax rows must exponentiate-sum to 1
    assert bool(jnp.allclose(jnp.sum(jnp.exp(out), axis=1), 1.0, atol=1e-5))
    # match the plain-XLA reference of the PyTorch module
    ref = lenet5_reference(x, params)
    assert bool(jnp.allclose(out, ref, atol=5e-3, rtol=5e-3)), \
        float(jnp.max(jnp.abs(out - ref)))

    print("KERNEL_OK")
</pallas_src>

<mosaic_0001>
module attributes {stable_mosaic.version = 11 : i64} {
  func.func @_lenet5_kernel(%arg0: i32, %arg1: memref<1x32x32xf32, #tpu.memory_space<vmem>>, %arg2: memref<160x168xf32, #tpu.memory_space<vmem>>, %arg3: memref<1x168xf32, #tpu.memory_space<vmem>>, %arg4: memref<168x84xf32, #tpu.memory_space<vmem>>, %arg5: memref<14x28xf32, #tpu.memory_space<vmem>>, %arg6: memref<420x160xf32, #tpu.memory_space<vmem>>, %arg7: memref<1x160xf32, #tpu.memory_space<vmem>>, %arg8: memref<160x80xf32, #tpu.memory_space<vmem>>, %arg9: memref<5x10xf32, #tpu.memory_space<vmem>>, %arg10: memref<400x128xf32, #tpu.memory_space<vmem>>, %arg11: memref<1x128xf32, #tpu.memory_space<vmem>>, %arg12: memref<128x128xf32, #tpu.memory_space<vmem>>, %arg13: memref<1x128xf32, #tpu.memory_space<vmem>>, %arg14: memref<128x128xf32, #tpu.memory_space<vmem>>, %arg15: memref<1x128xf32, #tpu.memory_space<vmem>>, %arg16: memref<1x1x128xf32, #tpu.memory_space<vmem>>) attributes {dimension_semantics = [#tpu.dimension_semantics<parallel>], iteration_bounds = array<i64: 2>, scalar_prefetch = 0 : i64, scratch_operands = 0 : i64, tpu.core_type = #tpu.core_type<tc>, window_params = [{transform_indices = @transform_0, window_bounds = array<i64: 1, 32, 32>}, {pipeline_mode = #tpu.pipeline_mode<synchronous>, transform_indices = @transform_1, window_bounds = array<i64: 160, 168>}, {pipeline_mode = #tpu.pipeline_mode<synchronous>, transform_indices = @transform_2, window_bounds = array<i64: 1, 168>}, {pipeline_mode = #tpu.pipeline_mode<synchronous>, transform_indices = @transform_3, window_bounds = array<i64: 168, 84>}, {pipeline_mode = #tpu.pipeline_mode<synchronous>, transform_indices = @transform_4, window_bounds = array<i64: 14, 28>}, {pipeline_mode = #tpu.pipeline_mode<synchronous>, transform_indices = @transform_5, window_bounds = array<i64: 420, 160>}, {pipeline_mode = #tpu.pipeline_mode<synchronous>, transform_indices = @transform_6, window_bounds = array<i64: 1, 160>}, {pipeline_mode = #tpu.pipeline_mode<synchronous>, transform_indices = @transform_7, window_bounds = array<i64: 160, 80>}, {pipeline_mode = #tpu.pipeline_mode<synchronous>, transform_indices = @transform_8, window_bounds = array<i64: 5, 10>}, {pipeline_mode = #tpu.pipeline_mode<synchronous>, transform_indices = @transform_9, window_bounds = array<i64: 400, 128>}, {pipeline_mode = #tpu.pipeline_mode<synchronous>, transform_indices = @transform_10, window_bounds = array<i64: 1, 128>}, {pipeline_mode = #tpu.pipeline_mode<synchronous>, transform_indices = @transform_11, window_bounds = array<i64: 128, 128>}, {pipeline_mode = #tpu.pipeline_mode<synchronous>, transform_indices = @transform_12, window_bounds = array<i64: 1, 128>}, {pipeline_mode = #tpu.pipeline_mode<synchronous>, transform_indices = @transform_13, window_bounds = array<i64: 128, 128>}, {pipeline_mode = #tpu.pipeline_mode<synchronous>, transform_indices = @transform_14, window_bounds = array<i64: 1, 128>}, {transform_indices = @transform_15, window_bounds = array<i64: 1, 1, 128>}]} {
    %c0 = arith.constant 0 : index
    %c0_0 = arith.constant 0 : index
    %c0_1 = arith.constant 0 : index
    %0 = vector.load %arg1[%c0, %c0_0, %c0_1] : memref<1x32x32xf32, #tpu.memory_space<vmem>>, vector<1x32x32xf32>
    %1 = vector.shape_cast %0 : vector<1x32x32xf32> to vector<32x32xf32>
    %2 = vector.extract_strided_slice %1 {offsets = [0, 0], sizes = [28, 32], strides = [1, 1]} : vector<32x32xf32> to vector<28x32xf32>
    %3 = vector.extract_strided_slice %1 {offsets = [1, 0], sizes = [28, 32], strides = [1, 1]} : vector<32x32xf32> to vector<28x32xf32>
    %4 = vector.extract_strided_slice %1 {offsets = [2, 0], sizes = [28, 32], strides = [1, 1]} : vector<32x32xf32> to vector<28x32xf32>
    %5 = vector.extract_strided_slice %1 {offsets = [3, 0], sizes = [28, 32], strides = [1, 1]} : vector<32x32xf32> to vector<28x32xf32>
    %6 = vector.extract_strided_slice %1 {offsets = [4, 0], sizes = [28, 32], strides = [1, 1]} : vector<32x32xf32> to vector<28x32xf32>
    %7 = tpu.concatenate %2, %3, %4, %5, %6 in 1 : vector<28x32xf32>, vector<28x32xf32>, vector<28x32xf32>, vector<28x32xf32>, vector<28x32xf32> -> vector<28x160xf32>
    %c0_2 = arith.constant 0 : index
    %c0_3 = arith.constant 0 : index
    %8 = vector.load %arg2[%c0_2, %c0_3] : memref<160x168xf32, #tpu.memory_space<vmem>>, vector<160x168xf32>
    %cst = arith.constant dense<0.000000e+00> : vector<28x168xf32>
    %9 = tpu.matmul %7, %8, %cst {dimension_numbers = #tpu.dot_dimension_numbers<[1], [0], [0], [1], [0, 0, 1, 1], [], []>, precision = #tpu.contract_precision<fp32>} : vector<28x160xf32>, vector<160x168xf32>, vector<28x168xf32> -> vector<28x168xf32>
    %c0_4 = arith.constant 0 : index
    %c0_5 = arith.constant 0 : index
    %10 = vector.load %arg3[%c0_4, %c0_5] : memref<1x168xf32, #tpu.memory_space<vmem>>, vector<1x168xf32>
    %11 = vector.broadcast %10 : vector<1x168xf32> to vector<28x168xf32>
    %12 = arith.addf %9, %11 : vector<28x168xf32>
    %cst_6 = arith.constant 0.000000e+00 : f32
    %13 = vector.broadcast %cst_6 : f32 to vector<28x168xf32>
    %14 = arith.maximumf %12, %13 : vector<28x168xf32>
    %c0_7 = arith.constant 0 : index
    %c0_8 = arith.constant 0 : index
    %15 = vector.load %arg5[%c0_7, %c0_8] : memref<14x28xf32, #tpu.memory_space<vmem>>, vector<14x28xf32>
    %c0_9 = arith.constant 0 : index
    %c0_10 = arith.constant 0 : index
    %16 = vector.load %arg4[%c0_9, %c0_10] : memref<168x84xf32, #tpu.memory_space<vmem>>, vector<168x84xf32>
    %cst_11 = arith.constant dense<0.000000e+00> : vector<28x84xf32>
    %17 = tpu.matmul %14, %16, %cst_11 {dimension_numbers = #tpu.dot_dimension_numbers<[1], [0], [0], [1], [0, 0, 1, 1], [], []>, precision = #tpu.contract_precision<fp32>} : vector<28x168xf32>, vector<168x84xf32>, vector<28x84xf32> -> vector<28x84xf32>
    %cst_12 = arith.constant dense<0.000000e+00> : vector<14x84xf32>
    %18 = tpu.matmul %15, %17, %cst_12 {dimension_numbers = #tpu.dot_dimension_numbers<[1], [0], [0], [1], [0, 0, 1, 1], [], []>, precision = #tpu.contract_precision<fp32>} : vector<14x28xf32>, vector<28x84xf32>, vector<14x84xf32> -> vector<14x84xf32>
    %19 = vector.extract_strided_slice %18 {offsets = [0, 0], sizes = [10, 84], strides = [1, 1]} : vector<14x84xf32> to vector<10x84xf32>
    %20 = vector.extract_strided_slice %18 {offsets = [1, 0], sizes = [10, 84], strides = [1, 1]} : vector<14x84xf32> to vector<10x84xf32>
    %21 = vector.extract_strided_slice %18 {offsets = [2, 0], sizes = [10, 84], strides = [1, 1]} : vector<14x84xf32> to vector<10x84xf32>
    %22 = vector.extract_strided_slice %18 {offsets = [3, 0], sizes = [10, 84], strides = [1, 1]} : vector<14x84xf32> to vector<10x84xf32>
    %23 = vector.extract_strided_slice %18 {offsets = [4, 0], sizes = [10, 84], strides = [1, 1]} : vector<14x84xf32> to vector<10x84xf32>
    %24 = tpu.concatenate %19, %20, %21, %22, %23 in 1 : vector<10x84xf32>, vector<10x84xf32>, vector<10x84xf32>, vector<10x84xf32>, vector<10x84xf32> -> vector<10x420xf32>
    %c0_13 = arith.constant 0 : index
    %c0_14 = arith.constant 0 : index
    %25 = vector.load %arg6[%c0_13, %c0_14] : memref<420x160xf32, #tpu.memory_space<vmem>>, vector<420x160xf32>
    %cst_15 = arith.constant dense<0.000000e+00> : vector<10x160xf32>
    %26 = tpu.matmul %24, %25, %cst_15 {dimension_numbers = #tpu.dot_dimension_numbers<[1], [0], [0], [1], [0, 0, 1, 1], [], []>, precision = #tpu.contract_precision<fp32>} : vector<10x420xf32>, vector<420x160xf32>, vector<10x160xf32> -> vector<10x160xf32>
    %c0_16 = arith.constant 0 : index
    %c0_17 = arith.constant 0 : index
    %27 = vector.load %arg7[%c0_16, %c0_17] : memref<1x160xf32, #tpu.memory_space<vmem>>, vector<1x160xf32>
    %28 = vector.broadcast %27 : vector<1x160xf32> to vector<10x160xf32>
    %29 = arith.addf %26, %28 : vector<10x160xf32>
    %cst_18 = arith.constant 0.000000e+00 : f32
    %30 = vector.broadcast %cst_18 : f32 to vector<10x160xf32>
    %31 = arith.maximumf %29, %30 : vector<10x160xf32>
    %c0_19 = arith.constant 0 : index
    %c0_20 = arith.constant 0 : index
    %32 = vector.load %arg9[%c0_19, %c0_20] : memref<5x10xf32, #tpu.memory_space<vmem>>, vector<5x10xf32>
    %c0_21 = arith.constant 0 : index
    %c0_22 = arith.constant 0 : index
    %33 = vector.load %arg8[%c0_21, %c0_22] : memref<160x80xf32, #tpu.memory_space<vmem>>, vector<160x80xf32>
    %cst_23 = arith.constant dense<0.000000e+00> : vector<10x80xf32>
    %34 = tpu.matmul %31, %33, %cst_23 {dimension_numbers = #tpu.dot_dimension_numbers<[1], [0], [0], [1], [0, 0, 1, 1], [], []>, precision = #tpu.contract_precision<fp32>} : vector<10x160xf32>, vector<160x80xf32>, vector<10x80xf32> -> vector<10x80xf32>
    %cst_24 = arith.constant dense<0.000000e+00> : vector<5x80xf32>
    %35 = tpu.matmul %32, %34, %cst_24 {dimension_numbers = #tpu.dot_dimension_numbers<[1], [0], [0], [1], [0, 0, 1, 1], [], []>, precision = #tpu.contract_precision<fp32>} : vector<5x10xf32>, vector<10x80xf32>, vector<5x80xf32> -> vector<5x80xf32>
    %36 = vector.extract_strided_slice %35 {offsets = [0, 0], sizes = [1, 80], strides = [1, 1]} : vector<5x80xf32> to vector<1x80xf32>
    %37 = vector.extract_strided_slice %35 {offsets = [1, 0], sizes = [1, 80], strides = [1, 1]} : vector<5x80xf32> to vector<1x80xf32>
    %38 = vector.extract_strided_slice %35 {offsets = [2, 0], sizes = [1, 80], strides = [1, 1]} : vector<5x80xf32> to vector<1x80xf32>
    %39 = vector.extract_strided_slice %35 {offsets = [3, 0], sizes = [1, 80], strides = [1, 1]} : vector<5x80xf32> to vector<1x80xf32>
    %40 = vector.extract_strided_slice %35 {offsets = [4, 0], sizes = [1, 80], strides = [1, 1]} : vector<5x80xf32> to vector<1x80xf32>
    %41 = tpu.concatenate %36, %37, %38, %39, %40 in 1 : vector<1x80xf32>, vector<1x80xf32>, vector<1x80xf32>, vector<1x80xf32>, vector<1x80xf32> -> vector<1x400xf32>
    %c0_25 = arith.constant 0 : index
    %c0_26 = arith.constant 0 : index
    %42 = vector.load %arg10[%c0_25, %c0_26] : memref<400x128xf32, #tpu.memory_space<vmem>>, vector<400x128xf32>
    %cst_27 = arith.constant dense<0.000000e+00> : vector<1x128xf32>
    %43 = tpu.matmul %41, %42, %cst_27 {dimension_numbers = #tpu.dot_dimension_numbers<[1], [0], [0], [1], [0, 0, 1, 1], [], []>, precision = #tpu.contract_precision<fp32>} : vector<1x400xf32>, vector<400x128xf32>, vector<1x128xf32> -> vector<1x128xf32>
    %c0_28 = arith.constant 0 : index
    %c0_29 = arith.constant 0 : index
    %44 = vector.load %arg11[%c0_28, %c0_29] : memref<1x128xf32, #tpu.memory_space<vmem>>, vector<1x128xf32>
    %45 = arith.addf %43, %44 : vector<1x128xf32>
    %cst_30 = arith.constant 0.000000e+00 : f32
    %46 = vector.broadcast %cst_30 : f32 to vector<1x128xf32>
    %47 = arith.maximumf %45, %46 : vector<1x128xf32>
    %c0_31 = arith.constant 0 : index
    %c0_32 = arith.constant 0 : index
    %48 = vector.load %arg12[%c0_31, %c0_32] : memref<128x128xf32, #tpu.memory_space<vmem>>, vector<128x128xf32>
    %cst_33 = arith.constant dense<0.000000e+00> : vector<1x128xf32>
    %49 = tpu.matmul %47, %48, %cst_33 {dimension_numbers = #tpu.dot_dimension_numbers<[1], [0], [0], [1], [0, 0, 1, 1], [], []>, precision = #tpu.contract_precision<fp32>} : vector<1x128xf32>, vector<128x128xf32>, vector<1x128xf32> -> vector<1x128xf32>
    %c0_34 = arith.constant 0 : index
    %c0_35 = arith.constant 0 : index
    %50 = vector.load %arg13[%c0_34, %c0_35] : memref<1x128xf32, #tpu.memory_space<vmem>>, vector<1x128xf32>
    %51 = arith.addf %49, %50 : vector<1x128xf32>
    %cst_36 = arith.constant 0.000000e+00 : f32
    %52 = vector.broadcast %cst_36 : f32 to vector<1x128xf32>
    %53 = arith.maximumf %51, %52 : vector<1x128xf32>
    %c0_37 = arith.constant 0 : index
    %c0_38 = arith.constant 0 : index
    %54 = vector.load %arg14[%c0_37, %c0_38] : memref<128x128xf32, #tpu.memory_space<vmem>>, vector<128x128xf32>
    %cst_39 = arith.constant dense<0.000000e+00> : vector<1x128xf32>
    %55 = tpu.matmul %53, %54, %cst_39 {dimension_numbers = #tpu.dot_dimension_numbers<[1], [0], [0], [1], [0, 0, 1, 1], [], []>, precision = #tpu.contract_precision<fp32>} : vector<1x128xf32>, vector<128x128xf32>, vector<1x128xf32> -> vector<1x128xf32>
    %c0_40 = arith.constant 0 : index
    %c0_41 = arith.constant 0 : index
    %56 = vector.load %arg15[%c0_40, %c0_41] : memref<1x128xf32, #tpu.memory_space<vmem>>, vector<1x128xf32>
    %57 = arith.addf %55, %56 : vector<1x128xf32>
    %58 = tpu.iota {dimensions = array<i32: 1>} : vector<1x128xi32>
    %c10_i32 = arith.constant 10 : i32
    %59 = vector.broadcast %c10_i32 : i32 to vector<1x128xi32>
    %60 = arith.cmpi slt, %58, %59 : vector<1x128xi32>
    %cst_42 = arith.constant -1.000000e+30 : f32
    %61 = vector.broadcast %cst_42 : f32 to vector<1x128xf32>
    %62 = arith.select %60, %57, %61 : vector<1x128xi1>, vector<1x128xf32>
    %cst_43 = arith.constant dense<0xFF800000> : vector<1xf32>
    %63 = vector.multi_reduction <maximumf>, %62, %cst_43 [1] : vector<1x128xf32> to vector<1xf32>
    %64 = vector.shape_cast %63 : vector<1xf32> to vector<1x1xf32>
    %65 = vector.broadcast %64 : vector<1x1xf32> to vector<1x128xf32>
    %66 = arith.subf %62, %65 : vector<1x128xf32>
    %67 = math.exp %66 : vector<1x128xf32>
    %cst_44 = arith.constant dense<0.000000e+00> : vector<1xf32>
    %68 = vector.multi_reduction <add>, %67, %cst_44 [1] : vector<1x128xf32> to vector<1xf32>
    %69 = vector.shape_cast %68 : vector<1xf32> to vector<1x1xf32>
    %70 = math.log %69 : vector<1x1xf32>
    %71 = vector.broadcast %70 : vector<1x1xf32> to vector<1x128xf32>
    %72 = arith.subf %66, %71 : vector<1x128xf32>
    %c0_45 = arith.constant 0 : index
    %c0_46 = arith.constant 0 : index
    %c0_47 = arith.constant 0 : index
    %73 = vector.load %arg16[%c0_45, %c0_46, %c0_47] : memref<1x1x128xf32, #tpu.memory_space<vmem>>, vector<1x1x128xf32>
    %74 = vector.shape_cast %73 : vector<1x1x128xf32> to vector<1x128xf32>
    %75 = vector.shape_cast %72 : vector<1x128xf32> to vector<1x1x128xf32>
    tpu.vector_store %arg16[%c0_45, %c0_46, %c0_47], %75 {strides = array<i32>} : memref<1x1x128xf32, #tpu.memory_space<vmem>>, vector<1x1x128xf32>,
    return
  }
  func.func @transform_0(%arg0: i32) -> (i32, i32, i32) {
    %c0_i32 = arith.constant 0 : i32
    %c0_i32_0 = arith.constant 0 : i32
    %c0_i32_1 = arith.constant 0 : i32
    return %arg0, %c0_i32, %c0_i32_0 : i32, i32, i32
  }
  func.func @transform_1(%arg0: i32) -> (i32, i32) {
    %c0_i32 = arith.constant 0 : i32
    %c0_i32_0 = arith.constant 0 : i32
    %c0_i32_1 = arith.constant 0 : i32
    return %c0_i32, %c0_i32_0 : i32, i32
  }
  func.func @transform_2(%arg0: i32) -> (i32, i32) {
    %c0_i32 = arith.constant 0 : i32
    %c0_i32_0 = arith.constant 0 : i32
    %c0_i32_1 = arith.constant 0 : i32
    return %c0_i32, %c0_i32_0 : i32, i32
  }
  func.func @transform_3(%arg0: i32) -> (i32, i32) {
    %c0_i32 = arith.constant 0 : i32
    %c0_i32_0 = arith.constant 0 : i32
    %c0_i32_1 = arith.constant 0 : i32
    return %c0_i32, %c0_i32_0 : i32, i32
  }
  func.func @transform_4(%arg0: i32) -> (i32, i32) {
    %c0_i32 = arith.constant 0 : i32
    %c0_i32_0 = arith.constant 0 : i32
    %c0_i32_1 = arith.constant 0 : i32
    return %c0_i32, %c0_i32_0 : i32, i32
  }
  func.func @transform_5(%arg0: i32) -> (i32, i32) {
    %c0_i32 = arith.constant 0 : i32
    %c0_i32_0 = arith.constant 0 : i32
    %c0_i32_1 = arith.constant 0 : i32
    return %c0_i32, %c0_i32_0 : i32, i32
  }
  func.func @transform_6(%arg0: i32) -> (i32, i32) {
    %c0_i32 = arith.constant 0 : i32
    %c0_i32_0 = arith.constant 0 : i32
    %c0_i32_1 = arith.constant 0 : i32
    return %c0_i32, %c0_i32_0 : i32, i32
  }
  func.func @transform_7(%arg0: i32) -> (i32, i32) {
    %c0_i32 = arith.constant 0 : i32
    %c0_i32_0 = arith.constant 0 : i32
    %c0_i32_1 = arith.constant 0 : i32
    return %c0_i32, %c0_i32_0 : i32, i32
  }
  func.func @transform_8(%arg0: i32) -> (i32, i32) {
    %c0_i32 = arith.constant 0 : i32
    %c0_i32_0 = arith.constant 0 : i32
    %c0_i32_1 = arith.constant 0 : i32
    return %c0_i32, %c0_i32_0 : i32, i32
  }
  func.func @transform_9(%arg0: i32) -> (i32, i32) {
    %c0_i32 = arith.constant 0 : i32
    %c0_i32_0 = arith.constant 0 : i32
    %c0_i32_1 = arith.constant 0 : i32
    return %c0_i32, %c0_i32_0 : i32, i32
  }
  func.func @transform_10(%arg0: i32) -> (i32, i32) {
    %c0_i32 = arith.constant 0 : i32
    %c0_i32_0 = arith.constant 0 : i32
    %c0_i32_1 = arith.constant 0 : i32
    return %c0_i32, %c0_i32_0 : i32, i32
  }
  func.func @transform_11(%arg0: i32) -> (i32, i32) {
    %c0_i32 = arith.constant 0 : i32
    %c0_i32_0 = arith.constant 0 : i32
    %c0_i32_1 = arith.constant 0 : i32
    return %c0_i32, %c0_i32_0 : i32, i32
  }
  func.func @transform_12(%arg0: i32) -> (i32, i32) {
    %c0_i32 = arith.constant 0 : i32
    %c0_i32_0 = arith.constant 0 : i32
    %c0_i32_1 = arith.constant 0 : i32
    return %c0_i32, %c0_i32_0 : i32, i32
  }
  func.func @transform_13(%arg0: i32) -> (i32, i32) {
    %c0_i32 = arith.constant 0 : i32
    %c0_i32_0 = arith.constant 0 : i32
    %c0_i32_1 = arith.constant 0 : i32
    return %c0_i32, %c0_i32_0 : i32, i32
  }
  func.func @transform_14(%arg0: i32) -> (i32, i32) {
    %c0_i32 = arith.constant 0 : i32
    %c0_i32_0 = arith.constant 0 : i32
    %c0_i32_1 = arith.constant 0 : i32
    return %c0_i32, %c0_i32_0 : i32, i32
  }
  func.func @transform_15(%arg0: i32) -> (i32, i32, i32) {
    %c0_i32 = arith.constant 0 : i32
    %c0_i32_0 = arith.constant 0 : i32
    %c0_i32_1 = arith.constant 0 : i32
    return %arg0, %c0_i32, %c0_i32_0 : i32, i32, i32
  }
}

</mosaic_0001>

<llo_original>
// kernel: _lambda_.1
$region0: #{_lambda_.1}
  #allocation0 [shape = 'u32[]', space=smem, size = 0x4, offset = 0x4, fixed_abs, tag = 'smem constant byte address 0x4 - core index']
  #allocation1 [shape = 'u32[144,128]{1,0:T(1,128)}', space=vmem, size = 0x12000, scoped, tag = 'internal scratch']
  %s0 = inlined_call_operand.vmem [shape: f32[2,32,32], index: 0, kind: input, shape index: {}]
  %s1 = inlined_call_operand.vmem [shape: f32[160,168], index: 1, kind: input, shape index: {}]
  %s2 = inlined_call_operand.vmem [shape: f32[1,168], index: 2, kind: input, shape index: {}]
  %s3 = inlined_call_operand.vmem [shape: f32[168,84], index: 3, kind: input, shape index: {}]
  %s4 = inlined_call_operand.vmem [shape: f32[14,28], index: 4, kind: input, shape index: {}]
  %s5 = inlined_call_operand.vmem [shape: f32[420,160], index: 5, kind: input, shape index: {}]
  %s6 = inlined_call_operand.vmem [shape: f32[1,160], index: 6, kind: input, shape index: {}]
  %s7 = inlined_call_operand.vmem [shape: f32[160,80], index: 7, kind: input, shape index: {}]
  %s8 = inlined_call_operand.vmem [shape: f32[5,10], index: 8, kind: input, shape index: {}]
  %s9 = inlined_call_operand.vmem [shape: f32[400,128], index: 9, kind: input, shape index: {}]
  %s10 = inlined_call_operand.vmem [shape: f32[1,128], index: 10, kind: input, shape index: {}]
  %s11 = inlined_call_operand.vmem [shape: f32[128,128], index: 11, kind: input, shape index: {}]
  %s12 = inlined_call_operand.vmem [shape: f32[1,128], index: 12, kind: input, shape index: {}]
  %s13 = inlined_call_operand.vmem [shape: f32[128,128], index: 13, kind: input, shape index: {}]
  %s14 = inlined_call_operand.vmem [shape: f32[1,128], index: 14, kind: input, shape index: {}]
  %s15 = inlined_call_operand.hbm [shape: f32[2,1,128], index: 15, kind: output, shape index: {}]
  %s16 = sld [smem:[#allocation0]]
  $region93: #{_lambda_.1} parent=0
    _
  %s18 = ssub.s32 1, %s16
  %s19 = scalar_select 0, %s18, %s16
  $region1: #{_lambda_.1} parent=0
    #allocation2 [shape = 'u8[1024]{0}', space=vmem, size = 0x400, scoped, tag = 'output window, operand 0']
    #allocation3 [shape = 's32[2]{0}', space=sflag, size = 0x8, scoped, tag = 'scoped memory for _lambda_.1']
    %20 = vsyncpa [#allocation3], 0
    %s21 = scalar_lea.sflag [#allocation3], 1
    %22 = vsyncpa %s21, 0
    loop: start=0, step=1, limit=4
    $region2: #{_lambda_.1} parent=1 // loop_pre_header
      _
    $region3: #{_lambda_.1} parent=1 // loop_header
      %s24 = sphi 0, %s28
      %p25 = scmp.ge.s32.totalorder %s24, 4
      %s34 = sphi 0, %s36
      %s37 = sphi 0, %s34
      %s38 = sphi 0, %s37
      %s54 = sphi 0, %s38
      %s58 = sphi 0, %s58
      %s60 = sphi 0, %s58
      %s61 = sphi 0, %s60
      %s75 = sphi 0, %s61
      %s79 = sphi 0, %s79
      %s81 = sphi 0, %s79
      %s82 = sphi 0, %s81
      %s96 = sphi 0, %s82
      %s100 = sphi 0, %s100
      %s102 = sphi 0, %s100
      %s103 = sphi 0, %s102
      %s117 = sphi 0, %s103
      %s121 = sphi 0, %s121
      %s123 = sphi 0, %s121
      %s124 = sphi 0, %s123
      %s138 = sphi 0, %s124
      %s142 = sphi 0, %s142
      %s144 = sphi 0, %s142
      %s145 = sphi 0, %s144
      %s159 = sphi 0, %s145
      %s163 = sphi 0, %s163
      %s165 = sphi 0, %s163
      %s166 = sphi 0, %s165
      %s180 = sphi 0, %s166
      %s184 = sphi 0, %s184
      %s186 = sphi 0, %s184
      %s187 = sphi 0, %s186
      %s201 = sphi 0, %s187
      %s205 = sphi 0, %s205
      %s207 = sphi 0, %s205
      %s208 = sphi 0, %s207
      %s222 = sphi 0, %s208
      %s226 = sphi 0, %s226
      %s228 = sphi 0, %s226
      %s229 = sphi 0, %s228
      %s243 = sphi 0, %s229
      %s247 = sphi 0, %s247
      %s249 = sphi 0, %s247
      %s250 = sphi 0, %s249
      %s264 = sphi 0, %s250
      %s268 = sphi 0, %s268
      %s270 = sphi 0, %s268
      %s271 = sphi 0, %s270
      %s285 = sphi 0, %s271
      %s289 = sphi 0, %s289
      %s291 = sphi 0, %s289
      %s292 = sphi 0, %s291
      %s306 = sphi 0, %s292
      %s310 = sphi 0, %s310
      %s312 = sphi 0, %s310
      %s313 = sphi 0, %s312
      %s327 = sphi 0, %s313
      %s331 = sphi 0, %s331
      %s333 = sphi 0, %s331
      %s334 = sphi 0, %s333
      %s348 = sphi 0, %s334
      %s354 = sphi 0, %s356
      %s357 = sphi 0, %s354
      %s358 = sphi 0, %s357
      %s374 = sphi 0, %s358
    $region4: #{_lambda_.1} parent=1 // loop_header_branch
      %27 = sbr.rel (%p25) target = $region8
    $region5: #{_lambda_.1} parent=1 // loop_body
      %s29 = ssub.s32 %s24, 1
      %s30 = ssub.s32 %s24, 2
      %s31 = sadd.s32 %s24, 1
      %s32 = ssub.s32 %s24, %s31
      %p33 = scmp.eq.s32.totalorder %s32, 0
      %s35 = sadd.s32 %s34, 1
      %s36 = scalar_select %p33, %s34, %s35
      %p39 = pneg %p33
      %p40 = scmp.eq.s32.totalorder %s24, 1
      %p41 = por %p39, %p40
      %p42 = scmp.ne.s32.totalorder %s34, %s37
      %p43 = scmp.eq.s32.totalorder %s24, 0
      %p44 = por %p42, %p43
      %p45 = scmp.ne.s32.totalorder %s34, %s37
      %p46 = scmp.eq.s32.totalorder %s29, 1
      %p47 = por %p45, %p46
      %p48 = scmp.ne.s32.totalorder %s37, %s38
      %p49 = scmp.eq.s32.totalorder %s29, 0
      %p50 = por %p48, %p49
      %p51 = scmp.ne.s32.totalorder %s37, %s38
      %p52 = scmp.eq.s32.totalorder %s30, 1
      %p53 = por %p51, %p52
      %p55 = scmp.ne.s32.totalorder %s38, %s54
      %p56 = scmp.eq.s32.totalorder %s30, 0
      %p57 = por %p55, %p56
      %s59 = sadd.s32 %s58, 1
      %p62 = scmp.eq.s32.totalorder %s24, 1
      %p63 = scmp.ne.s32.totalorder %s58, %s60
      %p64 = scmp.eq.s32.totalorder %s24, 0
      %p65 = por %p63, %p64
      %p66 = scmp.ne.s32.totalorder %s58, %s60
      %p67 = scmp.eq.s32.totalorder %s29, 1
      %p68 = por %p66, %p67
      %p69 = scmp.ne.s32.totalorder %s60, %s61
      %p70 = scmp.eq.s32.totalorder %s29, 0
      %p71 = por %p69, %p70
      %p72 = scmp.ne.s32.totalorder %s60, %s61
      %p73 = scmp.eq.s32.totalorder %s30, 1
      %p74 = por %p72, %p73
      %p76 = scmp.ne.s32.totalorder %s61, %s75
      %p77 = scmp.eq.s32.totalorder %s30, 0
      %p78 = por %p76, %p77
      %s80 = sadd.s32 %s79, 1
      %p83 = scmp.eq.s32.totalorder %s24, 1
      %p84 = scmp.ne.s32.totalorder %s79, %s81
      %p85 = scmp.eq.s32.totalorder %s24, 0
      %p86 = por %p84, %p85
      %p87 = scmp.ne.s32.totalorder %s79, %s81
      %p88 = scmp.eq.s32.totalorder %s29, 1
      %p89 = por %p87, %p88
      %p90 = scmp.ne.s32.totalorder %s81, %s82
      %p91 = scmp.eq.s32.totalorder %s29, 0
      %p92 = por %p90, %p91
      %p93 = scmp.ne.s32.totalorder %s81, %s82
      %p94 = scmp.eq.s32.totalorder %s30, 1
      %p95 = por %p93, %p94
      %p97 = scmp.ne.s32.totalorder %s82, %s96
      %p98 = scmp.eq.s32.totalorder %s30, 0
      %p99 = por %p97, %p98
      %s101 = sadd.s32 %s100, 1
      %p104 = scmp.eq.s32.totalorder %s24, 1
      %p105 = scmp.ne.s32.totalorder %s100, %s102
      %p106 = scmp.eq.s32.totalorder %s24, 0
      %p107 = por %p105, %p106
      %p108 = scmp.ne.s32.totalorder %s100, %s102
      %p109 = scmp.eq.s32.totalorder %s29, 1
      %p110 = por %p108, %p109
      %p111 = scmp.ne.s32.totalorder %s102, %s103
      %p112 = scmp.eq.s32.totalorder %s29, 0
      %p113 = por %p111, %p112
      %p114 = scmp.ne.s32.totalorder %s102, %s103
      %p115 = scmp.eq.s32.totalorder %s30, 1
      %p116 = por %p114, %p115
      %p118 = scmp.ne.s32.totalorder %s103, %s117
      %p119 = scmp.eq.s32.totalorder %s30, 0
      %p120 = por %p118, %p119
      %s122 = sadd.s32 %s121, 1
      %p125 = scmp.eq.s32.totalorder %s24, 1
      %p126 = scmp.ne.s32.totalorder %s121, %s123
      %p127 = scmp.eq.s32.totalorder %s24, 0
      %p128 = por %p126, %p127
      %p129 = scmp.ne.s32.totalorder %s121, %s123
      %p130 = scmp.eq.s32.totalorder %s29, 1
      %p131 = por %p129, %p130
      %p132 = scmp.ne.s32.totalorder %s123, %s124
      %p133 = scmp.eq.s32.totalorder %s29, 0
      %p134 = por %p132, %p133
      %p135 = scmp.ne.s32.totalorder %s123, %s124
      %p136 = scmp.eq.s32.totalorder %s30, 1
      %p137 = por %p135, %p136
      %p139 = scmp.ne.s32.totalorder %s124, %s138
      %p140 = scmp.eq.s32.totalorder %s30, 0
      %p141 = por %p139, %p140
      %s143 = sadd.s32 %s142, 1
      %p146 = scmp.eq.s32.totalorder %s24, 1
      %p147 = scmp.ne.s32.totalorder %s142, %s144
      %p148 = scmp.eq.s32.totalorder %s24, 0
      %p149 = por %p147, %p148
      %p150 = scmp.ne.s32.totalorder %s142, %s144
      %p151 = scmp.eq.s32.totalorder %s29, 1
      %p152 = por %p150, %p151
      %p153 = scmp.ne.s32.totalorder %s144, %s145
      %p154 = scmp.eq.s32.totalorder %s29, 0
      %p155 = por %p153, %p154
      %p156 = scmp.ne.s32.totalorder %s144, %s145
      %p157 = scmp.eq.s32.totalorder %s30, 1
      %p158 = por %p156, %p157
      %p160 = scmp.ne.s32.totalorder %s145, %s159
      %p161 = scmp.eq.s32.totalorder %s30, 0
      %p162 = por %p160, %p161
      %s164 = sadd.s32 %s163, 1
      %p167 = scmp.eq.s32.totalorder %s24, 1
      %p168 = scmp.ne.s32.totalorder %s163, %s165
      %p169 = scmp.eq.s32.totalorder %s24, 0
      %p170 = por %p168, %p169
      %p171 = scmp.ne.s32.totalorder %s163, %s165
      %p172 = scmp.eq.s32.totalorder %s29, 1
      %p173 = por %p171, %p172
      %p174 = scmp.ne.s32.totalorder %s165, %s166
      %p175 = scmp.eq.s32.totalorder %s29, 0
      %p176 = por %p174, %p175
      %p177 = scmp.ne.s32.totalorder %s165, %s166
      %p178 = scmp.eq.s32.totalorder %s30, 1
      %p179 = por %p177, %p178
      %p181 = scmp.ne.s32.totalorder %s166, %s180
      %p182 = scmp.eq.s32.totalorder %s30, 0
      %p183 = por %p181, %p182
      %s185 = sadd.s32 %s184, 1
      %p188 = scmp.eq.s32.totalorder %s24, 1
      %p189 = scmp.ne.s32.totalorder %s184, %s186
      %p190 = scmp.eq.s32.totalorder %s24, 0
      %p191 = por %p189, %p190
      %p192 = scmp.ne.s32.totalorder %s184, %s186
      %p193 = scmp.eq.s32.totalorder %s29, 1
      %p194 = por %p192, %p193
      %p195 = scmp.ne.s32.totalorder %s186, %s187
      %p196 = scmp.eq.s32.totalorder %s29, 0
      %p197 = por %p195, %p196
      %p198 = scmp.ne.s32.totalorder %s186, %s187
      %p199 = scmp.eq.s32.totalorder %s30, 1
      %p200 = por %p198, %p199
      %p202 = scmp.ne.s32.totalorder %s187, %s201
      %p203 = scmp.eq.s32.totalorder %s30, 0
      %p204 = por %p202, %p203
      %s206 = sadd.s32 %s205, 1
      %p209 = scmp.eq.s32.totalorder %s24, 1
      %p210 = scmp.ne.s32.totalorder %s205, %s207
      %p211 = scmp.eq.s32.totalorder %s24, 0
      %p212 = por %p210, %p211
      %p213 = scmp.ne.s32.totalorder %s205, %s207
      %p214 = scmp.eq.s32.totalorder %s29, 1
      %p215 = por %p213, %p214
      %p216 = scmp.ne.s32.totalorder %s207, %s208
      %p217 = scmp.eq.s32.totalorder %s29, 0
      %p218 = por %p216, %p217
      %p219 = scmp.ne.s32.totalorder %s207, %s208
      %p220 = scmp.eq.s32.totalorder %s30, 1
      %p221 = por %p219, %p220
      %p223 = scmp.ne.s32.totalorder %s208, %s222
      %p224 = scmp.eq.s32.totalorder %s30, 0
      %p225 = por %p223, %p224
      %s227 = sadd.s32 %s226, 1
      %p230 = scmp.eq.s32.totalorder %s24, 1
      %p231 = scmp.ne.s32.totalorder %s226, %s228
      %p232 = scmp.eq.s32.totalorder %s24, 0
      %p233 = por %p231, %p232
      %p234 = scmp.ne.s32.totalorder %s226, %s228
      %p235 = scmp.eq.s32.totalorder %s29, 1
      %p236 = por %p234, %p235
      %p237 = scmp.ne.s32.totalorder %s228, %s229
      %p238 = scmp.eq.s32.totalorder %s29, 0
      %p239 = por %p237, %p238
      %p240 = scmp.ne.s32.totalorder %s228, %s229
      %p241 = scmp.eq.s32.totalorder %s30, 1
      %p242 = por %p240, %p241
      %p244 = scmp.ne.s32.totalorder %s229, %s243
      %p245 = scmp.eq.s32.totalorder %s30, 0
      %p246 = por %p244, %p245
      %s248 = sadd.s32 %s247, 1
      %p251 = scmp.eq.s32.totalorder %s24, 1
      %p252 = scmp.ne.s32.totalorder %s247, %s249
      %p253 = scmp.eq.s32.totalorder %s24, 0
      %p254 = por %p252, %p253
      %p255 = scmp.ne.s32.totalorder %s247, %s249
      %p256 = scmp.eq.s32.totalorder %s29, 1
      %p257 = por %p255, %p256
      %p258 = scmp.ne.s32.totalorder %s249, %s250
      %p259 = scmp.eq.s32.totalorder %s29, 0
      %p260 = por %p258, %p259
      %p261 = scmp.ne.s32.totalorder %s249, %s250
      %p262 = scmp.eq.s32.totalorder %s30, 1
      %p263 = por %p261, %p262
      %p265 = scmp.ne.s32.totalorder %s250, %s264
      %p266 = scmp.eq.s32.totalorder %s30, 0
      %p267 = por %p265, %p266
      %s269 = sadd.s32 %s268, 1
      %p272 = scmp.eq.s32.totalorder %s24, 1
      %p273 = scmp.ne.s32.totalorder %s268, %s270
      %p274 = scmp.eq.s32.totalorder %s24, 0
      %p275 = por %p273, %p274
      %p276 = scmp.ne.s32.totalorder %s268, %s270
      %p277 = scmp.eq.s32.totalorder %s29, 1
      %p278 = por %p276, %p277
      %p279 = scmp.ne.s32.totalorder %s270, %s271
      %p280 = scmp.eq.s32.totalorder %s29, 0
      %p281 = por %p279, %p280
      %p282 = scmp.ne.s32.totalorder %s270, %s271
      %p283 = scmp.eq.s32.totalorder %s30, 1
      %p284 = por %p282, %p283
      %p286 = scmp.ne.s32.totalorder %s271, %s285
      %p287 = scmp.eq.s32.totalorder %s30, 0
      %p288 = por %p286, %p287
      %s290 = sadd.s32 %s289, 1
      %p293 = scmp.eq.s32.totalorder %s24, 1
      %p294 = scmp.ne.s32.totalorder %s289, %s291
      %p295 = scmp.eq.s32.totalorder %s24, 0
      %p296 = por %p294, %p295
      %p297 = scmp.ne.s32.totalorder %s289, %s291
      %p298 = scmp.eq.s32.totalorder %s29, 1
      %p299 = por %p297, %p298
      %p300 = scmp.ne.s32.totalorder %s291, %s292
      %p301 = scmp.eq.s32.totalorder %s29, 0
      %p302 = por %p300, %p301
      %p303 = scmp.ne.s32.totalorder %s291, %s292
      %p304 = scmp.eq.s32.totalorder %s30, 1
      %p305 = por %p303, %p304
      %p307 = scmp.ne.s32.totalorder %s292, %s306
      %p308 = scmp.eq.s32.totalorder %s30, 0
      %p309 = por %p307, %p308
      %s311 = sadd.s32 %s310, 1
      %p314 = scmp.eq.s32.totalorder %s24, 1
      %p315 = scmp.ne.s32.totalorder %s310, %s312
      %p316 = scmp.eq.s32.totalorder %s24, 0
      %p317 = por %p315, %p316
      %p318 = scmp.ne.s32.totalorder %s310, %s312
      %p319 = scmp.eq.s32.totalorder %s29, 1
      %p320 = por %p318, %p319
      %p321 = scmp.ne.s32.totalorder %s312, %s313
      %p322 = scmp.eq.s32.totalorder %s29, 0
      %p323 = por %p321, %p322
      %p324 = scmp.ne.s32.totalorder %s312, %s313
      %p325 = scmp.eq.s32.totalorder %s30, 1
      %p326 = por %p324, %p325
      %p328 = scmp.ne.s32.totalorder %s313, %s327
      %p329 = scmp.eq.s32.totalorder %s30, 0
      %p330 = por %p328, %p329
      %s332 = sadd.s32 %s331, 1
      %p335 = scmp.eq.s32.totalorder %s24, 1
      %p336 = scmp.ne.s32.totalorder %s331, %s333
      %p337 = scmp.eq.s32.totalorder %s24, 0
      %p338 = por %p336, %p337
      %p339 = scmp.ne.s32.totalorder %s331, %s333
      %p340 = scmp.eq.s32.totalorder %s29, 1
      %p341 = por %p339, %p340
      %p342 = scmp.ne.s32.totalorder %s333, %s334
      %p343 = scmp.eq.s32.totalorder %s29, 0
      %p344 = por %p342, %p343
      %p345 = scmp.ne.s32.totalorder %s333, %s334
      %p346 = scmp.eq.s32.totalorder %s30, 1
      %p347 = por %p345, %p346
      %p349 = scmp.ne.s32.totalorder %s334, %s348
      %p350 = scmp.eq.s32.totalorder %s30, 0
      %p351 = por %p349, %p350
      %s352 = ssub.s32 %s24, %s31
      %p353 = scmp.eq.s32.totalorder %s352, 0
      %s355 = sadd.s32 %s354, 1
      %s356 = scalar_select %p353, %s354, %s355
      %p359 = pneg %p353
      %p360 = scmp.eq.s32.totalorder %s24, 1
      %p361 = por %p359, %p360
      %p362 = scmp.ne.s32.totalorder %s354, %s357
      %p363 = scmp.eq.s32.totalorder %s24, 0
      %p364 = por %p362, %p363
      %p365 = scmp.ne.s32.totalorder %s354, %s357
      %p366 = scmp.eq.s32.totalorder %s29, 1
      %p367 = por %p365, %p366
      %p368 = scmp.ne.s32.totalorder %s357, %s358
      %p369 = scmp.eq.s32.totalorder %s29, 0
      %p370 = por %p368, %p369
      %p371 = scmp.ne.s32.totalorder %s357, %s358
      %p372 = scmp.eq.s32.totalorder %s30, 1
      %p373 = por %p371, %p372
      %p375 = scmp.ne.s32.totalorder %s358, %s374
      %p376 = scmp.eq.s32.totalorder %s30, 0
      %p377 = por %p375, %p376
      %p378 = scmp.le.s32.totalorder 1, %s24
      %p379 = scmp.lt.s32.totalorder %s24, 3
      %p380 = pnand %p378, %p379
      %p381 = pneg %p380
      // Predicated region
      $region9: #{_lambda_.1} parent=5 // pred_check
        _
      $region10: #{_lambda_.1} parent=5 // pred_check_branch
        %383 = sbr.rel (%p380) target = $region12
      $region11: #{_lambda_.1} parent=5 // pred_region
        %s384 = ssub.s32 %s24, 1
        // Predicated region
        $region13: #{_lambda_.1} parent=11 // pred_check
          %p385 = pneg %p71
        $region14: #{_lambda_.1} parent=11 // pred_check_branch
          %387 = sbr.rel (%p385) target = $region16
        $region15: #{_lambda_.1} parent=11 // pred_region
          _
        $region16: #{_lambda_.1} parent=11 // pred_fallthru
          _
        // Predicated region
        $region17: #{_lambda_.1} parent=11 // pred_check
          %p388 = pneg %p92
        $region18: #{_lambda_.1} parent=11 // pred_check_branch
          %390 = sbr.rel (%p388) target = $region20
        $region19: #{_lambda_.1} parent=11 // pred_region
          _
        $region20: #{_lambda_.1} parent=11 // pred_fallthru
          _
        // Predicated region
        $region21: #{_lambda_.1} parent=11 // pred_check
          %p391 = pneg %p113
        $region22: #{_lambda_.1} parent=11 // pred_check_branch
          %393 = sbr.rel (%p391) target = $region24
        $region23: #{_lambda_.1} parent=11 // pred_region
          _
        $region24: #{_lambda_.1} parent=11 // pred_fallthru
          _
        // Predicated region
        $region25: #{_lambda_.1} parent=11 // pred_check
          %p394 = pneg %p134
        $region26: #{_lambda_.1} parent=11 // pred_check_branch
          %396 = sbr.rel (%p394) target = $region28
        $region27: #{_lambda_.1} parent=11 // pred_region
          _
        $region28: #{_lambda_.1} parent=11 // pred_fallthru
          _
        // Predicated region
        $region29: #{_lambda_.1} parent=11 // pred_check
          %p397 = pneg %p155
        $region30: #{_lambda_.1} parent=11 // pred_check_branch
          %399 = sbr.rel (%p397) target = $region32
        $region31: #{_lambda_.1} parent=11 // pred_region
          _
        $region32: #{_lambda_.1} parent=11 // pred_fallthru
          _
        // Predicated region
        $region33: #{_lambda_.1} parent=11 // pred_check
          %p400 = pneg %p176
        $region34: #{_lambda_.1} parent=11 // pred_check_branch
          %402 = sbr.rel (%p400) target = $region36
        $region35: #{_lambda_.1} parent=11 // pred_region
          _
        $region36: #{_lambda_.1} parent=11 // pred_fallthru
          _
        // Predicated region
        $region37: #{_lambda_.1} parent=11 // pred_check
          %p403 = pneg %p197
        $region38: #{_lambda_.1} parent=11 // pred_check_branch
          %405 = sbr.rel (%p403) target = $region40
        $region39: #{_lambda_.1} parent=11 // pred_region
          _
        $region40: #{_lambda_.1} parent=11 // pred_fallthru
          _
        // Predicated region
        $region41: #{_lambda_.1} parent=11 // pred_check
          %p406 = pneg %p218
        $region42: #{_lambda_.1} parent=11 // pred_check_branch
          %408 = sbr.rel (%p406) target = $region44
        $region43: #{_lambda_.1} parent=11 // pred_region
          _
        $region44: #{_lambda_.1} parent=11 // pred_fallthru
          _
        // Predicated region
        $region45: #{_lambda_.1} parent=11 // pred_check
          %p409 = pneg %p239
        $region46: #{_lambda_.1} parent=11 // pred_check_branch
          %411 = sbr.rel (%p409) target = $region48
        $region47: #{_lambda_.1} parent=11 // pred_region
          _
        $region48: #{_lambda_.1} parent=11 // pred_fallthru
          _
        // Predicated region
        $region49: #{_lambda_.1} parent=11 // pred_check
          %p412 = pneg %p260
        $region50: #{_lambda_.1} parent=11 // pred_check_branch
          %414 = sbr.rel (%p412) target = $region52
        $region51: #{_lambda_.1} parent=11 // pred_region
          _
        $region52: #{_lambda_.1} parent=11 // pred_fallthru
          _
        // Predicated region
        $region53: #{_lambda_.1} parent=11 // pred_check
          %p415 = pneg %p281
        $region54: #{_lambda_.1} parent=11 // pred_check_branch
          %417 = sbr.rel (%p415) target = $region56
        $region55: #{_lambda_.1} parent=11 // pred_region
          _
        $region56: #{_lambda_.1} parent=11 // pred_fallthru
          _
        // Predicated region
        $region57: #{_lambda_.1} parent=11 // pred_check
          %p418 = pneg %p302
        $region58: #{_lambda_.1} parent=11 // pred_check_branch
          %420 = sbr.rel (%p418) target = $region60
        $region59: #{_lambda_.1} parent=11 // pred_region
          _
        $region60: #{_lambda_.1} parent=11 // pred_fallthru
          _
        // Predicated region
        $region61: #{_lambda_.1} parent=11 // pred_check
          %p421 = pneg %p323
        $region62: #{_lambda_.1} parent=11 // pred_check_branch
          %423 = sbr.rel (%p421) target = $region64
        $region63: #{_lambda_.1} parent=11 // pred_region
          _
        $region64: #{_lambda_.1} parent=11 // pred_fallthru
          _
        // Predicated region
        $region65: #{_lambda_.1} parent=11 // pred_check
          %p424 = pneg %p344
        $region66: #{_lambda_.1} parent=11 // pred_check_branch
          %426 = sbr.rel (%p424) target = $region68
        $region67: #{_lambda_.1} parent=11 // pred_region
          _
        $region68: #{_lambda_.1} parent=11 // pred_fallthru
          _
      $region12: #{_lambda_.1} parent=5 // pred_fallthru
        _
      %p427 = scmp.lt.s32.totalorder %s24, 2
      // Predicated region
      $region69: #{_lambda_.1} parent=5 // pred_check
        %p428 = pneg %p427
      $region70: #{_lambda_.1} parent=5 // pred_check_branch
        %430 = sbr.rel (%p428) target = $region72
      $region71: #{_lambda_.1} parent=5 // pred_region
        // Predicated region
        $region73: #{_lambda_.1} parent=71 // pred_check
          %p431 = pneg %p44
        $region74: #{_lambda_.1} parent=71 // pred_check_branch
          %433 = sbr.rel (%p431) target = $region76
        $region75: #{_lambda_.1} parent=71 // pred_region
          %p434 = scmp.lt.s32.totalorder %s24, 1
          %s435 = scalar_select %p434, %s24, 1
          %s436 = smul.addr %s435, 4
          %s437 = smul.addr %s436, 8
          %s438 = scalar_lea.vmem %s0, %s437
        $region76: #{_lambda_.1} parent=71 // pred_fallthru
          _
      $region72: #{_lambda_.1} parent=5 // pred_fallthru
        _
      %p439 = scmp.le.s32.totalorder 1, %s24
      %p440 = scmp.lt.s32.totalorder %s24, 3
      %p441 = pnand %p439, %p440
      %p442 = pneg %p441
      // Predicated region
      $region77: #{_lambda_.1} parent=5 // pred_check
        _
      $region78: #{_lambda_.1} parent=5 // pred_check_branch
        %444 = sbr.rel (%p441) target = $region80
      $region79: #{_lambda_.1} parent=5 // pred_region
        %s445 = ssub.s32 %s24, 1
        %p446 = scmp.lt.s32.totalorder %s29, 1
        %s447 = scalar_select %p446, %s29, 1
        %s448 = smul.addr %s447, 4
        %s449 = smul.addr %s448, 8
        %s450 = scalar_lea.vmem %s0, %s449
        %p451 = pneg %p50
        %p452 = pneg %p47
        %p453 = pneg %p71
        %p454 = pneg %p68
        %p455 = pneg %p92
        %p456 = pneg %p89
        %p457 = pneg %p113
        %p458 = pneg %p110
        %p459 = pneg %p134
        %p460 = pneg %p131
        %p461 = pneg %p155
        %p462 = pneg %p152
        %p463 = pneg %p176
        %p464 = pneg %p173
        %p465 = pneg %p197
        %p466 = pneg %p194
        %p467 = pneg %p218
        %p468 = pneg %p215
        %p469 = pneg %p239
        %p470 = pneg %p236
        %p471 = pneg %p260
        %p472 = pneg %p257
        %p473 = pneg %p281
        %p474 = pneg %p278
        %p475 = pneg %p302
        %p476 = pneg %p299
        %p477 = pneg %p323
        %p478 = pneg %p320
        %p479 = pneg %p344
        %p480 = pneg %p341
        %p481 = pneg %p370
        %p482 = pneg %p367
        %s483 = sand.u32 %s357, 1
        %s484 = scalar_lea.sflag [#allocation3], %s483
        %s485 = sand.u32 %s357, 1
        %s486 = scalar_lea.vmem [#allocation2], %s485
        %p487 = scmp.lt.s32.totalorder %s29, 1
        %s488 = scalar_select %p487, %s29, 1
        %s489 = smul.addr %s488, 4
        %s490 = smul.addr %s489, 8
        %s491 = scalar_lea.vmem %s0, %s490
        %v492 = vld [vmem:[%s491] sm:$0xff]
        %v493 = vld [vmem:[%s491 + $0x8] sm:$0xff]
        %v494 = vld [vmem:[%s491 + $0x10] sm:$0xff]
        %v495 = vld [vmem:[%s491 + $0x18] sm:$0xff]
        %vm500 = vcmask 1046528
        %v501 = vrot.slane %v492, 1
        %v502 = vrot.slane %v493, 1
        %v503 = vsel %vm500, %v501, %v502
        %v504 = vrot.slane %v494, 1
        %v505 = vsel %vm500, %v502, %v504
        %v506 = vrot.slane %v495, 1
        %v507 = vsel %vm500, %v504, %v506
        %508 = vrot.lane.b32.xlu0 %v503, 32
        %v509 = vpop.permute.xlu0 %508
        %510 = vrot.lane.b32.xlu0 %v505, 32
        %v511 = vpop.permute.xlu0 %510
        %512 = vrot.lane.b32.xlu0 %v507, 32
        %v513 = vpop.permute.xlu0 %512
        %514 = vrot.lane.b32.xlu0 %v506, 32
        %v515 = vpop.permute.xlu0 %514
        %vm520 = vcmask 1045504
        %v521 = vrot.slane %v492, 2
        %v522 = vrot.slane %v493, 2
        %v523 = vsel %vm520, %v521, %v522
        %v524 = vrot.slane %v494, 2
        %v525 = vsel %vm520, %v522, %v524
        %v526 = vrot.slane %v495, 2
        %v527 = vsel %vm520, %v524, %v526
        %528 = vrot.lane.b32.xlu0 %v523, 64
        %v529 = vpop.permute.xlu0 %528
        %530 = vrot.lane.b32.xlu0 %v525, 64
        %v531 = vpop.permute.xlu0 %530
        %532 = vrot.lane.b32.xlu0 %v527, 64
        %v533 = vpop.permute.xlu0 %532
        %534 = vrot.lane.b32.xlu0 %v526, 64
        %v535 = vpop.permute.xlu0 %534
        %vm540 = vcmask 1044480
        %v541 = vrot.slane %v492, 3
        %v542 = vrot.slane %v493, 3
        %v543 = vsel %vm540, %v541, %v542
        %v544 = vrot.slane %v494, 3
        %v545 = vsel %vm540, %v542, %v544
        %v546 = vrot.slane %v495, 3
        %v547 = vsel %vm540, %v544, %v546
        %548 = vrot.lane.b32.xlu0 %v543, 96
        %v549 = vpop.permute.xlu0 %548
        %550 = vrot.lane.b32.xlu0 %v545, 96
        %v551 = vpop.permute.xlu0 %550
        %552 = vrot.lane.b32.xlu0 %v547, 96
        %v553 = vpop.permute.xlu0 %552
        %554 = vrot.lane.b32.xlu0 %v546, 96
        %v555 = vpop.permute.xlu0 %554
        %vm560 = vcmask 1043456
        %v561 = vrot.slane %v492, 4
        %v562 = vrot.slane %v493, 4
        %v563 = vsel %vm560, %v561, %v562
        %v564 = vrot.slane %v494, 4
        %v565 = vsel %vm560, %v562, %v564
        %v566 = vrot.slane %v495, 4
        %v567 = vsel %vm560, %v564, %v566
        %vm568 = vcmask 261120
        %v569 = vsel %vm568, %v492, %v509
        %v570 = vsel %vm568, %v493, %v511
        %v571 = vsel %vm568, %v494, %v513
        %v572 = vsel %vm568, %v495, %v515
        %vm573 = vcmask 523264
        %v574 = vsel %vm573, %v569, %v529
        %v575 = vsel %vm573, %v570, %v531
        %v576 = vsel %vm573, %v571, %v533
        %v577 = vsel %vm573, %v572, %v535
        %vm578 = vcmask 785408
        %v579 = vsel %vm578, %v574, %v549
        %v580 = vsel %vm578, %v575, %v551
        %v581 = vsel %vm578, %v576, %v553
        %v582 = vsel %vm578, %v577, %v555
        %v583 = vld [vmem:[%s1] sm:$0xff]
        %v584 = vld [vmem:[%s1 + $0x8] sm:$0xff]
        %v585 = vld [vmem:[%s1 + $0x10] sm:$0xff]
        %v586 = vld [vmem:[%s1 + $0x18] sm:$0xff]
        %v587 = vld [vmem:[%s1 + $0x20] sm:$0xff]
        %v588 = vld [vmem:[%s1 + $0x28] sm:$0xff]
        %v589 = vld [vmem:[%s1 + $0x30] sm:$0xff]
        %v590 = vld [vmem:[%s1 + $0x38] sm:$0xff]
        %v591 = vld [vmem:[%s1 + $0x40] sm:$0xff]
        %v592 = vld [vmem:[%s1 + $0x48] sm:$0xff]
        %v593 = vld [vmem:[%s1 + $0x50] sm:$0xff]
        %v594 = vld [vmem:[%s1 + $0x58] sm:$0xff]
        %v595 = vld [vmem:[%s1 + $0x60] sm:$0xff]
        %v596 = vld [vmem:[%s1 + $0x68] sm:$0xff]
        %v597 = vld [vmem:[%s1 + $0x70] sm:$0xff]
        %v598 = vld [vmem:[%s1 + $0x78] sm:$0xff]
        %v599 = vld [vmem:[%s1 + $0x80] sm:$0xff]
        %v600 = vld [vmem:[%s1 + $0x88] sm:$0xff]
        %v601 = vld [vmem:[%s1 + $0x90] sm:$0xff]
        %v602 = vld [vmem:[%s1 + $0x98] sm:$0xff]
        %v603 = vld [vmem:[%s1 + $0xa0] sm:$0xff]
        %v604 = vld [vmem:[%s1 + $0xa8] sm:$0xff]
        %v605 = vld [vmem:[%s1 + $0xb0] sm:$0xff]
        %v606 = vld [vmem:[%s1 + $0xb8] sm:$0xff]
        %v607 = vld [vmem:[%s1 + $0xc0] sm:$0xff]
        %v608 = vld [vmem:[%s1 + $0xc8] sm:$0xff]
        %v609 = vld [vmem:[%s1 + $0xd0] sm:$0xff]
        %v610 = vld [vmem:[%s1 + $0xd8] sm:$0xff]
        %v611 = vld [vmem:[%s1 + $0xe0] sm:$0xff]
        %v612 = vld [vmem:[%s1 + $0xe8] sm:$0xff]
        %v613 = vld [vmem:[%s1 + $0xf0] sm:$0xff]
        %v614 = vld [vmem:[%s1 + $0xf8] sm:$0xff]
        %v615 = vld [vmem:[%s1 + $0x100] sm:$0xff]
        %v616 = vld [vmem:[%s1 + $0x108] sm:$0xff]
        %v617 = vld [vmem:[%s1 + $0x110] sm:$0xff]
        %v618 = vld [vmem:[%s1 + $0x118] sm:$0xff]
        %v619 = vld [vmem:[%s1 + $0x120] sm:$0xff]
        %v620 = vld [vmem:[%s1 + $0x128] sm:$0xff]
        %v621 = vld [vmem:[%s1 + $0x130] sm:$0xff]
        %v622 = vld [vmem:[%s1 + $0x138] sm:$0xff]
        %v623 = vld [vmem:[%s2] sm:$0x3]
        %v625 = vlaneseq
        %v626 = vshrl.u32 %v625, 7
        %v627 = vsub.s32 0, %v626
        %v628 = vrot.slane %v623, %v627
        %v629 = vlaneseq
        %v630 = vshrl.u32 %v629, 7
        %v631 = vsub.s32 1, %v630
        %v632 = vrot.slane %v623, %v631
        %v635 = vsel %vm568, %v563, 0
        %v637 = vsel %vm568, %v565, 0
        %v639 = vsel %vm568, %v567, 0
        %v641 = vsel %vm568, %v566, 0
        %v643 = vand.u32 %v584, 4294901760
        %644 = vmatprep.subr.mxu0 %v643
        %v645 = vand.u32 %v583, 4294901760
        %646 = vmatpush1.msra.mxu0 %v645
        %v647 = vand.u32 %v586, 4294901760
        %648 = vmatprep.subr.mxu0 %v647
        %v649 = vand.u32 %v585, 4294901760
        %650 = vmatpush1.msra.mxu0 %v649
        %v651 = vand.u32 %v588, 4294901760
        %652 = vmatprep.subr.mxu0 %v651
        %v653 = vand.u32 %v587, 4294901760
        %654 = vmatpush1.msra.mxu0 %v653
        %v655 = vand.u32 %v590, 4294901760
        %656 = vmatprep.subr.mxu0 %v655
        %v657 = vand.u32 %v589, 4294901760
        %658 = vmatpush1.msra.mxu0 %v657
        %v659 = vand.u32 %v592, 4294901760
        %660 = vmatprep.subr.mxu0 %v659
        %v661 = vand.u32 %v591, 4294901760
        %662 = vmatpush1.msra.mxu0 %v661
        %v663 = vand.u32 %v594, 4294901760
        %664 = vmatprep.subr.mxu0 %v663
        %v665 = vand.u32 %v593, 4294901760
        %666 = vmatpush1.msra.mxu0 %v665
        %v667 = vand.u32 %v596, 4294901760
        %668 = vmatprep.subr.mxu0 %v667
        %v669 = vand.u32 %v595, 4294901760
        %670 = vmatpush1.msra.mxu0 %v669
        %v671 = vand.u32 %v598, 4294901760
        %672 = vmatprep.subr.mxu0 %v671
        %v673 = vand.u32 %v597, 4294901760
        %674 = vmatpush1.msra.mxu0 %v673
        %v675 = vand.u32 %v600, 4294901760
        %676 = vmatprep.subr.mxu0 %v675
        %v677 = vand.u32 %v599, 4294901760
        %678 = vmatpush1.msra.mxu0 %v677
        %v679 = vand.u32 %v602, 4294901760
        %680 = vmatprep.subr.mxu0 %v679
        %v681 = vand.u32 %v601, 4294901760
        %682 = vmatpush1.msra.mxu0 %v681
        %v683 = vand.u32 %v604, 4294901760
        %684 = vmatprep.subr.mxu0 %v683
        %v685 = vand.u32 %v603, 4294901760
        %686 = vmatpush1.msra.mxu0 %v685
        %v687 = vand.u32 %v606, 4294901760
        %688 = vmatprep.subr.mxu0 %v687
        %v689 = vand.u32 %v605, 4294901760
        %690 = vmatpush1.msra.mxu0 %v689
        %v691 = vand.u32 %v608, 4294901760
        %692 = vmatprep.subr.mxu0 %v691
        %v693 = vand.u32 %v607, 4294901760
        %694 = vmatpush1.msra.mxu0 %v693
        %v695 = vand.u32 %v610, 4294901760
        %696 = vmatprep.subr.mxu0 %v695
        %v697 = vand.u32 %v609, 4294901760
        %698 = vmatpush1.msra.mxu0 %v697
        %v699 = vand.u32 %v612, 4294901760
        %700 = vmatprep.subr.mxu0 %v699
        %v701 = vand.u32 %v611, 4294901760
        %702 = vmatpush1.msra.mxu0 %v701
        %v703 = vand.u32 %v614, 4294901760
        %704 = vmatprep.subr.mxu0 %v703
        %v705 = vand.u32 %v613, 4294901760
        %706 = vmatpush1.msra.mxu0 %v705
        %v707 = vand.u32 %v616, 4294901760
        %708 = vmatprep.subr.mxu0 %v707
        %v709 = vand.u32 %v615, 4294901760
        %710 = vmatpush1.msra.mxu0 %v709
        %v711 = vand.u32 %v618, 4294901760
        %712 = vmatprep.subr.mxu0 %v711
        %v713 = vand.u32 %v617, 4294901760
        %714 = vmatpush1.msra.mxu0 %v713
        %v715 = vand.u32 %v620, 4294901760
        %716 = vmatprep.subr.mxu0 %v715
        %v717 = vand.u32 %v619, 4294901760
        %718 = vmatpush1.msra.mxu0 %v717
        %v719 = vand.u32 %v622, 4294901760
        %720 = vmatprep.subr.mxu0 %v719
        %v721 = vand.u32 %v621, 4294901760
        %722 = vmatpush1.msra.mxu0 %v721
        %723 = vmatprep.subr.mxu0 0.0
        %724 = vmatpush1.msra.mxu0 0.0
        %725 = vmatprep.subr.mxu0 0.0
        %726 = vmatpush1.msra.mxu0 0.0
        %727 = vmatprep.subr.mxu0 0.0
        %728 = vmatpush1.msra.mxu0 0.0
        %729 = vmatprep.subr.mxu0 0.0
        %730 = vmatpush1.msra.mxu0 0.0
        %731 = vmatprep.subr.mxu0 0.0
        %732 = vmatpush1.msra.mxu0 0.0
        %733 = vmatprep.subr.mxu0 0.0
        %734 = vmatpush1.msra.mxu0 0.0
        %735 = vmatprep.subr.mxu0 0.0
        %736 = vmatpush1.msra.mxu0 0.0
        %737 = vmatprep.subr.mxu0 0.0
        %738 = vmatpush1.msra.mxu0 0.0
        %739 = vmatprep.subr.mxu0 0.0
        %740 = vmatpush1.msra.mxu0 0.0
        %741 = vmatprep.subr.mxu0 0.0
        %742 = vmatpush1.msra.mxu0 0.0
        %743 = vmatprep.subr.mxu0 0.0
        %744 = vmatpush1.msra.mxu0 0.0
        %745 = vmatprep.subr.mxu0 0.0
        %746 = vmatpush1.msra.mxu0 0.0
        %v747 = vand.u32 %v635, 4294901760
        %v748 = vsub.f32 %v635, %v747
        %v749 = vand.u32 %v748, 4294901760
        %v750 = vsub.f32 %v748, %v749
        %v751 = vand.u32 %v750, 4294901760
        %752 = vmatprep.mubr.f32.mxu0 %v751
        %v753 = vand.u32 %v579, 4294901760
        %v754 = vsub.f32 %v579, %v753
        %v755 = vand.u32 %v754, 4294901760
        %v756 = vsub.f32 %v754, %v755
        %v757 = vand.u32 %v756, 4294901760
        %758 = vmatmul.mubr.f32.gmra.mrb[0].mxu0 %v757
        %v759 = vpop.f32.mrb[0].mxu0
        %v760 = vadd.f32 %v628, %v759
        %v761 = vpop.f32.mrb[0].mxu0
        %v762 = vadd.f32 %v632, %v761
        %v763 = vand.u32 %v637, 4294901760
        %v764 = vsub.f32 %v637, %v763
        %v765 = vand.u32 %v764, 4294901760
        %v766 = vsub.f32 %v764, %v765
        %v767 = vand.u32 %v766, 4294901760
        %768 = vmatprep.mubr.f32.mxu0 %v767
        %v769 = vand.u32 %v580, 4294901760
        %v770 = vsub.f32 %v580, %v769
        %v771 = vand.u32 %v770, 4294901760
        %v772 = vsub.f32 %v770, %v771
        %v773 = vand.u32 %v772, 4294901760
        %774 = vmatmul.mubr.f32.gmra.mrb[0].mxu0 %v773
        %v775 = vpop.f32.mrb[0].mxu0
        %v776 = vadd.f32 %v628, %v775
        %v777 = vpop.f32.mrb[0].mxu0
        %v778 = vadd.f32 %v632, %v777
        %v779 = vand.u32 %v639, 4294901760
        %v780 = vsub.f32 %v639, %v779
        %v781 = vand.u32 %v780, 4294901760
        %v782 = vsub.f32 %v780, %v781
        %v783 = vand.u32 %v782, 4294901760
        %784 = vmatprep.mubr.f32.mxu0 %v783
        %v785 = vand.u32 %v581, 4294901760
        %v786 = vsub.f32 %v581, %v785
        %v787 = vand.u32 %v786, 4294901760
        %v788 = vsub.f32 %v786, %v787
        %v789 = vand.u32 %v788, 4294901760
        %790 = vmatmul.mubr.f32.gmra.mrb[0].mxu0 %v789
        %v791 = vpop.f32.mrb[0].mxu0
        %v792 = vadd.f32 %v628, %v791
        %v793 = vpop.f32.mrb[0].mxu0
        %v794 = vadd.f32 %v632, %v793
        %v795 = vand.u32 %v641, 4294901760
        %v796 = vsub.f32 %v641, %v795
        %v797 = vand.u32 %v796, 4294901760
        %v798 = vsub.f32 %v796, %v797
        %v799 = vand.u32 %v798, 4294901760
        %800 = vmatprep.mubr.f32.mxu0 %v799
        %v801 = vand.u32 %v582, 4294901760
        %v802 = vsub.f32 %v582, %v801
        %v803 = vand.u32 %v802, 4294901760
        %v804 = vsub.f32 %v802, %v803
        %v805 = vand.u32 %v804, 4294901760
        %806 = vmatmul.mubr.f32.gmra.mrb[0].mxu0 %v805
        %v807 = vpop.f32.mrb[0].mxu0
        %v808 = vadd.f32 %v628, %v807
        %v809 = vpop.f32.mrb[0].mxu0
        %v810 = vadd.f32 %v632, %v809
        %811 = vdwg.mxu0
        %v812 = vand.u32 %v584, 4294901760
        %v813 = vsub.f32 %v584, %v812
        %v814 = vand.u32 %v813, 4294901760
        %v815 = vsub.f32 %v813, %v814
        %v816 = vand.u32 %v815, 4294901760
        %817 = vmatprep.subr.mxu0 %v816
        %v818 = vand.u32 %v583, 4294901760
        %v819 = vsub.f32 %v583, %v818
        %v820 = vand.u32 %v819, 4294901760
        %v821 = vsub.f32 %v819, %v820
        %v822 = vand.u32 %v821, 4294901760
        %823 = vmatpush1.msra.mxu0 %v822
        %v824 = vand.u32 %v586, 4294901760
        %v825 = vsub.f32 %v586, %v824
        %v826 = vand.u32 %v825, 4294901760
        %v827 = vsub.f32 %v825, %v826
        %v828 = vand.u32 %v827, 4294901760
        %829 = vmatprep.subr.mxu0 %v828
        %v830 = vand.u32 %v585, 4294901760
        %v831 = vsub.f32 %v585, %v830
        %v832 = vand.u32 %v831, 4294901760
        %v833 = vsub.f32 %v831, %v832
        %v834 = vand.u32 %v833, 4294901760
        %835 = vmatpush1.msra.mxu0 %v834
        %v836 = vand.u32 %v588, 4294901760
        %v837 = vsub.f32 %v588, %v836
        %v838 = vand.u32 %v837, 4294901760
        %v839 = vsub.f32 %v837, %v838
        %v840 = vand.u32 %v839, 4294901760
        %841 = vmatprep.subr.mxu0 %v840
        %v842 = vand.u32 %v587, 4294901760
        %v843 = vsub.f32 %v587, %v842
        %v844 = vand.u32 %v843, 4294901760
        %v845 = vsub.f32 %v843, %v844
        %v846 = vand.u32 %v845, 4294901760
        %847 = vmatpush1.msra.mxu0 %v846
        %v848 = vand.u32 %v590, 4294901760
        %v849 = vsub.f32 %v590, %v848
        %v850 = vand.u32 %v849, 4294901760
        %v851 = vsub.f32 %v849, %v850
        %v852 = vand.u32 %v851, 4294901760
        %853 = vmatprep.subr.mxu0 %v852
        %v854 = vand.u32 %v589, 4294901760
        %v855 = vsub.f32 %v589, %v854
        %v856 = vand.u32 %v855, 4294901760
        %v857 = vsub.f32 %v855, %v856
        %v858 = vand.u32 %v857, 4294901760
        %859 = vmatpush1.msra.mxu0 %v858
        %v860 = vand.u32 %v592, 4294901760
        %v861 = vsub.f32 %v592, %v860
        %v862 = vand.u32 %v861, 4294901760
        %v863 = vsub.f32 %v861, %v862
        %v864 = vand.u32 %v863, 4294901760
        %865 = vmatprep.subr.mxu0 %v864
        %v866 = vand.u32 %v591, 4294901760
        %v867 = vsub.f32 %v591, %v866
        %v868 = vand.u32 %v867, 4294901760
        %v869 = vsub.f32 %v867, %v868
        %v870 = vand.u32 %v869, 4294901760
        %871 = vmatpush1.msra.mxu0 %v870
        %v872 = vand.u32 %v594, 4294901760
        %v873 = vsub.f32 %v594, %v872
        %v874 = vand.u32 %v873, 4294901760
        %v875 = vsub.f32 %v873, %v874
        %v876 = vand.u32 %v875, 4294901760
        %877 = vmatprep.subr.mxu0 %v876
        %v878 = vand.u32 %v593, 4294901760
        %v879 = vsub.f32 %v593, %v878
        %v880 = vand.u32 %v879, 4294901760
        %v881 = vsub.f32 %v879, %v880
        %v882 = vand.u32 %v881, 4294901760
        %883 = vmatpush1.msra.mxu0 %v882
        %v884 = vand.u32 %v596, 4294901760
        %v885 = vsub.f32 %v596, %v884
        %v886 = vand.u32 %v885, 4294901760
        %v887 = vsub.f32 %v885, %v886
        %v888 = vand.u32 %v887, 4294901760
        %889 = vmatprep.subr.mxu0 %v888
        %v890 = vand.u32 %v595, 4294901760
        %v891 = vsub.f32 %v595, %v890
        %v892 = vand.u32 %v891, 4294901760
        %v893 = vsub.f32 %v891, %v892
        %v894 = vand.u32 %v893, 4294901760
        %895 = vmatpush1.msra.mxu0 %v894
        %v896 = vand.u32 %v598, 4294901760
        %v897 = vsub.f32 %v598, %v896
        %v898 = vand.u32 %v897, 4294901760
        %v899 = vsub.f32 %v897, %v898
        %v900 = vand.u32 %v899, 4294901760
        %901 = vmatprep.subr.mxu0 %v900
        %v902 = vand.u32 %v597, 4294901760
        %v903 = vsub.f32 %v597, %v902
        %v904 = vand.u32 %v903, 4294901760
        %v905 = vsub.f32 %v903, %v904
        %v906 = vand.u32 %v905, 4294901760
        %907 = vmatpush1.msra.mxu0 %v906
        %v908 = vand.u32 %v600, 4294901760
        %v909 = vsub.f32 %v600, %v908
        %v910 = vand.u32 %v909, 4294901760
        %v911 = vsub.f32 %v909, %v910
        %v912 = vand.u32 %v911, 4294901760
        %913 = vmatprep.subr.mxu0 %v912
        %v914 = vand.u32 %v599, 4294901760
        %v915 = vsub.f32 %v599, %v914
        %v916 = vand.u32 %v915, 4294901760
        %v917 = vsub.f32 %v915, %v916
        %v918 = vand.u32 %v917, 4294901760
        %919 = vmatpush1.msra.mxu0 %v918
        %v920 = vand.u32 %v602, 4294901760
        %v921 = vsub.f32 %v602, %v920
        %v922 = vand.u32 %v921, 4294901760
        %v923 = vsub.f32 %v921, %v922
        %v924 = vand.u32 %v923, 4294901760
        %925 = vmatprep.subr.mxu0 %v924
        %v926 = vand.u32 %v601, 4294901760
        %v927 = vsub.f32 %v601, %v926
        %v928 = vand.u32 %v927, 4294901760
        %v929 = vsub.f32 %v927, %v928
        %v930 = vand.u32 %v929, 4294901760
        %931 = vmatpush1.msra.mxu0 %v930
        %v932 = vand.u32 %v604, 4294901760
        %v933 = vsub.f32 %v604, %v932
        %v934 = vand.u32 %v933, 4294901760
        %v935 = vsub.f32 %v933, %v934
        %v936 = vand.u32 %v935, 4294901760
        %937 = vmatprep.subr.mxu0 %v936
        %v938 = vand.u32 %v603, 4294901760
        %v939 = vsub.f32 %v603, %v938
        %v940 = vand.u32 %v939, 4294901760
        %v941 = vsub.f32 %v939, %v940
        %v942 = vand.u32 %v941, 4294901760
        %943 = vmatpush1.msra.mxu0 %v942
        %v944 = vand.u32 %v606, 4294901760
        %v945 = vsub.f32 %v606, %v944
        %v946 = vand.u32 %v945, 4294901760
        %v947 = vsub.f32 %v945, %v946
        %v948 = vand.u32 %v947, 4294901760
        %949 = vmatprep.subr.mxu0 %v948
        %v950 = vand.u32 %v605, 4294901760
        %v951 = vsub.f32 %v605, %v950
        %v952 = vand.u32 %v951, 4294901760
        %v953 = vsub.f32 %v951, %v952
        %v954 = vand.u32 %v953, 4294901760
        %955 = vmatpush1.msra.mxu0 %v954
        %v956 = vand.u32 %v608, 4294901760
        %v957 = vsub.f32 %v608, %v956
        %v958 = vand.u32 %v957, 4294901760
        %v959 = vsub.f32 %v957, %v958
        %v960 = vand.u32 %v959, 4294901760
        %961 = vmatprep.subr.mxu0 %v960
        %v962 = vand.u32 %v607, 4294901760
        %v963 = vsub.f32 %v607, %v962
        %v964 = vand.u32 %v963, 4294901760
        %v965 = vsub.f32 %v963, %v964
        %v966 = vand.u32 %v965, 4294901760
        %967 = vmatpush1.msra.mxu0 %v966
        %v968 = vand.u32 %v610, 4294901760
        %v969 = vsub.f32 %v610, %v968
        %v970 = vand.u32 %v969, 4294901760
        %v971 = vsub.f32 %v969, %v970
        %v972 = vand.u32 %v971, 4294901760
        %973 = vmatprep.subr.mxu0 %v972
        %v974 = vand.u32 %v609, 4294901760
        %v975 = vsub.f32 %v609, %v974
        %v976 = vand.u32 %v975, 4294901760
        %v977 = vsub.f32 %v975, %v976
        %v978 = vand.u32 %v977, 4294901760
        %979 = vmatpush1.msra.mxu0 %v978
        %v980 = vand.u32 %v612, 4294901760
        %v981 = vsub.f32 %v612, %v980
        %v982 = vand.u32 %v981, 4294901760
        %v983 = vsub.f32 %v981, %v982
        %v984 = vand.u32 %v983, 4294901760
        %985 = vmatprep.subr.mxu0 %v984
        %v986 = vand.u32 %v611, 4294901760
        %v987 = vsub.f32 %v611, %v986
        %v988 = vand.u32 %v987, 4294901760
        %v989 = vsub.f32 %v987, %v988
        %v990 = vand.u32 %v989, 4294901760
        %991 = vmatpush1.msra.mxu0 %v990
        %v992 = vand.u32 %v614, 4294901760
        %v993 = vsub.f32 %v614, %v992
        %v994 = vand.u32 %v993, 4294901760
        %v995 = vsub.f32 %v993, %v994
        %v996 = vand.u32 %v995, 4294901760
        %997 = vmatprep.subr.mxu0 %v996
        %v998 = vand.u32 %v613, 4294901760
        %v999 = vsub.f32 %v613, %v998
        %v1000 = vand.u32 %v999, 4294901760
        %v1001 = vsub.f32 %v999, %v1000
        %v1002 = vand.u32 %v1001, 4294901760
        %1003 = vmatpush1.msra.mxu0 %v1002
        %v1004 = vand.u32 %v616, 4294901760
        %v1005 = vsub.f32 %v616, %v1004
        %v1006 = vand.u32 %v1005, 4294901760
        %v1007 = vsub.f32 %v1005, %v1006
        %v1008 = vand.u32 %v1007, 4294901760
        %1009 = vmatprep.subr.mxu0 %v1008
        %v1010 = vand.u32 %v615, 4294901760
        %v1011 = vsub.f32 %v615, %v1010
        %v1012 = vand.u32 %v1011, 4294901760
        %v1013 = vsub.f32 %v1011, %v1012
        %v1014 = vand.u32 %v1013, 4294901760
        %1015 = vmatpush1.msra.mxu0 %v1014
        %v1016 = vand.u32 %v618, 4294901760
        %v1017 = vsub.f32 %v618, %v1016
        %v1018 = vand.u32 %v1017, 4294901760
        %v1019 = vsub.f32 %v1017, %v1018
        %v1020 = vand.u32 %v1019, 4294901760
        %1021 = vmatprep.subr.mxu0 %v1020
        %v1022 = vand.u32 %v617, 4294901760
        %v1023 = vsub.f32 %v617, %v1022
        %v1024 = vand.u32 %v1023, 4294901760
        %v1025 = vsub.f32 %v1023, %v1024
        %v1026 = vand.u32 %v1025, 4294901760
        %1027 = vmatpush1.msra.mxu0 %v1026
        %v1028 = vand.u32 %v620, 4294901760
        %v1029 = vsub.f32 %v620, %v1028
        %v1030 = vand.u32 %v1029, 4294901760
        %v1031 = vsub.f32 %v1029, %v1030
        %v1032 = vand.u32 %v1031, 4294901760
        %1033 = vmatprep.subr.mxu0 %v1032
        %v1034 = vand.u32 %v619, 4294901760
        %v1035 = vsub.f32 %v619, %v1034
        %v1036 = vand.u32 %v1035, 4294901760
        %v1037 = vsub.f32 %v1035, %v1036
        %v1038 = vand.u32 %v1037, 4294901760
        %1039 = vmatpush1.msra.mxu0 %v1038
        %v1040 = vand.u32 %v622, 4294901760
        %v1041 = vsub.f32 %v622, %v1040
        %v1042 = vand.u32 %v1041, 4294901760
        %v1043 = vsub.f32 %v1041, %v1042
        %v1044 = vand.u32 %v1043, 4294901760
        %1045 = vmatprep.subr.mxu0 %v1044
        %v1046 = vand.u32 %v621, 4294901760
        %v1047 = vsub.f32 %v621, %v1046
        %v1048 = vand.u32 %v1047, 4294901760
        %v1049 = vsub.f32 %v1047, %v1048
        %v1050 = vand.u32 %v1049, 4294901760
        %1051 = vmatpush1.msra.mxu0 %v1050
        %1052 = vmatprep.subr.mxu0 0.0
        %1053 = vmatpush1.msra.mxu0 0.0
        %1054 = vmatprep.subr.mxu0 0.0
        %1055 = vmatpush1.msra.mxu0 0.0
        %1056 = vmatprep.subr.mxu0 0.0
        %1057 = vmatpush1.msra.mxu0 0.0
        %1058 = vmatprep.subr.mxu0 0.0
        %1059 = vmatpush1.msra.mxu0 0.0
        %1060 = vmatprep.subr.mxu0 0.0
        %1061 = vmatpush1.msra.mxu0 0.0
        %1062 = vmatprep.subr.mxu0 0.0
        %1063 = vmatpush1.msra.mxu0 0.0
        %1064 = vmatprep.subr.mxu0 0.0
        %1065 = vmatpush1.msra.mxu0 0.0
        %1066 = vmatprep.subr.mxu0 0.0
        %1067 = vmatpush1.msra.mxu0 0.0
        %1068 = vmatprep.subr.mxu0 0.0
        %1069 = vmatpush1.msra.mxu0 0.0
        %1070 = vmatprep.subr.mxu0 0.0
        %1071 = vmatpush1.msra.mxu0 0.0
        %1072 = vmatprep.subr.mxu0 0.0
        %1073 = vmatpush1.msra.mxu0 0.0
        %1074 = vmatprep.subr.mxu0 0.0
        %1075 = vmatpush1.msra.mxu0 0.0
        %v1076 = vand.u32 %v635, 4294901760
        %1077 = vmatprep.mubr.f32.mxu0 %v1076
        %v1078 = vand.u32 %v579, 4294901760
        %1079 = vmatmul.mubr.f32.gmra.mrb[0].mxu0 %v1078
        %v1080 = vpop.f32.mrb[0].mxu0
        %v1081 = vadd.f32 %v760, %v1080
        %v1082 = vpop.f32.mrb[0].mxu0
        %v1083 = vadd.f32 %v762, %v1082
        %v1084 = vand.u32 %v637, 4294901760
        %1085 = vmatprep.mubr.f32.mxu0 %v1084
        %v1086 = vand.u32 %v580, 4294901760
        %1087 = vmatmul.mubr.f32.gmra.mrb[0].mxu0 %v1086
        %v1088 = vpop.f32.mrb[0].mxu0
        %v1089 = vadd.f32 %v776, %v1088
        %v1090 = vpop.f32.mrb[0].mxu0
        %v1091 = vadd.f32 %v778, %v1090
        %v1092 = vand.u32 %v639, 4294901760
        %1093 = vmatprep.mubr.f32.mxu0 %v1092
        %v1094 = vand.u32 %v581, 4294901760
        %1095 = vmatmul.mubr.f32.gmra.mrb[0].mxu0 %v1094
        %v1096 = vpop.f32.mrb[0].mxu0
        %v1097 = vadd.f32 %v792, %v1096
        %v1098 = vpop.f32.mrb[0].mxu0
        %v1099 = vadd.f32 %v794, %v1098
        %v1100 = vand.u32 %v641, 4294901760
        %1101 = vmatprep.mubr.f32.mxu0 %v1100
        %v1102 = vand.u32 %v582, 4294901760
        %1103 = vmatmul.mubr.f32.gmra.mrb[0].mxu0 %v1102
        %v1104 = vpop.f32.mrb[0].mxu0
        %v1105 = vadd.f32 %v808, %v1104
        %v1106 = vpop.f32.mrb[0].mxu0
        %v1107 = vadd.f32 %v810, %v1106
        %1108 = vdwg.mxu0
        %v1109 = vand.u32 %v584, 4294901760
        %v1110 = vsub.f32 %v584, %v1109
        %1111 = vmatprep.subr.mxu0 %v1110
        %v1112 = vand.u32 %v583, 4294901760
        %v1113 = vsub.f32 %v583, %v1112
        %1114 = vmatpush1.msra.mxu0 %v1113
        %v1115 = vand.u32 %v586, 4294901760
        %v1116 = vsub.f32 %v586, %v1115
        %1117 = vmatprep.subr.mxu0 %v1116
        %v1118 = vand.u32 %v585, 4294901760
        %v1119 = vsub.f32 %v585, %v1118
        %1120 = vmatpush1.msra.mxu0 %v1119
        %v1121 = vand.u32 %v588, 4294901760
        %v1122 = vsub.f32 %v588, %v1121
        %1123 = vmatprep.subr.mxu0 %v1122
        %v1124 = vand.u32 %v587, 4294901760
        %v1125 = vsub.f32 %v587, %v1124
        %1126 = vmatpush1.msra.mxu0 %v1125
        %v1127 = vand.u32 %v590, 4294901760
        %v1128 = vsub.f32 %v590, %v1127
        %1129 = vmatprep.subr.mxu0 %v1128
        %v1130 = vand.u32 %v589, 4294901760
        %v1131 = vsub.f32 %v589, %v1130
        %1132 = vmatpush1.msra.mxu0 %v1131
        %v1133 = vand.u32 %v592, 4294901760
        %v1134 = vsub.f32 %v592, %v1133
        %1135 = vmatprep.subr.mxu0 %v1134
        %v1136 = vand.u32 %v591, 4294901760
        %v1137 = vsub.f32 %v591, %v1136
        %1138 = vmatpush1.msra.mxu0 %v1137
        %v1139 = vand.u32 %v594, 4294901760
        %v1140 = vsub.f32 %v594, %v1139
        %1141 = vmatprep.subr.mxu0 %v1140
        %v1142 = vand.u32 %v593, 4294901760
        %v1143 = vsub.f32 %v593, %v1142
        %1144 = vmatpush1.msra.mxu0 %v1143
        %v1145 = vand.u32 %v596, 4294901760
        %v1146 = vsub.f32 %v596, %v1145
        %1147 = vmatprep.subr.mxu0 %v1146
        %v1148 = vand.u32 %v595, 4294901760
        %v1149 = vsub.f32 %v595, %v1148
        %1150 = vmatpush1.msra.mxu0 %v1149
        %v1151 = vand.u32 %v598, 4294901760
        %v1152 = vsub.f32 %v598, %v1151
        %1153 = vmatprep.subr.mxu0 %v1152
        %v1154 = vand.u32 %v597, 4294901760
        %v1155 = vsub.f32 %v597, %v1154
        %1156 = vmatpush1.msra.mxu0 %v1155
        %v1157 = vand.u32 %v600, 4294901760
        %v1158 = vsub.f32 %v600, %v1157
        %1159 = vmatprep.subr.mxu0 %v1158
        %v1160 = vand.u32 %v599, 4294901760
        %v1161 = vsub.f32 %v599, %v1160
        %1162 = vmatpush1.msra.mxu0 %v1161
        %v1163 = vand.u32 %v602, 4294901760
        %v1164 = vsub.f32 %v602, %v1163
        %1165 = vmatprep.subr.mxu0 %v1164
        %v1166 = vand.u32 %v601, 4294901760
        %v1167 = vsub.f32 %v601, %v1166
        %1168 = vmatpush1.msra.mxu0 %v1167
        %v1169 = vand.u32 %v604, 4294901760
        %v1170 = vsub.f32 %v604, %v1169
        %1171 = vmatprep.subr.mxu0 %v1170
        %v1172 = vand.u32 %v603, 4294901760
        %v1173 = vsub.f32 %v603, %v1172
        %1174 = vmatpush1.msra.mxu0 %v1173
        %v1175 = vand.u32 %v606, 4294901760
        %v1176 = vsub.f32 %v606, %v1175
        %1177 = vmatprep.subr.mxu0 %v1176
        %v1178 = vand.u32 %v605, 4294901760
        %v1179 = vsub.f32 %v605, %v1178
        %1180 = vmatpush1.msra.mxu0 %v1179
        %v1181 = vand.u32 %v608, 4294901760
        %v1182 = vsub.f32 %v608, %v1181
        %1183 = vmatprep.subr.mxu0 %v1182
        %v1184 = vand.u32 %v607, 4294901760
        %v1185 = vsub.f32 %v607, %v1184
        %1186 = vmatpush1.msra.mxu0 %v1185
        %v1187 = vand.u32 %v610, 4294901760
        %v1188 = vsub.f32 %v610, %v1187
        %1189 = vmatprep.subr.mxu0 %v1188
        %v1190 = vand.u32 %v609, 4294901760
        %v1191 = vsub.f32 %v609, %v1190
        %1192 = vmatpush1.msra.mxu0 %v1191
        %v1193 = vand.u32 %v612, 4294901760
        %v1194 = vsub.f32 %v612, %v1193
        %1195 = vmatprep.subr.mxu0 %v1194
        %v1196 = vand.u32 %v611, 4294901760
        %v1197 = vsub.f32 %v611, %v1196
        %1198 = vmatpush1.msra.mxu0 %v1197
        %v1199 = vand.u32 %v614, 4294901760
        %v1200 = vsub.f32 %v614, %v1199
        %1201 = vmatprep.subr.mxu0 %v1200
        %v1202 = vand.u32 %v613, 4294901760
        %v1203 = vsub.f32 %v613, %v1202
        %1204 = vmatpush1.msra.mxu0 %v1203
        %v1205 = vand.u32 %v616, 4294901760
        %v1206 = vsub.f32 %v616, %v1205
        %1207 = vmatprep.subr.mxu0 %v1206
        %v1208 = vand.u32 %v615, 4294901760
        %v1209 = vsub.f32 %v615, %v1208
        %1210 = vmatpush1.msra.mxu0 %v1209
        %v1211 = vand.u32 %v618, 4294901760
        %v1212 = vsub.f32 %v618, %v1211
        %1213 = vmatprep.subr.mxu0 %v1212
        %v1214 = vand.u32 %v617, 4294901760
        %v1215 = vsub.f32 %v617, %v1214
        %1216 = vmatpush1.msra.mxu0 %v1215
        %v1217 = vand.u32 %v620, 4294901760
        %v1218 = vsub.f32 %v620, %v1217
        %1219 = vmatprep.subr.mxu0 %v1218
        %v1220 = vand.u32 %v619, 4294901760
        %v1221 = vsub.f32 %v619, %v1220
        %1222 = vmatpush1.msra.mxu0 %v1221
        %v1223 = vand.u32 %v622, 4294901760
        %v1224 = vsub.f32 %v622, %v1223
        %1225 = vmatprep.subr.mxu0 %v1224
        %v1226 = vand.u32 %v621, 4294901760
        %v1227 = vsub.f32 %v621, %v1226
        %1228 = vmatpush1.msra.mxu0 %v1227
        %1229 = vmatprep.subr.mxu0 0.0
        %1230 = vmatpush1.msra.mxu0 0.0
        %1231 = vmatprep.subr.mxu0 0.0
        %1232 = vmatpush1.msra.mxu0 0.0
        %1233 = vmatprep.subr.mxu0 0.0
        %1234 = vmatpush1.msra.mxu0 0.0
        %1235 = vmatprep.subr.mxu0 0.0
        %1236 = vmatpush1.msra.mxu0 0.0
        %1237 = vmatprep.subr.mxu0 0.0
        %1238 = vmatpush1.msra.mxu0 0.0
        %1239 = vmatprep.subr.mxu0 0.0
        %1240 = vmatpush1.msra.mxu0 0.0
        %1241 = vmatprep.subr.mxu0 0.0
        %1242 = vmatpush1.msra.mxu0 0.0
        %1243 = vmatprep.subr.mxu0 0.0
        %1244 = vmatpush1.msra.mxu0 0.0
        %1245 = vmatprep.subr.mxu0 0.0
        %1246 = vmatpush1.msra.mxu0 0.0
        %1247 = vmatprep.subr.mxu0 0.0
        %1248 = vmatpush1.msra.mxu0 0.0
        %1249 = vmatprep.subr.mxu0 0.0
        %1250 = vmatpush1.msra.mxu0 0.0
        %1251 = vmatprep.subr.mxu0 0.0
        %1252 = vmatpush1.msra.mxu0 0.0
        %v1253 = vand.u32 %v635, 4294901760
        %v1254 = vsub.f32 %v635, %v1253
        %1255 = vmatprep.mubr.f32.mxu0 %v1254
        %v1256 = vand.u32 %v579, 4294901760
        %v1257 = vsub.f32 %v579, %v1256
        %1258 = vmatmul.mubr.f32.gmra.mrb[0].mxu0 %v1257
        %v1259 = vpop.f32.mrb[0].mxu0
        %v1260 = vadd.f32 %v1081, %v1259
        %v1261 = vpop.f32.mrb[0].mxu0
        %v1262 = vadd.f32 %v1083, %v1261
        %v1263 = vand.u32 %v637, 4294901760
        %v1264 = vsub.f32 %v637, %v1263
        %1265 = vmatprep.mubr.f32.mxu0 %v1264
        %v1266 = vand.u32 %v580, 4294901760
        %v1267 = vsub.f32 %v580, %v1266
        %1268 = vmatmul.mubr.f32.gmra.mrb[0].mxu0 %v1267
        %v1269 = vpop.f32.mrb[0].mxu0
        %v1270 = vadd.f32 %v1089, %v1269
        %v1271 = vpop.f32.mrb[0].mxu0
        %v1272 = vadd.f32 %v1091, %v1271
        %v1273 = vand.u32 %v639, 4294901760
        %v1274 = vsub.f32 %v639, %v1273
        %1275 = vmatprep.mubr.f32.mxu0 %v1274
        %v1276 = vand.u32 %v581, 4294901760
        %v1277 = vsub.f32 %v581, %v1276
        %1278 = vmatmul.mubr.f32.gmra.mrb[0].mxu0 %v1277
        %v1279 = vpop.f32.mrb[0].mxu0
        %v1280 = vadd.f32 %v1097, %v1279
        %v1281 = vpop.f32.mrb[0].mxu0
        %v1282 = vadd.f32 %v1099, %v1281
        %v1283 = vand.u32 %v641, 4294901760
        %v1284 = vsub.f32 %v641, %v1283
        %1285 = vmatprep.mubr.f32.mxu0 %v1284
        %v1286 = vand.u32 %v582, 4294901760
        %v1287 = vsub.f32 %v582, %v1286
        %1288 = vmatmul.mubr.f32.gmra.mrb[0].mxu0 %v1287
        %v1289 = vpop.f32.mrb[0].mxu0
        %v1290 = vadd.f32 %v1105, %v1289
        %v1291 = vpop.f32.mrb[0].mxu0
        %v1292 = vadd.f32 %v1107, %v1291
        %1293 = vdwg.mxu0
        %v1294 = vand.u32 %v584, 4294901760
        %1295 = vmatprep.subr.mxu0 %v1294
        %v1296 = vand.u32 %v583, 4294901760
        %1297 = vmatpush1.msra.mxu0 %v1296
        %v1298 = vand.u32 %v586, 4294901760
        %1299 = vmatprep.subr.mxu0 %v1298
        %v1300 = vand.u32 %v585, 4294901760
        %1301 = vmatpush1.msra.mxu0 %v1300
        %v1302 = vand.u32 %v588, 4294901760
        %1303 = vmatprep.subr.mxu0 %v1302
        %v1304 = vand.u32 %v587, 4294901760
        %1305 = vmatpush1.msra.mxu0 %v1304
        %v1306 = vand.u32 %v590, 4294901760
        %1307 = vmatprep.subr.mxu0 %v1306
        %v1308 = vand.u32 %v589, 4294901760
        %1309 = vmatpush1.msra.mxu0 %v1308
        %v1310 = vand.u32 %v592, 4294901760
        %1311 = vmatprep.subr.mxu0 %v1310
        %v1312 = vand.u32 %v591, 4294901760
        %1313 = vmatpush1.msra.mxu0 %v1312
        %v1314 = vand.u32 %v594, 4294901760
        %1315 = vmatprep.subr.mxu0 %v1314
        %v1316 = vand.u32 %v593, 4294901760
        %1317 = vmatpush1.msra.mxu0 %v1316
        %v1318 = vand.u32 %v596, 4294901760
        %1319 = vmatprep.subr.mxu0 %v1318
        %v1320 = vand.u32 %v595, 4294901760
        %1321 = vmatpush1.msra.mxu0 %v1320
        %v1322 = vand.u32 %v598, 4294901760
        %1323 = vmatprep.subr.mxu0 %v1322
        %v1324 = vand.u32 %v597, 4294901760
        %1325 = vmatpush1.msra.mxu0 %v1324
        %v1326 = vand.u32 %v600, 4294901760
        %1327 = vmatprep.subr.mxu0 %v1326
        %v1328 = vand.u32 %v599, 4294901760
        %1329 = vmatpush1.msra.mxu0 %v1328
        %v1330 = vand.u32 %v602, 4294901760
        %1331 = vmatprep.subr.mxu0 %v1330
        %v1332 = vand.u32 %v601, 4294901760
        %1333 = vmatpush1.msra.mxu0 %v1332
        %v1334 = vand.u32 %v604, 4294901760
        %1335 = vmatprep.subr.mxu0 %v1334
        %v1336 = vand.u32 %v603, 4294901760
        %1337 = vmatpush1.msra.mxu0 %v1336
        %v1338 = vand.u32 %v606, 4294901760
        %1339 = vmatprep.subr.mxu0 %v1338
        %v1340 = vand.u32 %v605, 4294901760
        %1341 = vmatpush1.msra.mxu0 %v1340
        %v1342 = vand.u32 %v608, 4294901760
        %1343 = vmatprep.subr.mxu0 %v1342
        %v1344 = vand.u32 %v607, 4294901760
        %1345 = vmatpush1.msra.mxu0 %v1344
        %v1346 = vand.u32 %v610, 4294901760
        %1347 = vmatprep.subr.mxu0 %v1346
        %v1348 = vand.u32 %v609, 4294901760
        %1349 = vmatpush1.msra.mxu0 %v1348
        %v1350 = vand.u32 %v612, 4294901760
        %1351 = vmatprep.subr.mxu0 %v1350
        %v1352 = vand.u32 %v611, 4294901760
        %1353 = vmatpush1.msra.mxu0 %v1352
        %v1354 = vand.u32 %v614, 4294901760
        %1355 = vmatprep.subr.mxu0 %v1354
        %v1356 = vand.u32 %v613, 4294901760
        %1357 = vmatpush1.msra.mxu0 %v1356
        %v1358 = vand.u32 %v616, 4294901760
        %1359 = vmatprep.subr.mxu0 %v1358
        %v1360 = vand.u32 %v615, 4294901760
        %1361 = vmatpush1.msra.mxu0 %v1360
        %v1362 = vand.u32 %v618, 4294901760
        %1363 = vmatprep.subr.mxu0 %v1362
        %v1364 = vand.u32 %v617, 4294901760
        %1365 = vmatpush1.msra.mxu0 %v1364
        %v1366 = vand.u32 %v620, 4294901760
        %1367 = vmatprep.subr.mxu0 %v1366
        %v1368 = vand.u32 %v619, 4294901760
        %1369 = vmatpush1.msra.mxu0 %v1368
        %v1370 = vand.u32 %v622, 4294901760
        %1371 = vmatprep.subr.mxu0 %v1370
        %v1372 = vand.u32 %v621, 4294901760
        %1373 = vmatpush1.msra.mxu0 %v1372
        %1374 = vmatprep.subr.mxu0 0.0
        %1375 = vmatpush1.msra.mxu0 0.0
        %1376 = vmatprep.subr.mxu0 0.0
        %1377 = vmatpush1.msra.mxu0 0.0
        %1378 = vmatprep.subr.mxu0 0.0
        %1379 = vmatpush1.msra.mxu0 0.0
        %1380 = vmatprep.subr.mxu0 0.0
        %1381 = vmatpush1.msra.mxu0 0.0
        %1382 = vmatprep.subr.mxu0 0.0
        %1383 = vmatpush1.msra.mxu0 0.0
        %1384 = vmatprep.subr.mxu0 0.0
        %1385 = vmatpush1.msra.mxu0 0.0
        %1386 = vmatprep.subr.mxu0 0.0
        %1387 = vmatpush1.msra.mxu0 0.0
        %1388 = vmatprep.subr.mxu0 0.0
        %1389 = vmatpush1.msra.mxu0 0.0
        %1390 = vmatprep.subr.mxu0 0.0
        %1391 = vmatpush1.msra.mxu0 0.0
        %1392 = vmatprep.subr.mxu0 0.0
        %1393 = vmatpush1.msra.mxu0 0.0
        %1394 = vmatprep.subr.mxu0 0.0
        %1395 = vmatpush1.msra.mxu0 0.0
        %1396 = vmatprep.subr.mxu0 0.0
        %1397 = vmatpush1.msra.mxu0 0.0
        %v1398 = vand.u32 %v635, 4294901760
        %v1399 = vsub.f32 %v635, %v1398
        %v1400 = vand.u32 %v1399, 4294901760
        %1401 = vmatprep.mubr.f32.mxu0 %v1400
        %v1402 = vand.u32 %v579, 4294901760
        %v1403 = vsub.f32 %v579, %v1402
        %v1404 = vand.u32 %v1403, 4294901760
        %1405 = vmatmul.mubr.f32.gmra.mrb[0].mxu0 %v1404
        %v1406 = vpop.f32.mrb[0].mxu0
        %v1407 = vadd.f32 %v1260, %v1406
        %v1408 = vpop.f32.mrb[0].mxu0
        %v1409 = vadd.f32 %v1262, %v1408
        %v1410 = vand.u32 %v637, 4294901760
        %v1411 = vsub.f32 %v637, %v1410
        %v1412 = vand.u32 %v1411, 4294901760
        %1413 = vmatprep.mubr.f32.mxu0 %v1412
        %v1414 = vand.u32 %v580, 4294901760
        %v1415 = vsub.f32 %v580, %v1414
        %v1416 = vand.u32 %v1415, 4294901760
        %1417 = vmatmul.mubr.f32.gmra.mrb[0].mxu0 %v1416
        %v1418 = vpop.f32.mrb[0].mxu0
        %v1419 = vadd.f32 %v1270, %v1418
        %v1420 = vpop.f32.mrb[0].mxu0
        %v1421 = vadd.f32 %v1272, %v1420
        %v1422 = vand.u32 %v639, 4294901760
        %v1423 = vsub.f32 %v639, %v1422
        %v1424 = vand.u32 %v1423, 4294901760
        %1425 = vmatprep.mubr.f32.mxu0 %v1424
        %v1426 = vand.u32 %v581, 4294901760
        %v1427 = vsub.f32 %v581, %v1426
        %v1428 = vand.u32 %v1427, 4294901760
        %1429 = vmatmul.mubr.f32.gmra.mrb[0].mxu0 %v1428
        %v1430 = vpop.f32.mrb[0].mxu0
        %v1431 = vadd.f32 %v1280, %v1430
        %v1432 = vpop.f32.mrb[0].mxu0
        %v1433 = vadd.f32 %v1282, %v1432
        %v1434 = vand.u32 %v641, 4294901760
        %v1435 = vsub.f32 %v641, %v1434
        %v1436 = vand.u32 %v1435, 4294901760
        %1437 = vmatprep.mubr.f32.mxu0 %v1436
        %v1438 = vand.u32 %v582, 4294901760
        %v1439 = vsub.f32 %v582, %v1438
        %v1440 = vand.u32 %v1439, 4294901760
        %1441 = vmatmul.mubr.f32.gmra.mrb[0].mxu0 %v1440
        %v1442 = vpop.f32.mrb[0].mxu0
        %v1443 = vadd.f32 %v1290, %v1442
        %v1444 = vpop.f32.mrb[0].mxu0
        %v1445 = vadd.f32 %v1292, %v1444
        %1446 = vdwg.mxu0
        %v1447 = vand.u32 %v584, 4294901760
        %v1448 = vsub.f32 %v584, %v1447
        %v1449 = vand.u32 %v1448, 4294901760
        %1450 = vmatprep.subr.mxu0 %v1449
        %v1451 = vand.u32 %v583, 4294901760
        %v1452 = vsub.f32 %v583, %v1451
        %v1453 = vand.u32 %v1452, 4294901760
        %1454 = vmatpush1.msra.mxu0 %v1453
        %v1455 = vand.u32 %v586, 4294901760
        %v1456 = vsub.f32 %v586, %v1455
        %v1457 = vand.u32 %v1456, 4294901760
        %1458 = vmatprep.subr.mxu0 %v1457
        %v1459 = vand.u32 %v585, 4294901760
        %v1460 = vsub.f32 %v585, %v1459
        %v1461 = vand.u32 %v1460, 4294901760
        %1462 = vmatpush1.msra.mxu0 %v1461
        %v1463 = vand.u32 %v588, 4294901760
        %v1464 = vsub.f32 %v588, %v1463
        %v1465 = vand.u32 %v1464, 4294901760
        %1466 = vmatprep.subr.mxu0 %v1465
        %v1467 = vand.u32 %v587, 4294901760
        %v1468 = vsub.f32 %v587, %v1467
        %v1469 = vand.u32 %v1468, 4294901760
        %1470 = vmatpush1.msra.mxu0 %v1469
        %v1471 = vand.u32 %v590, 4294901760
        %v1472 = vsub.f32 %v590, %v1471
        %v1473 = vand.u32 %v1472, 4294901760
        %1474 = vmatprep.subr.mxu0 %v1473
        %v1475 = vand.u32 %v589, 4294901760
        %v1476 = vsub.f32 %v589, %v1475
        %v1477 = vand.u32 %v1476, 4294901760
        %1478 = vmatpush1.msra.mxu0 %v1477
        %v1479 = vand.u32 %v592, 4294901760
        %v1480 = vsub.f32 %v592, %v1479
        %v1481 = vand.u32 %v1480, 4294901760
        %1482 = vmatprep.subr.mxu0 %v1481
        %v1483 = vand.u32 %v591, 4294901760
        %v1484 = vsub.f32 %v591, %v1483
        %v1485 = vand.u32 %v1484, 4294901760
        %1486 = vmatpush1.msra.mxu0 %v1485
        %v1487 = vand.u32 %v594, 4294901760
        %v1488 = vsub.f32 %v594, %v1487
        %v1489 = vand.u32 %v1488, 4294901760
        %1490 = vmatprep.subr.mxu0 %v1489
        %v1491 = vand.u32 %v593, 4294901760
        %v1492 = vsub.f32 %v593, %v1491
        %v1493 = vand.u32 %v1492, 4294901760
        %1494 = vmatpush1.msra.mxu0 %v1493
        %v1495 = vand.u32 %v596, 4294901760
        %v1496 = vsub.f32 %v596, %v1495
        %v1497 = vand.u32 %v1496, 4294901760
        %1498 = vmatprep.subr.mxu0 %v1497
        %v1499 = vand.u32 %v595, 4294901760
        %v1500 = vsub.f32 %v595, %v1499
        %v1501 = vand.u32 %v1500, 4294901760
        %1502 = vmatpush1.msra.mxu0 %v1501
        %v1503 = vand.u32 %v598, 4294901760
        %v1504 = vsub.f32 %v598, %v1503
        %v1505 = vand.u32 %v1504, 4294901760
        %1506 = vmatprep.subr.mxu0 %v1505
        %v1507 = vand.u32 %v597, 4294901760
        %v1508 = vsub.f32 %v597, %v1507
        %v1509 = vand.u32 %v1508, 4294901760
        %1510 = vmatpush1.msra.mxu0 %v1509
        %v1511 = vand.u32 %v600, 4294901760
        %v1512 = vsub.f32 %v600, %v1511
        %v1513 = vand.u32 %v1512, 4294901760
        %1514 = vmatprep.subr.mxu0 %v1513
        %v1515 = vand.u32 %v599, 4294901760
        %v1516 = vsub.f32 %v599, %v1515
        %v1517 = vand.u32 %v1516, 4294901760
        %1518 = vmatpush1.msra.mxu0 %v1517
        %v1519 = vand.u32 %v602, 4294901760
        %v1520 = vsub.f32 %v602, %v1519
        %v1521 = vand.u32 %v1520, 4294901760
        %1522 = vmatprep.subr.mxu0 %v1521
        %v1523 = vand.u32 %v601, 4294901760
        %v1524 = vsub.f32 %v601, %v1523
        %v1525 = vand.u32 %v1524, 4294901760
        %1526 = vmatpush1.msra.mxu0 %v1525
        %v1527 = vand.u32 %v604, 4294901760
        %v1528 = vsub.f32 %v604, %v1527
        %v1529 = vand.u32 %v1528, 4294901760
        %1530 = vmatprep.subr.mxu0 %v1529
        %v1531 = vand.u32 %v603, 4294901760
        %v1532 = vsub.f32 %v603, %v1531
        %v1533 = vand.u32 %v1532, 4294901760
        %1534 = vmatpush1.msra.mxu0 %v1533
        %v1535 = vand.u32 %v606, 4294901760
        %v1536 = vsub.f32 %v606, %v1535
        %v1537 = vand.u32 %v1536, 4294901760
        %1538 = vmatprep.subr.mxu0 %v1537
        %v1539 = vand.u32 %v605, 4294901760
        %v1540 = vsub.f32 %v605, %v1539
        %v1541 = vand.u32 %v1540, 4294901760
        %1542 = vmatpush1.msra.mxu0 %v1541
        %v1543 = vand.u32 %v608, 4294901760
        %v1544 = vsub.f32 %v608, %v1543
        %v1545 = vand.u32 %v1544, 4294901760
        %1546 = vmatprep.subr.mxu0 %v1545
        %v1547 = vand.u32 %v607, 4294901760
        %v1548 = vsub.f32 %v607, %v1547
        %v1549 = vand.u32 %v1548, 4294901760
        %1550 = vmatpush1.msra.mxu0 %v1549
        %v1551 = vand.u32 %v610, 4294901760
        %v1552 = vsub.f32 %v610, %v1551
        %v1553 = vand.u32 %v1552, 4294901760
        %1554 = vmatprep.subr.mxu0 %v1553
        %v1555 = vand.u32 %v609, 4294901760
        %v1556 = vsub.f32 %v609, %v1555
        %v1557 = vand.u32 %v1556, 4294901760
        %1558 = vmatpush1.msra.mxu0 %v1557
        %v1559 = vand.u32 %v612, 4294901760
        %v1560 = vsub.f32 %v612, %v1559
        %v1561 = vand.u32 %v1560, 4294901760
        %1562 = vmatprep.subr.mxu0 %v1561
        %v1563 = vand.u32 %v611, 4294901760
        %v1564 = vsub.f32 %v611, %v1563
        %v1565 = vand.u32 %v1564, 4294901760
        %1566 = vmatpush1.msra.mxu0 %v1565
        %v1567 = vand.u32 %v614, 4294901760
        %v1568 = vsub.f32 %v614, %v1567
        %v1569 = vand.u32 %v1568, 4294901760
        %1570 = vmatprep.subr.mxu0 %v1569
        %v1571 = vand.u32 %v613, 4294901760
        %v1572 = vsub.f32 %v613, %v1571
        %v1573 = vand.u32 %v1572, 4294901760
        %1574 = vmatpush1.msra.mxu0 %v1573
        %v1575 = vand.u32 %v616, 4294901760
        %v1576 = vsub.f32 %v616, %v1575
        %v1577 = vand.u32 %v1576, 4294901760
        %1578 = vmatprep.subr.mxu0 %v1577
        %v1579 = vand.u32 %v615, 4294901760
        %v1580 = vsub.f32 %v615, %v1579
        %v1581 = vand.u32 %v1580, 4294901760
        %1582 = vmatpush1.msra.mxu0 %v1581
        %v1583 = vand.u32 %v618, 4294901760
        %v1584 = vsub.f32 %v618, %v1583
        %v1585 = vand.u32 %v1584, 4294901760
        %1586 = vmatprep.subr.mxu0 %v1585
        %v1587 = vand.u32 %v617, 4294901760
        %v1588 = vsub.f32 %v617, %v1587
        %v1589 = vand.u32 %v1588, 4294901760
        %1590 = vmatpush1.msra.mxu0 %v1589
        %v1591 = vand.u32 %v620, 4294901760
        %v1592 = vsub.f32 %v620, %v1591
        %v1593 = vand.u32 %v1592, 4294901760
        %1594 = vmatprep.subr.mxu0 %v1593
        %v1595 = vand.u32 %v619, 4294901760
        %v1596 = vsub.f32 %v619, %v1595
        %v1597 = vand.u32 %v1596, 4294901760
        %1598 = vmatpush1.msra.mxu0 %v1597
        %v1599 = vand.u32 %v622, 4294901760
        %v1600 = vsub.f32 %v622, %v1599
        %v1601 = vand.u32 %v1600, 4294901760
        %1602 = vmatprep.subr.mxu0 %v1601
        %v1603 = vand.u32 %v621, 4294901760
        %v1604 = vsub.f32 %v621, %v1603
        %v1605 = vand.u32 %v1604, 4294901760
        %1606 = vmatpush1.msra.mxu0 %v1605
        %1607 = vmatprep.subr.mxu0 0.0
        %1608 = vmatpush1.msra.mxu0 0.0
        %1609 = vmatprep.subr.mxu0 0.0
        %1610 = vmatpush1.msra.mxu0 0.0
        %1611 = vmatprep.subr.mxu0 0.0
        %1612 = vmatpush1.msra.mxu0 0.0
        %1613 = vmatprep.subr.mxu0 0.0
        %1614 = vmatpush1.msra.mxu0 0.0
        %1615 = vmatprep.subr.mxu0 0.0
        %1616 = vmatpush1.msra.mxu0 0.0
        %1617 = vmatprep.subr.mxu0 0.0
        %1618 = vmatpush1.msra.mxu0 0.0
        %1619 = vmatprep.subr.mxu0 0.0
        %1620 = vmatpush1.msra.mxu0 0.0
        %1621 = vmatprep.subr.mxu0 0.0
        %1622 = vmatpush1.msra.mxu0 0.0
        %1623 = vmatprep.subr.mxu0 0.0
        %1624 = vmatpush1.msra.mxu0 0.0
        %1625 = vmatprep.subr.mxu0 0.0
        %1626 = vmatpush1.msra.mxu0 0.0
        %1627 = vmatprep.subr.mxu0 0.0
        %1628 = vmatpush1.msra.mxu0 0.0
        %1629 = vmatprep.subr.mxu0 0.0
        %1630 = vmatpush1.msra.mxu0 0.0
        %v1631 = vand.u32 %v635, 4294901760
        %1632 = vmatprep.mubr.f32.mxu0 %v1631
        %v1633 = vand.u32 %v579, 4294901760
        %1634 = vmatmul.mubr.f32.gmra.mrb[0].mxu0 %v1633
        %v1635 = vpop.f32.mrb[0].mxu0
        %v1636 = vadd.f32 %v1407, %v1635
        %v1637 = vpop.f32.mrb[0].mxu0
        %v1638 = vadd.f32 %v1409, %v1637
        %v1639 = vand.u32 %v637, 4294901760
        %1640 = vmatprep.mubr.f32.mxu0 %v1639
        %v1641 = vand.u32 %v580, 4294901760
        %1642 = vmatmul.mubr.f32.gmra.mrb[0].mxu0 %v1641
        %v1643 = vpop.f32.mrb[0].mxu0
        %v1644 = vadd.f32 %v1419, %v1643
        %v1645 = vpop.f32.mrb[0].mxu0
        %v1646 = vadd.f32 %v1421, %v1645
        %v1647 = vand.u32 %v639, 4294901760
        %1648 = vmatprep.mubr.f32.mxu0 %v1647
        %v1649 = vand.u32 %v581, 4294901760
        %1650 = vmatmul.mubr.f32.gmra.mrb[0].mxu0 %v1649
        %v1651 = vpop.f32.mrb[0].mxu0
        %v1652 = vadd.f32 %v1431, %v1651
        %v1653 = vpop.f32.mrb[0].mxu0
        %v1654 = vadd.f32 %v1433, %v1653
        %v1655 = vand.u32 %v641, 4294901760
        %1656 = vmatprep.mubr.f32.mxu0 %v1655
        %v1657 = vand.u32 %v582, 4294901760
        %1658 = vmatmul.mubr.f32.gmra.mrb[0].mxu0 %v1657
        %v1659 = vpop.f32.mrb[0].mxu0
        %v1660 = vadd.f32 %v1443, %v1659
        %v1661 = vpop.f32.mrb[0].mxu0
        %v1662 = vadd.f32 %v1445, %v1661
        %1663 = vdwg.mxu0
        %v1664 = vand.u32 %v584, 4294901760
        %1665 = vmatprep.subr.mxu0 %v1664
        %v1666 = vand.u32 %v583, 4294901760
        %1667 = vmatpush1.msra.mxu0 %v1666
        %v1668 = vand.u32 %v586, 4294901760
        %1669 = vmatprep.subr.mxu0 %v1668
        %v1670 = vand.u32 %v585, 4294901760
        %1671 = vmatpush1.msra.mxu0 %v1670
        %v1672 = vand.u32 %v588, 4294901760
        %1673 = vmatprep.subr.mxu0 %v1672
        %v1674 = vand.u32 %v587, 4294901760
        %1675 = vmatpush1.msra.mxu0 %v1674
        %v1676 = vand.u32 %v590, 4294901760
        %1677 = vmatprep.subr.mxu0 %v1676
        %v1678 = vand.u32 %v589, 4294901760
        %1679 = vmatpush1.msra.mxu0 %v1678
        %v1680 = vand.u32 %v592, 4294901760
        %1681 = vmatprep.subr.mxu0 %v1680
        %v1682 = vand.u32 %v591, 4294901760
        %1683 = vmatpush1.msra.mxu0 %v1682
        %v1684 = vand.u32 %v594, 4294901760
        %1685 = vmatprep.subr.mxu0 %v1684
        %v1686 = vand.u32 %v593, 4294901760
        %1687 = vmatpush1.msra.mxu0 %v1686
        %v1688 = vand.u32 %v596, 4294901760
        %1689 = vmatprep.subr.mxu0 %v1688
        %v1690 = vand.u32 %v595, 4294901760
        %1691 = vmatpush1.msra.mxu0 %v1690
        %v1692 = vand.u32 %v598, 4294901760
        %1693 = vmatprep.subr.mxu0 %v1692
        %v1694 = vand.u32 %v597, 4294901760
        %1695 = vmatpush1.msra.mxu0 %v1694
        %v1696 = vand.u32 %v600, 4294901760
        %1697 = vmatprep.subr.mxu0 %v1696
        %v1698 = vand.u32 %v599, 4294901760
        %1699 = vmatpush1.msra.mxu0 %v1698
        %v1700 = vand.u32 %v602, 4294901760
        %1701 = vmatprep.subr.mxu0 %v1700
        %v1702 = vand.u32 %v601, 4294901760
        %1703 = vmatpush1.msra.mxu0 %v1702
        %v1704 = vand.u32 %v604, 4294901760
        %1705 = vmatprep.subr.mxu0 %v1704
        %v1706 = vand.u32 %v603, 4294901760
        %1707 = vmatpush1.msra.mxu0 %v1706
        %v1708 = vand.u32 %v606, 4294901760
        %1709 = vmatprep.subr.mxu0 %v1708
        %v1710 = vand.u32 %v605, 4294901760
        %1711 = vmatpush1.msra.mxu0 %v1710
        %v1712 = vand.u32 %v608, 4294901760
        %1713 = vmatprep.subr.mxu0 %v1712
        %v1714 = vand.u32 %v607, 4294901760
        %1715 = vmatpush1.msra.mxu0 %v1714
        %v1716 = vand.u32 %v610, 4294901760
        %1717 = vmatprep.subr.mxu0 %v1716
        %v1718 = vand.u32 %v609, 4294901760
        %1719 = vmatpush1.msra.mxu0 %v1718
        %v1720 = vand.u32 %v612, 4294901760
        %1721 = vmatprep.subr.mxu0 %v1720
        %v1722 = vand.u32 %v611, 4294901760
        %1723 = vmatpush1.msra.mxu0 %v1722
        %v1724 = vand.u32 %v614, 4294901760
        %1725 = vmatprep.subr.mxu0 %v1724
        %v1726 = vand.u32 %v613, 4294901760
        %1727 = vmatpush1.msra.mxu0 %v1726
        %v1728 = vand.u32 %v616, 4294901760
        %1729 = vmatprep.subr.mxu0 %v1728
        %v1730 = vand.u32 %v615, 4294901760
        %1731 = vmatpush1.msra.mxu0 %v1730
        %v1732 = vand.u32 %v618, 4294901760
        %1733 = vmatprep.subr.mxu0 %v1732
        %v1734 = vand.u32 %v617, 4294901760
        %1735 = vmatpush1.msra.mxu0 %v1734
        %v1736 = vand.u32 %v620, 4294901760
        %1737 = vmatprep.subr.mxu0 %v1736
        %v1738 = vand.u32 %v619, 4294901760
        %1739 = vmatpush1.msra.mxu0 %v1738
        %v1740 = vand.u32 %v622, 4294901760
        %1741 = vmatprep.subr.mxu0 %v1740
        %v1742 = vand.u32 %v621, 4294901760
        %1743 = vmatpush1.msra.mxu0 %v1742
        %1744 = vmatprep.subr.mxu0 0.0
        %1745 = vmatpush1.msra.mxu0 0.0
        %1746 = vmatprep.subr.mxu0 0.0
        %1747 = vmatpush1.msra.mxu0 0.0
        %1748 = vmatprep.subr.mxu0 0.0
        %1749 = vmatpush1.msra.mxu0 0.0
        %1750 = vmatprep.subr.mxu0 0.0
        %1751 = vmatpush1.msra.mxu0 0.0
        %1752 = vmatprep.subr.mxu0 0.0
        %1753 = vmatpush1.msra.mxu0 0.0
        %1754 = vmatprep.subr.mxu0 0.0
        %1755 = vmatpush1.msra.mxu0 0.0
        %1756 = vmatprep.subr.mxu0 0.0
        %1757 = vmatpush1.msra.mxu0 0.0
        %1758 = vmatprep.subr.mxu0 0.0
        %1759 = vmatpush1.msra.mxu0 0.0
        %1760 = vmatprep.subr.mxu0 0.0
        %1761 = vmatpush1.msra.mxu0 0.0
        %1762 = vmatprep.subr.mxu0 0.0
        %1763 = vmatpush1.msra.mxu0 0.0
        %1764 = vmatprep.subr.mxu0 0.0
        %1765 = vmatpush1.msra.mxu0 0.0
        %1766 = vmatprep.subr.mxu0 0.0
        %1767 = vmatpush1.msra.mxu0 0.0
        %v1768 = vand.u32 %v635, 4294901760
        %1769 = vmatprep.mubr.f32.mxu0 %v1768
        %v1770 = vand.u32 %v579, 4294901760
        %1771 = vmatmul.mubr.f32.gmra.mrb[0].mxu0 %v1770
        %v1772 = vpop.f32.mrb[0].mxu0
        %v1773 = vadd.f32 %v1636, %v1772
        %v1774 = vpop.f32.mrb[0].mxu0
        %v1775 = vadd.f32 %v1638, %v1774
        %v1776 = vand.u32 %v637, 4294901760
        %1777 = vmatprep.mubr.f32.mxu0 %v1776
        %v1778 = vand.u32 %v580, 4294901760
        %1779 = vmatmul.mubr.f32.gmra.mrb[0].mxu0 %v1778
        %v1780 = vpop.f32.mrb[0].mxu0
        %v1781 = vadd.f32 %v1644, %v1780
        %v1782 = vpop.f32.mrb[0].mxu0
        %v1783 = vadd.f32 %v1646, %v1782
        %v1784 = vand.u32 %v639, 4294901760
        %1785 = vmatprep.mubr.f32.mxu0 %v1784
        %v1786 = vand.u32 %v581, 4294901760
        %1787 = vmatmul.mubr.f32.gmra.mrb[0].mxu0 %v1786
        %v1788 = vpop.f32.mrb[0].mxu0
        %v1789 = vadd.f32 %v1652, %v1788
        %v1790 = vpop.f32.mrb[0].mxu0
        %v1791 = vadd.f32 %v1654, %v1790
        %v1792 = vand.u32 %v641, 4294901760
        %1793 = vmatprep.mubr.f32.mxu0 %v1792
        %v1794 = vand.u32 %v582, 4294901760
        %1795 = vmatmul.mubr.f32.gmra.mrb[0].mxu0 %v1794
        %v1796 = vpop.f32.mrb[0].mxu0
        %v1797 = vadd.f32 %v1660, %v1796
        %v1798 = vpop.f32.mrb[0].mxu0
        %v1799 = vadd.f32 %v1662, %v1798
        %1800 = vdwg.mxu0
        %v1801 = vmax.f32 %v1773, 0.0
        %v1802 = vmax.f32 %v1775, 0.0
        %v1803 = vmax.f32 %v1781, 0.0
        %v1804 = vmax.f32 %v1783, 0.0
        %v1805 = vmax.f32 %v1789, 0.0
        %v1806 = vmax.f32 %v1791, 0.0
        %v1807 = vmax.f32 %v1797, 0.0
        %v1808 = vmax.f32 %v1799, 0.0
        %v1809 = vld [vmem:[%s4] sm:$0xff]
        %v1810 = vld [vmem:[%s4 + $0x8] sm:$0x3f]
        %v1811 = vld [vmem:[%s3] sm:$0xff]
        %v1812 = vld [vmem:[%s3 + $0x8] sm:$0xff]
        %v1813 = vld [vmem:[%s3 + $0x10] sm:$0xff]
        %v1814 = vld [vmem:[%s3 + $0x18] sm:$0xff]
        %v1815 = vld [vmem:[%s3 + $0x20] sm:$0xff]
        %v1816 = vld [vmem:[%s3 + $0x28] sm:$0xff]
        %v1817 = vld [vmem:[%s3 + $0x30] sm:$0xff]
        %v1818 = vld [vmem:[%s3 + $0x38] sm:$0xff]
        %v1819 = vld [vmem:[%s3 + $0x40] sm:$0xff]
        %v1820 = vld [vmem:[%s3 + $0x48] sm:$0xff]
        %v1821 = vld [vmem:[%s3 + $0x50] sm:$0xff]
        %v1822 = vld [vmem:[%s3 + $0x58] sm:$0xff]
        %v1823 = vld [vmem:[%s3 + $0x60] sm:$0xff]
        %v1824 = vld [vmem:[%s3 + $0x68] sm:$0xff]
        %v1825 = vld [vmem:[%s3 + $0x70] sm:$0xff]
        %v1826 = vld [vmem:[%s3 + $0x78] sm:$0xff]
        %v1827 = vld [vmem:[%s3 + $0x80] sm:$0xff]
        %v1828 = vld [vmem:[%s3 + $0x88] sm:$0xff]
        %v1829 = vld [vmem:[%s3 + $0x90] sm:$0xff]
        %v1830 = vld [vmem:[%s3 + $0x98] sm:$0xff]
        %v1831 = vld [vmem:[%s3 + $0xa0] sm:$0xff]
        %vm1832 = vcmask 326656
        %v1834 = vsel %vm1832, %v1802, 0
        %v1837 = vsel %vm1832, %v1804, 0
        %v1840 = vsel %vm1832, %v1806, 0
        %v1843 = vsel %vm1832, %v1808, 0
        %1845 = vmatprep.subr.mxu0 0.0
        %v1846 = vand.u32 %v1811, 4294901760
        %1847 = vmatpush1.msra.mxu0 %v1846
        %1848 = vmatprep.subr.mxu0 0.0
        %v1849 = vand.u32 %v1812, 4294901760
        %1850 = vmatpush1.msra.mxu0 %v1849
        %1851 = vmatprep.subr.mxu0 0.0
        %v1852 = vand.u32 %v1813, 4294901760
        %1853 = vmatpush1.msra.mxu0 %v1852
        %1854 = vmatprep.subr.mxu0 0.0
        %v1855 = vand.u32 %v1814, 4294901760
        %1856 = vmatpush1.msra.mxu0 %v1855
        %1857 = vmatprep.subr.mxu0 0.0
        %v1858 = vand.u32 %v1815, 4294901760
        %1859 = vmatpush1.msra.mxu0 %v1858
        %1860 = vmatprep.subr.mxu0 0.0
        %v1861 = vand.u32 %v1816, 4294901760
        %1862 = vmatpush1.msra.mxu0 %v1861
        %1863 = vmatprep.subr.mxu0 0.0
        %v1864 = vand.u32 %v1817, 4294901760
        %1865 = vmatpush1.msra.mxu0 %v1864
        %1866 = vmatprep.subr.mxu0 0.0
        %v1867 = vand.u32 %v1818, 4294901760
        %1868 = vmatpush1.msra.mxu0 %v1867
        %1869 = vmatprep.subr.mxu0 0.0
        %v1870 = vand.u32 %v1819, 4294901760
        %1871 = vmatpush1.msra.mxu0 %v1870
        %1872 = vmatprep.subr.mxu0 0.0
        %v1873 = vand.u32 %v1820, 4294901760
        %1874 = vmatpush1.msra.mxu0 %v1873
        %1875 = vmatprep.subr.mxu0 0.0
        %v1876 = vand.u32 %v1821, 4294901760
        %1877 = vmatpush1.msra.mxu0 %v1876
        %1878 = vmatprep.subr.mxu0 0.0
        %v1879 = vand.u32 %v1822, 4294901760
        %1880 = vmatpush1.msra.mxu0 %v1879
        %1881 = vmatprep.subr.mxu0 0.0
        %v1882 = vand.u32 %v1823, 4294901760
        %1883 = vmatpush1.msra.mxu0 %v1882
        %1884 = vmatprep.subr.mxu0 0.0
        %v1885 = vand.u32 %v1824, 4294901760
        %1886 = vmatpush1.msra.mxu0 %v1885
        %1887 = vmatprep.subr.mxu0 0.0
        %v1888 = vand.u32 %v1825, 4294901760
        %1889 = vmatpush1.msra.mxu0 %v1888
        %1890 = vmatprep.subr.mxu0 0.0
        %v1891 = vand.u32 %v1826, 4294901760
        %1892 = vmatpush1.msra.mxu0 %v1891
        %1893 = vmatprep.subr.mxu0 0.0
        %v1894 = vand.u32 %v1827, 4294901760
        %1895 = vmatpush1.msra.mxu0 %v1894
        %1896 = vmatprep.subr.mxu0 0.0
        %v1897 = vand.u32 %v1828, 4294901760
        %1898 = vmatpush1.msra.mxu0 %v1897
        %1899 = vmatprep.subr.mxu0 0.0
        %v1900 = vand.u32 %v1829, 4294901760
        %1901 = vmatpush1.msra.mxu0 %v1900
        %1902 = vmatprep.subr.mxu0 0.0
        %v1903 = vand.u32 %v1830, 4294901760
        %1904 = vmatpush1.msra.mxu0 %v1903
        %1905 = vmatprep.subr.mxu0 0.0
        %v1906 = vand.u32 %v1831, 4294901760
        %1907 = vmatpush1.msra.mxu0 %v1906
        %1908 = vmatprep.subr.mxu0 0.0
        %1909 = vmatpush1.msra.mxu0 0.0
        %1910 = vmatprep.subr.mxu0 0.0
        %1911 = vmatpush1.msra.mxu0 0.0
        %1912 = vmatprep.subr.mxu0 0.0
        %1913 = vmatpush1.msra.mxu0 0.0
        %1914 = vmatprep.subr.mxu0 0.0
        %1915 = vmatpush1.msra.mxu0 0.0
        %1916 = vmatprep.subr.mxu0 0.0
        %1917 = vmatpush1.msra.mxu0 0.0
        %1918 = vmatprep.subr.mxu0 0.0
        %1919 = vmatpush1.msra.mxu0 0.0
        %1920 = vmatprep.subr.mxu0 0.0
        %1921 = vmatpush1.msra.mxu0 0.0
        %1922 = vmatprep.subr.mxu0 0.0
        %1923 = vmatpush1.msra.mxu0 0.0
        %1924 = vmatprep.subr.mxu0 0.0
        %1925 = vmatpush1.msra.mxu0 0.0
        %1926 = vmatprep.subr.mxu0 0.0
        %1927 = vmatpush1.msra.mxu0 0.0
        %1928 = vmatprep.subr.mxu0 0.0
        %1929 = vmatpush1.msra.mxu0 0.0
        %v1930 = vand.u32 %v1834, 4294901760
        %v1931 = vsub.f32 %v1834, %v1930
        %v1932 = vand.u32 %v1931, 4294901760
        %v1933 = vsub.f32 %v1931, %v1932
        %v1934 = vand.u32 %v1933, 4294901760
        %1935 = vmatprep.mubr.f32.mxu0 %v1934
        %v1936 = vand.u32 %v1801, 4294901760
        %v1937 = vsub.f32 %v1801, %v1936
        %v1938 = vand.u32 %v1937, 4294901760
        %v1939 = vsub.f32 %v1937, %v1938
        %v1940 = vand.u32 %v1939, 4294901760
        %1941 = vmatmul.mubr.f32.gmra.mrb[0].mxu0 %v1940
        %v1942 = vpop.f32.mrb[0].mxu0
        %v1943 = vadd.f32 0.0, %v1942
        %v1944 = vpop.f32.mrb[0].mxu0
        %v1945 = vand.u32 %v1837, 4294901760
        %v1946 = vsub.f32 %v1837, %v1945
        %v1947 = vand.u32 %v1946, 4294901760
        %v1948 = vsub.f32 %v1946, %v1947
        %v1949 = vand.u32 %v1948, 4294901760
        %1950 = vmatprep.mubr.f32.mxu0 %v1949
        %v1951 = vand.u32 %v1803, 4294901760
        %v1952 = vsub.f32 %v1803, %v1951
        %v1953 = vand.u32 %v1952, 4294901760
        %v1954 = vsub.f32 %v1952, %v1953
        %v1955 = vand.u32 %v1954, 4294901760
        %1956 = vmatmul.mubr.f32.gmra.mrb[0].mxu0 %v1955
        %v1957 = vpop.f32.mrb[0].mxu0
        %v1958 = vadd.f32 0.0, %v1957
        %v1959 = vpop.f32.mrb[0].mxu0
        %v1960 = vand.u32 %v1840, 4294901760
        %v1961 = vsub.f32 %v1840, %v1960
        %v1962 = vand.u32 %v1961, 4294901760
        %v1963 = vsub.f32 %v1961, %v1962
        %v1964 = vand.u32 %v1963, 4294901760
        %1965 = vmatprep.mubr.f32.mxu0 %v1964
        %v1966 = vand.u32 %v1805, 4294901760
        %v1967 = vsub.f32 %v1805, %v1966
        %v1968 = vand.u32 %v1967, 4294901760
        %v1969 = vsub.f32 %v1967, %v1968
        %v1970 = vand.u32 %v1969, 4294901760
        %1971 = vmatmul.mubr.f32.gmra.mrb[0].mxu0 %v1970
        %v1972 = vpop.f32.mrb[0].mxu0
        %v1973 = vadd.f32 0.0, %v1972
        %v1974 = vpop.f32.mrb[0].mxu0
        %v1975 = vand.u32 %v1843, 4294901760
        %v1976 = vsub.f32 %v1843, %v1975
        %v1977 = vand.u32 %v1976, 4294901760
        %v1978 = vsub.f32 %v1976, %v1977
        %v1979 = vand.u32 %v1978, 4294901760
        %1980 = vmatprep.mubr.f32.mxu0 %v1979
        %v1981 = vand.u32 %v1807, 4294901760
        %v1982 = vsub.f32 %v1807, %v1981
        %v1983 = vand.u32 %v1982, 4294901760
        %v1984 = vsub.f32 %v1982, %v1983
        %v1985 = vand.u32 %v1984, 4294901760
        %1986 = vmatmul.mubr.f32.gmra.mrb[0].mxu0 %v1985
        %v1987 = vpop.f32.mrb[0].mxu0
        %v1988 = vadd.f32 0.0, %v1987
        %v1989 = vpop.f32.mrb[0].mxu0
        %1990 = vdwg.mxu0
        %1991 = vmatprep.subr.mxu0 0.0
        %v1992 = vand.u32 %v1811, 4294901760
        %v1993 = vsub.f32 %v1811, %v1992
        %v1994 = vand.u32 %v1993, 4294901760
        %v1995 = vsub.f32 %v1993, %v1994
        %v1996 = vand.u32 %v1995, 4294901760
        %1997 = vmatpush1.msra.mxu0 %v1996
        %1998 = vmatprep.subr.mxu0 0.0
        %v1999 = vand.u32 %v1812, 4294901760
        %v2000 = vsub.f32 %v1812, %v1999
        %v2001 = vand.u32 %v2000, 4294901760
        %v2002 = vsub.f32 %v2000, %v2001
        %v2003 = vand.u32 %v2002, 4294901760
        %2004 = vmatpush1.msra.mxu0 %v2003
        %2005 = vmatprep.subr.mxu0 0.0
        %v2006 = vand.u32 %v1813, 4294901760
        %v2007 = vsub.f32 %v1813, %v2006
        %v2008 = vand.u32 %v2007, 4294901760
        %v2009 = vsub.f32 %v2007, %v2008
        %v2010 = vand.u32 %v2009, 4294901760
        %2011 = vmatpush1.msra.mxu0 %v2010
        %2012 = vmatprep.subr.mxu0 0.0
        %v2013 = vand.u32 %v1814, 4294901760
        %v2014 = vsub.f32 %v1814, %v2013
        %v2015 = vand.u32 %v2014, 4294901760
        %v2016 = vsub.f32 %v2014, %v2015
        %v2017 = vand.u32 %v2016, 4294901760
        %2018 = vmatpush1.msra.mxu0 %v2017
        %2019 = vmatprep.subr.mxu0 0.0
        %v2020 = vand.u32 %v1815, 4294901760
        %v2021 = vsub.f32 %v1815, %v2020
        %v2022 = vand.u32 %v2021, 4294901760
        %v2023 = vsub.f32 %v2021, %v2022
        %v2024 = vand.u32 %v2023, 4294901760
        %2025 = vmatpush1.msra.mxu0 %v2024
        %2026 = vmatprep.subr.mxu0 0.0
        %v2027 = vand.u32 %v1816, 4294901760
        %v2028 = vsub.f32 %v1816, %v2027
        %v2029 = vand.u32 %v2028, 4294901760
        %v2030 = vsub.f32 %v2028, %v2029
        %v2031 = vand.u32 %v2030, 4294901760
        %2032 = vmatpush1.msra.mxu0 %v2031
        %2033 = vmatprep.subr.mxu0 0.0
        %v2034 = vand.u32 %v1817, 4294901760
        %v2035 = vsub.f32 %v1817, %v2034
        %v2036 = vand.u32 %v2035, 4294901760
        %v2037 = vsub.f32 %v2035, %v2036
        %v2038 = vand.u32 %v2037, 4294901760
        %2039 = vmatpush1.msra.mxu0 %v2038
        %2040 = vmatprep.subr.mxu0 0.0
        %v2041 = vand.u32 %v1818, 4294901760
        %v2042 = vsub.f32 %v1818, %v2041
        %v2043 = vand.u32 %v2042, 4294901760
        %v2044 = vsub.f32 %v2042, %v2043
        %v2045 = vand.u32 %v2044, 4294901760
        %2046 = vmatpush1.msra.mxu0 %v2045
        %2047 = vmatprep.subr.mxu0 0.0
        %v2048 = vand.u32 %v1819, 4294901760
        %v2049 = vsub.f32 %v1819, %v2048
        %v2050 = vand.u32 %v2049, 4294901760
        %v2051 = vsub.f32 %v2049, %v2050
        %v2052 = vand.u32 %v2051, 4294901760
        %2053 = vmatpush1.msra.mxu0 %v2052
        %2054 = vmatprep.subr.mxu0 0.0
        %v2055 = vand.u32 %v1820, 4294901760
        %v2056 = vsub.f32 %v1820, %v2055
        %v2057 = vand.u32 %v2056, 4294901760
        %v2058 = vsub.f32 %v2056, %v2057
        %v2059 = vand.u32 %v2058, 4294901760
        %2060 = vmatpush1.msra.mxu0 %v2059
        %2061 = vmatprep.subr.mxu0 0.0
        %v2062 = vand.u32 %v1821, 4294901760
        %v2063 = vsub.f32 %v1821, %v2062
        %v2064 = vand.u32 %v2063, 4294901760
        %v2065 = vsub.f32 %v2063, %v2064
        %v2066 = vand.u32 %v2065, 4294901760
        %2067 = vmatpush1.msra.mxu0 %v2066
        %2068 = vmatprep.subr.mxu0 0.0
        %v2069 = vand.u32 %v1822, 4294901760
        %v2070 = vsub.f32 %v1822, %v2069
        %v2071 = vand.u32 %v2070, 4294901760
        %v2072 = vsub.f32 %v2070, %v2071
        %v2073 = vand.u32 %v2072, 4294901760
        %2074 = vmatpush1.msra.mxu0 %v2073
        %2075 = vmatprep.subr.mxu0 0.0
        %v2076 = vand.u32 %v1823, 4294901760
        %v2077 = vsub.f32 %v1823, %v2076
        %v2078 = vand.u32 %v2077, 4294901760
        %v2079 = vsub.f32 %v2077, %v2078
        %v2080 = vand.u32 %v2079, 4294901760
        %2081 = vmatpush1.msra.mxu0 %v2080
        %2082 = vmatprep.subr.mxu0 0.0
        %v2083 = vand.u32 %v1824, 4294901760
        %v2084 = vsub.f32 %v1824, %v2083
        %v2085 = vand.u32 %v2084, 4294901760
        %v2086 = vsub.f32 %v2084, %v2085
        %v2087 = vand.u32 %v2086, 4294901760
        %2088 = vmatpush1.msra.mxu0 %v2087
        %2089 = vmatprep.subr.mxu0 0.0
        %v2090 = vand.u32 %v1825, 4294901760
        %v2091 = vsub.f32 %v1825, %v2090
        %v2092 = vand.u32 %v2091, 4294901760
        %v2093 = vsub.f32 %v2091, %v2092
        %v2094 = vand.u32 %v2093, 4294901760
        %2095 = vmatpush1.msra.mxu0 %v2094
        %2096 = vmatprep.subr.mxu0 0.0
        %v2097 = vand.u32 %v1826, 4294901760
        %v2098 = vsub.f32 %v1826, %v2097
        %v2099 = vand.u32 %v2098, 4294901760
        %v2100 = vsub.f32 %v2098, %v2099
        %v2101 = vand.u32 %v2100, 4294901760
        %2102 = vmatpush1.msra.mxu0 %v2101
        %2103 = vmatprep.subr.mxu0 0.0
        %v2104 = vand.u32 %v1827, 4294901760
        %v2105 = vsub.f32 %v1827, %v2104
        %v2106 = vand.u32 %v2105, 4294901760
        %v2107 = vsub.f32 %v2105, %v2106
        %v2108 = vand.u32 %v2107, 4294901760
        %2109 = vmatpush1.msra.mxu0 %v2108
        %2110 = vmatprep.subr.mxu0 0.0
        %v2111 = vand.u32 %v1828, 4294901760
        %v2112 = vsub.f32 %v1828, %v2111
        %v2113 = vand.u32 %v2112, 4294901760
        %v2114 = vsub.f32 %v2112, %v2113
        %v2115 = vand.u32 %v2114, 4294901760
        %2116 = vmatpush1.msra.mxu0 %v2115
        %2117 = vmatprep.subr.mxu0 0.0
        %v2118 = vand.u32 %v1829, 4294901760
        %v2119 = vsub.f32 %v1829, %v2118
        %v2120 = vand.u32 %v2119, 4294901760
        %v2121 = vsub.f32 %v2119, %v2120
        %v2122 = vand.u32 %v2121, 4294901760
        %2123 = vmatpush1.msra.mxu0 %v2122
        %2124 = vmatprep.subr.mxu0 0.0
        %v2125 = vand.u32 %v1830, 4294901760
        %v2126 = vsub.f32 %v1830, %v2125
        %v2127 = vand.u32 %v2126, 4294901760
        %v2128 = vsub.f32 %v2126, %v2127
        %v2129 = vand.u32 %v2128, 4294901760
        %2130 = vmatpush1.msra.mxu0 %v2129
        %2131 = vmatprep.subr.mxu0 0.0
        %v2132 = vand.u32 %v1831, 4294901760
        %v2133 = vsub.f32 %v1831, %v2132
        %v2134 = vand.u32 %v2133, 4294901760
        %v2135 = vsub.f32 %v2133, %v2134
        %v2136 = vand.u32 %v2135, 4294901760
        %2137 = vmatpush1.msra.mxu0 %v2136
        %2138 = vmatprep.subr.mxu0 0.0
        %2139 = vmatpush1.msra.mxu0 0.0
        %2140 = vmatprep.subr.mxu0 0.0
        %2141 = vmatpush1.msra.mxu0 0.0
        %2142 = vmatprep.subr.mxu0 0.0
        %2143 = vmatpush1.msra.mxu0 0.0
        %2144 = vmatprep.subr.mxu0 0.0
        %2145 = vmatpush1.msra.mxu0 0.0
        %2146 = vmatprep.subr.mxu0 0.0
        %2147 = vmatpush1.msra.mxu0 0.0
        %2148 = vmatprep.subr.mxu0 0.0
        %2149 = vmatpush1.msra.mxu0 0.0
        %2150 = vmatprep.subr.mxu0 0.0
        %2151 = vmatpush1.msra.mxu0 0.0
        %2152 = vmatprep.subr.mxu0 0.0
        %2153 = vmatpush1.msra.mxu0 0.0
        %2154 = vmatprep.subr.mxu0 0.0
        %2155 = vmatpush1.msra.mxu0 0.0
        %2156 = vmatprep.subr.mxu0 0.0
        %2157 = vmatpush1.msra.mxu0 0.0
        %2158 = vmatprep.subr.mxu0 0.0
        %2159 = vmatpush1.msra.mxu0 0.0
        %v2160 = vand.u32 %v1834, 4294901760
        %2161 = vmatprep.mubr.f32.mxu0 %v2160
        %v2162 = vand.u32 %v1801, 4294901760
        %2163 = vmatmul.mubr.f32.gmra.mrb[0].mxu0 %v2162
        %v2164 = vpop.f32.mrb[0].mxu0
        %v2165 = vadd.f32 %v1943, %v2164
        %v2166 = vpop.f32.mrb[0].mxu0
        %v2167 = vand.u32 %v1837, 4294901760
        %2168 = vmatprep.mubr.f32.mxu0 %v2167
        %v2169 = vand.u32 %v1803, 4294901760
        %2170 = vmatmul.mubr.f32.gmra.mrb[0].mxu0 %v2169
        %v2171 = vpop.f32.mrb[0].mxu0
        %v2172 = vadd.f32 %v1958, %v2171
        %v2173 = vpop.f32.mrb[0].mxu0
        %v2174 = vand.u32 %v1840, 4294901760
        %2175 = vmatprep.mubr.f32.mxu0 %v2174
        %v2176 = vand.u32 %v1805, 4294901760
        %2177 = vmatmul.mubr.f32.gmra.mrb[0].mxu0 %v2176
        %v2178 = vpop.f32.mrb[0].mxu0
        %v2179 = vadd.f32 %v1973, %v2178
        %v2180 = vpop.f32.mrb[0].mxu0
        %v2181 = vand.u32 %v1843, 4294901760
        %2182 = vmatprep.mubr.f32.mxu0 %v2181
        %v2183 = vand.u32 %v1807, 4294901760
        %2184 = vmatmul.mubr.f32.gmra.mrb[0].mxu0 %v2183
        %v2185 = vpop.f32.mrb[0].mxu0
        %v2186 = vadd.f32 %v1988, %v2185
        %v2187 = vpop.f32.mrb[0].mxu0
        %2188 = vdwg.mxu0
        %2189 = vmatprep.subr.mxu0 0.0
        %v2190 = vand.u32 %v1811, 4294901760
        %v2191 = vsub.f32 %v1811, %v2190
        %2192 = vmatpush1.msra.mxu0 %v2191
        %2193 = vmatprep.subr.mxu0 0.0
        %v2194 = vand.u32 %v1812, 4294901760
        %v2195 = vsub.f32 %v1812, %v2194
        %2196 = vmatpush1.msra.mxu0 %v2195
        %2197 = vmatprep.subr.mxu0 0.0
        %v2198 = vand.u32 %v1813, 4294901760
        %v2199 = vsub.f32 %v1813, %v2198
        %2200 = vmatpush1.msra.mxu0 %v2199
        %2201 = vmatprep.subr.mxu0 0.0
        %v2202 = vand.u32 %v1814, 4294901760
        %v2203 = vsub.f32 %v1814, %v2202
        %2204 = vmatpush1.msra.mxu0 %v2203
        %2205 = vmatprep.subr.mxu0 0.0
        %v2206 = vand.u32 %v1815, 4294901760
        %v2207 = vsub.f32 %v1815, %v2206
        %2208 = vmatpush1.msra.mxu0 %v2207
        %2209 = vmatprep.subr.mxu0 0.0
        %v2210 = vand.u32 %v1816, 4294901760
        %v2211 = vsub.f32 %v1816, %v2210
        %2212 = vmatpush1.msra.mxu0 %v2211
        %2213 = vmatprep.subr.mxu0 0.0
        %v2214 = vand.u32 %v1817, 4294901760
        %v2215 = vsub.f32 %v1817, %v2214
        %2216 = vmatpush1.msra.mxu0 %v2215
        %2217 = vmatprep.subr.mxu0 0.0
        %v2218 = vand.u32 %v1818, 4294901760
        %v2219 = vsub.f32 %v1818, %v2218
        %2220 = vmatpush1.msra.mxu0 %v2219
        %2221 = vmatprep.subr.mxu0 0.0
        %v2222 = vand.u32 %v1819, 4294901760
        %v2223 = vsub.f32 %v1819, %v2222
        %2224 = vmatpush1.msra.mxu0 %v2223
        %2225 = vmatprep.subr.mxu0 0.0
        %v2226 = vand.u32 %v1820, 4294901760
        %v2227 = vsub.f32 %v1820, %v2226
        %2228 = vmatpush1.msra.mxu0 %v2227
        %2229 = vmatprep.subr.mxu0 0.0
        %v2230 = vand.u32 %v1821, 4294901760
        %v2231 = vsub.f32 %v1821, %v2230
        %2232 = vmatpush1.msra.mxu0 %v2231
        %2233 = vmatprep.subr.mxu0 0.0
        %v2234 = vand.u32 %v1822, 4294901760
        %v2235 = vsub.f32 %v1822, %v2234
        %2236 = vmatpush1.msra.mxu0 %v2235
        %2237 = vmatprep.subr.mxu0 0.0
        %v2238 = vand.u32 %v1823, 4294901760
        %v2239 = vsub.f32 %v1823, %v2238
        %2240 = vmatpush1.msra.mxu0 %v2239
        %2241 = vmatprep.subr.mxu0 0.0
        %v2242 = vand.u32 %v1824, 4294901760
        %v2243 = vsub.f32 %v1824, %v2242
        %2244 = vmatpush1.msra.mxu0 %v2243
        %2245 = vmatprep.subr.mxu0 0.0
        %v2246 = vand.u32 %v1825, 4294901760
        %v2247 = vsub.f32 %v1825, %v2246
        %2248 = vmatpush1.msra.mxu0 %v2247
        %2249 = vmatprep.subr.mxu0 0.0
        %v2250 = vand.u32 %v1826, 4294901760
        %v2251 = vsub.f32 %v1826, %v2250
        %2252 = vmatpush1.msra.mxu0 %v2251
        %2253 = vmatprep.subr.mxu0 0.0
        %v2254 = vand.u32 %v1827, 4294901760
        %v2255 = vsub.f32 %v1827, %v2254
        %2256 = vmatpush1.msra.mxu0 %v2255
        %2257 = vmatprep.subr.mxu0 0.0
        %v2258 = vand.u32 %v1828, 4294901760
        %v2259 = vsub.f32 %v1828, %v2258
        %2260 = vmatpush1.msra.mxu0 %v2259
        %2261 = vmatprep.subr.mxu0 0.0
        %v2262 = vand.u32 %v1829, 4294901760
        %v2263 = vsub.f32 %v1829, %v2262
        %2264 = vmatpush1.msra.mxu0 %v2263
        %2265 = vmatprep.subr.mxu0 0.0
        %v2266 = vand.u32 %v1830, 4294901760
        %v2267 = vsub.f32 %v1830, %v2266
        %2268 = vmatpush1.msra.mxu0 %v2267
        %2269 = vmatprep.subr.mxu0 0.0
        %v2270 = vand.u32 %v1831, 4294901760
        %v2271 = vsub.f32 %v1831, %v2270
        %2272 = vmatpush1.msra.mxu0 %v2271
        %2273 = vmatprep.subr.mxu0 0.0
        %2274 = vmatpush1.msra.mxu0 0.0
        %2275 = vmatprep.subr.mxu0 0.0
        %2276 = vmatpush1.msra.mxu0 0.0
        %2277 = vmatprep.subr.mxu0 0.0
        %2278 = vmatpush1.msra.mxu0 0.0
        %2279 = vmatprep.subr.mxu0 0.0
        %2280 = vmatpush1.msra.mxu0 0.0
        %2281 = vmatprep.subr.mxu0 0.0
        %2282 = vmatpush1.msra.mxu0 0.0
        %2283 = vmatprep.subr.mxu0 0.0
        %2284 = vmatpush1.msra.mxu0 0.0
        %2285 = vmatprep.subr.mxu0 0.0
        %2286 = vmatpush1.msra.mxu0 0.0
        %2287 = vmatprep.subr.mxu0 0.0
        %2288 = vmatpush1.msra.mxu0 0.0
        %2289 = vmatprep.subr.mxu0 0.0
        %2290 = vmatpush1.msra.mxu0 0.0
        %2291 = vmatprep.subr.mxu0 0.0
        %2292 = vmatpush1.msra.mxu0 0.0
        %2293 = vmatprep.subr.mxu0 0.0
        %2294 = vmatpush1.msra.mxu0 0.0
        %v2295 = vand.u32 %v1834, 4294901760
        %v2296 = vsub.f32 %v1834, %v2295
        %2297 = vmatprep.mubr.f32.mxu0 %v2296
        %v2298 = vand.u32 %v1801, 4294901760
        %v2299 = vsub.f32 %v1801, %v2298
        %2300 = vmatmul.mubr.f32.gmra.mrb[0].mxu0 %v2299
        %v2301 = vpop.f32.mrb[0].mxu0
        %v2302 = vadd.f32 %v2165, %v2301
        %v2303 = vpop.f32.mrb[0].mxu0
        %v2304 = vand.u32 %v1837, 4294901760
        %v2305 = vsub.f32 %v1837, %v2304
        %2306 = vmatprep.mubr.f32.mxu0 %v2305
        %v2307 = vand.u32 %v1803, 4294901760
        %v2308 = vsub.f32 %v1803, %v2307
        %2309 = vmatmul.mubr.f32.gmra.mrb[0].mxu0 %v2308
        %v2310 = vpop.f32.mrb[0].mxu0
        %v2311 = vadd.f32 %v2172, %v2310
        %v2312 = vpop.f32.mrb[0].mxu0
        %v2313 = vand.u32 %v1840, 4294901760
        %v2314 = vsub.f32 %v1840, %v2313
        %2315 = vmatprep.mubr.f32.mxu0 %v2314
        %v2316 = vand.u32 %v1805, 4294901760
        %v2317 = vsub.f32 %v1805, %v2316
        %2318 = vmatmul.mubr.f32.gmra.mrb[0].mxu0 %v2317
        %v2319 = vpop.f32.mrb[0].mxu0
        %v2320 = vadd.f32 %v2179, %v2319
        %v2321 = vpop.f32.mrb[0].mxu0
        %v2322 = vand.u32 %v1843, 4294901760
        %v2323 = vsub.f32 %v1843, %v2322
        %2324 = vmatprep.mubr.f32.mxu0 %v2323
        %v2325 = vand.u32 %v1807, 4294901760
        %v2326 = vsub.f32 %v1807, %v2325
        %2327 = vmatmul.mubr.f32.gmra.mrb[0].mxu0 %v2326
        %v2328 = vpop.f32.mrb[0].mxu0
        %v2329 = vadd.f32 %v2186, %v2328
        %v2330 = vpop.f32.mrb[0].mxu0
        %2331 = vdwg.mxu0
        %2332 = vmatprep.subr.mxu0 0.0
        %v2333 = vand.u32 %v1811, 4294901760
        %2334 = vmatpush1.msra.mxu0 %v2333
        %2335 = vmatprep.subr.mxu0 0.0
        %v2336 = vand.u32 %v1812, 4294901760
        %2337 = vmatpush1.msra.mxu0 %v2336
        %2338 = vmatprep.subr.mxu0 0.0
        %v2339 = vand.u32 %v1813, 4294901760
        %2340 = vmatpush1.msra.mxu0 %v2339
        %2341 = vmatprep.subr.mxu0 0.0
        %v2342 = vand.u32 %v1814, 4294901760
        %2343 = vmatpush1.msra.mxu0 %v2342
        %2344 = vmatprep.subr.mxu0 0.0
        %v2345 = vand.u32 %v1815, 4294901760
        %2346 = vmatpush1.msra.mxu0 %v2345
        %2347 = vmatprep.subr.mxu0 0.0
        %v2348 = vand.u32 %v1816, 4294901760
        %2349 = vmatpush1.msra.mxu0 %v2348
        %2350 = vmatprep.subr.mxu0 0.0
        %v2351 = vand.u32 %v1817, 4294901760
        %2352 = vmatpush1.msra.mxu0 %v2351
        %2353 = vmatprep.subr.mxu0 0.0
        %v2354 = vand.u32 %v1818, 4294901760
        %2355 = vmatpush1.msra.mxu0 %v2354
        %2356 = vmatprep.subr.mxu0 0.0
        %v2357 = vand.u32 %v1819, 4294901760
        %2358 = vmatpush1.msra.mxu0 %v2357
        %2359 = vmatprep.subr.mxu0 0.0
        %v2360 = vand.u32 %v1820, 4294901760
        %2361 = vmatpush1.msra.mxu0 %v2360
        %2362 = vmatprep.subr.mxu0 0.0
        %v2363 = vand.u32 %v1821, 4294901760
        %2364 = vmatpush1.msra.mxu0 %v2363
        %2365 = vmatprep.subr.mxu0 0.0
        %v2366 = vand.u32 %v1822, 4294901760
        %2367 = vmatpush1.msra.mxu0 %v2366
        %2368 = vmatprep.subr.mxu0 0.0
        %v2369 = vand.u32 %v1823, 4294901760
        %2370 = vmatpush1.msra.mxu0 %v2369
        %2371 = vmatprep.subr.mxu0 0.0
        %v2372 = vand.u32 %v1824, 4294901760
        %2373 = vmatpush1.msra.mxu0 %v2372
        %2374 = vmatprep.subr.mxu0 0.0
        %v2375 = vand.u32 %v1825, 4294901760
        %2376 = vmatpush1.msra.mxu0 %v2375
        %2377 = vmatprep.subr.mxu0 0.0
        %v2378 = vand.u32 %v1826, 4294901760
        %2379 = vmatpush1.msra.mxu0 %v2378
        %2380 = vmatprep.subr.mxu0 0.0
        %v2381 = vand.u32 %v1827, 4294901760
        %2382 = vmatpush1.msra.mxu0 %v2381
        %2383 = vmatprep.subr.mxu0 0.0
        %v2384 = vand.u32 %v1828, 4294901760
        %2385 = vmatpush1.msra.mxu0 %v2384
        %2386 = vmatprep.subr.mxu0 0.0
        %v2387 = vand.u32 %v1829, 4294901760
        %2388 = vmatpush1.msra.mxu0 %v2387
        %2389 = vmatprep.subr.mxu0 0.0
        %v2390 = vand.u32 %v1830, 4294901760
        %2391 = vmatpush1.msra.mxu0 %v2390
        %2392 = vmatprep.subr.mxu0 0.0
        %v2393 = vand.u32 %v1831, 4294901760
        %2394 = vmatpush1.msra.mxu0 %v2393
        %2395 = vmatprep.subr.mxu0 0.0
        %2396 = vmatpush1.msra.mxu0 0.0
        %2397 = vmatprep.subr.mxu0 0.0
        %2398 = vmatpush1.msra.mxu0 0.0
        %2399 = vmatprep.subr.mxu0 0.0
        %2400 = vmatpush1.msra.mxu0 0.0
        %2401 = vmatprep.subr.mxu0 0.0
        %2402 = vmatpush1.msra.mxu0 0.0
        %2403 = vmatprep.subr.mxu0 0.0
        %2404 = vmatpush1.msra.mxu0 0.0
        %2405 = vmatprep.subr.mxu0 0.0
        %2406 = vmatpush1.msra.mxu0 0.0
        %2407 = vmatprep.subr.mxu0 0.0
        %2408 = vmatpush1.msra.mxu0 0.0
        %2409 = vmatprep.subr.mxu0 0.0
        %2410 = vmatpush1.msra.mxu0 0.0
        %2411 = vmatprep.subr.mxu0 0.0
        %2412 = vmatpush1.msra.mxu0 0.0
        %2413 = vmatprep.subr.mxu0 0.0
        %2414 = vmatpush1.msra.mxu0 0.0
        %2415 = vmatprep.subr.mxu0 0.0
        %2416 = vmatpush1.msra.mxu0 0.0
        %v2417 = vand.u32 %v1834, 4294901760
        %v2418 = vsub.f32 %v1834, %v2417
        %v2419 = vand.u32 %v2418, 4294901760
        %2420 = vmatprep.mubr.f32.mxu0 %v2419
        %v2421 = vand.u32 %v1801, 4294901760
        %v2422 = vsub.f32 %v1801, %v2421
        %v2423 = vand.u32 %v2422, 4294901760
        %2424 = vmatmul.mubr.f32.gmra.mrb[0].mxu0 %v2423
        %v2425 = vpop.f32.mrb[0].mxu0
        %v2426 = vadd.f32 %v2302, %v2425
        %v2427 = vpop.f32.mrb[0].mxu0
        %v2428 = vand.u32 %v1837, 4294901760
        %v2429 = vsub.f32 %v1837, %v2428
        %v2430 = vand.u32 %v2429, 4294901760
        %2431 = vmatprep.mubr.f32.mxu0 %v2430
        %v2432 = vand.u32 %v1803, 4294901760
        %v2433 = vsub.f32 %v1803, %v2432
        %v2434 = vand.u32 %v2433, 4294901760
        %2435 = vmatmul.mubr.f32.gmra.mrb[0].mxu0 %v2434
        %v2436 = vpop.f32.mrb[0].mxu0
        %v2437 = vadd.f32 %v2311, %v2436
        %v2438 = vpop.f32.mrb[0].mxu0
        %v2439 = vand.u32 %v1840, 4294901760
        %v2440 = vsub.f32 %v1840, %v2439
        %v2441 = vand.u32 %v2440, 4294901760
        %2442 = vmatprep.mubr.f32.mxu0 %v2441
        %v2443 = vand.u32 %v1805, 4294901760
        %v2444 = vsub.f32 %v1805, %v2443
        %v2445 = vand.u32 %v2444, 4294901760
        %2446 = vmatmul.mubr.f32.gmra.mrb[0].mxu0 %v2445
        %v2447 = vpop.f32.mrb[0].mxu0
        %v2448 = vadd.f32 %v2320, %v2447
        %v2449 = vpop.f32.mrb[0].mxu0
        %v2450 = vand.u32 %v1843, 4294901760
        %v2451 = vsub.f32 %v1843, %v2450
        %v2452 = vand.u32 %v2451, 4294901760
        %2453 = vmatprep.mubr.f32.mxu0 %v2452
        %v2454 = vand.u32 %v1807, 4294901760
        %v2455 = vsub.f32 %v1807, %v2454
        %v2456 = vand.u32 %v2455, 4294901760
        %2457 = vmatmul.mubr.f32.gmra.mrb[0].mxu0 %v2456
        %v2458 = vpop.f32.mrb[0].mxu0
        %v2459 = vadd.f32 %v2329, %v2458
        %v2460 = vpop.f32.mrb[0].mxu0
        %2461 = vdwg.mxu0
        %2462 = vmatprep.subr.mxu0 0.0
        %v2463 = vand.u32 %v1811, 4294901760
        %v2464 = vsub.f32 %v1811, %v2463
        %v2465 = vand.u32 %v2464, 4294901760
        %2466 = vmatpush1.msra.mxu0 %v2465
        %2467 = vmatprep.subr.mxu0 0.0
        %v2468 = vand.u32 %v1812, 4294901760
        %v2469 = vsub.f32 %v1812, %v2468
        %v2470 = vand.u32 %v2469, 4294901760
        %2471 = vmatpush1.msra.mxu0 %v2470
        %2472 = vmatprep.subr.mxu0 0.0
        %v2473 = vand.u32 %v1813, 4294901760
        %v2474 = vsub.f32 %v1813, %v2473
        %v2475 = vand.u32 %v2474, 4294901760
        %2476 = vmatpush1.msra.mxu0 %v2475
        %2477 = vmatprep.subr.mxu0 0.0
        %v2478 = vand.u32 %v1814, 4294901760
        %v2479 = vsub.f32 %v1814, %v2478
        %v2480 = vand.u32 %v2479, 4294901760
        %2481 = vmatpush1.msra.mxu0 %v2480
        %2482 = vmatprep.subr.mxu0 0.0
        %v2483 = vand.u32 %v1815, 4294901760
        %v2484 = vsub.f32 %v1815, %v2483
        %v2485 = vand.u32 %v2484, 4294901760
        %2486 = vmatpush1.msra.mxu0 %v2485
        %2487 = vmatprep.subr.mxu0 0.0
        %v2488 = vand.u32 %v1816, 4294901760
        %v2489 = vsub.f32 %v1816, %v2488
        %v2490 = vand.u32 %v2489, 4294901760
        %2491 = vmatpush1.msra.mxu0 %v2490
        %2492 = vmatprep.subr.mxu0 0.0
        %v2493 = vand.u32 %v1817, 4294901760
        %v2494 = vsub.f32 %v1817, %v2493
        %v2495 = vand.u32 %v2494, 4294901760
        %2496 = vmatpush1.msra.mxu0 %v2495
        %2497 = vmatprep.subr.mxu0 0.0
        %v2498 = vand.u32 %v1818, 4294901760
        %v2499 = vsub.f32 %v1818, %v2498
        %v2500 = vand.u32 %v2499, 4294901760
        %2501 = vmatpush1.msra.mxu0 %v2500
        %2502 = vmatprep.subr.mxu0 0.0
        %v2503 = vand.u32 %v1819, 4294901760
        %v2504 = vsub.f32 %v1819, %v2503
        %v2505 = vand.u32 %v2504, 4294901760
        %2506 = vmatpush1.msra.mxu0 %v2505
        %2507 = vmatprep.subr.mxu0 0.0
        %v2508 = vand.u32 %v1820, 4294901760
        %v2509 = vsub.f32 %v1820, %v2508
        %v2510 = vand.u32 %v2509, 4294901760
        %2511 = vmatpush1.msra.mxu0 %v2510
        %2512 = vmatprep.subr.mxu0 0.0
        %v2513 = vand.u32 %v1821, 4294901760
        %v2514 = vsub.f32 %v1821, %v2513
        %v2515 = vand.u32 %v2514, 4294901760
        %2516 = vmatpush1.msra.mxu0 %v2515
        %2517 = vmatprep.subr.mxu0 0.0
        %v2518 = vand.u32 %v1822, 4294901760
        %v2519 = vsub.f32 %v1822, %v2518
        %v2520 = vand.u32 %v2519, 4294901760
        %2521 = vmatpush1.msra.mxu0 %v2520
        %2522 = vmatprep.subr.mxu0 0.0
        %v2523 = vand.u32 %v1823, 4294901760
        %v2524 = vsub.f32 %v1823, %v2523
        %v2525 = vand.u32 %v2524, 4294901760
        %2526 = vmatpush1.msra.mxu0 %v2525
        %2527 = vmatprep.subr.mxu0 0.0
        %v2528 = vand.u32 %v1824, 4294901760
        %v2529 = vsub.f32 %v1824, %v2528
        %v2530 = vand.u32 %v2529, 4294901760
        %2531 = vmatpush1.msra.mxu0 %v2530
        %2532 = vmatprep.subr.mxu0 0.0
        %v2533 = vand.u32 %v1825, 4294901760
        %v2534 = vsub.f32 %v1825, %v2533
        %v2535 = vand.u32 %v2534, 4294901760
        %2536 = vmatpush1.msra.mxu0 %v2535
        %2537 = vmatprep.subr.mxu0 0.0
        %v2538 = vand.u32 %v1826, 4294901760
        %v2539 = vsub.f32 %v1826, %v2538
        %v2540 = vand.u32 %v2539, 4294901760
        %2541 = vmatpush1.msra.mxu0 %v2540
        %2542 = vmatprep.subr.mxu0 0.0
        %v2543 = vand.u32 %v1827, 4294901760
        %v2544 = vsub.f32 %v1827, %v2543
        %v2545 = vand.u32 %v2544, 4294901760
        %2546 = vmatpush1.msra.mxu0 %v2545
        %2547 = vmatprep.subr.mxu0 0.0
        %v2548 = vand.u32 %v1828, 4294901760
        %v2549 = vsub.f32 %v1828, %v2548
        %v2550 = vand.u32 %v2549, 4294901760
        %2551 = vmatpush1.msra.mxu0 %v2550
        %2552 = vmatprep.subr.mxu0 0.0
        %v2553 = vand.u32 %v1829, 4294901760
        %v2554 = vsub.f32 %v1829, %v2553
        %v2555 = vand.u32 %v2554, 4294901760
        %2556 = vmatpush1.msra.mxu0 %v2555
        %2557 = vmatprep.subr.mxu0 0.0
        %v2558 = vand.u32 %v1830, 4294901760
        %v2559 = vsub.f32 %v1830, %v2558
        %v2560 = vand.u32 %v2559, 4294901760
        %2561 = vmatpush1.msra.mxu0 %v2560
        %2562 = vmatprep.subr.mxu0 0.0
        %v2563 = vand.u32 %v1831, 4294901760
        %v2564 = vsub.f32 %v1831, %v2563
        %v2565 = vand.u32 %v2564, 4294901760
        %2566 = vmatpush1.msra.mxu0 %v2565
        %2567 = vmatprep.subr.mxu0 0.0
        %2568 = vmatpush1.msra.mxu0 0.0
        %2569 = vmatprep.subr.mxu0 0.0
        %2570 = vmatpush1.msra.mxu0 0.0
        %2571 = vmatprep.subr.mxu0 0.0
        %2572 = vmatpush1.msra.mxu0 0.0
        %2573 = vmatprep.subr.mxu0 0.0
        %2574 = vmatpush1.msra.mxu0 0.0
        %2575 = vmatprep.subr.mxu0 0.0
        %2576 = vmatpush1.msra.mxu0 0.0
        %2577 = vmatprep.subr.mxu0 0.0
        %2578 = vmatpush1.msra.mxu0 0.0
        %2579 = vmatprep.subr.mxu0 0.0
        %2580 = vmatpush1.msra.mxu0 0.0
        %2581 = vmatprep.subr.mxu0 0.0
        %2582 = vmatpush1.msra.mxu0 0.0
        %2583 = vmatprep.subr.mxu0 0.0
        %2584 = vmatpush1.msra.mxu0 0.0
        %2585 = vmatprep.subr.mxu0 0.0
        %2586 = vmatpush1.msra.mxu0 0.0
        %2587 = vmatprep.subr.mxu0 0.0
        %2588 = vmatpush1.msra.mxu0 0.0
        %v2589 = vand.u32 %v1834, 4294901760
        %2590 = vmatprep.mubr.f32.mxu0 %v2589
        %v2591 = vand.u32 %v1801, 4294901760
        %2592 = vmatmul.mubr.f32.gmra.mrb[0].mxu0 %v2591
        %v2593 = vpop.f32.mrb[0].mxu0
        %v2594 = vadd.f32 %v2426, %v2593
        %v2595 = vpop.f32.mrb[0].mxu0
        %v2596 = vand.u32 %v1837, 4294901760
        %2597 = vmatprep.mubr.f32.mxu0 %v2596
        %v2598 = vand.u32 %v1803, 4294901760
        %2599 = vmatmul.mubr.f32.gmra.mrb[0].mxu0 %v2598
        %v2600 = vpop.f32.mrb[0].mxu0
        %v2601 = vadd.f32 %v2437, %v2600
        %v2602 = vpop.f32.mrb[0].mxu0
        %v2603 = vand.u32 %v1840, 4294901760
        %2604 = vmatprep.mubr.f32.mxu0 %v2603
        %v2605 = vand.u32 %v1805, 4294901760
        %2606 = vmatmul.mubr.f32.gmra.mrb[0].mxu0 %v2605
        %v2607 = vpop.f32.mrb[0].mxu0
        %v2608 = vadd.f32 %v2448, %v2607
        %v2609 = vpop.f32.mrb[0].mxu0
        %v2610 = vand.u32 %v1843, 4294901760
        %2611 = vmatprep.mubr.f32.mxu0 %v2610
        %v2612 = vand.u32 %v1807, 4294901760
        %2613 = vmatmul.mubr.f32.gmra.mrb[0].mxu0 %v2612
        %v2614 = vpop.f32.mrb[0].mxu0
        %v2615 = vadd.f32 %v2459, %v2614
        %v2616 = vpop.f32.mrb[0].mxu0
        %2617 = vdwg.mxu0
        %2618 = vmatprep.subr.mxu0 0.0
        %v2619 = vand.u32 %v1811, 4294901760
        %2620 = vmatpush1.msra.mxu0 %v2619
        %2621 = vmatprep.subr.mxu0 0.0
        %v2622 = vand.u32 %v1812, 4294901760
        %2623 = vmatpush1.msra.mxu0 %v2622
        %2624 = vmatprep.subr.mxu0 0.0
        %v2625 = vand.u32 %v1813, 4294901760
        %2626 = vmatpush1.msra.mxu0 %v2625
        %2627 = vmatprep.subr.mxu0 0.0
        %v2628 = vand.u32 %v1814, 4294901760
        %2629 = vmatpush1.msra.mxu0 %v2628
        %2630 = vmatprep.subr.mxu0 0.0
        %v2631 = vand.u32 %v1815, 4294901760
        %2632 = vmatpush1.msra.mxu0 %v2631
        %2633 = vmatprep.subr.mxu0 0.0
        %v2634 = vand.u32 %v1816, 4294901760
        %2635 = vmatpush1.msra.mxu0 %v2634
        %2636 = vmatprep.subr.mxu0 0.0
        %v2637 = vand.u32 %v1817, 4294901760
        %2638 = vmatpush1.msra.mxu0 %v2637
        %2639 = vmatprep.subr.mxu0 0.0
        %v2640 = vand.u32 %v1818, 4294901760
        %2641 = vmatpush1.msra.mxu0 %v2640
        %2642 = vmatprep.subr.mxu0 0.0
        %v2643 = vand.u32 %v1819, 4294901760
        %2644 = vmatpush1.msra.mxu0 %v2643
        %2645 = vmatprep.subr.mxu0 0.0
        %v2646 = vand.u32 %v1820, 4294901760
        %2647 = vmatpush1.msra.mxu0 %v2646
        %2648 = vmatprep.subr.mxu0 0.0
        %v2649 = vand.u32 %v1821, 4294901760
        %2650 = vmatpush1.msra.mxu0 %v2649
        %2651 = vmatprep.subr.mxu0 0.0
        %v2652 = vand.u32 %v1822, 4294901760
        %2653 = vmatpush1.msra.mxu0 %v2652
        %2654 = vmatprep.subr.mxu0 0.0
        %v2655 = vand.u32 %v1823, 4294901760
        %2656 = vmatpush1.msra.mxu0 %v2655
        %2657 = vmatprep.subr.mxu0 0.0
        %v2658 = vand.u32 %v1824, 4294901760
        %2659 = vmatpush1.msra.mxu0 %v2658
        %2660 = vmatprep.subr.mxu0 0.0
        %v2661 = vand.u32 %v1825, 4294901760
        %2662 = vmatpush1.msra.mxu0 %v2661
        %2663 = vmatprep.subr.mxu0 0.0
        %v2664 = vand.u32 %v1826, 4294901760
        %2665 = vmatpush1.msra.mxu0 %v2664
        %2666 = vmatprep.subr.mxu0 0.0
        %v2667 = vand.u32 %v1827, 4294901760
        %2668 = vmatpush1.msra.mxu0 %v2667
        %2669 = vmatprep.subr.mxu0 0.0
        %v2670 = vand.u32 %v1828, 4294901760
        %2671 = vmatpush1.msra.mxu0 %v2670
        %2672 = vmatprep.subr.mxu0 0.0
        %v2673 = vand.u32 %v1829, 4294901760
        %2674 = vmatpush1.msra.mxu0 %v2673
        %2675 = vmatprep.subr.mxu0 0.0
        %v2676 = vand.u32 %v1830, 4294901760
        %2677 = vmatpush1.msra.mxu0 %v2676
        %2678 = vmatprep.subr.mxu0 0.0
        %v2679 = vand.u32 %v1831, 4294901760
        %2680 = vmatpush1.msra.mxu0 %v2679
        %2681 = vmatprep.subr.mxu0 0.0
        %2682 = vmatpush1.msra.mxu0 0.0
        %2683 = vmatprep.subr.mxu0 0.0
        %2684 = vmatpush1.msra.mxu0 0.0
        %2685 = vmatprep.subr.mxu0 0.0
        %2686 = vmatpush1.msra.mxu0 0.0
        %2687 = vmatprep.subr.mxu0 0.0
        %2688 = vmatpush1.msra.mxu0 0.0
        %2689 = vmatprep.subr.mxu0 0.0
        %2690 = vmatpush1.msra.mxu0 0.0
        %2691 = vmatprep.subr.mxu0 0.0
        %2692 = vmatpush1.msra.mxu0 0.0
        %2693 = vmatprep.subr.mxu0 0.0
        %2694 = vmatpush1.msra.mxu0 0.0
        %2695 = vmatprep.subr.mxu0 0.0
        %2696 = vmatpush1.msra.mxu0 0.0
        %2697 = vmatprep.subr.mxu0 0.0
        %2698 = vmatpush1.msra.mxu0 0.0
        %2699 = vmatprep.subr.mxu0 0.0
        %2700 = vmatpush1.msra.mxu0 0.0
        %2701 = vmatprep.subr.mxu0 0.0
        %2702 = vmatpush1.msra.mxu0 0.0
        %v2703 = vand.u32 %v1834, 4294901760
        %2704 = vmatprep.mubr.f32.mxu0 %v2703
        %v2705 = vand.u32 %v1801, 4294901760
        %2706 = vmatmul.mubr.f32.gmra.mrb[0].mxu0 %v2705
        %v2707 = vpop.f32.mrb[0].mxu0
        %v2708 = vadd.f32 %v2594, %v2707
        %v2709 = vpop.f32.mrb[0].mxu0
        %v2710 = vand.u32 %v1837, 4294901760
        %2711 = vmatprep.mubr.f32.mxu0 %v2710
        %v2712 = vand.u32 %v1803, 4294901760
        %2713 = vmatmul.mubr.f32.gmra.mrb[0].mxu0 %v2712
        %v2714 = vpop.f32.mrb[0].mxu0
        %v2715 = vadd.f32 %v2601, %v2714
        %v2716 = vpop.f32.mrb[0].mxu0
        %v2717 = vand.u32 %v1840, 4294901760
        %2718 = vmatprep.mubr.f32.mxu0 %v2717
        %v2719 = vand.u32 %v1805, 4294901760
        %2720 = vmatmul.mubr.f32.gmra.mrb[0].mxu0 %v2719
        %v2721 = vpop.f32.mrb[0].mxu0
        %v2722 = vadd.f32 %v2608, %v2721
        %v2723 = vpop.f32.mrb[0].mxu0
        %v2724 = vand.u32 %v1843, 4294901760
        %2725 = vmatprep.mubr.f32.mxu0 %v2724
        %v2726 = vand.u32 %v1807, 4294901760
        %2727 = vmatmul.mubr.f32.gmra.mrb[0].mxu0 %v2726
        %v2728 = vpop.f32.mrb[0].mxu0
        %v2729 = vadd.f32 %v2615, %v2728
        %v2730 = vpop.f32.mrb[0].mxu0
        %2731 = vdwg.mxu0
        %vm2732 = vcmask 228352
        %v2734 = vsel %vm2732, %v1809, 0
        %v2737 = vsel %vm2732, %v1810, 0
        %v2740 = vsel %vm560, %v2729, 0
        %2742 = vmatprep.subr.mxu0 0.0
        %v2743 = vand.u32 %v2708, 4294901760
        %2744 = vmatpush1.msra.mxu0 %v2743
        %2745 = vmatprep.subr.mxu0 0.0
        %v2746 = vand.u32 %v2715, 4294901760
        %2747 = vmatpush1.msra.mxu0 %v2746
        %2748 = vmatprep.subr.mxu0 0.0
        %v2749 = vand.u32 %v2722, 4294901760
        %2750 = vmatpush1.msra.mxu0 %v2749
        %2751 = vmatprep.subr.mxu0 0.0
        %v2752 = vand.u32 %v2740, 4294901760
        %2753 = vmatpush1.msra.mxu0 %v2752
        %2754 = vmatprep.subr.mxu0 0.0
        %2755 = vmatpush1.msra.mxu0 0.0
        %2756 = vmatprep.subr.mxu0 0.0
        %2757 = vmatpush1.msra.mxu0 0.0
        %2758 = vmatprep.subr.mxu0 0.0
        %2759 = vmatpush1.msra.mxu0 0.0
        %2760 = vmatprep.subr.mxu0 0.0
        %2761 = vmatpush1.msra.mxu0 0.0
        %2762 = vmatprep.subr.mxu0 0.0
        %2763 = vmatpush1.msra.mxu0 0.0
        %2764 = vmatprep.subr.mxu0 0.0
        %2765 = vmatpush1.msra.mxu0 0.0
        %2766 = vmatprep.subr.mxu0 0.0
        %2767 = vmatpush1.msra.mxu0 0.0
        %2768 = vmatprep.subr.mxu0 0.0
        %2769 = vmatpush1.msra.mxu0 0.0
        %2770 = vmatprep.subr.mxu0 0.0
        %2771 = vmatpush1.msra.mxu0 0.0
        %2772 = vmatprep.subr.mxu0 0.0
        %2773 = vmatpush1.msra.mxu0 0.0
        %2774 = vmatprep.subr.mxu0 0.0
        %2775 = vmatpush1.msra.mxu0 0.0
        %2776 = vmatprep.subr.mxu0 0.0
        %2777 = vmatpush1.msra.mxu0 0.0
        %2778 = vmatprep.subr.mxu0 0.0
        %2779 = vmatpush1.msra.mxu0 0.0
        %2780 = vmatprep.subr.mxu0 0.0
        %2781 = vmatpush1.msra.mxu0 0.0
        %2782 = vmatprep.subr.mxu0 0.0
        %2783 = vmatpush1.msra.mxu0 0.0
        %2784 = vmatprep.subr.mxu0 0.0
        %2785 = vmatpush1.msra.mxu0 0.0
        %2786 = vmatprep.subr.mxu0 0.0
        %2787 = vmatpush1.msra.mxu0 0.0
        %2788 = vmatprep.subr.mxu0 0.0
        %2789 = vmatpush1.msra.mxu0 0.0
        %2790 = vmatprep.subr.mxu0 0.0
        %2791 = vmatpush1.msra.mxu0 0.0
        %2792 = vmatprep.subr.mxu0 0.0
        %2793 = vmatpush1.msra.mxu0 0.0
        %2794 = vmatprep.subr.mxu0 0.0
        %2795 = vmatpush1.msra.mxu0 0.0
        %2796 = vmatprep.subr.mxu0 0.0
        %2797 = vmatpush1.msra.mxu0 0.0
        %2798 = vmatprep.subr.mxu0 0.0
        %2799 = vmatpush1.msra.mxu0 0.0
        %2800 = vmatprep.subr.mxu0 0.0
        %2801 = vmatpush1.msra.mxu0 0.0
        %2802 = vmatprep.subr.mxu0 0.0
        %2803 = vmatpush1.msra.mxu0 0.0
        %2804 = vmatprep.subr.mxu0 0.0
        %2805 = vmatpush1.msra.mxu0 0.0
        %2806 = vmatprep.subr.mxu0 0.0
        %2807 = vmatpush1.msra.mxu0 0.0
        %2808 = vmatprep.subr.mxu0 0.0
        %2809 = vmatpush1.msra.mxu0 0.0
        %2810 = vmatprep.mubr.f32.mxu0 0.0
        %v2811 = vand.u32 %v2734, 4294901760
        %v2812 = vsub.f32 %v2734, %v2811
        %v2813 = vand.u32 %v2812, 4294901760
        %v2814 = vsub.f32 %v2812, %v2813
        %v2815 = vand.u32 %v2814, 4294901760
        %2816 = vmatmul.mubr.f32.gmra.mrb[0].mxu0 %v2815
        %v2817 = vpop.f32.mrb[0].mxu0
        %v2818 = vadd.f32 0.0, %v2817
        %v2819 = vpop.f32.mrb[0].mxu0
        %2820 = vmatprep.mubr.f32.mxu0 0.0
        %v2821 = vand.u32 %v2737, 4294901760
        %v2822 = vsub.f32 %v2737, %v2821
        %v2823 = vand.u32 %v2822, 4294901760
        %v2824 = vsub.f32 %v2822, %v2823
        %v2825 = vand.u32 %v2824, 4294901760
        %2826 = vmatmul.mubr.f32.gmra.mrb[0].mxu0 %v2825
        %v2827 = vpop.f32.mrb[0].mxu0
        %v2828 = vadd.f32 0.0, %v2827
        %v2829 = vpop.f32.mrb[0].mxu0
        %2830 = vdwg.mxu0
        %2831 = vmatprep.subr.mxu0 0.0
        %v2832 = vand.u32 %v2708, 4294901760
        %v2833 = vsub.f32 %v2708, %v2832
        %v2834 = vand.u32 %v2833, 4294901760
        %v2835 = vsub.f32 %v2833, %v2834
        %v2836 = vand.u32 %v2835, 4294901760
        %2837 = vmatpush1.msra.mxu0 %v2836
        %2838 = vmatprep.subr.mxu0 0.0
        %v2839 = vand.u32 %v2715, 4294901760
        %v2840 = vsub.f32 %v2715, %v2839
        %v2841 = vand.u32 %v2840, 4294901760
        %v2842 = vsub.f32 %v2840, %v2841
        %v2843 = vand.u32 %v2842, 4294901760
        %2844 = vmatpush1.msra.mxu0 %v2843
        %2845 = vmatprep.subr.mxu0 0.0
        %v2846 = vand.u32 %v2722, 4294901760
        %v2847 = vsub.f32 %v2722, %v2846
        %v2848 = vand.u32 %v2847, 4294901760
        %v2849 = vsub.f32 %v2847, %v2848
        %v2850 = vand.u32 %v2849, 4294901760
        %2851 = vmatpush1.msra.mxu0 %v2850
        %2852 = vmatprep.subr.mxu0 0.0
        %v2853 = vand.u32 %v2740, 4294901760
        %v2854 = vsub.f32 %v2740, %v2853
        %v2855 = vand.u32 %v2854, 4294901760
        %v2856 = vsub.f32 %v2854, %v2855
        %v2857 = vand.u32 %v2856, 4294901760
        %2858 = vmatpush1.msra.mxu0 %v2857
        %2859 = vmatprep.subr.mxu0 0.0
        %2860 = vmatpush1.msra.mxu0 0.0
        %2861 = vmatprep.subr.mxu0 0.0
        %2862 = vmatpush1.msra.mxu0 0.0
        %2863 = vmatprep.subr.mxu0 0.0
        %2864 = vmatpush1.msra.mxu0 0.0
        %2865 = vmatprep.subr.mxu0 0.0
        %2866 = vmatpush1.msra.mxu0 0.0
        %2867 = vmatprep.subr.mxu0 0.0
        %2868 = vmatpush1.msra.mxu0 0.0
        %2869 = vmatprep.subr.mxu0 0.0
        %2870 = vmatpush1.msra.mxu0 0.0
        %2871 = vmatprep.subr.mxu0 0.0
        %2872 = vmatpush1.msra.mxu0 0.0
        %2873 = vmatprep.subr.mxu0 0.0
        %2874 = vmatpush1.msra.mxu0 0.0
        %2875 = vmatprep.subr.mxu0 0.0
        %2876 = vmatpush1.msra.mxu0 0.0
        %2877 = vmatprep.subr.mxu0 0.0
        %2878 = vmatpush1.msra.mxu0 0.0
        %2879 = vmatprep.subr.mxu0 0.0
        %2880 = vmatpush1.msra.mxu0 0.0
        %2881 = vmatprep.subr.mxu0 0.0
        %2882 = vmatpush1.msra.mxu0 0.0
        %2883 = vmatprep.subr.mxu0 0.0
        %2884 = vmatpush1.msra.mxu0 0.0
        %2885 = vmatprep.subr.mxu0 0.0
        %2886 = vmatpush1.msra.mxu0 0.0
        %2887 = vmatprep.subr.mxu0 0.0
        %2888 = vmatpush1.msra.mxu0 0.0
        %2889 = vmatprep.subr.mxu0 0.0
        %2890 = vmatpush1.msra.mxu0 0.0
        %2891 = vmatprep.subr.mxu0 0.0
        %2892 = vmatpush1.msra.mxu0 0.0
        %2893 = vmatprep.subr.mxu0 0.0
        %2894 = vmatpush1.msra.mxu0 0.0
        %2895 = vmatprep.subr.mxu0 0.0
        %2896 = vmatpush1.msra.mxu0 0.0
        %2897 = vmatprep.subr.mxu0 0.0
        %2898 = vmatpush1.msra.mxu0 0.0
        %2899 = vmatprep.subr.mxu0 0.0
        %2900 = vmatpush1.msra.mxu0 0.0
        %2901 = vmatprep.subr.mxu0 0.0
        %2902 = vmatpush1.msra.mxu0 0.0
        %2903 = vmatprep.subr.mxu0 0.0
        %2904 = vmatpush1.msra.mxu0 0.0
        %2905 = vmatprep.subr.mxu0 0.0
        %2906 = vmatpush1.msra.mxu0 0.0
        %2907 = vmatprep.subr.mxu0 0.0
        %2908 = vmatpush1.msra.mxu0 0.0
        %2909 = vmatprep.subr.mxu0 0.0
        %2910 = vmatpush1.msra.mxu0 0.0
        %2911 = vmatprep.subr.mxu0 0.0
        %2912 = vmatpush1.msra.mxu0 0.0
        %2913 = vmatprep.subr.mxu0 0.0
        %2914 = vmatpush1.msra.mxu0 0.0
        %2915 = vmatprep.mubr.f32.mxu0 0.0
        %v2916 = vand.u32 %v2734, 4294901760
        %2917 = vmatmul.mubr.f32.gmra.mrb[0].mxu0 %v2916
        %v2918 = vpop.f32.mrb[0].mxu0
        %v2919 = vadd.f32 %v2818, %v2918
        %v2920 = vpop.f32.mrb[0].mxu0
        %2921 = vmatprep.mubr.f32.mxu0 0.0
        %v2922 = vand.u32 %v2737, 4294901760
        %2923 = vmatmul.mubr.f32.gmra.mrb[0].mxu0 %v2922
        %v2924 = vpop.f32.mrb[0].mxu0
        %v2925 = vadd.f32 %v2828, %v2924
        %v2926 = vpop.f32.mrb[0].mxu0
        %2927 = vdwg.mxu0
        %2928 = vmatprep.subr.mxu0 0.0
        %v2929 = vand.u32 %v2708, 4294901760
        %v2930 = vsub.f32 %v2708, %v2929
        %2931 = vmatpush1.msra.mxu0 %v2930
        %2932 = vmatprep.subr.mxu0 0.0
        %v2933 = vand.u32 %v2715, 4294901760
        %v2934 = vsub.f32 %v2715, %v2933
        %2935 = vmatpush1.msra.mxu0 %v2934
        %2936 = vmatprep.subr.mxu0 0.0
        %v2937 = vand.u32 %v2722, 4294901760
        %v2938 = vsub.f32 %v2722, %v2937
        %2939 = vmatpush1.msra.mxu0 %v2938
        %2940 = vmatprep.subr.mxu0 0.0
        %v2941 = vand.u32 %v2740, 4294901760
        %v2942 = vsub.f32 %v2740, %v2941
        %2943 = vmatpush1.msra.mxu0 %v2942
        %2944 = vmatprep.subr.mxu0 0.0
        %2945 = vmatpush1.msra.mxu0 0.0
        %2946 = vmatprep.subr.mxu0 0.0
        %2947 = vmatpush1.msra.mxu0 0.0
        %2948 = vmatprep.subr.mxu0 0.0
        %2949 = vmatpush1.msra.mxu0 0.0
        %2950 = vmatprep.subr.mxu0 0.0
        %2951 = vmatpush1.msra.mxu0 0.0
        %2952 = vmatprep.subr.mxu0 0.0
        %2953 = vmatpush1.msra.mxu0 0.0
        %2954 = vmatprep.subr.mxu0 0.0
        %2955 = vmatpush1.msra.mxu0 0.0
        %2956 = vmatprep.subr.mxu0 0.0
        %2957 = vmatpush1.msra.mxu0 0.0
        %2958 = vmatprep.subr.mxu0 0.0
        %2959 = vmatpush1.msra.mxu0 0.0
        %2960 = vmatprep.subr.mxu0 0.0
        %2961 = vmatpush1.msra.mxu0 0.0
        %2962 = vmatprep.subr.mxu0 0.0
        %2963 = vmatpush1.msra.mxu0 0.0
        %2964 = vmatprep.subr.mxu0 0.0
        %2965 = vmatpush1.msra.mxu0 0.0
        %2966 = vmatprep.subr.mxu0 0.0
        %2967 = vmatpush1.msra.mxu0 0.0
        %2968 = vmatprep.subr.mxu0 0.0
        %2969 = vmatpush1.msra.mxu0 0.0
        %2970 = vmatprep.subr.mxu0 0.0
        %2971 = vmatpush1.msra.mxu0 0.0
        %2972 = vmatprep.subr.mxu0 0.0
        %2973 = vmatpush1.msra.mxu0 0.0
        %2974 = vmatprep.subr.mxu0 0.0
        %2975 = vmatpush1.msra.mxu0 0.0
        %2976 = vmatprep.subr.mxu0 0.0
        %2977 = vmatpush1.msra.mxu0 0.0
        %2978 = vmatprep.subr.mxu0 0.0
        %2979 = vmatpush1.msra.mxu0 0.0
        %2980 = vmatprep.subr.mxu0 0.0
        %2981 = vmatpush1.msra.mxu0 0.0
        %2982 = vmatprep.subr.mxu0 0.0
        %2983 = vmatpush1.msra.mxu0 0.0
        %2984 = vmatprep.subr.mxu0 0.0
        %2985 = vmatpush1.msra.mxu0 0.0
        %2986 = vmatprep.subr.mxu0 0.0
        %2987 = vmatpush1.msra.mxu0 0.0
        %2988 = vmatprep.subr.mxu0 0.0
        %2989 = vmatpush1.msra.mxu0 0.0
        %2990 = vmatprep.subr.mxu0 0.0
        %2991 = vmatpush1.msra.mxu0 0.0
        %2992 = vmatprep.subr.mxu0 0.0
        %2993 = vmatpush1.msra.mxu0 0.0
        %2994 = vmatprep.subr.mxu0 0.0
        %2995 = vmatpush1.msra.mxu0 0.0
        %2996 = vmatprep.subr.mxu0 0.0
        %2997 = vmatpush1.msra.mxu0 0.0
        %2998 = vmatprep.subr.mxu0 0.0
        %2999 = vmatpush1.msra.mxu0 0.0
        %3000 = vmatprep.mubr.f32.mxu0 0.0
        %v3001 = vand.u32 %v2734, 4294901760
        %v3002 = vsub.f32 %v2734, %v3001
        %3003 = vmatmul.mubr.f32.gmra.mrb[0].mxu0 %v3002
        %v3004 = vpop.f32.mrb[0].mxu0
        %v3005 = vadd.f32 %v2919, %v3004
        %v3006 = vpop.f32.mrb[0].mxu0
        %3007 = vmatprep.mubr.f32.mxu0 0.0
        %v3008 = vand.u32 %v2737, 4294901760
        %v3009 = vsub.f32 %v2737, %v3008
        %3010 = vmatmul.mubr.f32.gmra.mrb[0].mxu0 %v3009
        %v3011 = vpop.f32.mrb[0].mxu0
        %v3012 = vadd.f32 %v2925, %v3011
        %v3013 = vpop.f32.mrb[0].mxu0
        %3014 = vdwg.mxu0
        %3015 = vmatprep.subr.mxu0 0.0
        %v3016 = vand.u32 %v2708, 4294901760
        %3017 = vmatpush1.msra.mxu0 %v3016
        %3018 = vmatprep.subr.mxu0 0.0
        %v3019 = vand.u32 %v2715, 4294901760
        %3020 = vmatpush1.msra.mxu0 %v3019
        %3021 = vmatprep.subr.mxu0 0.0
        %v3022 = vand.u32 %v2722, 4294901760
        %3023 = vmatpush1.msra.mxu0 %v3022
        %3024 = vmatprep.subr.mxu0 0.0
        %v3025 = vand.u32 %v2740, 4294901760
        %3026 = vmatpush1.msra.mxu0 %v3025
        %3027 = vmatprep.subr.mxu0 0.0
        %3028 = vmatpush1.msra.mxu0 0.0
        %3029 = vmatprep.subr.mxu0 0.0
        %3030 = vmatpush1.msra.mxu0 0.0
        %3031 = vmatprep.subr.mxu0 0.0
        %3032 = vmatpush1.msra.mxu0 0.0
        %3033 = vmatprep.subr.mxu0 0.0
        %3034 = vmatpush1.msra.mxu0 0.0
        %3035 = vmatprep.subr.mxu0 0.0
        %3036 = vmatpush1.msra.mxu0 0.0
        %3037 = vmatprep.subr.mxu0 0.0
        %3038 = vmatpush1.msra.mxu0 0.0
        %3039 = vmatprep.subr.mxu0 0.0
        %3040 = vmatpush1.msra.mxu0 0.0
        %3041 = vmatprep.subr.mxu0 0.0
        %3042 = vmatpush1.msra.mxu0 0.0
        %3043 = vmatprep.subr.mxu0 0.0
        %3044 = vmatpush1.msra.mxu0 0.0
        %3045 = vmatprep.subr.mxu0 0.0
        %3046 = vmatpush1.msra.mxu0 0.0
        %3047 = vmatprep.subr.mxu0 0.0
        %3048 = vmatpush1.msra.mxu0 0.0
        %3049 = vmatprep.subr.mxu0 0.0
        %3050 = vmatpush1.msra.mxu0 0.0
        %3051 = vmatprep.subr.mxu0 0.0
        %3052 = vmatpush1.msra.mxu0 0.0
        %3053 = vmatprep.subr.mxu0 0.0
        %3054 = vmatpush1.msra.mxu0 0.0
        %3055 = vmatprep.subr.mxu0 0.0
        %3056 = vmatpush1.msra.mxu0 0.0
        %3057 = vmatprep.subr.mxu0 0.0
        %3058 = vmatpush1.msra.mxu0 0.0
        %3059 = vmatprep.subr.mxu0 0.0
        %3060 = vmatpush1.msra.mxu0 0.0
        %3061 = vmatprep.subr.mxu0 0.0
        %3062 = vmatpush1.msra.mxu0 0.0
        %3063 = vmatprep.subr.mxu0 0.0
        %3064 = vmatpush1.msra.mxu0 0.0
        %3065 = vmatprep.subr.mxu0 0.0
        %3066 = vmatpush1.msra.mxu0 0.0
        %3067 = vmatprep.subr.mxu0 0.0
        %3068 = vmatpush1.msra.mxu0 0.0
        %3069 = vmatprep.subr.mxu0 0.0
        %3070 = vmatpush1.msra.mxu0 0.0
        %3071 = vmatprep.subr.mxu0 0.0
        %3072 = vmatpush1.msra.mxu0 0.0
        %3073 = vmatprep.subr.mxu0 0.0
        %3074 = vmatpush1.msra.mxu0 0.0
        %3075 = vmatprep.subr.mxu0 0.0
        %3076 = vmatpush1.msra.mxu0 0.0
        %3077 = vmatprep.subr.mxu0 0.0
        %3078 = vmatpush1.msra.mxu0 0.0
        %3079 = vmatprep.subr.mxu0 0.0
        %3080 = vmatpush1.msra.mxu0 0.0
        %3081 = vmatprep.subr.mxu0 0.0
        %3082 = vmatpush1.msra.mxu0 0.0
        %3083 = vmatprep.mubr.f32.mxu0 0.0
        %v3084 = vand.u32 %v2734, 4294901760
        %v3085 = vsub.f32 %v2734, %v3084
        %v3086 = vand.u32 %v3085, 4294901760
        %3087 = vmatmul.mubr.f32.gmra.mrb[0].mxu0 %v3086
        %v3088 = vpop.f32.mrb[0].mxu0
        %v3089 = vadd.f32 %v3005, %v3088
        %v3090 = vpop.f32.mrb[0].mxu0
        %3091 = vmatprep.mubr.f32.mxu0 0.0
        %v3092 = vand.u32 %v2737, 4294901760
        %v3093 = vsub.f32 %v2737, %v3092
        %v3094 = vand.u32 %v3093, 4294901760
        %3095 = vmatmul.mubr.f32.gmra.mrb[0].mxu0 %v3094
        %v3096 = vpop.f32.mrb[0].mxu0
        %v3097 = vadd.f32 %v3012, %v3096
        %v3098 = vpop.f32.mrb[0].mxu0
        %3099 = vdwg.mxu0
        %3100 = vmatprep.subr.mxu0 0.0
        %v3101 = vand.u32 %v2708, 4294901760
        %v3102 = vsub.f32 %v2708, %v3101
        %v3103 = vand.u32 %v3102, 4294901760
        %3104 = vmatpush1.msra.mxu0 %v3103
        %3105 = vmatprep.subr.mxu0 0.0
        %v3106 = vand.u32 %v2715, 4294901760
        %v3107 = vsub.f32 %v2715, %v3106
        %v3108 = vand.u32 %v3107, 4294901760
        %3109 = vmatpush1.msra.mxu0 %v3108
        %3110 = vmatprep.subr.mxu0 0.0
        %v3111 = vand.u32 %v2722, 4294901760
        %v3112 = vsub.f32 %v2722, %v3111
        %v3113 = vand.u32 %v3112, 4294901760
        %3114 = vmatpush1.msra.mxu0 %v3113
        %3115 = vmatprep.subr.mxu0 0.0
        %v3116 = vand.u32 %v2740, 4294901760
        %v3117 = vsub.f32 %v2740, %v3116
        %v3118 = vand.u32 %v3117, 4294901760
        %3119 = vmatpush1.msra.mxu0 %v3118
        %3120 = vmatprep.subr.mxu0 0.0
        %3121 = vmatpush1.msra.mxu0 0.0
        %3122 = vmatprep.subr.mxu0 0.0
        %3123 = vmatpush1.msra.mxu0 0.0
        %3124 = vmatprep.subr.mxu0 0.0
        %3125 = vmatpush1.msra.mxu0 0.0
        %3126 = vmatprep.subr.mxu0 0.0
        %3127 = vmatpush1.msra.mxu0 0.0
        %3128 = vmatprep.subr.mxu0 0.0
        %3129 = vmatpush1.msra.mxu0 0.0
        %3130 = vmatprep.subr.mxu0 0.0
        %3131 = vmatpush1.msra.mxu0 0.0
        %3132 = vmatprep.subr.mxu0 0.0
        %3133 = vmatpush1.msra.mxu0 0.0
        %3134 = vmatprep.subr.mxu0 0.0
        %3135 = vmatpush1.msra.mxu0 0.0
        %3136 = vmatprep.subr.mxu0 0.0
        %3137 = vmatpush1.msra.mxu0 0.0
        %3138 = vmatprep.subr.mxu0 0.0
        %3139 = vmatpush1.msra.mxu0 0.0
        %3140 = vmatprep.subr.mxu0 0.0
        %3141 = vmatpush1.msra.mxu0 0.0
        %3142 = vmatprep.subr.mxu0 0.0
        %3143 = vmatpush1.msra.mxu0 0.0
        %3144 = vmatprep.subr.mxu0 0.0
        %3145 = vmatpush1.msra.mxu0 0.0
        %3146 = vmatprep.subr.mxu0 0.0
        %3147 = vmatpush1.msra.mxu0 0.0
        %3148 = vmatprep.subr.mxu0 0.0
        %3149 = vmatpush1.msra.mxu0 0.0
        %3150 = vmatprep.subr.mxu0 0.0
        %3151 = vmatpush1.msra.mxu0 0.0
        %3152 = vmatprep.subr.mxu0 0.0
        %3153 = vmatpush1.msra.mxu0 0.0
        %3154 = vmatprep.subr.mxu0 0.0
        %3155 = vmatpush1.msra.mxu0 0.0
        %3156 = vmatprep.subr.mxu0 0.0
        %3157 = vmatpush1.msra.mxu0 0.0
        %3158 = vmatprep.subr.mxu0 0.0
        %3159 = vmatpush1.msra.mxu0 0.0
        %3160 = vmatprep.subr.mxu0 0.0
        %3161 = vmatpush1.msra.mxu0 0.0
        %3162 = vmatprep.subr.mxu0 0.0
        %3163 = vmatpush1.msra.mxu0 0.0
        %3164 = vmatprep.subr.mxu0 0.0
        %3165 = vmatpush1.msra.mxu0 0.0
        %3166 = vmatprep.subr.mxu0 0.0
        %3167 = vmatpush1.msra.mxu0 0.0
        %3168 = vmatprep.subr.mxu0 0.0
        %3169 = vmatpush1.msra.mxu0 0.0
        %3170 = vmatprep.subr.mxu0 0.0
        %3171 = vmatpush1.msra.mxu0 0.0
        %3172 = vmatprep.subr.mxu0 0.0
        %3173 = vmatpush1.msra.mxu0 0.0
        %3174 = vmatprep.subr.mxu0 0.0
        %3175 = vmatpush1.msra.mxu0 0.0
        %3176 = vmatprep.mubr.f32.mxu0 0.0
        %v3177 = vand.u32 %v2734, 4294901760
        %3178 = vmatmul.mubr.f32.gmra.mrb[0].mxu0 %v3177
        %v3179 = vpop.f32.mrb[0].mxu0
        %v3180 = vadd.f32 %v3089, %v3179
        %v3181 = vpop.f32.mrb[0].mxu0
        %3182 = vmatprep.mubr.f32.mxu0 0.0
        %v3183 = vand.u32 %v2737, 4294901760
        %3184 = vmatmul.mubr.f32.gmra.mrb[0].mxu0 %v3183
        %v3185 = vpop.f32.mrb[0].mxu0
        %v3186 = vadd.f32 %v3097, %v3185
        %v3187 = vpop.f32.mrb[0].mxu0
        %3188 = vdwg.mxu0
        %3189 = vmatprep.subr.mxu0 0.0
        %v3190 = vand.u32 %v2708, 4294901760
        %3191 = vmatpush1.msra.mxu0 %v3190
        %3192 = vmatprep.subr.mxu0 0.0
        %v3193 = vand.u32 %v2715, 4294901760
        %3194 = vmatpush1.msra.mxu0 %v3193
        %3195 = vmatprep.subr.mxu0 0.0
        %v3196 = vand.u32 %v2722, 4294901760
        %3197 = vmatpush1.msra.mxu0 %v3196
        %3198 = vmatprep.subr.mxu0 0.0
        %v3199 = vand.u32 %v2740, 4294901760
        %3200 = vmatpush1.msra.mxu0 %v3199
        %3201 = vmatprep.subr.mxu0 0.0
        %3202 = vmatpush1.msra.mxu0 0.0
        %3203 = vmatprep.subr.mxu0 0.0
        %3204 = vmatpush1.msra.mxu0 0.0
        %3205 = vmatprep.subr.mxu0 0.0
        %3206 = vmatpush1.msra.mxu0 0.0
        %3207 = vmatprep.subr.mxu0 0.0
        %3208 = vmatpush1.msra.mxu0 0.0
        %3209 = vmatprep.subr.mxu0 0.0
        %3210 = vmatpush1.msra.mxu0 0.0
        %3211 = vmatprep.subr.mxu0 0.0
        %3212 = vmatpush1.msra.mxu0 0.0
        %3213 = vmatprep.subr.mxu0 0.0
        %3214 = vmatpush1.msra.mxu0 0.0
        %3215 = vmatprep.subr.mxu0 0.0
        %3216 = vmatpush1.msra.mxu0 0.0
        %3217 = vmatprep.subr.mxu0 0.0
        %3218 = vmatpush1.msra.mxu0 0.0
        %3219 = vmatprep.subr.mxu0 0.0
        %3220 = vmatpush1.msra.mxu0 0.0
        %3221 = vmatprep.subr.mxu0 0.0
        %3222 = vmatpush1.msra.mxu0 0.0
        %3223 = vmatprep.subr.mxu0 0.0
        %3224 = vmatpush1.msra.mxu0 0.0
        %3225 = vmatprep.subr.mxu0 0.0
        %3226 = vmatpush1.msra.mxu0 0.0
        %3227 = vmatprep.subr.mxu0 0.0
        %3228 = vmatpush1.msra.mxu0 0.0
        %3229 = vmatprep.subr.mxu0 0.0
        %3230 = vmatpush1.msra.mxu0 0.0
        %3231 = vmatprep.subr.mxu0 0.0
        %3232 = vmatpush1.msra.mxu0 0.0
        %3233 = vmatprep.subr.mxu0 0.0
        %3234 = vmatpush1.msra.mxu0 0.0
        %3235 = vmatprep.subr.mxu0 0.0
        %3236 = vmatpush1.msra.mxu0 0.0
        %3237 = vmatprep.subr.mxu0 0.0
        %3238 = vmatpush1.msra.mxu0 0.0
        %3239 = vmatprep.subr.mxu0 0.0
        %3240 = vmatpush1.msra.mxu0 0.0
        %3241 = vmatprep.subr.mxu0 0.0
        %3242 = vmatpush1.msra.mxu0 0.0
        %3243 = vmatprep.subr.mxu0 0.0
        %3244 = vmatpush1.msra.mxu0 0.0
        %3245 = vmatprep.subr.mxu0 0.0
        %3246 = vmatpush1.msra.mxu0 0.0
        %3247 = vmatprep.subr.mxu0 0.0
        %3248 = vmatpush1.msra.mxu0 0.0
        %3249 = vmatprep.subr.mxu0 0.0
        %3250 = vmatpush1.msra.mxu0 0.0
        %3251 = vmatprep.subr.mxu0 0.0
        %3252 = vmatpush1.msra.mxu0 0.0
        %3253 = vmatprep.subr.mxu0 0.0
        %3254 = vmatpush1.msra.mxu0 0.0
        %3255 = vmatprep.subr.mxu0 0.0
        %3256 = vmatpush1.msra.mxu0 0.0
        %3257 = vmatprep.mubr.f32.mxu0 0.0
        %v3258 = vand.u32 %v2734, 4294901760
        %3259 = vmatmul.mubr.f32.gmra.mrb[0].mxu0 %v3258
        %v3260 = vpop.f32.mrb[0].mxu0
        %v3261 = vadd.f32 %v3180, %v3260
        %v3262 = vpop.f32.mrb[0].mxu0
        %3263 = vmatprep.mubr.f32.mxu0 0.0
        %v3264 = vand.u32 %v2737, 4294901760
        %3265 = vmatmul.mubr.f32.gmra.mrb[0].mxu0 %v3264
        %v3266 = vpop.f32.mrb[0].mxu0
        %v3267 = vadd.f32 %v3186, %v3266
        %v3268 = vpop.f32.mrb[0].mxu0
        %3269 = vdwg.mxu0
        %v3272 = vrot.slane %v3261, 1
        %v3273 = vrot.slane %v3267, 1
        %v3274 = vsel %vm500, %v3272, %v3273
        %3275 = vrot.lane.b32.xlu0 %v3274, 84
        %v3276 = vpop.permute.xlu0 %3275
        %3277 = vrot.lane.b32.xlu0 %v3273, 84
        %v3278 = vpop.permute.xlu0 %3277
        %v3281 = vrot.slane %v3261, 2
        %v3282 = vrot.slane %v3267, 2
        %v3283 = vsel %vm520, %v3281, %v3282
        %3284 = vrot.lane.b32.xlu0 %v3283, 40
        %v3285 = vpop.permute.xlu0 %3284
        %3286 = vrot.lane.b32.xlu0 %v3282, 40
        %v3287 = vpop.permute.xlu0 %3286
        %v3290 = vrot.slane %v3261, 3
        %v3291 = vrot.slane %v3267, 3
        %v3292 = vsel %vm540, %v3290, %v3291
        %3293 = vrot.lane.b32.xlu0 %v3292, 124
        %v3294 = vpop.permute.xlu0 %3293
        %3295 = vrot.lane.b32.xlu0 %v3291, 124
        %v3296 = vpop.permute.xlu0 %3295
        %v3299 = vrot.slane %v3261, 4
        %v3300 = vrot.slane %v3267, 4
        %v3301 = vsel %vm560, %v3299, %v3300
        %3302 = vrot.lane.b32.xlu0 %v3301, 80
        %v3303 = vpop.permute.xlu0 %3302
        %3304 = vrot.lane.b32.xlu0 %v3300, 80
        %v3305 = vpop.permute.xlu0 %3304
        %vm3308 = vcmask 687104
        %v3309 = vsel %vm3308, %v3261, %v3276
        %v3310 = vsel %vm3308, %v3267, %v3278
        %v3311 = vsel %vm1832, %v3276, %v3285
        %v3312 = vsel %vm1832, %v3278, %v3287
        %vm3313 = vcmask 1014784
        %v3314 = vsel %vm3313, %v3311, %v3294
        %v3315 = vsel %vm3313, %v3312, %v3296
        %vm3316 = vcmask 654336
        %v3317 = vsel %vm3316, %v3294, %v3303
        %v3318 = vsel %vm3316, %v3296, %v3305
        %v3319 = vld [vmem:[%s5] sm:$0xff]
        %v3320 = vld [vmem:[%s5 + $0x8] sm:$0xff]
        %v3321 = vld [vmem:[%s5 + $0x10] sm:$0xff]
        %v3322 = vld [vmem:[%s5 + $0x18] sm:$0xff]
        %v3323 = vld [vmem:[%s5 + $0x20] sm:$0xff]
        %v3324 = vld [vmem:[%s5 + $0x28] sm:$0xff]
        %v3325 = vld [vmem:[%s5 + $0x30] sm:$0xff]
        %v3326 = vld [vmem:[%s5 + $0x38] sm:$0xff]
        %v3327 = vld [vmem:[%s5 + $0x40] sm:$0xff]
        %v3328 = vld [vmem:[%s5 + $0x48] sm:$0xff]
        %v3329 = vld [vmem:[%s5 + $0x50] sm:$0xff]
        %v3330 = vld [vmem:[%s5 + $0x58] sm:$0xff]
        %v3331 = vld [vmem:[%s5 + $0x60] sm:$0xff]
        %v3332 = vld [vmem:[%s5 + $0x68] sm:$0xff]
        %v3333 = vld [vmem:[%s5 + $0x70] sm:$0xff]
        %v3334 = vld [vmem:[%s5 + $0x78] sm:$0xff]
        %v3335 = vld [vmem:[%s5 + $0x80] sm:$0xff]
        %v3336 = vld [vmem:[%s5 + $0x88] sm:$0xff]
        %v3337 = vld [vmem:[%s5 + $0x90] sm:$0xff]
        %v3338 = vld [vmem:[%s5 + $0x98] sm:$0xff]
        %v3339 = vld [vmem:[%s5 + $0xa0] sm:$0xff]
        %v3340 = vld [vmem:[%s5 + $0xa8] sm:$0xff]
        %v3341 = vld [vmem:[%s5 + $0xb0] sm:$0xff]
        %v3342 = vld [vmem:[%s5 + $0xb8] sm:$0xff]
        %v3343 = vld [vmem:[%s5 + $0xc0] sm:$0xff]
        %v3344 = vld [vmem:[%s5 + $0xc8] sm:$0xff]
        %v3345 = vld [vmem:[%s5 + $0xd0] sm:$0xff]
        %v3346 = vld [vmem:[%s5 + $0xd8] sm:$0xff]
        %v3347 = vld [vmem:[%s5 + $0xe0] sm:$0xff]
        %v3348 = vld [vmem:[%s5 + $0xe8] sm:$0xff]
        %v3349 = vld [vmem:[%s5 + $0xf0] sm:$0xff]
        %v3350 = vld [vmem:[%s5 + $0xf8] sm:$0xff]
        %v3351 = vld [vmem:[%s5 + $0x100] sm:$0xff]
        %v3352 = vld [vmem:[%s5 + $0x108] sm:$0xff]
        %v3353 = vld [vmem:[%s5 + $0x110] sm:$0xff]
        %v3354 = vld [vmem:[%s5 + $0x118] sm:$0xff]
        %v3355 = vld [vmem:[%s5 + $0x120] sm:$0xff]
        %v3356 = vld [vmem:[%s5 + $0x128] sm:$0xff]
        %v3357 = vld [vmem:[%s5 + $0x130] sm:$0xff]
        %v3358 = vld [vmem:[%s5 + $0x138] sm:$0xff]
        %v3359 = vld [vmem:[%s5 + $0x140] sm:$0xff]
        %v3360 = vld [vmem:[%s5 + $0x148] sm:$0xff]
        %v3361 = vld [vmem:[%s5 + $0x150] sm:$0xff]
        %v3362 = vld [vmem:[%s5 + $0x158] sm:$0xff]
        %v3363 = vld [vmem:[%s5 + $0x160] sm:$0xff]
        %v3364 = vld [vmem:[%s5 + $0x168] sm:$0xff]
        %v3365 = vld [vmem:[%s5 + $0x170] sm:$0xff]
        %v3366 = vld [vmem:[%s5 + $0x178] sm:$0xff]
        %v3367 = vld [vmem:[%s5 + $0x180] sm:$0xff]
        %v3368 = vld [vmem:[%s5 + $0x188] sm:$0xff]
        %v3369 = vld [vmem:[%s5 + $0x190] sm:$0xff]
        %v3370 = vld [vmem:[%s5 + $0x198] sm:$0xff]
        %v3371 = vld [vmem:[%s5 + $0x1a0] sm:$0xff]
        %v3372 = vld [vmem:[%s5 + $0x1a8] sm:$0xff]
        %v3373 = vld [vmem:[%s5 + $0x1b0] sm:$0xff]
        %v3374 = vld [vmem:[%s5 + $0x1b8] sm:$0xff]
        %v3375 = vld [vmem:[%s5 + $0x1c0] sm:$0xff]
        %v3376 = vld [vmem:[%s5 + $0x1c8] sm:$0xff]
        %v3377 = vld [vmem:[%s5 + $0x1d0] sm:$0xff]
        %v3378 = vld [vmem:[%s5 + $0x1d8] sm:$0xff]
        %v3379 = vld [vmem:[%s5 + $0x1e0] sm:$0xff]
        %v3380 = vld [vmem:[%s5 + $0x1e8] sm:$0xff]
        %v3381 = vld [vmem:[%s5 + $0x1f0] sm:$0xff]
        %v3382 = vld [vmem:[%s5 + $0x1f8] sm:$0xff]
        %v3383 = vld [vmem:[%s5 + $0x200] sm:$0xff]
        %v3384 = vld [vmem:[%s5 + $0x208] sm:$0xff]
        %v3385 = vld [vmem:[%s5 + $0x210] sm:$0xff]
        %v3386 = vld [vmem:[%s5 + $0x218] sm:$0xff]
        %v3387 = vld [vmem:[%s5 + $0x220] sm:$0xff]
        %v3388 = vld [vmem:[%s5 + $0x228] sm:$0xff]
        %v3389 = vld [vmem:[%s5 + $0x230] sm:$0xff]
        %v3390 = vld [vmem:[%s5 + $0x238] sm:$0xff]
        %v3391 = vld [vmem:[%s5 + $0x240] sm:$0xff]
        %v3392 = vld [vmem:[%s5 + $0x248] sm:$0xff]
        %v3393 = vld [vmem:[%s5 + $0x250] sm:$0xff]
        %v3394 = vld [vmem:[%s5 + $0x258] sm:$0xff]
        %v3395 = vld [vmem:[%s5 + $0x260] sm:$0xff]
        %v3396 = vld [vmem:[%s5 + $0x268] sm:$0xff]
        %v3397 = vld [vmem:[%s5 + $0x270] sm:$0xff]
        %v3398 = vld [vmem:[%s5 + $0x278] sm:$0xff]
        %v3399 = vld [vmem:[%s5 + $0x280] sm:$0xff]
        %v3400 = vld [vmem:[%s5 + $0x288] sm:$0xff]
        %v3401 = vld [vmem:[%s5 + $0x290] sm:$0xff]
        %v3402 = vld [vmem:[%s5 + $0x298] sm:$0xff]
        %v3403 = vld [vmem:[%s5 + $0x2a0] sm:$0xff]
        %v3404 = vld [vmem:[%s5 + $0x2a8] sm:$0xff]
        %v3405 = vld [vmem:[%s5 + $0x2b0] sm:$0xff]
        %v3406 = vld [vmem:[%s5 + $0x2b8] sm:$0xff]
        %v3407 = vld [vmem:[%s5 + $0x2c0] sm:$0xff]
        %v3408 = vld [vmem:[%s5 + $0x2c8] sm:$0xff]
        %v3409 = vld [vmem:[%s5 + $0x2d0] sm:$0xff]
        %v3410 = vld [vmem:[%s5 + $0x2d8] sm:$0xff]
        %v3411 = vld [vmem:[%s5 + $0x2e0] sm:$0xff]
        %v3412 = vld [vmem:[%s5 + $0x2e8] sm:$0xff]
        %v3413 = vld [vmem:[%s5 + $0x2f0] sm:$0xff]
        %v3414 = vld [vmem:[%s5 + $0x2f8] sm:$0xff]
        %v3415 = vld [vmem:[%s5 + $0x300] sm:$0xff]
        %v3416 = vld [vmem:[%s5 + $0x308] sm:$0xff]
        %v3417 = vld [vmem:[%s5 + $0x310] sm:$0xff]
        %v3418 = vld [vmem:[%s5 + $0x318] sm:$0xff]
        %v3419 = vld [vmem:[%s5 + $0x320] sm:$0xff]
        %v3420 = vld [vmem:[%s5 + $0x328] sm:$0xff]
        %v3421 = vld [vmem:[%s5 + $0x330] sm:$0xff]
        %v3422 = vld [vmem:[%s5 + $0x338] sm:$0xff]
        %v3423 = vld [vmem:[%s5 + $0x340] sm:$0xf]
        %v3424 = vld [vmem:[%s5 + $0x348] sm:$0xf]
        %v3425 = vld [vmem:[%s6] sm:$0x3]
        %v3427 = vlaneseq
        %v3428 = vshrl.u32 %v3427, 7
        %v3429 = vsub.s32 0, %v3428
        %v3430 = vrot.slane %v3425, %v3429
        %v3431 = vlaneseq
        %v3432 = vshrl.u32 %v3431, 7
        %v3433 = vsub.s32 1, %v3432
        %v3434 = vrot.slane %v3425, %v3433
        %vm3437 = vcmask 293888
        %v3438 = vsel %vm3437, %v3303, 0
        %v3440 = vsel %vm3437, %v3305, 0
        %v3443 = vsel %vm560, %v3423, 0
        %v3446 = vsel %vm560, %v3424, 0
        %v3448 = vand.u32 %v3320, 4294901760
        %3449 = vmatprep.subr.mxu0 %v3448
        %v3450 = vand.u32 %v3319, 4294901760
        %3451 = vmatpush1.msra.mxu0 %v3450
        %v3452 = vand.u32 %v3322, 4294901760
        %3453 = vmatprep.subr.mxu0 %v3452
        %v3454 = vand.u32 %v3321, 4294901760
        %3455 = vmatpush1.msra.mxu0 %v3454
        %v3456 = vand.u32 %v3324, 4294901760
        %3457 = vmatprep.subr.mxu0 %v3456
        %v3458 = vand.u32 %v3323, 4294901760
        %3459 = vmatpush1.msra.mxu0 %v3458
        %v3460 = vand.u32 %v3326, 4294901760
        %3461 = vmatprep.subr.mxu0 %v3460
        %v3462 = vand.u32 %v3325, 4294901760
        %3463 = vmatpush1.msra.mxu0 %v3462
        %v3464 = vand.u32 %v3328, 4294901760
        %3465 = vmatprep.subr.mxu0 %v3464
        %v3466 = vand.u32 %v3327, 4294901760
        %3467 = vmatpush1.msra.mxu0 %v3466
        %v3468 = vand.u32 %v3330, 4294901760
        %3469 = vmatprep.subr.mxu0 %v3468
        %v3470 = vand.u32 %v3329, 4294901760
        %3471 = vmatpush1.msra.mxu0 %v3470
        %v3472 = vand.u32 %v3332, 4294901760
        %3473 = vmatprep.subr.mxu0 %v3472
        %v3474 = vand.u32 %v3331, 4294901760
        %3475 = vmatpush1.msra.mxu0 %v3474
        %v3476 = vand.u32 %v3334, 4294901760
        %3477 = vmatprep.subr.mxu0 %v3476
        %v3478 = vand.u32 %v3333, 4294901760
        %3479 = vmatpush1.msra.mxu0 %v3478
        %v3480 = vand.u32 %v3336, 4294901760
        %3481 = vmatprep.subr.mxu0 %v3480
        %v3482 = vand.u32 %v3335, 4294901760
        %3483 = vmatpush1.msra.mxu0 %v3482
        %v3484 = vand.u32 %v3338, 4294901760
        %3485 = vmatprep.subr.mxu0 %v3484
        %v3486 = vand.u32 %v3337, 4294901760
        %3487 = vmatpush1.msra.mxu0 %v3486
        %v3488 = vand.u32 %v3340, 4294901760
        %3489 = vmatprep.subr.mxu0 %v3488
        %v3490 = vand.u32 %v3339, 4294901760
        %3491 = vmatpush1.msra.mxu0 %v3490
        %v3492 = vand.u32 %v3342, 4294901760
        %3493 = vmatprep.subr.mxu0 %v3492
        %v3494 = vand.u32 %v3341, 4294901760
        %3495 = vmatpush1.msra.mxu0 %v3494
        %v3496 = vand.u32 %v3344, 4294901760
        %3497 = vmatprep.subr.mxu0 %v3496
        %v3498 = vand.u32 %v3343, 4294901760
        %3499 = vmatpush1.msra.mxu0 %v3498
        %v3500 = vand.u32 %v3346, 4294901760
        %3501 = vmatprep.subr.mxu0 %v3500
        %v3502 = vand.u32 %v3345, 4294901760
        %3503 = vmatpush1.msra.mxu0 %v3502
        %v3504 = vand.u32 %v3348, 4294901760
        %3505 = vmatprep.subr.mxu0 %v3504
        %v3506 = vand.u32 %v3347, 4294901760
        %3507 = vmatpush1.msra.mxu0 %v3506
        %v3508 = vand.u32 %v3350, 4294901760
        %3509 = vmatprep.subr.mxu0 %v3508
        %v3510 = vand.u32 %v3349, 4294901760
        %3511 = vmatpush1.msra.mxu0 %v3510
        %v3512 = vand.u32 %v3352, 4294901760
        %3513 = vmatprep.subr.mxu0 %v3512
        %v3514 = vand.u32 %v3351, 4294901760
        %3515 = vmatpush1.msra.mxu0 %v3514
        %v3516 = vand.u32 %v3354, 4294901760
        %3517 = vmatprep.subr.mxu0 %v3516
        %v3518 = vand.u32 %v3353, 4294901760
        %3519 = vmatpush1.msra.mxu0 %v3518
        %v3520 = vand.u32 %v3356, 4294901760
        %3521 = vmatprep.subr.mxu0 %v3520
        %v3522 = vand.u32 %v3355, 4294901760
        %3523 = vmatpush1.msra.mxu0 %v3522
        %v3524 = vand.u32 %v3358, 4294901760
        %3525 = vmatprep.subr.mxu0 %v3524
        %v3526 = vand.u32 %v3357, 4294901760
        %3527 = vmatpush1.msra.mxu0 %v3526
        %v3528 = vand.u32 %v3360, 4294901760
        %3529 = vmatprep.subr.mxu0 %v3528
        %v3530 = vand.u32 %v3359, 4294901760
        %3531 = vmatpush1.msra.mxu0 %v3530
        %v3532 = vand.u32 %v3362, 4294901760
        %3533 = vmatprep.subr.mxu0 %v3532
        %v3534 = vand.u32 %v3361, 4294901760
        %3535 = vmatpush1.msra.mxu0 %v3534
        %v3536 = vand.u32 %v3364, 4294901760
        %3537 = vmatprep.subr.mxu0 %v3536
        %v3538 = vand.u32 %v3363, 4294901760
        %3539 = vmatpush1.msra.mxu0 %v3538
        %v3540 = vand.u32 %v3366, 4294901760
        %3541 = vmatprep.subr.mxu0 %v3540
        %v3542 = vand.u32 %v3365, 4294901760
        %3543 = vmatpush1.msra.mxu0 %v3542
        %v3544 = vand.u32 %v3368, 4294901760
        %3545 = vmatprep.subr.mxu0 %v3544
        %v3546 = vand.u32 %v3367, 4294901760
        %3547 = vmatpush1.msra.mxu0 %v3546
        %v3548 = vand.u32 %v3370, 4294901760
        %3549 = vmatprep.subr.mxu0 %v3548
        %v3550 = vand.u32 %v3369, 4294901760
        %3551 = vmatpush1.msra.mxu0 %v3550
        %v3552 = vand.u32 %v3372, 4294901760
        %3553 = vmatprep.subr.mxu0 %v3552
        %v3554 = vand.u32 %v3371, 4294901760
        %3555 = vmatpush1.msra.mxu0 %v3554
        %v3556 = vand.u32 %v3374, 4294901760
        %3557 = vmatprep.subr.mxu0 %v3556
        %v3558 = vand.u32 %v3373, 4294901760
        %3559 = vmatpush1.msra.mxu0 %v3558
        %v3560 = vand.u32 %v3376, 4294901760
        %3561 = vmatprep.subr.mxu0 %v3560
        %v3562 = vand.u32 %v3375, 4294901760
        %3563 = vmatpush1.msra.mxu0 %v3562
        %v3564 = vand.u32 %v3378, 4294901760
        %3565 = vmatprep.subr.mxu0 %v3564
        %v3566 = vand.u32 %v3377, 4294901760
        %3567 = vmatpush1.msra.mxu0 %v3566
        %v3568 = vand.u32 %v3380, 4294901760
        %3569 = vmatprep.subr.mxu0 %v3568
        %v3570 = vand.u32 %v3379, 4294901760
        %3571 = vmatpush1.msra.mxu0 %v3570
        %v3572 = vand.u32 %v3382, 4294901760
        %3573 = vmatprep.subr.mxu0 %v3572
        %v3574 = vand.u32 %v3381, 4294901760
        %3575 = vmatpush1.msra.mxu0 %v3574
        %v3576 = vand.u32 %v3314, 4294901760
        %v3577 = vsub.f32 %v3314, %v3576
        %v3578 = vand.u32 %v3577, 4294901760
        %v3579 = vsub.f32 %v3577, %v3578
        %v3580 = vand.u32 %v3579, 4294901760
        %3581 = vmatprep.mubr.f32.mxu0 %v3580
        %v3582 = vand.u32 %v3309, 4294901760
        %v3583 = vsub.f32 %v3309, %v3582
        %v3584 = vand.u32 %v3583, 4294901760
        %v3585 = vsub.f32 %v3583, %v3584
        %v3586 = vand.u32 %v3585, 4294901760
        %3587 = vmatmul.mubr.f32.gmra.mrb[0].mxu0 %v3586
        %v3588 = vpop.f32.mrb[0].mxu0
        %v3589 = vadd.f32 %v3430, %v3588
        %v3590 = vpop.f32.mrb[0].mxu0
        %v3591 = vadd.f32 %v3434, %v3590
        %v3592 = vand.u32 %v3315, 4294901760
        %v3593 = vsub.f32 %v3315, %v3592
        %v3594 = vand.u32 %v3593, 4294901760
        %v3595 = vsub.f32 %v3593, %v3594
        %v3596 = vand.u32 %v3595, 4294901760
        %3597 = vmatprep.mubr.f32.mxu0 %v3596
        %v3598 = vand.u32 %v3310, 4294901760
        %v3599 = vsub.f32 %v3310, %v3598
        %v3600 = vand.u32 %v3599, 4294901760
        %v3601 = vsub.f32 %v3599, %v3600
        %v3602 = vand.u32 %v3601, 4294901760
        %3603 = vmatmul.mubr.f32.gmra.mrb[0].mxu0 %v3602
        %v3604 = vpop.f32.mrb[0].mxu0
        %v3605 = vadd.f32 %v3430, %v3604
        %v3606 = vpop.f32.mrb[0].mxu0
        %v3607 = vadd.f32 %v3434, %v3606
        %3608 = vdwg.mxu0
        %v3609 = vand.u32 %v3320, 4294901760
        %v3610 = vsub.f32 %v3320, %v3609
        %v3611 = vand.u32 %v3610, 4294901760
        %v3612 = vsub.f32 %v3610, %v3611
        %v3613 = vand.u32 %v3612, 4294901760
        %3614 = vmatprep.subr.mxu0 %v3613
        %v3615 = vand.u32 %v3319, 4294901760
        %v3616 = vsub.f32 %v3319, %v3615
        %v3617 = vand.u32 %v3616, 4294901760
        %v3618 = vsub.f32 %v3616, %v3617
        %v3619 = vand.u32 %v3618, 4294901760
        %3620 = vmatpush1.msra.mxu0 %v3619
        %v3621 = vand.u32 %v3322, 4294901760
        %v3622 = vsub.f32 %v3322, %v3621
        %v3623 = vand.u32 %v3622, 4294901760
        %v3624 = vsub.f32 %v3622, %v3623
        %v3625 = vand.u32 %v3624, 4294901760
        %3626 = vmatprep.subr.mxu0 %v3625
        %v3627 = vand.u32 %v3321, 4294901760
        %v3628 = vsub.f32 %v3321, %v3627
        %v3629 = vand.u32 %v3628, 4294901760
        %v3630 = vsub.f32 %v3628, %v3629
        %v3631 = vand.u32 %v3630, 4294901760
        %3632 = vmatpush1.msra.mxu0 %v3631
        %v3633 = vand.u32 %v3324, 4294901760
        %v3634 = vsub.f32 %v3324, %v3633
        %v3635 = vand.u32 %v3634, 4294901760
        %v3636 = vsub.f32 %v3634, %v3635
        %v3637 = vand.u32 %v3636, 4294901760
        %3638 = vmatprep.subr.mxu0 %v3637
        %v3639 = vand.u32 %v3323, 4294901760
        %v3640 = vsub.f32 %v3323, %v3639
        %v3641 = vand.u32 %v3640, 4294901760
        %v3642 = vsub.f32 %v3640, %v3641
        %v3643 = vand.u32 %v3642, 4294901760
        %3644 = vmatpush1.msra.mxu0 %v3643
        %v3645 = vand.u32 %v3326, 4294901760
        %v3646 = vsub.f32 %v3326, %v3645
        %v3647 = vand.u32 %v3646, 4294901760
        %v3648 = vsub.f32 %v3646, %v3647
        %v3649 = vand.u32 %v3648, 4294901760
        %3650 = vmatprep.subr.mxu0 %v3649
        %v3651 = vand.u32 %v3325, 4294901760
        %v3652 = vsub.f32 %v3325, %v3651
        %v3653 = vand.u32 %v3652, 4294901760
        %v3654 = vsub.f32 %v3652, %v3653
        %v3655 = vand.u32 %v3654, 4294901760
        %3656 = vmatpush1.msra.mxu0 %v3655
        %v3657 = vand.u32 %v3328, 4294901760
        %v3658 = vsub.f32 %v3328, %v3657
        %v3659 = vand.u32 %v3658, 4294901760
        %v3660 = vsub.f32 %v3658, %v3659
        %v3661 = vand.u32 %v3660, 4294901760
        %3662 = vmatprep.subr.mxu0 %v3661
        %v3663 = vand.u32 %v3327, 4294901760
        %v3664 = vsub.f32 %v3327, %v3663
        %v3665 = vand.u32 %v3664, 4294901760
        %v3666 = vsub.f32 %v3664, %v3665
        %v3667 = vand.u32 %v3666, 4294901760
        %3668 = vmatpush1.msra.mxu0 %v3667
        %v3669 = vand.u32 %v3330, 4294901760
        %v3670 = vsub.f32 %v3330, %v3669
        %v3671 = vand.u32 %v3670, 4294901760
        %v3672 = vsub.f32 %v3670, %v3671
        %v3673 = vand.u32 %v3672, 4294901760
        %3674 = vmatprep.subr.mxu0 %v3673
        %v3675 = vand.u32 %v3329, 4294901760
        %v3676 = vsub.f32 %v3329, %v3675
        %v3677 = vand.u32 %v3676, 4294901760
        %v3678 = vsub.f32 %v3676, %v3677
        %v3679 = vand.u32 %v3678, 4294901760
        %3680 = vmatpush1.msra.mxu0 %v3679
        %v3681 = vand.u32 %v3332, 4294901760
        %v3682 = vsub.f32 %v3332, %v3681
        %v3683 = vand.u32 %v3682, 4294901760
        %v3684 = vsub.f32 %v3682, %v3683
        %v3685 = vand.u32 %v3684, 4294901760
        %3686 = vmatprep.subr.mxu0 %v3685
        %v3687 = vand.u32 %v3331, 4294901760
        %v3688 = vsub.f32 %v3331, %v3687
        %v3689 = vand.u32 %v3688, 4294901760
        %v3690 = vsub.f32 %v3688, %v3689
        %v3691 = vand.u32 %v3690, 4294901760
        %3692 = vmatpush1.msra.mxu0 %v3691
        %v3693 = vand.u32 %v3334, 4294901760
        %v3694 = vsub.f32 %v3334, %v3693
        %v3695 = vand.u32 %v3694, 4294901760
        %v3696 = vsub.f32 %v3694, %v3695
        %v3697 = vand.u32 %v3696, 4294901760
        %3698 = vmatprep.subr.mxu0 %v3697
        %v3699 = vand.u32 %v3333, 4294901760
        %v3700 = vsub.f32 %v3333, %v3699
        %v3701 = vand.u32 %v3700, 4294901760
        %v3702 = vsub.f32 %v3700, %v3701
        %v3703 = vand.u32 %v3702, 4294901760
        %3704 = vmatpush1.msra.mxu0 %v3703
        %v3705 = vand.u32 %v3336, 4294901760
        %v3706 = vsub.f32 %v3336, %v3705
        %v3707 = vand.u32 %v3706, 4294901760
        %v3708 = vsub.f32 %v3706, %v3707
        %v3709 = vand.u32 %v3708, 4294901760
        %3710 = vmatprep.subr.mxu0 %v3709
        %v3711 = vand.u32 %v3335, 4294901760
        %v3712 = vsub.f32 %v3335, %v3711
        %v3713 = vand.u32 %v3712, 4294901760
        %v3714 = vsub.f32 %v3712, %v3713
        %v3715 = vand.u32 %v3714, 4294901760
        %3716 = vmatpush1.msra.mxu0 %v3715
        %v3717 = vand.u32 %v3338, 4294901760
        %v3718 = vsub.f32 %v3338, %v3717
        %v3719 = vand.u32 %v3718, 4294901760
        %v3720 = vsub.f32 %v3718, %v3719
        %v3721 = vand.u32 %v3720, 4294901760
        %3722 = vmatprep.subr.mxu0 %v3721
        %v3723 = vand.u32 %v3337, 4294901760
        %v3724 = vsub.f32 %v3337, %v3723
        %v3725 = vand.u32 %v3724, 4294901760
        %v3726 = vsub.f32 %v3724, %v3725
        %v3727 = vand.u32 %v3726, 4294901760
        %3728 = vmatpush1.msra.mxu0 %v3727
        %v3729 = vand.u32 %v3340, 4294901760
        %v3730 = vsub.f32 %v3340, %v3729
        %v3731 = vand.u32 %v3730, 4294901760
        %v3732 = vsub.f32 %v3730, %v3731
        %v3733 = vand.u32 %v3732, 4294901760
        %3734 = vmatprep.subr.mxu0 %v3733
        %v3735 = vand.u32 %v3339, 4294901760
        %v3736 = vsub.f32 %v3339, %v3735
        %v3737 = vand.u32 %v3736, 4294901760
        %v3738 = vsub.f32 %v3736, %v3737
        %v3739 = vand.u32 %v3738, 4294901760
        %3740 = vmatpush1.msra.mxu0 %v3739
        %v3741 = vand.u32 %v3342, 4294901760
        %v3742 = vsub.f32 %v3342, %v3741
        %v3743 = vand.u32 %v3742, 4294901760
        %v3744 = vsub.f32 %v3742, %v3743
        %v3745 = vand.u32 %v3744, 4294901760
        %3746 = vmatprep.subr.mxu0 %v3745
        %v3747 = vand.u32 %v3341, 4294901760
        %v3748 = vsub.f32 %v3341, %v3747
        %v3749 = vand.u32 %v3748, 4294901760
        %v3750 = vsub.f32 %v3748, %v3749
        %v3751 = vand.u32 %v3750, 4294901760
        %3752 = vmatpush1.msra.mxu0 %v3751
        %v3753 = vand.u32 %v3344, 4294901760
        %v3754 = vsub.f32 %v3344, %v3753
        %v3755 = vand.u32 %v3754, 4294901760
        %v3756 = vsub.f32 %v3754, %v3755
        %v3757 = vand.u32 %v3756, 4294901760
        %3758 = vmatprep.subr.mxu0 %v3757
        %v3759 = vand.u32 %v3343, 4294901760
        %v3760 = vsub.f32 %v3343, %v3759
        %v3761 = vand.u32 %v3760, 4294901760
        %v3762 = vsub.f32 %v3760, %v3761
        %v3763 = vand.u32 %v3762, 4294901760
        %3764 = vmatpush1.msra.mxu0 %v3763
        %v3765 = vand.u32 %v3346, 4294901760
        %v3766 = vsub.f32 %v3346, %v3765
        %v3767 = vand.u32 %v3766, 4294901760
        %v3768 = vsub.f32 %v3766, %v3767
        %v3769 = vand.u32 %v3768, 4294901760
        %3770 = vmatprep.subr.mxu0 %v3769
        %v3771 = vand.u32 %v3345, 4294901760
        %v3772 = vsub.f32 %v3345, %v3771
        %v3773 = vand.u32 %v3772, 4294901760
        %v3774 = vsub.f32 %v3772, %v3773
        %v3775 = vand.u32 %v3774, 4294901760
        %3776 = vmatpush1.msra.mxu0 %v3775
        %v3777 = vand.u32 %v3348, 4294901760
        %v3778 = vsub.f32 %v3348, %v3777
        %v3779 = vand.u32 %v3778, 4294901760
        %v3780 = vsub.f32 %v3778, %v3779
        %v3781 = vand.u32 %v3780, 4294901760
        %3782 = vmatprep.subr.mxu0 %v3781
        %v3783 = vand.u32 %v3347, 4294901760
        %v3784 = vsub.f32 %v3347, %v3783
        %v3785 = vand.u32 %v3784, 4294901760
        %v3786 = vsub.f32 %v3784, %v3785
        %v3787 = vand.u32 %v3786, 4294901760
        %3788 = vmatpush1.msra.mxu0 %v3787
        %v3789 = vand.u32 %v3350, 4294901760
        %v3790 = vsub.f32 %v3350, %v3789
        %v3791 = vand.u32 %v3790, 4294901760
        %v3792 = vsub.f32 %v3790, %v3791
        %v3793 = vand.u32 %v3792, 4294901760
        %3794 = vmatprep.subr.mxu0 %v3793
        %v3795 = vand.u32 %v3349, 4294901760
        %v3796 = vsub.f32 %v3349, %v3795
        %v3797 = vand.u32 %v3796, 4294901760
        %v3798 = vsub.f32 %v3796, %v3797
        %v3799 = vand.u32 %v3798, 4294901760
        %3800 = vmatpush1.msra.mxu0 %v3799
        %v3801 = vand.u32 %v3352, 4294901760
        %v3802 = vsub.f32 %v3352, %v3801
        %v3803 = vand.u32 %v3802, 4294901760
        %v3804 = vsub.f32 %v3802, %v3803
        %v3805 = vand.u32 %v3804, 4294901760
        %3806 = vmatprep.subr.mxu0 %v3805
        %v3807 = vand.u32 %v3351, 4294901760
        %v3808 = vsub.f32 %v3351, %v3807
        %v3809 = vand.u32 %v3808, 4294901760
        %v3810 = vsub.f32 %v3808, %v3809
        %v3811 = vand.u32 %v3810, 4294901760
        %3812 = vmatpush1.msra.mxu0 %v3811
        %v3813 = vand.u32 %v3354, 4294901760
        %v3814 = vsub.f32 %v3354, %v3813
        %v3815 = vand.u32 %v3814, 4294901760
        %v3816 = vsub.f32 %v3814, %v3815
        %v3817 = vand.u32 %v3816, 4294901760
        %3818 = vmatprep.subr.mxu0 %v3817
        %v3819 = vand.u32 %v3353, 4294901760
        %v3820 = vsub.f32 %v3353, %v3819
        %v3821 = vand.u32 %v3820, 4294901760
        %v3822 = vsub.f32 %v3820, %v3821
        %v3823 = vand.u32 %v3822, 4294901760
        %3824 = vmatpush1.msra.mxu0 %v3823
        %v3825 = vand.u32 %v3356, 4294901760
        %v3826 = vsub.f32 %v3356, %v3825
        %v3827 = vand.u32 %v3826, 4294901760
        %v3828 = vsub.f32 %v3826, %v3827
        %v3829 = vand.u32 %v3828, 4294901760
        %3830 = vmatprep.subr.mxu0 %v3829
        %v3831 = vand.u32 %v3355, 4294901760
        %v3832 = vsub.f32 %v3355, %v3831
        %v3833 = vand.u32 %v3832, 4294901760
        %v3834 = vsub.f32 %v3832, %v3833
        %v3835 = vand.u32 %v3834, 4294901760
        %3836 = vmatpush1.msra.mxu0 %v3835
        %v3837 = vand.u32 %v3358, 4294901760
        %v3838 = vsub.f32 %v3358, %v3837
        %v3839 = vand.u32 %v3838, 4294901760
        %v3840 = vsub.f32 %v3838, %v3839
        %v3841 = vand.u32 %v3840, 4294901760
        %3842 = vmatprep.subr.mxu0 %v3841
        %v3843 = vand.u32 %v3357, 4294901760
        %v3844 = vsub.f32 %v3357, %v3843
        %v3845 = vand.u32 %v3844, 4294901760
        %v3846 = vsub.f32 %v3844, %v3845
        %v3847 = vand.u32 %v3846, 4294901760
        %3848 = vmatpush1.msra.mxu0 %v3847
        %v3849 = vand.u32 %v3360, 4294901760
        %v3850 = vsub.f32 %v3360, %v3849
        %v3851 = vand.u32 %v3850, 4294901760
        %v3852 = vsub.f32 %v3850, %v3851
        %v3853 = vand.u32 %v3852, 4294901760
        %3854 = vmatprep.subr.mxu0 %v3853
        %v3855 = vand.u32 %v3359, 4294901760
        %v3856 = vsub.f32 %v3359, %v3855
        %v3857 = vand.u32 %v3856, 4294901760
        %v3858 = vsub.f32 %v3856, %v3857
        %v3859 = vand.u32 %v3858, 4294901760
        %3860 = vmatpush1.msra.mxu0 %v3859
        %v3861 = vand.u32 %v3362, 4294901760
        %v3862 = vsub.f32 %v3362, %v3861
        %v3863 = vand.u32 %v3862, 4294901760
        %v3864 = vsub.f32 %v3862, %v3863
        %v3865 = vand.u32 %v3864, 4294901760
        %3866 = vmatprep.subr.mxu0 %v3865
        %v3867 = vand.u32 %v3361, 4294901760
        %v3868 = vsub.f32 %v3361, %v3867
        %v3869 = vand.u32 %v3868, 4294901760
        %v3870 = vsub.f32 %v3868, %v3869
        %v3871 = vand.u32 %v3870, 4294901760
        %3872 = vmatpush1.msra.mxu0 %v3871
        %v3873 = vand.u32 %v3364, 4294901760
        %v3874 = vsub.f32 %v3364, %v3873
        %v3875 = vand.u32 %v3874, 4294901760
        %v3876 = vsub.f32 %v3874, %v3875
        %v3877 = vand.u32 %v3876, 4294901760
        %3878 = vmatprep.subr.mxu0 %v3877
        %v3879 = vand.u32 %v3363, 4294901760
        %v3880 = vsub.f32 %v3363, %v3879
        %v3881 = vand.u32 %v3880, 4294901760
        %v3882 = vsub.f32 %v3880, %v3881
        %v3883 = vand.u32 %v3882, 4294901760
        %3884 = vmatpush1.msra.mxu0 %v3883
        %v3885 = vand.u32 %v3366, 4294901760
        %v3886 = vsub.f32 %v3366, %v3885
        %v3887 = vand.u32 %v3886, 4294901760
        %v3888 = vsub.f32 %v3886, %v3887
        %v3889 = vand.u32 %v3888, 4294901760
        %3890 = vmatprep.subr.mxu0 %v3889
        %v3891 = vand.u32 %v3365, 4294901760
        %v3892 = vsub.f32 %v3365, %v3891
        %v3893 = vand.u32 %v3892, 4294901760
        %v3894 = vsub.f32 %v3892, %v3893
        %v3895 = vand.u32 %v3894, 4294901760
        %3896 = vmatpush1.msra.mxu0 %v3895
        %v3897 = vand.u32 %v3368, 4294901760
        %v3898 = vsub.f32 %v3368, %v3897
        %v3899 = vand.u32 %v3898, 4294901760
        %v3900 = vsub.f32 %v3898, %v3899
        %v3901 = vand.u32 %v3900, 4294901760
        %3902 = vmatprep.subr.mxu0 %v3901
        %v3903 = vand.u32 %v3367, 4294901760
        %v3904 = vsub.f32 %v3367, %v3903
        %v3905 = vand.u32 %v3904, 4294901760
        %v3906 = vsub.f32 %v3904, %v3905
        %v3907 = vand.u32 %v3906, 4294901760
        %3908 = vmatpush1.msra.mxu0 %v3907
        %v3909 = vand.u32 %v3370, 4294901760
        %v3910 = vsub.f32 %v3370, %v3909
        %v3911 = vand.u32 %v3910, 4294901760
        %v3912 = vsub.f32 %v3910, %v3911
        %v3913 = vand.u32 %v3912, 4294901760
        %3914 = vmatprep.subr.mxu0 %v3913
        %v3915 = vand.u32 %v3369, 4294901760
        %v3916 = vsub.f32 %v3369, %v3915
        %v3917 = vand.u32 %v3916, 4294901760
        %v3918 = vsub.f32 %v3916, %v3917
        %v3919 = vand.u32 %v3918, 4294901760
        %3920 = vmatpush1.msra.mxu0 %v3919
        %v3921 = vand.u32 %v3372, 4294901760
        %v3922 = vsub.f32 %v3372, %v3921
        %v3923 = vand.u32 %v3922, 4294901760
        %v3924 = vsub.f32 %v3922, %v3923
        %v3925 = vand.u32 %v3924, 4294901760
        %3926 = vmatprep.subr.mxu0 %v3925
        %v3927 = vand.u32 %v3371, 4294901760
        %v3928 = vsub.f32 %v3371, %v3927
        %v3929 = vand.u32 %v3928, 4294901760
        %v3930 = vsub.f32 %v3928, %v3929
        %v3931 = vand.u32 %v3930, 4294901760
        %3932 = vmatpush1.msra.mxu0 %v3931
        %v3933 = vand.u32 %v3374, 4294901760
        %v3934 = vsub.f32 %v3374, %v3933
        %v3935 = vand.u32 %v3934, 4294901760
        %v3936 = vsub.f32 %v3934, %v3935
        %v3937 = vand.u32 %v3936, 4294901760
        %3938 = vmatprep.subr.mxu0 %v3937
        %v3939 = vand.u32 %v3373, 4294901760
        %v3940 = vsub.f32 %v3373, %v3939
        %v3941 = vand.u32 %v3940, 4294901760
        %v3942 = vsub.f32 %v3940, %v3941
        %v3943 = vand.u32 %v3942, 4294901760
        %3944 = vmatpush1.msra.mxu0 %v3943
        %v3945 = vand.u32 %v3376, 4294901760
        %v3946 = vsub.f32 %v3376, %v3945
        %v3947 = vand.u32 %v3946, 4294901760
        %v3948 = vsub.f32 %v3946, %v3947
        %v3949 = vand.u32 %v3948, 4294901760
        %3950 = vmatprep.subr.mxu0 %v3949
        %v3951 = vand.u32 %v3375, 4294901760
        %v3952 = vsub.f32 %v3375, %v3951
        %v3953 = vand.u32 %v3952, 4294901760
        %v3954 = vsub.f32 %v3952, %v3953
        %v3955 = vand.u32 %v3954, 4294901760
        %3956 = vmatpush1.msra.mxu0 %v3955
        %v3957 = vand.u32 %v3378, 4294901760
        %v3958 = vsub.f32 %v3378, %v3957
        %v3959 = vand.u32 %v3958, 4294901760
        %v3960 = vsub.f32 %v3958, %v3959
        %v3961 = vand.u32 %v3960, 4294901760
        %3962 = vmatprep.subr.mxu0 %v3961
        %v3963 = vand.u32 %v3377, 4294901760
        %v3964 = vsub.f32 %v3377, %v3963
        %v3965 = vand.u32 %v3964, 4294901760
        %v3966 = vsub.f32 %v3964, %v3965
        %v3967 = vand.u32 %v3966, 4294901760
        %3968 = vmatpush1.msra.mxu0 %v3967
        %v3969 = vand.u32 %v3380, 4294901760
        %v3970 = vsub.f32 %v3380, %v3969
        %v3971 = vand.u32 %v3970, 4294901760
        %v3972 = vsub.f32 %v3970, %v3971
        %v3973 = vand.u32 %v3972, 4294901760
        %3974 = vmatprep.subr.mxu0 %v3973
        %v3975 = vand.u32 %v3379, 4294901760
        %v3976 = vsub.f32 %v3379, %v3975
        %v3977 = vand.u32 %v3976, 4294901760
        %v3978 = vsub.f32 %v3976, %v3977
        %v3979 = vand.u32 %v3978, 4294901760
        %3980 = vmatpush1.msra.mxu0 %v3979
        %v3981 = vand.u32 %v3382, 4294901760
        %v3982 = vsub.f32 %v3382, %v3981
        %v3983 = vand.u32 %v3982, 4294901760
        %v3984 = vsub.f32 %v3982, %v3983
        %v3985 = vand.u32 %v3984, 4294901760
        %3986 = vmatprep.subr.mxu0 %v3985
        %v3987 = vand.u32 %v3381, 4294901760
        %v3988 = vsub.f32 %v3381, %v3987
        %v3989 = vand.u32 %v3988, 4294901760
        %v3990 = vsub.f32 %v3988, %v3989
        %v3991 = vand.u32 %v3990, 4294901760
        %3992 = vmatpush1.msra.mxu0 %v3991
        %v3993 = vand.u32 %v3314, 4294901760
        %3994 = vmatprep.mubr.f32.mxu0 %v3993
        %v3995 = vand.u32 %v3309, 4294901760
        %3996 = vmatmul.mubr.f32.gmra.mrb[0].mxu0 %v3995
        %v3997 = vpop.f32.mrb[0].mxu0
        %v3998 = vadd.f32 %v3589, %v3997
        %v3999 = vpop.f32.mrb[0].mxu0
        %v4000 = vadd.f32 %v3591, %v3999
        %v4001 = vand.u32 %v3315, 4294901760
        %4002 = vmatprep.mubr.f32.mxu0 %v4001
        %v4003 = vand.u32 %v3310, 4294901760
        %4004 = vmatmul.mubr.f32.gmra.mrb[0].mxu0 %v4003
        %v4005 = vpop.f32.mrb[0].mxu0
        %v4006 = vadd.f32 %v3605, %v4005
        %v4007 = vpop.f32.mrb[0].mxu0
        %v4008 = vadd.f32 %v3607, %v4007
        %4009 = vdwg.mxu0
        %v4010 = vand.u32 %v3320, 4294901760
        %v4011 = vsub.f32 %v3320, %v4010
        %4012 = vmatprep.subr.mxu0 %v4011
        %v4013 = vand.u32 %v3319, 4294901760
        %v4014 = vsub.f32 %v3319, %v4013
        %4015 = vmatpush1.msra.mxu0 %v4014
        %v4016 = vand.u32 %v3322, 4294901760
        %v4017 = vsub.f32 %v3322, %v4016
        %4018 = vmatprep.subr.mxu0 %v4017
        %v4019 = vand.u32 %v3321, 4294901760
        %v4020 = vsub.f32 %v3321, %v4019
        %4021 = vmatpush1.msra.mxu0 %v4020
        %v4022 = vand.u32 %v3324, 4294901760
        %v4023 = vsub.f32 %v3324, %v4022
        %4024 = vmatprep.subr.mxu0 %v4023
        %v4025 = vand.u32 %v3323, 4294901760
        %v4026 = vsub.f32 %v3323, %v4025
        %4027 = vmatpush1.msra.mxu0 %v4026
        %v4028 = vand.u32 %v3326, 4294901760
        %v4029 = vsub.f32 %v3326, %v4028
        %4030 = vmatprep.subr.mxu0 %v4029
        %v4031 = vand.u32 %v3325, 4294901760
        %v4032 = vsub.f32 %v3325, %v4031
        %4033 = vmatpush1.msra.mxu0 %v4032
        %v4034 = vand.u32 %v3328, 4294901760
        %v4035 = vsub.f32 %v3328, %v4034
        %4036 = vmatprep.subr.mxu0 %v4035
        %v4037 = vand.u32 %v3327, 4294901760
        %v4038 = vsub.f32 %v3327, %v4037
        %4039 = vmatpush1.msra.mxu0 %v4038
        %v4040 = vand.u32 %v3330, 4294901760
        %v4041 = vsub.f32 %v3330, %v4040
        %4042 = vmatprep.subr.mxu0 %v4041
        %v4043 = vand.u32 %v3329, 4294901760
        %v4044 = vsub.f32 %v3329, %v4043
        %4045 = vmatpush1.msra.mxu0 %v4044
        %v4046 = vand.u32 %v3332, 4294901760
        %v4047 = vsub.f32 %v3332, %v4046
        %4048 = vmatprep.subr.mxu0 %v4047
        %v4049 = vand.u32 %v3331, 4294901760
        %v4050 = vsub.f32 %v3331, %v4049
        %4051 = vmatpush1.msra.mxu0 %v4050
        %v4052 = vand.u32 %v3334, 4294901760
        %v4053 = vsub.f32 %v3334, %v4052
        %4054 = vmatprep.subr.mxu0 %v4053
        %v4055 = vand.u32 %v3333, 4294901760
        %v4056 = vsub.f32 %v3333, %v4055
        %4057 = vmatpush1.msra.mxu0 %v4056
        %v4058 = vand.u32 %v3336, 4294901760
        %v4059 = vsub.f32 %v3336, %v4058
        %4060 = vmatprep.subr.mxu0 %v4059
        %v4061 = vand.u32 %v3335, 4294901760
        %v4062 = vsub.f32 %v3335, %v4061
        %4063 = vmatpush1.msra.mxu0 %v4062
        %v4064 = vand.u32 %v3338, 4294901760
        %v4065 = vsub.f32 %v3338, %v4064
        %4066 = vmatprep.subr.mxu0 %v4065
        %v4067 = vand.u32 %v3337, 4294901760
        %v4068 = vsub.f32 %v3337, %v4067
        %4069 = vmatpush1.msra.mxu0 %v4068
        %v4070 = vand.u32 %v3340, 4294901760
        %v4071 = vsub.f32 %v3340, %v4070
        %4072 = vmatprep.subr.mxu0 %v4071
        %v4073 = vand.u32 %v3339, 4294901760
        %v4074 = vsub.f32 %v3339, %v4073
        %4075 = vmatpush1.msra.mxu0 %v4074
        %v4076 = vand.u32 %v3342, 4294901760
        %v4077 = vsub.f32 %v3342, %v4076
        %4078 = vmatprep.subr.mxu0 %v4077
        %v4079 = vand.u32 %v3341, 4294901760
        %v4080 = vsub.f32 %v3341, %v4079
        %4081 = vmatpush1.msra.mxu0 %v4080
        %v4082 = vand.u32 %v3344, 4294901760
        %v4083 = vsub.f32 %v3344, %v4082
        %4084 = vmatprep.subr.mxu0 %v4083
        %v4085 = vand.u32 %v3343, 4294901760
        %v4086 = vsub.f32 %v3343, %v4085
        %4087 = vmatpush1.msra.mxu0 %v4086
        %v4088 = vand.u32 %v3346, 4294901760
        %v4089 = vsub.f32 %v3346, %v4088
        %4090 = vmatprep.subr.mxu0 %v4089
        %v4091 = vand.u32 %v3345, 4294901760
        %v4092 = vsub.f32 %v3345, %v4091
        %4093 = vmatpush1.msra.mxu0 %v4092
        %v4094 = vand.u32 %v3348, 4294901760
        %v4095 = vsub.f32 %v3348, %v4094
        %4096 = vmatprep.subr.mxu0 %v4095
        %v4097 = vand.u32 %v3347, 4294901760
        %v4098 = vsub.f32 %v3347, %v4097
        %4099 = vmatpush1.msra.mxu0 %v4098
        %v4100 = vand.u32 %v3350, 4294901760
        %v4101 = vsub.f32 %v3350, %v4100
        %4102 = vmatprep.subr.mxu0 %v4101
        %v4103 = vand.u32 %v3349, 4294901760
        %v4104 = vsub.f32 %v3349, %v4103
        %4105 = vmatpush1.msra.mxu0 %v4104
        %v4106 = vand.u32 %v3352, 4294901760
        %v4107 = vsub.f32 %v3352, %v4106
        %4108 = vmatprep.subr.mxu0 %v4107
        %v4109 = vand.u32 %v3351, 4294901760
        %v4110 = vsub.f32 %v3351, %v4109
        %4111 = vmatpush1.msra.mxu0 %v4110
        %v4112 = vand.u32 %v3354, 4294901760
        %v4113 = vsub.f32 %v3354, %v4112
        %4114 = vmatprep.subr.mxu0 %v4113
        %v4115 = vand.u32 %v3353, 4294901760
        %v4116 = vsub.f32 %v3353, %v4115
        %4117 = vmatpush1.msra.mxu0 %v4116
        %v4118 = vand.u32 %v3356, 4294901760
        %v4119 = vsub.f32 %v3356, %v4118
        %4120 = vmatprep.subr.mxu0 %v4119
        %v4121 = vand.u32 %v3355, 4294901760
        %v4122 = vsub.f32 %v3355, %v4121
        %4123 = vmatpush1.msra.mxu0 %v4122
        %v4124 = vand.u32 %v3358, 4294901760
        %v4125 = vsub.f32 %v3358, %v4124
        %4126 = vmatprep.subr.mxu0 %v4125
        %v4127 = vand.u32 %v3357, 4294901760
        %v4128 = vsub.f32 %v3357, %v4127
        %4129 = vmatpush1.msra.mxu0 %v4128
        %v4130 = vand.u32 %v3360, 4294901760
        %v4131 = vsub.f32 %v3360, %v4130
        %4132 = vmatprep.subr.mxu0 %v4131
        %v4133 = vand.u32 %v3359, 4294901760
        %v4134 = vsub.f32 %v3359, %v4133
        %4135 = vmatpush1.msra.mxu0 %v4134
        %v4136 = vand.u32 %v3362, 4294901760
        %v4137 = vsub.f32 %v3362, %v4136
        %4138 = vmatprep.subr.mxu0 %v4137
        %v4139 = vand.u32 %v3361, 4294901760
        %v4140 = vsub.f32 %v3361, %v4139
        %4141 = vmatpush1.msra.mxu0 %v4140
        %v4142 = vand.u32 %v3364, 4294901760
        %v4143 = vsub.f32 %v3364, %v4142
        %4144 = vmatprep.subr.mxu0 %v4143
        %v4145 = vand.u32 %v3363, 4294901760
        %v4146 = vsub.f32 %v3363, %v4145
        %4147 = vmatpush1.msra.mxu0 %v4146
        %v4148 = vand.u32 %v3366, 4294901760
        %v4149 = vsub.f32 %v3366, %v4148
        %4150 = vmatprep.subr.mxu0 %v4149
        %v4151 = vand.u32 %v3365, 4294901760
        %v4152 = vsub.f32 %v3365, %v4151
        %4153 = vmatpush1.msra.mxu0 %v4152
        %v4154 = vand.u32 %v3368, 4294901760
        %v4155 = vsub.f32 %v3368, %v4154
        %4156 = vmatprep.subr.mxu0 %v4155
        %v4157 = vand.u32 %v3367, 4294901760
        %v4158 = vsub.f32 %v3367, %v4157
        %4159 = vmatpush1.msra.mxu0 %v4158
        %v4160 = vand.u32 %v3370, 4294901760
        %v4161 = vsub.f32 %v3370, %v4160
        %4162 = vmatprep.subr.mxu0 %v4161
        %v4163 = vand.u32 %v3369, 4294901760
        %v4164 = vsub.f32 %v3369, %v4163
        %4165 = vmatpush1.msra.mxu0 %v4164
        %v4166 = vand.u32 %v3372, 4294901760
        %v4167 = vsub.f32 %v3372, %v4166
        %4168 = vmatprep.subr.mxu0 %v4167
        %v4169 = vand.u32 %v3371, 4294901760
        %v4170 = vsub.f32 %v3371, %v4169
        %4171 = vmatpush1.msra.mxu0 %v4170
        %v4172 = vand.u32 %v3374, 4294901760
        %v4173 = vsub.f32 %v3374, %v4172
        %4174 = vmatprep.subr.mxu0 %v4173
        %v4175 = vand.u32 %v3373, 4294901760
        %v4176 = vsub.f32 %v3373, %v4175
        %4177 = vmatpush1.msra.mxu0 %v4176
        %v4178 = vand.u32 %v3376, 4294901760
        %v4179 = vsub.f32 %v3376, %v4178
        %4180 = vmatprep.subr.mxu0 %v4179
        %v4181 = vand.u32 %v3375, 4294901760
        %v4182 = vsub.f32 %v3375, %v4181
        %4183 = vmatpush1.msra.mxu0 %v4182
        %v4184 = vand.u32 %v3378, 4294901760
        %v4185 = vsub.f32 %v3378, %v4184
        %4186 = vmatprep.subr.mxu0 %v4185
        %v4187 = vand.u32 %v3377, 4294901760
        %v4188 = vsub.f32 %v3377, %v4187
        %4189 = vmatpush1.msra.mxu0 %v4188
        %v4190 = vand.u32 %v3380, 4294901760
        %v4191 = vsub.f32 %v3380, %v4190
        %4192 = vmatprep.subr.mxu0 %v4191
        %v4193 = vand.u32 %v3379, 4294901760
        %v4194 = vsub.f32 %v3379, %v4193
        %4195 = vmatpush1.msra.mxu0 %v4194
        %v4196 = vand.u32 %v3382, 4294901760
        %v4197 = vsub.f32 %v3382, %v4196
        %4198 = vmatprep.subr.mxu0 %v4197
        %v4199 = vand.u32 %v3381, 4294901760
        %v4200 = vsub.f32 %v3381, %v4199
        %4201 = vmatpush1.msra.mxu0 %v4200
        %v4202 = vand.u32 %v3314, 4294901760
        %v4203 = vsub.f32 %v3314, %v4202
        %4204 = vmatprep.mubr.f32.mxu0 %v4203
        %v4205 = vand.u32 %v3309, 4294901760
        %v4206 = vsub.f32 %v3309, %v4205
        %4207 = vmatmul.mubr.f32.gmra.mrb[0].mxu0 %v4206
        %v4208 = vpop.f32.mrb[0].mxu0
        %v4209 = vadd.f32 %v3998, %v4208
        %v4210 = vpop.f32.mrb[0].mxu0
        %v4211 = vadd.f32 %v4000, %v4210
        %v4212 = vand.u32 %v3315, 4294901760
        %v4213 = vsub.f32 %v3315, %v4212
        %4214 = vmatprep.mubr.f32.mxu0 %v4213
        %v4215 = vand.u32 %v3310, 4294901760
        %v4216 = vsub.f32 %v3310, %v4215
        %4217 = vmatmul.mubr.f32.gmra.mrb[0].mxu0 %v4216
        %v4218 = vpop.f32.mrb[0].mxu0
        %v4219 = vadd.f32 %v4006, %v4218
        %v4220 = vpop.f32.mrb[0].mxu0
        %v4221 = vadd.f32 %v4008, %v4220
        %4222 = vdwg.mxu0
        %v4223 = vand.u32 %v3320, 4294901760
        %4224 = vmatprep.subr.mxu0 %v4223
        %v4225 = vand.u32 %v3319, 4294901760
        %4226 = vmatpush1.msra.mxu0 %v4225
        %v4227 = vand.u32 %v3322, 4294901760
        %4228 = vmatprep.subr.mxu0 %v4227
        %v4229 = vand.u32 %v3321, 4294901760
        %4230 = vmatpush1.msra.mxu0 %v4229
        %v4231 = vand.u32 %v3324, 4294901760
        %4232 = vmatprep.subr.mxu0 %v4231
        %v4233 = vand.u32 %v3323, 4294901760
        %4234 = vmatpush1.msra.mxu0 %v4233
        %v4235 = vand.u32 %v3326, 4294901760
        %4236 = vmatprep.subr.mxu0 %v4235
        %v4237 = vand.u32 %v3325, 4294901760
        %4238 = vmatpush1.msra.mxu0 %v4237
        %v4239 = vand.u32 %v3328, 4294901760
        %4240 = vmatprep.subr.mxu0 %v4239
        %v4241 = vand.u32 %v3327, 4294901760
        %4242 = vmatpush1.msra.mxu0 %v4241
        %v4243 = vand.u32 %v3330, 4294901760
        %4244 = vmatprep.subr.mxu0 %v4243
        %v4245 = vand.u32 %v3329, 4294901760
        %4246 = vmatpush1.msra.mxu0 %v4245
        %v4247 = vand.u32 %v3332, 4294901760
        %4248 = vmatprep.subr.mxu0 %v4247
        %v4249 = vand.u32 %v3331, 4294901760
        %4250 = vmatpush1.msra.mxu0 %v4249
        %v4251 = vand.u32 %v3334, 4294901760
        %4252 = vmatprep.subr.mxu0 %v4251
        %v4253 = vand.u32 %v3333, 4294901760
        %4254 = vmatpush1.msra.mxu0 %v4253
        %v4255 = vand.u32 %v3336, 4294901760
        %4256 = vmatprep.subr.mxu0 %v4255
        %v4257 = vand.u32 %v3335, 4294901760
        %4258 = vmatpush1.msra.mxu0 %v4257
        %v4259 = vand.u32 %v3338, 4294901760
        %4260 = vmatprep.subr.mxu0 %v4259
        %v4261 = vand.u32 %v3337, 4294901760
        %4262 = vmatpush1.msra.mxu0 %v4261
        %v4263 = vand.u32 %v3340, 4294901760
        %4264 = vmatprep.subr.mxu0 %v4263
        %v4265 = vand.u32 %v3339, 4294901760
        %4266 = vmatpush1.msra.mxu0 %v4265
        %v4267 = vand.u32 %v3342, 4294901760
        %4268 = vmatprep.subr.mxu0 %v4267
        %v4269 = vand.u32 %v3341, 4294901760
        %4270 = vmatpush1.msra.mxu0 %v4269
        %v4271 = vand.u32 %v3344, 4294901760
        %4272 = vmatprep.subr.mxu0 %v4271
        %v4273 = vand.u32 %v3343, 4294901760
        %4274 = vmatpush1.msra.mxu0 %v4273
        %v4275 = vand.u32 %v3346, 4294901760
        %4276 = vmatprep.subr.mxu0 %v4275
        %v4277 = vand.u32 %v3345, 4294901760
        %4278 = vmatpush1.msra.mxu0 %v4277
        %v4279 = vand.u32 %v3348, 4294901760
        %4280 = vmatprep.subr.mxu0 %v4279
        %v4281 = vand.u32 %v3347, 4294901760
        %4282 = vmatpush1.msra.mxu0 %v4281
        %v4283 = vand.u32 %v3350, 4294901760
        %4284 = vmatprep.subr.mxu0 %v4283
        %v4285 = vand.u32 %v3349, 4294901760
        %4286 = vmatpush1.msra.mxu0 %v4285
        %v4287 = vand.u32 %v3352, 4294901760
        %4288 = vmatprep.subr.mxu0 %v4287
        %v4289 = vand.u32 %v3351, 4294901760
        %4290 = vmatpush1.msra.mxu0 %v4289
        %v4291 = vand.u32 %v3354, 4294901760
        %4292 = vmatprep.subr.mxu0 %v4291
        %v4293 = vand.u32 %v3353, 4294901760
        %4294 = vmatpush1.msra.mxu0 %v4293
        %v4295 = vand.u32 %v3356, 4294901760
        %4296 = vmatprep.subr.mxu0 %v4295
        %v4297 = vand.u32 %v3355, 4294901760
        %4298 = vmatpush1.msra.mxu0 %v4297
        %v4299 = vand.u32 %v3358, 4294901760
        %4300 = vmatprep.subr.mxu0 %v4299
        %v4301 = vand.u32 %v3357, 4294901760
        %4302 = vmatpush1.msra.mxu0 %v4301
        %v4303 = vand.u32 %v3360, 4294901760
        %4304 = vmatprep.subr.mxu0 %v4303
        %v4305 = vand.u32 %v3359, 4294901760
        %4306 = vmatpush1.msra.mxu0 %v4305
        %v4307 = vand.u32 %v3362, 4294901760
        %4308 = vmatprep.subr.mxu0 %v4307
        %v4309 = vand.u32 %v3361, 4294901760
        %4310 = vmatpush1.msra.mxu0 %v4309
        %v4311 = vand.u32 %v3364, 4294901760
        %4312 = vmatprep.subr.mxu0 %v4311
        %v4313 = vand.u32 %v3363, 4294901760
        %4314 = vmatpush1.msra.mxu0 %v4313
        %v4315 = vand.u32 %v3366, 4294901760
        %4316 = vmatprep.subr.mxu0 %v4315
        %v4317 = vand.u32 %v3365, 4294901760
        %4318 = vmatpush1.msra.mxu0 %v4317
        %v4319 = vand.u32 %v3368, 4294901760
        %4320 = vmatprep.subr.mxu0 %v4319
        %v4321 = vand.u32 %v3367, 4294901760
        %4322 = vmatpush1.msra.mxu0 %v4321
        %v4323 = vand.u32 %v3370, 4294901760
        %4324 = vmatprep.subr.mxu0 %v4323
        %v4325 = vand.u32 %v3369, 4294901760
        %4326 = vmatpush1.msra.mxu0 %v4325
        %v4327 = vand.u32 %v3372, 4294901760
        %4328 = vmatprep.subr.mxu0 %v4327
        %v4329 = vand.u32 %v3371, 4294901760
        %4330 = vmatpush1.msra.mxu0 %v4329
        %v4331 = vand.u32 %v3374, 4294901760
        %4332 = vmatprep.subr.mxu0 %v4331
        %v4333 = vand.u32 %v3373, 4294901760
        %4334 = vmatpush1.msra.mxu0 %v4333
        %v4335 = vand.u32 %v3376, 4294901760
        %4336 = vmatprep.subr.mxu0 %v4335
        %v4337 = vand.u32 %v3375, 4294901760
        %4338 = vmatpush1.msra.mxu0 %v4337
        %v4339 = vand.u32 %v3378, 4294901760
        %4340 = vmatprep.subr.mxu0 %v4339
        %v4341 = vand.u32 %v3377, 4294901760
        %4342 = vmatpush1.msra.mxu0 %v4341
        %v4343 = vand.u32 %v3380, 4294901760
        %4344 = vmatprep.subr.mxu0 %v4343
        %v4345 = vand.u32 %v3379, 4294901760
        %4346 = vmatpush1.msra.mxu0 %v4345
        %v4347 = vand.u32 %v3382, 4294901760
        %4348 = vmatprep.subr.mxu0 %v4347
        %v4349 = vand.u32 %v3381, 4294901760
        %4350 = vmatpush1.msra.mxu0 %v4349
        %v4351 = vand.u32 %v3314, 4294901760
        %v4352 = vsub.f32 %v3314, %v4351
        %v4353 = vand.u32 %v4352, 4294901760
        %4354 = vmatprep.mubr.f32.mxu0 %v4353
        %v4355 = vand.u32 %v3309, 4294901760
        %v4356 = vsub.f32 %v3309, %v4355
        %v4357 = vand.u32 %v4356, 4294901760
        %4358 = vmatmul.mubr.f32.gmra.mrb[0].mxu0 %v4357
        %v4359 = vpop.f32.mrb[0].mxu0
        %v4360 = vadd.f32 %v4209, %v4359
        %v4361 = vpop.f32.mrb[0].mxu0
        %v4362 = vadd.f32 %v4211, %v4361
        %v4363 = vand.u32 %v3315, 4294901760
        %v4364 = vsub.f32 %v3315, %v4363
        %v4365 = vand.u32 %v4364, 4294901760
        %4366 = vmatprep.mubr.f32.mxu0 %v4365
        %v4367 = vand.u32 %v3310, 4294901760
        %v4368 = vsub.f32 %v3310, %v4367
        %v4369 = vand.u32 %v4368, 4294901760
        %4370 = vmatmul.mubr.f32.gmra.mrb[0].mxu0 %v4369
        %v4371 = vpop.f32.mrb[0].mxu0
        %v4372 = vadd.f32 %v4219, %v4371
        %v4373 = vpop.f32.mrb[0].mxu0
        %v4374 = vadd.f32 %v4221, %v4373
        %4375 = vdwg.mxu0
        %v4376 = vand.u32 %v3320, 4294901760
        %v4377 = vsub.f32 %v3320, %v4376
        %v4378 = vand.u32 %v4377, 4294901760
        %4379 = vmatprep.subr.mxu0 %v4378
        %v4380 = vand.u32 %v3319, 4294901760
        %v4381 = vsub.f32 %v3319, %v4380
        %v4382 = vand.u32 %v4381, 4294901760
        %4383 = vmatpush1.msra.mxu0 %v4382
        %v4384 = vand.u32 %v3322, 4294901760
        %v4385 = vsub.f32 %v3322, %v4384
        %v4386 = vand.u32 %v4385, 4294901760
        %4387 = vmatprep.subr.mxu0 %v4386
        %v4388 = vand.u32 %v3321, 4294901760
        %v4389 = vsub.f32 %v3321, %v4388
        %v4390 = vand.u32 %v4389, 4294901760
        %4391 = vmatpush1.msra.mxu0 %v4390
        %v4392 = vand.u32 %v3324, 4294901760
        %v4393 = vsub.f32 %v3324, %v4392
        %v4394 = vand.u32 %v4393, 4294901760
        %4395 = vmatprep.subr.mxu0 %v4394
        %v4396 = vand.u32 %v3323, 4294901760
        %v4397 = vsub.f32 %v3323, %v4396
        %v4398 = vand.u32 %v4397, 4294901760
        %4399 = vmatpush1.msra.mxu0 %v4398
        %v4400 = vand.u32 %v3326, 4294901760
        %v4401 = vsub.f32 %v3326, %v4400
        %v4402 = vand.u32 %v4401, 4294901760
        %4403 = vmatprep.subr.mxu0 %v4402
        %v4404 = vand.u32 %v3325, 4294901760
        %v4405 = vsub.f32 %v3325, %v4404
        %v4406 = vand.u32 %v4405, 4294901760
        %4407 = vmatpush1.msra.mxu0 %v4406
        %v4408 = vand.u32 %v3328, 4294901760
        %v4409 = vsub.f32 %v3328, %v4408
        %v4410 = vand.u32 %v4409, 4294901760
        %4411 = vmatprep.subr.mxu0 %v4410
        %v4412 = vand.u32 %v3327, 4294901760
        %v4413 = vsub.f32 %v3327, %v4412
        %v4414 = vand.u32 %v4413, 4294901760
        %4415 = vmatpush1.msra.mxu0 %v4414
        %v4416 = vand.u32 %v3330, 4294901760
        %v4417 = vsub.f32 %v3330, %v4416
        %v4418 = vand.u32 %v4417, 4294901760
        %4419 = vmatprep.subr.mxu0 %v4418
        %v4420 = vand.u32 %v3329, 4294901760
        %v4421 = vsub.f32 %v3329, %v4420
        %v4422 = vand.u32 %v4421, 4294901760
        %4423 = vmatpush1.msra.mxu0 %v4422
        %v4424 = vand.u32 %v3332, 4294901760
        %v4425 = vsub.f32 %v3332, %v4424
        %v4426 = vand.u32 %v4425, 4294901760
        %4427 = vmatprep.subr.mxu0 %v4426
        %v4428 = vand.u32 %v3331, 4294901760
        %v4429 = vsub.f32 %v3331, %v4428
        %v4430 = vand.u32 %v4429, 4294901760
        %4431 = vmatpush1.msra.mxu0 %v4430
        %v4432 = vand.u32 %v3334, 4294901760
        %v4433 = vsub.f32 %v3334, %v4432
        %v4434 = vand.u32 %v4433, 4294901760
        %4435 = vmatprep.subr.mxu0 %v4434
        %v4436 = vand.u32 %v3333, 4294901760
        %v4437 = vsub.f32 %v3333, %v4436
        %v4438 = vand.u32 %v4437, 4294901760
        %4439 = vmatpush1.msra.mxu0 %v4438
        %v4440 = vand.u32 %v3336, 4294901760
        %v4441 = vsub.f32 %v3336, %v4440
        %v4442 = vand.u32 %v4441, 4294901760
        %4443 = vmatprep.subr.mxu0 %v4442
        %v4444 = vand.u32 %v3335, 4294901760
        %v4445 = vsub.f32 %v3335, %v4444
        %v4446 = vand.u32 %v4445, 4294901760
        %4447 = vmatpush1.msra.mxu0 %v4446
        %v4448 = vand.u32 %v3338, 4294901760
        %v4449 = vsub.f32 %v3338, %v4448
        %v4450 = vand.u32 %v4449, 4294901760
        %4451 = vmatprep.subr.mxu0 %v4450
        %v4452 = vand.u32 %v3337, 4294901760
        %v4453 = vsub.f32 %v3337, %v4452
        %v4454 = vand.u32 %v4453, 4294901760
        %4455 = vmatpush1.msra.mxu0 %v4454
        %v4456 = vand.u32 %v3340, 4294901760
        %v4457 = vsub.f32 %v3340, %v4456
        %v4458 = vand.u32 %v4457, 4294901760
        %4459 = vmatprep.subr.mxu0 %v4458
        %v4460 = vand.u32 %v3339, 4294901760
        %v4461 = vsub.f32 %v3339, %v4460
        %v4462 = vand.u32 %v4461, 4294901760
        %4463 = vmatpush1.msra.mxu0 %v4462
        %v4464 = vand.u32 %v3342, 4294901760
        %v4465 = vsub.f32 %v3342, %v4464
        %v4466 = vand.u32 %v4465, 4294901760
        %4467 = vmatprep.subr.mxu0 %v4466
        %v4468 = vand.u32 %v3341, 4294901760
        %v4469 = vsub.f32 %v3341, %v4468
        %v4470 = vand.u32 %v4469, 4294901760
        %4471 = vmatpush1.msra.mxu0 %v4470
        %v4472 = vand.u32 %v3344, 4294901760
        %v4473 = vsub.f32 %v3344, %v4472
        %v4474 = vand.u32 %v4473, 4294901760
        %4475 = vmatprep.subr.mxu0 %v4474
        %v4476 = vand.u32 %v3343, 4294901760
        %v4477 = vsub.f32 %v3343, %v4476
        %v4478 = vand.u32 %v4477, 4294901760
        %4479 = vmatpush1.msra.mxu0 %v4478
        %v4480 = vand.u32 %v3346, 4294901760
        %v4481 = vsub.f32 %v3346, %v4480
        %v4482 = vand.u32 %v4481, 4294901760
        %4483 = vmatprep.subr.mxu0 %v4482
        %v4484 = vand.u32 %v3345, 4294901760
        %v4485 = vsub.f32 %v3345, %v4484
        %v4486 = vand.u32 %v4485, 4294901760
        %4487 = vmatpush1.msra.mxu0 %v4486
        %v4488 = vand.u32 %v3348, 4294901760
        %v4489 = vsub.f32 %v3348, %v4488
        %v4490 = vand.u32 %v4489, 4294901760
        %4491 = vmatprep.subr.mxu0 %v4490
        %v4492 = vand.u32 %v3347, 4294901760
        %v4493 = vsub.f32 %v3347, %v4492
        %v4494 = vand.u32 %v4493, 4294901760
        %4495 = vmatpush1.msra.mxu0 %v4494
        %v4496 = vand.u32 %v3350, 4294901760
        %v4497 = vsub.f32 %v3350, %v4496
        %v4498 = vand.u32 %v4497, 4294901760
        %4499 = vmatprep.subr.mxu0 %v4498
        %v4500 = vand.u32 %v3349, 4294901760
        %v4501 = vsub.f32 %v3349, %v4500
        %v4502 = vand.u32 %v4501, 4294901760
        %4503 = vmatpush1.msra.mxu0 %v4502
        %v4504 = vand.u32 %v3352, 4294901760
        %v4505 = vsub.f32 %v3352, %v4504
        %v4506 = vand.u32 %v4505, 4294901760
        %4507 = vmatprep.subr.mxu0 %v4506
        %v4508 = vand.u32 %v3351, 4294901760
        %v4509 = vsub.f32 %v3351, %v4508
        %v4510 = vand.u32 %v4509, 4294901760
        %4511 = vmatpush1.msra.mxu0 %v4510
        %v4512 = vand.u32 %v3354, 4294901760
        %v4513 = vsub.f32 %v3354, %v4512
        %v4514 = vand.u32 %v4513, 4294901760
        %4515 = vmatprep.subr.mxu0 %v4514
        %v4516 = vand.u32 %v3353, 4294901760
        %v4517 = vsub.f32 %v3353, %v4516
        %v4518 = vand.u32 %v4517, 4294901760
        %4519 = vmatpush1.msra.mxu0 %v4518
        %v4520 = vand.u32 %v3356, 4294901760
        %v4521 = vsub.f32 %v3356, %v4520
        %v4522 = vand.u32 %v4521, 4294901760
        %4523 = vmatprep.subr.mxu0 %v4522
        %v4524 = vand.u32 %v3355, 4294901760
        %v4525 = vsub.f32 %v3355, %v4524
        %v4526 = vand.u32 %v4525, 4294901760
        %4527 = vmatpush1.msra.mxu0 %v4526
        %v4528 = vand.u32 %v3358, 4294901760
        %v4529 = vsub.f32 %v3358, %v4528
        %v4530 = vand.u32 %v4529, 4294901760
        %4531 = vmatprep.subr.mxu0 %v4530
        %v4532 = vand.u32 %v3357, 4294901760
        %v4533 = vsub.f32 %v3357, %v4532
        %v4534 = vand.u32 %v4533, 4294901760
        %4535 = vmatpush1.msra.mxu0 %v4534
        %v4536 = vand.u32 %v3360, 4294901760
        %v4537 = vsub.f32 %v3360, %v4536
        %v4538 = vand.u32 %v4537, 4294901760
        %4539 = vmatprep.subr.mxu0 %v4538
        %v4540 = vand.u32 %v3359, 4294901760
        %v4541 = vsub.f32 %v3359, %v4540
        %v4542 = vand.u32 %v4541, 4294901760
        %4543 = vmatpush1.msra.mxu0 %v4542
        %v4544 = vand.u32 %v3362, 4294901760
        %v4545 = vsub.f32 %v3362, %v4544
        %v4546 = vand.u32 %v4545, 4294901760
        %4547 = vmatprep.subr.mxu0 %v4546
        %v4548 = vand.u32 %v3361, 4294901760
        %v4549 = vsub.f32 %v3361, %v4548
        %v4550 = vand.u32 %v4549, 4294901760
        %4551 = vmatpush1.msra.mxu0 %v4550
        %v4552 = vand.u32 %v3364, 4294901760
        %v4553 = vsub.f32 %v3364, %v4552
        %v4554 = vand.u32 %v4553, 4294901760
        %4555 = vmatprep.subr.mxu0 %v4554
        %v4556 = vand.u32 %v3363, 4294901760
        %v4557 = vsub.f32 %v3363, %v4556
        %v4558 = vand.u32 %v4557, 4294901760
        %4559 = vmatpush1.msra.mxu0 %v4558
        %v4560 = vand.u32 %v3366, 4294901760
        %v4561 = vsub.f32 %v3366, %v4560
        %v4562 = vand.u32 %v4561, 4294901760
        %4563 = vmatprep.subr.mxu0 %v4562
        %v4564 = vand.u32 %v3365, 4294901760
        %v4565 = vsub.f32 %v3365, %v4564
        %v4566 = vand.u32 %v4565, 4294901760
        %4567 = vmatpush1.msra.mxu0 %v4566
        %v4568 = vand.u32 %v3368, 4294901760
        %v4569 = vsub.f32 %v3368, %v4568
        %v4570 = vand.u32 %v4569, 4294901760
        %4571 = vmatprep.subr.mxu0 %v4570
        %v4572 = vand.u32 %v3367, 4294901760
        %v4573 = vsub.f32 %v3367, %v4572
        %v4574 = vand.u32 %v4573, 4294901760
        %4575 = vmatpush1.msra.mxu0 %v4574
        %v4576 = vand.u32 %v3370, 4294901760
        %v4577 = vsub.f32 %v3370, %v4576
        %v4578 = vand.u32 %v4577, 4294901760
        %4579 = vmatprep.subr.mxu0 %v4578
        %v4580 = vand.u32 %v3369, 4294901760
        %v4581 = vsub.f32 %v3369, %v4580
        %v4582 = vand.u32 %v4581, 4294901760
        %4583 = vmatpush1.msra.mxu0 %v4582
        %v4584 = vand.u32 %v3372, 4294901760
        %v4585 = vsub.f32 %v3372, %v4584
        %v4586 = vand.u32 %v4585, 4294901760
        %4587 = vmatprep.subr.mxu0 %v4586
        %v4588 = vand.u32 %v3371, 4294901760
        %v4589 = vsub.f32 %v3371, %v4588
        %v4590 = vand.u32 %v4589, 4294901760
        %4591 = vmatpush1.msra.mxu0 %v4590
        %v4592 = vand.u32 %v3374, 4294901760
        %v4593 = vsub.f32 %v3374, %v4592
        %v4594 = vand.u32 %v4593, 4294901760
        %4595 = vmatprep.subr.mxu0 %v4594
        %v4596 = vand.u32 %v3373, 4294901760
        %v4597 = vsub.f32 %v3373, %v4596
        %v4598 = vand.u32 %v4597, 4294901760
        %4599 = vmatpush1.msra.mxu0 %v4598
        %v4600 = vand.u32 %v3376, 4294901760
        %v4601 = vsub.f32 %v3376, %v4600
        %v4602 = vand.u32 %v4601, 4294901760
        %4603 = vmatprep.subr.mxu0 %v4602
        %v4604 = vand.u32 %v3375, 4294901760
        %v4605 = vsub.f32 %v3375, %v4604
        %v4606 = vand.u32 %v4605, 4294901760
        %4607 = vmatpush1.msra.mxu0 %v4606
        %v4608 = vand.u32 %v3378, 4294901760
        %v4609 = vsub.f32 %v3378, %v4608
        %v4610 = vand.u32 %v4609, 4294901760
        %4611 = vmatprep.subr.mxu0 %v4610
        %v4612 = vand.u32 %v3377, 4294901760
        %v4613 = vsub.f32 %v3377, %v4612
        %v4614 = vand.u32 %v4613, 4294901760
        %4615 = vmatpush1.msra.mxu0 %v4614
        %v4616 = vand.u32 %v3380, 4294901760
        %v4617 = vsub.f32 %v3380, %v4616
        %v4618 = vand.u32 %v4617, 4294901760
        %4619 = vmatprep.subr.mxu0 %v4618
        %v4620 = vand.u32 %v3379, 4294901760
        %v4621 = vsub.f32 %v3379, %v4620
        %v4622 = vand.u32 %v4621, 4294901760
        %4623 = vmatpush1.msra.mxu0 %v4622
        %v4624 = vand.u32 %v3382, 4294901760
        %v4625 = vsub.f32 %v3382, %v4624
        %v4626 = vand.u32 %v4625, 4294901760
        %4627 = vmatprep.subr.mxu0 %v4626
        %v4628 = vand.u32 %v3381, 4294901760
        %v4629 = vsub.f32 %v3381, %v4628
        %v4630 = vand.u32 %v4629, 4294901760
        %4631 = vmatpush1.msra.mxu0 %v4630
        %v4632 = vand.u32 %v3314, 4294901760
        %4633 = vmatprep.mubr.f32.mxu0 %v4632
        %v4634 = vand.u32 %v3309, 4294901760
        %4635 = vmatmul.mubr.f32.gmra.mrb[0].mxu0 %v4634
        %v4636 = vpop.f32.mrb[0].mxu0
        %v4637 = vadd.f32 %v4360, %v4636
        %v4638 = vpop.f32.mrb[0].mxu0
        %v4639 = vadd.f32 %v4362, %v4638
        %v4640 = vand.u32 %v3315, 4294901760
        %4641 = vmatprep.mubr.f32.mxu0 %v4640
        %v4642 = vand.u32 %v3310, 4294901760
        %4643 = vmatmul.mubr.f32.gmra.mrb[0].mxu0 %v4642
        %v4644 = vpop.f32.mrb[0].mxu0
        %v4645 = vadd.f32 %v4372, %v4644
        %v4646 = vpop.f32.mrb[0].mxu0
        %v4647 = vadd.f32 %v4374, %v4646
        %4648 = vdwg.mxu0
        %v4649 = vand.u32 %v3320, 4294901760
        %4650 = vmatprep.subr.mxu0 %v4649
        %v4651 = vand.u32 %v3319, 4294901760
        %4652 = vmatpush1.msra.mxu0 %v4651
        %v4653 = vand.u32 %v3322, 4294901760
        %4654 = vmatprep.subr.mxu0 %v4653
        %v4655 = vand.u32 %v3321, 4294901760
        %4656 = vmatpush1.msra.mxu0 %v4655
        %v4657 = vand.u32 %v3324, 4294901760
        %4658 = vmatprep.subr.mxu0 %v4657
        %v4659 = vand.u32 %v3323, 4294901760
        %4660 = vmatpush1.msra.mxu0 %v4659
        %v4661 = vand.u32 %v3326, 4294901760
        %4662 = vmatprep.subr.mxu0 %v4661
        %v4663 = vand.u32 %v3325, 4294901760
        %4664 = vmatpush1.msra.mxu0 %v4663
        %v4665 = vand.u32 %v3328, 4294901760
        %4666 = vmatprep.subr.mxu0 %v4665
        %v4667 = vand.u32 %v3327, 4294901760
        %4668 = vmatpush1.msra.mxu0 %v4667
        %v4669 = vand.u32 %v3330, 4294901760
        %4670 = vmatprep.subr.mxu0 %v4669
        %v4671 = vand.u32 %v3329, 4294901760
        %4672 = vmatpush1.msra.mxu0 %v4671
        %v4673 = vand.u32 %v3332, 4294901760
        %4674 = vmatprep.subr.mxu0 %v4673
        %v4675 = vand.u32 %v3331, 4294901760
        %4676 = vmatpush1.msra.mxu0 %v4675
        %v4677 = vand.u32 %v3334, 4294901760
        %4678 = vmatprep.subr.mxu0 %v4677
        %v4679 = vand.u32 %v3333, 4294901760
        %4680 = vmatpush1.msra.mxu0 %v4679
        %v4681 = vand.u32 %v3336, 4294901760
        %4682 = vmatprep.subr.mxu0 %v4681
        %v4683 = vand.u32 %v3335, 4294901760
        %4684 = vmatpush1.msra.mxu0 %v4683
        %v4685 = vand.u32 %v3338, 4294901760
        %4686 = vmatprep.subr.mxu0 %v4685
        %v4687 = vand.u32 %v3337, 4294901760
        %4688 = vmatpush1.msra.mxu0 %v4687
        %v4689 = vand.u32 %v3340, 4294901760
        %4690 = vmatprep.subr.mxu0 %v4689
        %v4691 = vand.u32 %v3339, 4294901760
        %4692 = vmatpush1.msra.mxu0 %v4691
        %v4693 = vand.u32 %v3342, 4294901760
        %4694 = vmatprep.subr.mxu0 %v4693
        %v4695 = vand.u32 %v3341, 4294901760
        %4696 = vmatpush1.msra.mxu0 %v4695
        %v4697 = vand.u32 %v3344, 4294901760
        %4698 = vmatprep.subr.mxu0 %v4697
        %v4699 = vand.u32 %v3343, 4294901760
        %4700 = vmatpush1.msra.mxu0 %v4699
        %v4701 = vand.u32 %v3346, 4294901760
        %4702 = vmatprep.subr.mxu0 %v4701
        %v4703 = vand.u32 %v3345, 4294901760
        %4704 = vmatpush1.msra.mxu0 %v4703
        %v4705 = vand.u32 %v3348, 4294901760
        %4706 = vmatprep.subr.mxu0 %v4705
        %v4707 = vand.u32 %v3347, 4294901760
        %4708 = vmatpush1.msra.mxu0 %v4707
        %v4709 = vand.u32 %v3350, 4294901760
        %4710 = vmatprep.subr.mxu0 %v4709
        %v4711 = vand.u32 %v3349, 4294901760
        %4712 = vmatpush1.msra.mxu0 %v4711
        %v4713 = vand.u32 %v3352, 4294901760
        %4714 = vmatprep.subr.mxu0 %v4713
        %v4715 = vand.u32 %v3351, 4294901760
        %4716 = vmatpush1.msra.mxu0 %v4715
        %v4717 = vand.u32 %v3354, 4294901760
        %4718 = vmatprep.subr.mxu0 %v4717
        %v4719 = vand.u32 %v3353, 4294901760
        %4720 = vmatpush1.msra.mxu0 %v4719
        %v4721 = vand.u32 %v3356, 4294901760
        %4722 = vmatprep.subr.mxu0 %v4721
        %v4723 = vand.u32 %v3355, 4294901760
        %4724 = vmatpush1.msra.mxu0 %v4723
        %v4725 = vand.u32 %v3358, 4294901760
        %4726 = vmatprep.subr.mxu0 %v4725
        %v4727 = vand.u32 %v3357, 4294901760
        %4728 = vmatpush1.msra.mxu0 %v4727
        %v4729 = vand.u32 %v3360, 4294901760
        %4730 = vmatprep.subr.mxu0 %v4729
        %v4731 = vand.u32 %v3359, 4294901760
        %4732 = vmatpush1.msra.mxu0 %v4731
        %v4733 = vand.u32 %v3362, 4294901760
        %4734 = vmatprep.subr.mxu0 %v4733
        %v4735 = vand.u32 %v3361, 4294901760
        %4736 = vmatpush1.msra.mxu0 %v4735
        %v4737 = vand.u32 %v3364, 4294901760
        %4738 = vmatprep.subr.mxu0 %v4737
        %v4739 = vand.u32 %v3363, 4294901760
        %4740 = vmatpush1.msra.mxu0 %v4739
        %v4741 = vand.u32 %v3366, 4294901760
        %4742 = vmatprep.subr.mxu0 %v4741
        %v4743 = vand.u32 %v3365, 4294901760
        %4744 = vmatpush1.msra.mxu0 %v4743
        %v4745 = vand.u32 %v3368, 4294901760
        %4746 = vmatprep.subr.mxu0 %v4745
        %v4747 = vand.u32 %v3367, 4294901760
        %4748 = vmatpush1.msra.mxu0 %v4747
        %v4749 = vand.u32 %v3370, 4294901760
        %4750 = vmatprep.subr.mxu0 %v4749
        %v4751 = vand.u32 %v3369, 4294901760
        %4752 = vmatpush1.msra.mxu0 %v4751
        %v4753 = vand.u32 %v3372, 4294901760
        %4754 = vmatprep.subr.mxu0 %v4753
        %v4755 = vand.u32 %v3371, 4294901760
        %4756 = vmatpush1.msra.mxu0 %v4755
        %v4757 = vand.u32 %v3374, 4294901760
        %4758 = vmatprep.subr.mxu0 %v4757
        %v4759 = vand.u32 %v3373, 4294901760
        %4760 = vmatpush1.msra.mxu0 %v4759
        %v4761 = vand.u32 %v3376, 4294901760
        %4762 = vmatprep.subr.mxu0 %v4761
        %v4763 = vand.u32 %v3375, 4294901760
        %4764 = vmatpush1.msra.mxu0 %v4763
        %v4765 = vand.u32 %v3378, 4294901760
        %4766 = vmatprep.subr.mxu0 %v4765
        %v4767 = vand.u32 %v3377, 4294901760
        %4768 = vmatpush1.msra.mxu0 %v4767
        %v4769 = vand.u32 %v3380, 4294901760
        %4770 = vmatprep.subr.mxu0 %v4769
        %v4771 = vand.u32 %v3379, 4294901760
        %4772 = vmatpush1.msra.mxu0 %v4771
        %v4773 = vand.u32 %v3382, 4294901760
        %4774 = vmatprep.subr.mxu0 %v4773
        %v4775 = vand.u32 %v3381, 4294901760
        %4776 = vmatpush1.msra.mxu0 %v4775
        %v4777 = vand.u32 %v3314, 4294901760
        %4778 = vmatprep.mubr.f32.mxu0 %v4777
        %v4779 = vand.u32 %v3309, 4294901760
        %4780 = vmatmul.mubr.f32.gmra.mrb[0].mxu0 %v4779
        %v4781 = vpop.f32.mrb[0].mxu0
        %v4782 = vadd.f32 %v4637, %v4781
        %v4783 = vpop.f32.mrb[0].mxu0
        %v4784 = vadd.f32 %v4639, %v4783
        %v4785 = vand.u32 %v3315, 4294901760
        %4786 = vmatprep.mubr.f32.mxu0 %v4785
        %v4787 = vand.u32 %v3310, 4294901760
        %4788 = vmatmul.mubr.f32.gmra.mrb[0].mxu0 %v4787
        %v4789 = vpop.f32.mrb[0].mxu0
        %v4790 = vadd.f32 %v4645, %v4789
        %v4791 = vpop.f32.mrb[0].mxu0
        %v4792 = vadd.f32 %v4647, %v4791
        %4793 = vdwg.mxu0
        %v4794 = vand.u32 %v3384, 4294901760
        %4795 = vmatprep.subr.mxu0 %v4794
        %v4796 = vand.u32 %v3383, 4294901760
        %4797 = vmatpush1.msra.mxu0 %v4796
        %v4798 = vand.u32 %v3386, 4294901760
        %4799 = vmatprep.subr.mxu0 %v4798
        %v4800 = vand.u32 %v3385, 4294901760
        %4801 = vmatpush1.msra.mxu0 %v4800
        %v4802 = vand.u32 %v3388, 4294901760
        %4803 = vmatprep.subr.mxu0 %v4802
        %v4804 = vand.u32 %v3387, 4294901760
        %4805 = vmatpush1.msra.mxu0 %v4804
        %v4806 = vand.u32 %v3390, 4294901760
        %4807 = vmatprep.subr.mxu0 %v4806
        %v4808 = vand.u32 %v3389, 4294901760
        %4809 = vmatpush1.msra.mxu0 %v4808
        %v4810 = vand.u32 %v3392, 4294901760
        %4811 = vmatprep.subr.mxu0 %v4810
        %v4812 = vand.u32 %v3391, 4294901760
        %4813 = vmatpush1.msra.mxu0 %v4812
        %v4814 = vand.u32 %v3394, 4294901760
        %4815 = vmatprep.subr.mxu0 %v4814
        %v4816 = vand.u32 %v3393, 4294901760
        %4817 = vmatpush1.msra.mxu0 %v4816
        %v4818 = vand.u32 %v3396, 4294901760
        %4819 = vmatprep.subr.mxu0 %v4818
        %v4820 = vand.u32 %v3395, 4294901760
        %4821 = vmatpush1.msra.mxu0 %v4820
        %v4822 = vand.u32 %v3398, 4294901760
        %4823 = vmatprep.subr.mxu0 %v4822
        %v4824 = vand.u32 %v3397, 4294901760
        %4825 = vmatpush1.msra.mxu0 %v4824
        %v4826 = vand.u32 %v3400, 4294901760
        %4827 = vmatprep.subr.mxu0 %v4826
        %v4828 = vand.u32 %v3399, 4294901760
        %4829 = vmatpush1.msra.mxu0 %v4828
        %v4830 = vand.u32 %v3402, 4294901760
        %4831 = vmatprep.subr.mxu0 %v4830
        %v4832 = vand.u32 %v3401, 4294901760
        %4833 = vmatpush1.msra.mxu0 %v4832
        %v4834 = vand.u32 %v3404, 4294901760
        %4835 = vmatprep.subr.mxu0 %v4834
        %v4836 = vand.u32 %v3403, 4294901760
        %4837 = vmatpush1.msra.mxu0 %v4836
        %v4838 = vand.u32 %v3406, 4294901760
        %4839 = vmatprep.subr.mxu0 %v4838
        %v4840 = vand.u32 %v3405, 4294901760
        %4841 = vmatpush1.msra.mxu0 %v4840
        %v4842 = vand.u32 %v3408, 4294901760
        %4843 = vmatprep.subr.mxu0 %v4842
        %v4844 = vand.u32 %v3407, 4294901760
        %4845 = vmatpush1.msra.mxu0 %v4844
        %v4846 = vand.u32 %v3410, 4294901760
        %4847 = vmatprep.subr.mxu0 %v4846
        %v4848 = vand.u32 %v3409, 4294901760
        %4849 = vmatpush1.msra.mxu0 %v4848
        %v4850 = vand.u32 %v3412, 4294901760
        %4851 = vmatprep.subr.mxu0 %v4850
        %v4852 = vand.u32 %v3411, 4294901760
        %4853 = vmatpush1.msra.mxu0 %v4852
        %v4854 = vand.u32 %v3414, 4294901760
        %4855 = vmatprep.subr.mxu0 %v4854
        %v4856 = vand.u32 %v3413, 4294901760
        %4857 = vmatpush1.msra.mxu0 %v4856
        %v4858 = vand.u32 %v3416, 4294901760
        %4859 = vmatprep.subr.mxu0 %v4858
        %v4860 = vand.u32 %v3415, 4294901760
        %4861 = vmatpush1.msra.mxu0 %v4860
        %v4862 = vand.u32 %v3418, 4294901760
        %4863 = vmatprep.subr.mxu0 %v4862
        %v4864 = vand.u32 %v3417, 4294901760
        %4865 = vmatpush1.msra.mxu0 %v4864
        %v4866 = vand.u32 %v3420, 4294901760
        %4867 = vmatprep.subr.mxu0 %v4866
        %v4868 = vand.u32 %v3419, 4294901760
        %4869 = vmatpush1.msra.mxu0 %v4868
        %v4870 = vand.u32 %v3422, 4294901760
        %4871 = vmatprep.subr.mxu0 %v4870
        %v4872 = vand.u32 %v3421, 4294901760
        %4873 = vmatpush1.msra.mxu0 %v4872
        %v4874 = vand.u32 %v3446, 4294901760
        %4875 = vmatprep.subr.mxu0 %v4874
        %v4876 = vand.u32 %v3443, 4294901760
        %4877 = vmatpush1.msra.mxu0 %v4876
        %4878 = vmatprep.subr.mxu0 0.0
        %4879 = vmatpush1.msra.mxu0 0.0
        %4880 = vmatprep.subr.mxu0 0.0
        %4881 = vmatpush1.msra.mxu0 0.0
        %4882 = vmatprep.subr.mxu0 0.0
        %4883 = vmatpush1.msra.mxu0 0.0
        %4884 = vmatprep.subr.mxu0 0.0
        %4885 = vmatpush1.msra.mxu0 0.0
        %4886 = vmatprep.subr.mxu0 0.0
        %4887 = vmatpush1.msra.mxu0 0.0
        %4888 = vmatprep.subr.mxu0 0.0
        %4889 = vmatpush1.msra.mxu0 0.0
        %4890 = vmatprep.subr.mxu0 0.0
        %4891 = vmatpush1.msra.mxu0 0.0
        %4892 = vmatprep.subr.mxu0 0.0
        %4893 = vmatpush1.msra.mxu0 0.0
        %4894 = vmatprep.subr.mxu0 0.0
        %4895 = vmatpush1.msra.mxu0 0.0
        %4896 = vmatprep.subr.mxu0 0.0
        %4897 = vmatpush1.msra.mxu0 0.0
        %4898 = vmatprep.subr.mxu0 0.0
        %4899 = vmatpush1.msra.mxu0 0.0
        %v4900 = vand.u32 %v3438, 4294901760
        %v4901 = vsub.f32 %v3438, %v4900
        %v4902 = vand.u32 %v4901, 4294901760
        %v4903 = vsub.f32 %v4901, %v4902
        %v4904 = vand.u32 %v4903, 4294901760
        %4905 = vmatprep.mubr.f32.mxu0 %v4904
        %v4906 = vand.u32 %v3317, 4294901760
        %v4907 = vsub.f32 %v3317, %v4906
        %v4908 = vand.u32 %v4907, 4294901760
        %v4909 = vsub.f32 %v4907, %v4908
        %v4910 = vand.u32 %v4909, 4294901760
        %4911 = vmatmul.mubr.f32.gmra.mrb[0].mxu0 %v4910
        %v4912 = vpop.f32.mrb[0].mxu0
        %v4913 = vadd.f32 %v4782, %v4912
        %v4914 = vpop.f32.mrb[0].mxu0
        %v4915 = vadd.f32 %v4784, %v4914
        %v4916 = vand.u32 %v3440, 4294901760
        %v4917 = vsub.f32 %v3440, %v4916
        %v4918 = vand.u32 %v4917, 4294901760
        %v4919 = vsub.f32 %v4917, %v4918
        %v4920 = vand.u32 %v4919, 4294901760
        %4921 = vmatprep.mubr.f32.mxu0 %v4920
        %v4922 = vand.u32 %v3318, 4294901760
        %v4923 = vsub.f32 %v3318, %v4922
        %v4924 = vand.u32 %v4923, 4294901760
        %v4925 = vsub.f32 %v4923, %v4924
        %v4926 = vand.u32 %v4925, 4294901760
        %4927 = vmatmul.mubr.f32.gmra.mrb[0].mxu0 %v4926
        %v4928 = vpop.f32.mrb[0].mxu0
        %v4929 = vadd.f32 %v4790, %v4928
        %v4930 = vpop.f32.mrb[0].mxu0
        %v4931 = vadd.f32 %v4792, %v4930
        %4932 = vdwg.mxu0
        %v4933 = vand.u32 %v3384, 4294901760
        %v4934 = vsub.f32 %v3384, %v4933
        %v4935 = vand.u32 %v4934, 4294901760
        %v4936 = vsub.f32 %v4934, %v4935
        %v4937 = vand.u32 %v4936, 4294901760
        %4938 = vmatprep.subr.mxu0 %v4937
        %v4939 = vand.u32 %v3383, 4294901760
        %v4940 = vsub.f32 %v3383, %v4939
        %v4941 = vand.u32 %v4940, 4294901760
        %v4942 = vsub.f32 %v4940, %v4941
        %v4943 = vand.u32 %v4942, 4294901760
        %4944 = vmatpush1.msra.mxu0 %v4943
        %v4945 = vand.u32 %v3386, 4294901760
        %v4946 = vsub.f32 %v3386, %v4945
        %v4947 = vand.u32 %v4946, 4294901760
        %v4948 = vsub.f32 %v4946, %v4947
        %v4949 = vand.u32 %v4948, 4294901760
        %4950 = vmatprep.subr.mxu0 %v4949
        %v4951 = vand.u32 %v3385, 4294901760
        %v4952 = vsub.f32 %v3385, %v4951
        %v4953 = vand.u32 %v4952, 4294901760
        %v4954 = vsub.f32 %v4952, %v4953
        %v4955 = vand.u32 %v4954, 4294901760
        %4956 = vmatpush1.msra.mxu0 %v4955
        %v4957 = vand.u32 %v3388, 4294901760
        %v4958 = vsub.f32 %v3388, %v4957
        %v4959 = vand.u32 %v4958, 4294901760
        %v4960 = vsub.f32 %v4958, %v4959
        %v4961 = vand.u32 %v4960, 4294901760
        %4962 = vmatprep.subr.mxu0 %v4961
        %v4963 = vand.u32 %v3387, 4294901760
        %v4964 = vsub.f32 %v3387, %v4963
        %v4965 = vand.u32 %v4964, 4294901760
        %v4966 = vsub.f32 %v4964, %v4965
        %v4967 = vand.u32 %v4966, 4294901760
        %4968 = vmatpush1.msra.mxu0 %v4967
        %v4969 = vand.u32 %v3390, 4294901760
        %v4970 = vsub.f32 %v3390, %v4969
        %v4971 = vand.u32 %v4970, 4294901760
        %v4972 = vsub.f32 %v4970, %v4971
        %v4973 = vand.u32 %v4972, 4294901760
        %4974 = vmatprep.subr.mxu0 %v4973
        %v4975 = vand.u32 %v3389, 4294901760
        %v4976 = vsub.f32 %v3389, %v4975
        %v4977 = vand.u32 %v4976, 4294901760
        %v4978 = vsub.f32 %v4976, %v4977
        %v4979 = vand.u32 %v4978, 4294901760
        %4980 = vmatpush1.msra.mxu0 %v4979
        %v4981 = vand.u32 %v3392, 4294901760
        %v4982 = vsub.f32 %v3392, %v4981
        %v4983 = vand.u32 %v4982, 4294901760
        %v4984 = vsub.f32 %v4982, %v4983
        %v4985 = vand.u32 %v4984, 4294901760
        %4986 = vmatprep.subr.mxu0 %v4985
        %v4987 = vand.u32 %v3391, 4294901760
        %v4988 = vsub.f32 %v3391, %v4987
        %v4989 = vand.u32 %v4988, 4294901760
        %v4990 = vsub.f32 %v4988, %v4989
        %v4991 = vand.u32 %v4990, 4294901760
        %4992 = vmatpush1.msra.mxu0 %v4991
        %v4993 = vand.u32 %v3394, 4294901760
        %v4994 = vsub.f32 %v3394, %v4993
        %v4995 = vand.u32 %v4994, 4294901760
        %v4996 = vsub.f32 %v4994, %v4995
        %v4997 = vand.u32 %v4996, 4294901760
        %4998 = vmatprep.subr.mxu0 %v4997
        %v4999 = vand.u32 %v3393, 4294901760
        %v5000 = vsub.f32 %v3393, %v4999
        %v5001 = vand.u32 %v5000, 4294901760
        %v5002 = vsub.f32 %v5000, %v5001
        %v5003 = vand.u32 %v5002, 4294901760
        %5004 = vmatpush1.msra.mxu0 %v5003
        %v5005 = vand.u32 %v3396, 4294901760
        %v5006 = vsub.f32 %v3396, %v5005
        %v5007 = vand.u32 %v5006, 4294901760
        %v5008 = vsub.f32 %v5006, %v5007
        %v5009 = vand.u32 %v5008, 4294901760
        %5010 = vmatprep.subr.mxu0 %v5009
        %v5011 = vand.u32 %v3395, 4294901760
        %v5012 = vsub.f32 %v3395, %v5011
        %v5013 = vand.u32 %v5012, 4294901760
        %v5014 = vsub.f32 %v5012, %v5013
        %v5015 = vand.u32 %v5014, 4294901760
        %5016 = vmatpush1.msra.mxu0 %v5015
        %v5017 = vand.u32 %v3398, 4294901760
        %v5018 = vsub.f32 %v3398, %v5017
        %v5019 = vand.u32 %v5018, 4294901760
        %v5020 = vsub.f32 %v5018, %v5019
        %v5021 = vand.u32 %v5020, 4294901760
        %5022 = vmatprep.subr.mxu0 %v5021
        %v5023 = vand.u32 %v3397, 4294901760
        %v5024 = vsub.f32 %v3397, %v5023
        %v5025 = vand.u32 %v5024, 4294901760
        %v5026 = vsub.f32 %v5024, %v5025
        %v5027 = vand.u32 %v5026, 4294901760
        %5028 = vmatpush1.msra.mxu0 %v5027
        %v5029 = vand.u32 %v3400, 4294901760
        %v5030 = vsub.f32 %v3400, %v5029
        %v5031 = vand.u32 %v5030, 4294901760
        %v5032 = vsub.f32 %v5030, %v5031
        %v5033 = vand.u32 %v5032, 4294901760
        %5034 = vmatprep.subr.mxu0 %v5033
        %v5035 = vand.u32 %v3399, 4294901760
        %v5036 = vsub.f32 %v3399, %v5035
        %v5037 = vand.u32 %v5036, 4294901760
        %v5038 = vsub.f32 %v5036, %v5037
        %v5039 = vand.u32 %v5038, 4294901760
        %5040 = vmatpush1.msra.mxu0 %v5039
        %v5041 = vand.u32 %v3402, 4294901760
        %v5042 = vsub.f32 %v3402, %v5041
        %v5043 = vand.u32 %v5042, 4294901760
        %v5044 = vsub.f32 %v5042, %v5043
        %v5045 = vand.u32 %v5044, 4294901760
        %5046 = vmatprep.subr.mxu0 %v5045
        %v5047 = vand.u32 %v3401, 4294901760
        %v5048 = vsub.f32 %v3401, %v5047
        %v5049 = vand.u32 %v5048, 4294901760
        %v5050 = vsub.f32 %v5048, %v5049
        %v5051 = vand.u32 %v5050, 4294901760
        %5052 = vmatpush1.msra.mxu0 %v5051
        %v5053 = vand.u32 %v3404, 4294901760
        %v5054 = vsub.f32 %v3404, %v5053
        %v5055 = vand.u32 %v5054, 4294901760
        %v5056 = vsub.f32 %v5054, %v5055
        %v5057 = vand.u32 %v5056, 4294901760
        %5058 = vmatprep.subr.mxu0 %v5057
        %v5059 = vand.u32 %v3403, 4294901760
        %v5060 = vsub.f32 %v3403, %v5059
        %v5061 = vand.u32 %v5060, 4294901760
        %v5062 = vsub.f32 %v5060, %v5061
        %v5063 = vand.u32 %v5062, 4294901760
        %5064 = vmatpush1.msra.mxu0 %v5063
        %v5065 = vand.u32 %v3406, 4294901760
        %v5066 = vsub.f32 %v3406, %v5065
        %v5067 = vand.u32 %v5066, 4294901760
        %v5068 = vsub.f32 %v5066, %v5067
        %v5069 = vand.u32 %v5068, 4294901760
        %5070 = vmatprep.subr.mxu0 %v5069
        %v5071 = vand.u32 %v3405, 4294901760
        %v5072 = vsub.f32 %v3405, %v5071
        %v5073 = vand.u32 %v5072, 4294901760
        %v5074 = vsub.f32 %v5072, %v5073
        %v5075 = vand.u32 %v5074, 4294901760
        %5076 = vmatpush1.msra.mxu0 %v5075
        %v5077 = vand.u32 %v3408, 4294901760
        %v5078 = vsub.f32 %v3408, %v5077
        %v5079 = vand.u32 %v5078, 4294901760
        %v5080 = vsub.f32 %v5078, %v5079
        %v5081 = vand.u32 %v5080, 4294901760
        %5082 = vmatprep.subr.mxu0 %v5081
        %v5083 = vand.u32 %v3407, 4294901760
        %v5084 = vsub.f32 %v3407, %v5083
        %v5085 = vand.u32 %v5084, 4294901760
        %v5086 = vsub.f32 %v5084, %v5085
        %v5087 = vand.u32 %v5086, 4294901760
        %5088 = vmatpush1.msra.mxu0 %v5087
        %v5089 = vand.u32 %v3410, 4294901760
        %v5090 = vsub.f32 %v3410, %v5089
        %v5091 = vand.u32 %v5090, 4294901760
        %v5092 = vsub.f32 %v5090, %v5091
        %v5093 = vand.u32 %v5092, 4294901760
        %5094 = vmatprep.subr.mxu0 %v5093
        %v5095 = vand.u32 %v3409, 4294901760
        %v5096 = vsub.f32 %v3409, %v5095
        %v5097 = vand.u32 %v5096, 4294901760
        %v5098 = vsub.f32 %v5096, %v5097
        %v5099 = vand.u32 %v5098, 4294901760
        %5100 = vmatpush1.msra.mxu0 %v5099
        %v5101 = vand.u32 %v3412, 4294901760
        %v5102 = vsub.f32 %v3412, %v5101
        %v5103 = vand.u32 %v5102, 4294901760
        %v5104 = vsub.f32 %v5102, %v5103
        %v5105 = vand.u32 %v5104, 4294901760
        %5106 = vmatprep.subr.mxu0 %v5105
        %v5107 = vand.u32 %v3411, 4294901760
        %v5108 = vsub.f32 %v3411, %v5107
        %v5109 = vand.u32 %v5108, 4294901760
        %v5110 = vsub.f32 %v5108, %v5109
        %v5111 = vand.u32 %v5110, 4294901760
        %5112 = vmatpush1.msra.mxu0 %v5111
        %v5113 = vand.u32 %v3414, 4294901760
        %v5114 = vsub.f32 %v3414, %v5113
        %v5115 = vand.u32 %v5114, 4294901760
        %v5116 = vsub.f32 %v5114, %v5115
        %v5117 = vand.u32 %v5116, 4294901760
        %5118 = vmatprep.subr.mxu0 %v5117
        %v5119 = vand.u32 %v3413, 4294901760
        %v5120 = vsub.f32 %v3413, %v5119
        %v5121 = vand.u32 %v5120, 4294901760
        %v5122 = vsub.f32 %v5120, %v5121
        %v5123 = vand.u32 %v5122, 4294901760
        %5124 = vmatpush1.msra.mxu0 %v5123
        %v5125 = vand.u32 %v3416, 4294901760
        %v5126 = vsub.f32 %v3416, %v5125
        %v5127 = vand.u32 %v5126, 4294901760
        %v5128 = vsub.f32 %v5126, %v5127
        %v5129 = vand.u32 %v5128, 4294901760
        %5130 = vmatprep.subr.mxu0 %v5129
        %v5131 = vand.u32 %v3415, 4294901760
        %v5132 = vsub.f32 %v3415, %v5131
        %v5133 = vand.u32 %v5132, 4294901760
        %v5134 = vsub.f32 %v5132, %v5133
        %v5135 = vand.u32 %v5134, 4294901760
        %5136 = vmatpush1.msra.mxu0 %v5135
        %v5137 = vand.u32 %v3418, 4294901760
        %v5138 = vsub.f32 %v3418, %v5137
        %v5139 = vand.u32 %v5138, 4294901760
        %v5140 = vsub.f32 %v5138, %v5139
        %v5141 = vand.u32 %v5140, 4294901760
        %5142 = vmatprep.subr.mxu0 %v5141
        %v5143 = vand.u32 %v3417, 4294901760
        %v5144 = vsub.f32 %v3417, %v5143
        %v5145 = vand.u32 %v5144, 4294901760
        %v5146 = vsub.f32 %v5144, %v5145
        %v5147 = vand.u32 %v5146, 4294901760
        %5148 = vmatpush1.msra.mxu0 %v5147
        %v5149 = vand.u32 %v3420, 4294901760
        %v5150 = vsub.f32 %v3420, %v5149
        %v5151 = vand.u32 %v5150, 4294901760
        %v5152 = vsub.f32 %v5150, %v5151
        %v5153 = vand.u32 %v5152, 4294901760
        %5154 = vmatprep.subr.mxu0 %v5153
        %v5155 = vand.u32 %v3419, 4294901760
        %v5156 = vsub.f32 %v3419, %v5155
        %v5157 = vand.u32 %v5156, 4294901760
        %v5158 = vsub.f32 %v5156, %v5157
        %v5159 = vand.u32 %v5158, 4294901760
        %5160 = vmatpush1.msra.mxu0 %v5159
        %v5161 = vand.u32 %v3422, 4294901760
        %v5162 = vsub.f32 %v3422, %v5161
        %v5163 = vand.u32 %v5162, 4294901760
        %v5164 = vsub.f32 %v5162, %v5163
        %v5165 = vand.u32 %v5164, 4294901760
        %5166 = vmatprep.subr.mxu0 %v5165
        %v5167 = vand.u32 %v3421, 4294901760
        %v5168 = vsub.f32 %v3421, %v5167
        %v5169 = vand.u32 %v5168, 4294901760
        %v5170 = vsub.f32 %v5168, %v5169
        %v5171 = vand.u32 %v5170, 4294901760
        %5172 = vmatpush1.msra.mxu0 %v5171
        %v5173 = vand.u32 %v3446, 4294901760
        %v5174 = vsub.f32 %v3446, %v5173
        %v5175 = vand.u32 %v5174, 4294901760
        %v5176 = vsub.f32 %v5174, %v5175
        %v5177 = vand.u32 %v5176, 4294901760
        %5178 = vmatprep.subr.mxu0 %v5177
        %v5179 = vand.u32 %v3443, 4294901760
        %v5180 = vsub.f32 %v3443, %v5179
        %v5181 = vand.u32 %v5180, 4294901760
        %v5182 = vsub.f32 %v5180, %v5181
        %v5183 = vand.u32 %v5182, 4294901760
        %5184 = vmatpush1.msra.mxu0 %v5183
        %5185 = vmatprep.subr.mxu0 0.0
        %5186 = vmatpush1.msra.mxu0 0.0
        %5187 = vmatprep.subr.mxu0 0.0
        %5188 = vmatpush1.msra.mxu0 0.0
        %5189 = vmatprep.subr.mxu0 0.0
        %5190 = vmatpush1.msra.mxu0 0.0
        %5191 = vmatprep.subr.mxu0 0.0
        %5192 = vmatpush1.msra.mxu0 0.0
        %5193 = vmatprep.subr.mxu0 0.0
        %5194 = vmatpush1.msra.mxu0 0.0
        %5195 = vmatprep.subr.mxu0 0.0
        %5196 = vmatpush1.msra.mxu0 0.0
        %5197 = vmatprep.subr.mxu0 0.0
        %5198 = vmatpush1.msra.mxu0 0.0
        %5199 = vmatprep.subr.mxu0 0.0
        %5200 = vmatpush1.msra.mxu0 0.0
        %5201 = vmatprep.subr.mxu0 0.0
        %5202 = vmatpush1.msra.mxu0 0.0
        %5203 = vmatprep.subr.mxu0 0.0
        %5204 = vmatpush1.msra.mxu0 0.0
        %5205 = vmatprep.subr.mxu0 0.0
        %5206 = vmatpush1.msra.mxu0 0.0
        %v5207 = vand.u32 %v3438, 4294901760
        %5208 = vmatprep.mubr.f32.mxu0 %v5207
        %v5209 = vand.u32 %v3317, 4294901760
        %5210 = vmatmul.mubr.f32.gmra.mrb[0].mxu0 %v5209
        %v5211 = vpop.f32.mrb[0].mxu0
        %v5212 = vadd.f32 %v4913, %v5211
        %v5213 = vpop.f32.mrb[0].mxu0
        %v5214 = vadd.f32 %v4915, %v5213
        %v5215 = vand.u32 %v3440, 4294901760
        %5216 = vmatprep.mubr.f32.mxu0 %v5215
        %v5217 = vand.u32 %v3318, 4294901760
        %5218 = vmatmul.mubr.f32.gmra.mrb[0].mxu0 %v5217
        %v5219 = vpop.f32.mrb[0].mxu0
        %v5220 = vadd.f32 %v4929, %v5219
        %v5221 = vpop.f32.mrb[0].mxu0
        %v5222 = vadd.f32 %v4931, %v5221
        %5223 = vdwg.mxu0
        %v5224 = vand.u32 %v3384, 4294901760
        %v5225 = vsub.f32 %v3384, %v5224
        %5226 = vmatprep.subr.mxu0 %v5225
        %v5227 = vand.u32 %v3383, 4294901760
        %v5228 = vsub.f32 %v3383, %v5227
        %5229 = vmatpush1.msra.mxu0 %v5228
        %v5230 = vand.u32 %v3386, 4294901760
        %v5231 = vsub.f32 %v3386, %v5230
        %5232 = vmatprep.subr.mxu0 %v5231
        %v5233 = vand.u32 %v3385, 4294901760
        %v5234 = vsub.f32 %v3385, %v5233
        %5235 = vmatpush1.msra.mxu0 %v5234
        %v5236 = vand.u32 %v3388, 4294901760
        %v5237 = vsub.f32 %v3388, %v5236
        %5238 = vmatprep.subr.mxu0 %v5237
        %v5239 = vand.u32 %v3387, 4294901760
        %v5240 = vsub.f32 %v3387, %v5239
        %5241 = vmatpush1.msra.mxu0 %v5240
        %v5242 = vand.u32 %v3390, 4294901760
        %v5243 = vsub.f32 %v3390, %v5242
        %5244 = vmatprep.subr.mxu0 %v5243
        %v5245 = vand.u32 %v3389, 4294901760
        %v5246 = vsub.f32 %v3389, %v5245
        %5247 = vmatpush1.msra.mxu0 %v5246
        %v5248 = vand.u32 %v3392, 4294901760
        %v5249 = vsub.f32 %v3392, %v5248
        %5250 = vmatprep.subr.mxu0 %v5249
        %v5251 = vand.u32 %v3391, 4294901760
        %v5252 = vsub.f32 %v3391, %v5251
        %5253 = vmatpush1.msra.mxu0 %v5252
        %v5254 = vand.u32 %v3394, 4294901760
        %v5255 = vsub.f32 %v3394, %v5254
        %5256 = vmatprep.subr.mxu0 %v5255
        %v5257 = vand.u32 %v3393, 4294901760
        %v5258 = vsub.f32 %v3393, %v5257
        %5259 = vmatpush1.msra.mxu0 %v5258
        %v5260 = vand.u32 %v3396, 4294901760
        %v5261 = vsub.f32 %v3396, %v5260
        %5262 = vmatprep.subr.mxu0 %v5261
        %v5263 = vand.u32 %v3395, 4294901760
        %v5264 = vsub.f32 %v3395, %v5263
        %5265 = vmatpush1.msra.mxu0 %v5264
        %v5266 = vand.u32 %v3398, 4294901760
        %v5267 = vsub.f32 %v3398, %v5266
        %5268 = vmatprep.subr.mxu0 %v5267
        %v5269 = vand.u32 %v3397, 4294901760
        %v5270 = vsub.f32 %v3397, %v5269
        %5271 = vmatpush1.msra.mxu0 %v5270
        %v5272 = vand.u32 %v3400, 4294901760
        %v5273 = vsub.f32 %v3400, %v5272
        %5274 = vmatprep.subr.mxu0 %v5273
        %v5275 = vand.u32 %v3399, 4294901760
        %v5276 = vsub.f32 %v3399, %v5275
        %5277 = vmatpush1.msra.mxu0 %v5276
        %v5278 = vand.u32 %v3402, 4294901760
        %v5279 = vsub.f32 %v3402, %v5278
        %5280 = vmatprep.subr.mxu0 %v5279
        %v5281 = vand.u32 %v3401, 4294901760
        %v5282 = vsub.f32 %v3401, %v5281
        %5283 = vmatpush1.msra.mxu0 %v5282
        %v5284 = vand.u32 %v3404, 4294901760
        %v5285 = vsub.f32 %v3404, %v5284
        %5286 = vmatprep.subr.mxu0 %v5285
        %v5287 = vand.u32 %v3403, 4294901760
        %v5288 = vsub.f32 %v3403, %v5287
        %5289 = vmatpush1.msra.mxu0 %v5288
        %v5290 = vand.u32 %v3406, 4294901760
        %v5291 = vsub.f32 %v3406, %v5290
        %5292 = vmatprep.subr.mxu0 %v5291
        %v5293 = vand.u32 %v3405, 4294901760
        %v5294 = vsub.f32 %v3405, %v5293
        %5295 = vmatpush1.msra.mxu0 %v5294
        %v5296 = vand.u32 %v3408, 4294901760
        %v5297 = vsub.f32 %v3408, %v5296
        %5298 = vmatprep.subr.mxu0 %v5297
        %v5299 = vand.u32 %v3407, 4294901760
        %v5300 = vsub.f32 %v3407, %v5299
        %5301 = vmatpush1.msra.mxu0 %v5300
        %v5302 = vand.u32 %v3410, 4294901760
        %v5303 = vsub.f32 %v3410, %v5302
        %5304 = vmatprep.subr.mxu0 %v5303
        %v5305 = vand.u32 %v3409, 4294901760
        %v5306 = vsub.f32 %v3409, %v5305
        %5307 = vmatpush1.msra.mxu0 %v5306
        %v5308 = vand.u32 %v3412, 4294901760
        %v5309 = vsub.f32 %v3412, %v5308
        %5310 = vmatprep.subr.mxu0 %v5309
        %v5311 = vand.u32 %v3411, 4294901760
        %v5312 = vsub.f32 %v3411, %v5311
        %5313 = vmatpush1.msra.mxu0 %v5312
        %v5314 = vand.u32 %v3414, 4294901760
        %v5315 = vsub.f32 %v3414, %v5314
        %5316 = vmatprep.subr.mxu0 %v5315
        %v5317 = vand.u32 %v3413, 4294901760
        %v5318 = vsub.f32 %v3413, %v5317
        %5319 = vmatpush1.msra.mxu0 %v5318
        %v5320 = vand.u32 %v3416, 4294901760
        %v5321 = vsub.f32 %v3416, %v5320
        %5322 = vmatprep.subr.mxu0 %v5321
        %v5323 = vand.u32 %v3415, 4294901760
        %v5324 = vsub.f32 %v3415, %v5323
        %5325 = vmatpush1.msra.mxu0 %v5324
        %v5326 = vand.u32 %v3418, 4294901760
        %v5327 = vsub.f32 %v3418, %v5326
        %5328 = vmatprep.subr.mxu0 %v5327
        %v5329 = vand.u32 %v3417, 4294901760
        %v5330 = vsub.f32 %v3417, %v5329
        %5331 = vmatpush1.msra.mxu0 %v5330
        %v5332 = vand.u32 %v3420, 4294901760
        %v5333 = vsub.f32 %v3420, %v5332
        %5334 = vmatprep.subr.mxu0 %v5333
        %v5335 = vand.u32 %v3419, 4294901760
        %v5336 = vsub.f32 %v3419, %v5335
        %5337 = vmatpush1.msra.mxu0 %v5336
        %v5338 = vand.u32 %v3422, 4294901760
        %v5339 = vsub.f32 %v3422, %v5338
        %5340 = vmatprep.subr.mxu0 %v5339
        %v5341 = vand.u32 %v3421, 4294901760
        %v5342 = vsub.f32 %v3421, %v5341
        %5343 = vmatpush1.msra.mxu0 %v5342
        %v5344 = vand.u32 %v3446, 4294901760
        %v5345 = vsub.f32 %v3446, %v5344
        %5346 = vmatprep.subr.mxu0 %v5345
        %v5347 = vand.u32 %v3443, 4294901760
        %v5348 = vsub.f32 %v3443, %v5347
        %5349 = vmatpush1.msra.mxu0 %v5348
        %5350 = vmatprep.subr.mxu0 0.0
        %5351 = vmatpush1.msra.mxu0 0.0
        %5352 = vmatprep.subr.mxu0 0.0
        %5353 = vmatpush1.msra.mxu0 0.0
        %5354 = vmatprep.subr.mxu0 0.0
        %5355 = vmatpush1.msra.mxu0 0.0
        %5356 = vmatprep.subr.mxu0 0.0
        %5357 = vmatpush1.msra.mxu0 0.0
        %5358 = vmatprep.subr.mxu0 0.0
        %5359 = vmatpush1.msra.mxu0 0.0
        %5360 = vmatprep.subr.mxu0 0.0
        %5361 = vmatpush1.msra.mxu0 0.0
        %5362 = vmatprep.subr.mxu0 0.0
        %5363 = vmatpush1.msra.mxu0 0.0
        %5364 = vmatprep.subr.mxu0 0.0
        %5365 = vmatpush1.msra.mxu0 0.0
        %5366 = vmatprep.subr.mxu0 0.0
        %5367 = vmatpush1.msra.mxu0 0.0
        %5368 = vmatprep.subr.mxu0 0.0
        %5369 = vmatpush1.msra.mxu0 0.0
        %5370 = vmatprep.subr.mxu0 0.0
        %5371 = vmatpush1.msra.mxu0 0.0
        %v5372 = vand.u32 %v3438, 4294901760
        %v5373 = vsub.f32 %v3438, %v5372
        %5374 = vmatprep.mubr.f32.mxu0 %v5373
        %v5375 = vand.u32 %v3317, 4294901760
        %v5376 = vsub.f32 %v3317, %v5375
        %5377 = vmatmul.mubr.f32.gmra.mrb[0].mxu0 %v5376
        %v5378 = vpop.f32.mrb[0].mxu0
        %v5379 = vadd.f32 %v5212, %v5378
        %v5380 = vpop.f32.mrb[0].mxu0
        %v5381 = vadd.f32 %v5214, %v5380
        %v5382 = vand.u32 %v3440, 4294901760
        %v5383 = vsub.f32 %v3440, %v5382
        %5384 = vmatprep.mubr.f32.mxu0 %v5383
        %v5385 = vand.u32 %v3318, 4294901760
        %v5386 = vsub.f32 %v3318, %v5385
        %5387 = vmatmul.mubr.f32.gmra.mrb[0].mxu0 %v5386
        %v5388 = vpop.f32.mrb[0].mxu0
        %v5389 = vadd.f32 %v5220, %v5388
        %v5390 = vpop.f32.mrb[0].mxu0
        %v5391 = vadd.f32 %v5222, %v5390
        %5392 = vdwg.mxu0
        %v5393 = vand.u32 %v3384, 4294901760
        %5394 = vmatprep.subr.mxu0 %v5393
        %v5395 = vand.u32 %v3383, 4294901760
        %5396 = vmatpush1.msra.mxu0 %v5395
        %v5397 = vand.u32 %v3386, 4294901760
        %5398 = vmatprep.subr.mxu0 %v5397
        %v5399 = vand.u32 %v3385, 4294901760
        %5400 = vmatpush1.msra.mxu0 %v5399
        %v5401 = vand.u32 %v3388, 4294901760
        %5402 = vmatprep.subr.mxu0 %v5401
        %v5403 = vand.u32 %v3387, 4294901760
        %5404 = vmatpush1.msra.mxu0 %v5403
        %v5405 = vand.u32 %v3390, 4294901760
        %5406 = vmatprep.subr.mxu0 %v5405
        %v5407 = vand.u32 %v3389, 4294901760
        %5408 = vmatpush1.msra.mxu0 %v5407
        %v5409 = vand.u32 %v3392, 4294901760
        %5410 = vmatprep.subr.mxu0 %v5409
        %v5411 = vand.u32 %v3391, 4294901760
        %5412 = vmatpush1.msra.mxu0 %v5411
        %v5413 = vand.u32 %v3394, 4294901760
        %5414 = vmatprep.subr.mxu0 %v5413
        %v5415 = vand.u32 %v3393, 4294901760
        %5416 = vmatpush1.msra.mxu0 %v5415
        %v5417 = vand.u32 %v3396, 4294901760
        %5418 = vmatprep.subr.mxu0 %v5417
        %v5419 = vand.u32 %v3395, 4294901760
        %5420 = vmatpush1.msra.mxu0 %v5419
        %v5421 = vand.u32 %v3398, 4294901760
        %5422 = vmatprep.subr.mxu0 %v5421
        %v5423 = vand.u32 %v3397, 4294901760
        %5424 = vmatpush1.msra.mxu0 %v5423
        %v5425 = vand.u32 %v3400, 4294901760
        %5426 = vmatprep.subr.mxu0 %v5425
        %v5427 = vand.u32 %v3399, 4294901760
        %5428 = vmatpush1.msra.mxu0 %v5427
        %v5429 = vand.u32 %v3402, 4294901760
        %5430 = vmatprep.subr.mxu0 %v5429
        %v5431 = vand.u32 %v3401, 4294901760
        %5432 = vmatpush1.msra.mxu0 %v5431
        %v5433 = vand.u32 %v3404, 4294901760
        %5434 = vmatprep.subr.mxu0 %v5433
        %v5435 = vand.u32 %v3403, 4294901760
        %5436 = vmatpush1.msra.mxu0 %v5435
        %v5437 = vand.u32 %v3406, 4294901760
        %5438 = vmatprep.subr.mxu0 %v5437
        %v5439 = vand.u32 %v3405, 4294901760
        %5440 = vmatpush1.msra.mxu0 %v5439
        %v5441 = vand.u32 %v3408, 4294901760
        %5442 = vmatprep.subr.mxu0 %v5441
        %v5443 = vand.u32 %v3407, 4294901760
        %5444 = vmatpush1.msra.mxu0 %v5443
        %v5445 = vand.u32 %v3410, 4294901760
        %5446 = vmatprep.subr.mxu0 %v5445
        %v5447 = vand.u32 %v3409, 4294901760
        %5448 = vmatpush1.msra.mxu0 %v5447
        %v5449 = vand.u32 %v3412, 4294901760
        %5450 = vmatprep.subr.mxu0 %v5449
        %v5451 = vand.u32 %v3411, 4294901760
        %5452 = vmatpush1.msra.mxu0 %v5451
        %v5453 = vand.u32 %v3414, 4294901760
        %5454 = vmatprep.subr.mxu0 %v5453
        %v5455 = vand.u32 %v3413, 4294901760
        %5456 = vmatpush1.msra.mxu0 %v5455
        %v5457 = vand.u32 %v3416, 4294901760
        %5458 = vmatprep.subr.mxu0 %v5457
        %v5459 = vand.u32 %v3415, 4294901760
        %5460 = vmatpush1.msra.mxu0 %v5459
        %v5461 = vand.u32 %v3418, 4294901760
        %5462 = vmatprep.subr.mxu0 %v5461
        %v5463 = vand.u32 %v3417, 4294901760
        %5464 = vmatpush1.msra.mxu0 %v5463
        %v5465 = vand.u32 %v3420, 4294901760
        %5466 = vmatprep.subr.mxu0 %v5465
        %v5467 = vand.u32 %v3419, 4294901760
        %5468 = vmatpush1.msra.mxu0 %v5467
        %v5469 = vand.u32 %v3422, 4294901760
        %5470 = vmatprep.subr.mxu0 %v5469
        %v5471 = vand.u32 %v3421, 4294901760
        %5472 = vmatpush1.msra.mxu0 %v5471
        %v5473 = vand.u32 %v3446, 4294901760
        %5474 = vmatprep.subr.mxu0 %v5473
        %v5475 = vand.u32 %v3443, 4294901760
        %5476 = vmatpush1.msra.mxu0 %v5475
        %5477 = vmatprep.subr.mxu0 0.0
        %5478 = vmatpush1.msra.mxu0 0.0
        %5479 = vmatprep.subr.mxu0 0.0
        %5480 = vmatpush1.msra.mxu0 0.0
        %5481 = vmatprep.subr.mxu0 0.0
        %5482 = vmatpush1.msra.mxu0 0.0
        %5483 = vmatprep.subr.mxu0 0.0
        %5484 = vmatpush1.msra.mxu0 0.0
        %5485 = vmatprep.subr.mxu0 0.0
        %5486 = vmatpush1.msra.mxu0 0.0
        %5487 = vmatprep.subr.mxu0 0.0
        %5488 = vmatpush1.msra.mxu0 0.0
        %5489 = vmatprep.subr.mxu0 0.0
        %5490 = vmatpush1.msra.mxu0 0.0
        %5491 = vmatprep.subr.mxu0 0.0
        %5492 = vmatpush1.msra.mxu0 0.0
        %5493 = vmatprep.subr.mxu0 0.0
        %5494 = vmatpush1.msra.mxu0 0.0
        %5495 = vmatprep.subr.mxu0 0.0
        %5496 = vmatpush1.msra.mxu0 0.0
        %5497 = vmatprep.subr.mxu0 0.0
        %5498 = vmatpush1.msra.mxu0 0.0
        %v5499 = vand.u32 %v3438, 4294901760
        %v5500 = vsub.f32 %v3438, %v5499
        %v5501 = vand.u32 %v5500, 4294901760
        %5502 = vmatprep.mubr.f32.mxu0 %v5501
        %v5503 = vand.u32 %v3317, 4294901760
        %v5504 = vsub.f32 %v3317, %v5503
        %v5505 = vand.u32 %v5504, 4294901760
        %5506 = vmatmul.mubr.f32.gmra.mrb[0].mxu0 %v5505
        %v5507 = vpop.f32.mrb[0].mxu0
        %v5508 = vadd.f32 %v5379, %v5507
        %v5509 = vpop.f32.mrb[0].mxu0
        %v5510 = vadd.f32 %v5381, %v5509
        %v5511 = vand.u32 %v3440, 4294901760
        %v5512 = vsub.f32 %v3440, %v5511
        %v5513 = vand.u32 %v5512, 4294901760
        %5514 = vmatprep.mubr.f32.mxu0 %v5513
        %v5515 = vand.u32 %v3318, 4294901760
        %v5516 = vsub.f32 %v3318, %v5515
        %v5517 = vand.u32 %v5516, 4294901760
        %5518 = vmatmul.mubr.f32.gmra.mrb[0].mxu0 %v5517
        %v5519 = vpop.f32.mrb[0].mxu0
        %v5520 = vadd.f32 %v5389, %v5519
        %v5521 = vpop.f32.mrb[0].mxu0
        %v5522 = vadd.f32 %v5391, %v5521
        %5523 = vdwg.mxu0
        %v5524 = vand.u32 %v3384, 4294901760
        %v5525 = vsub.f32 %v3384, %v5524
        %v5526 = vand.u32 %v5525, 4294901760
        %5527 = vmatprep.subr.mxu0 %v5526
        %v5528 = vand.u32 %v3383, 4294901760
        %v5529 = vsub.f32 %v3383, %v5528
        %v5530 = vand.u32 %v5529, 4294901760
        %5531 = vmatpush1.msra.mxu0 %v5530
        %v5532 = vand.u32 %v3386, 4294901760
        %v5533 = vsub.f32 %v3386, %v5532
        %v5534 = vand.u32 %v5533, 4294901760
        %5535 = vmatprep.subr.mxu0 %v5534
        %v5536 = vand.u32 %v3385, 4294901760
        %v5537 = vsub.f32 %v3385, %v5536
        %v5538 = vand.u32 %v5537, 4294901760
        %5539 = vmatpush1.msra.mxu0 %v5538
        %v5540 = vand.u32 %v3388, 4294901760
        %v5541 = vsub.f32 %v3388, %v5540
        %v5542 = vand.u32 %v5541, 4294901760
        %5543 = vmatprep.subr.mxu0 %v5542
        %v5544 = vand.u32 %v3387, 4294901760
        %v5545 = vsub.f32 %v3387, %v5544
        %v5546 = vand.u32 %v5545, 4294901760
        %5547 = vmatpush1.msra.mxu0 %v5546
        %v5548 = vand.u32 %v3390, 4294901760
        %v5549 = vsub.f32 %v3390, %v5548
        %v5550 = vand.u32 %v5549, 4294901760
        %5551 = vmatprep.subr.mxu0 %v5550
        %v5552 = vand.u32 %v3389, 4294901760
        %v5553 = vsub.f32 %v3389, %v5552
        %v5554 = vand.u32 %v5553, 4294901760
        %5555 = vmatpush1.msra.mxu0 %v5554
        %v5556 = vand.u32 %v3392, 4294901760
        %v5557 = vsub.f32 %v3392, %v5556
        %v5558 = vand.u32 %v5557, 4294901760
        %5559 = vmatprep.subr.mxu0 %v5558
        %v5560 = vand.u32 %v3391, 4294901760
        %v5561 = vsub.f32 %v3391, %v5560
        %v5562 = vand.u32 %v5561, 4294901760
        %5563 = vmatpush1.msra.mxu0 %v5562
        %v5564 = vand.u32 %v3394, 4294901760
        %v5565 = vsub.f32 %v3394, %v5564
        %v5566 = vand.u32 %v5565, 4294901760
        %5567 = vmatprep.subr.mxu0 %v5566
        %v5568 = vand.u32 %v3393, 4294901760
        %v5569 = vsub.f32 %v3393, %v5568
        %v5570 = vand.u32 %v5569, 4294901760
        %5571 = vmatpush1.msra.mxu0 %v5570
        %v5572 = vand.u32 %v3396, 4294901760
        %v5573 = vsub.f32 %v3396, %v5572
        %v5574 = vand.u32 %v5573, 4294901760
        %5575 = vmatprep.subr.mxu0 %v5574
        %v5576 = vand.u32 %v3395, 4294901760
        %v5577 = vsub.f32 %v3395, %v5576
        %v5578 = vand.u32 %v5577, 4294901760
        %5579 = vmatpush1.msra.mxu0 %v5578
        %v5580 = vand.u32 %v3398, 4294901760
        %v5581 = vsub.f32 %v3398, %v5580
        %v5582 = vand.u32 %v5581, 4294901760
        %5583 = vmatprep.subr.mxu0 %v5582
        %v5584 = vand.u32 %v3397, 4294901760
        %v5585 = vsub.f32 %v3397, %v5584
        %v5586 = vand.u32 %v5585, 4294901760
        %5587 = vmatpush1.msra.mxu0 %v5586
        %v5588 = vand.u32 %v3400, 4294901760
        %v5589 = vsub.f32 %v3400, %v5588
        %v5590 = vand.u32 %v5589, 4294901760
        %5591 = vmatprep.subr.mxu0 %v5590
        %v5592 = vand.u32 %v3399, 4294901760
        %v5593 = vsub.f32 %v3399, %v5592
        %v5594 = vand.u32 %v5593, 4294901760
        %5595 = vmatpush1.msra.mxu0 %v5594
        %v5596 = vand.u32 %v3402, 4294901760
        %v5597 = vsub.f32 %v3402, %v5596
        %v5598 = vand.u32 %v5597, 4294901760
        %5599 = vmatprep.subr.mxu0 %v5598
        %v5600 = vand.u32 %v3401, 4294901760
        %v5601 = vsub.f32 %v3401, %v5600
        %v5602 = vand.u32 %v5601, 4294901760
        %5603 = vmatpush1.msra.mxu0 %v5602
        %v5604 = vand.u32 %v3404, 4294901760
        %v5605 = vsub.f32 %v3404, %v5604
        %v5606 = vand.u32 %v5605, 4294901760
        %5607 = vmatprep.subr.mxu0 %v5606
        %v5608 = vand.u32 %v3403, 4294901760
        %v5609 = vsub.f32 %v3403, %v5608
        %v5610 = vand.u32 %v5609, 4294901760
        %5611 = vmatpush1.msra.mxu0 %v5610
        %v5612 = vand.u32 %v3406, 4294901760
        %v5613 = vsub.f32 %v3406, %v5612
        %v5614 = vand.u32 %v5613, 4294901760
        %5615 = vmatprep.subr.mxu0 %v5614
        %v5616 = vand.u32 %v3405, 4294901760
        %v5617 = vsub.f32 %v3405, %v5616
        %v5618 = vand.u32 %v5617, 4294901760
        %5619 = vmatpush1.msra.mxu0 %v5618
        %v5620 = vand.u32 %v3408, 4294901760
        %v5621 = vsub.f32 %v3408, %v5620
        %v5622 = vand.u32 %v5621, 4294901760
        %5623 = vmatprep.subr.mxu0 %v5622
        %v5624 = vand.u32 %v3407, 4294901760
        %v5625 = vsub.f32 %v3407, %v5624
        %v5626 = vand.u32 %v5625, 4294901760
        %5627 = vmatpush1.msra.mxu0 %v5626
        %v5628 = vand.u32 %v3410, 4294901760
        %v5629 = vsub.f32 %v3410, %v5628
        %v5630 = vand.u32 %v5629, 4294901760
        %5631 = vmatprep.subr.mxu0 %v5630
        %v5632 = vand.u32 %v3409, 4294901760
        %v5633 = vsub.f32 %v3409, %v5632
        %v5634 = vand.u32 %v5633, 4294901760
        %5635 = vmatpush1.msra.mxu0 %v5634
        %v5636 = vand.u32 %v3412, 4294901760
        %v5637 = vsub.f32 %v3412, %v5636
        %v5638 = vand.u32 %v5637, 4294901760
        %5639 = vmatprep.subr.mxu0 %v5638
        %v5640 = vand.u32 %v3411, 4294901760
        %v5641 = vsub.f32 %v3411, %v5640
        %v5642 = vand.u32 %v5641, 4294901760
        %5643 = vmatpush1.msra.mxu0 %v5642
        %v5644 = vand.u32 %v3414, 4294901760
        %v5645 = vsub.f32 %v3414, %v5644
        %v5646 = vand.u32 %v5645, 4294901760
        %5647 = vmatprep.subr.mxu0 %v5646
        %v5648 = vand.u32 %v3413, 4294901760
        %v5649 = vsub.f32 %v3413, %v5648
        %v5650 = vand.u32 %v5649, 4294901760
        %5651 = vmatpush1.msra.mxu0 %v5650
        %v5652 = vand.u32 %v3416, 4294901760
        %v5653 = vsub.f32 %v3416, %v5652
        %v5654 = vand.u32 %v5653, 4294901760
        %5655 = vmatprep.subr.mxu0 %v5654
        %v5656 = vand.u32 %v3415, 4294901760
        %v5657 = vsub.f32 %v3415, %v5656
        %v5658 = vand.u32 %v5657, 4294901760
        %5659 = vmatpush1.msra.mxu0 %v5658
        %v5660 = vand.u32 %v3418, 4294901760
        %v5661 = vsub.f32 %v3418, %v5660
        %v5662 = vand.u32 %v5661, 4294901760
        %5663 = vmatprep.subr.mxu0 %v5662
        %v5664 = vand.u32 %v3417, 4294901760
        %v5665 = vsub.f32 %v3417, %v5664
        %v5666 = vand.u32 %v5665, 4294901760
        %5667 = vmatpush1.msra.mxu0 %v5666
        %v5668 = vand.u32 %v3420, 4294901760
        %v5669 = vsub.f32 %v3420, %v5668
        %v5670 = vand.u32 %v5669, 4294901760
        %5671 = vmatprep.subr.mxu0 %v5670
        %v5672 = vand.u32 %v3419, 4294901760
        %v5673 = vsub.f32 %v3419, %v5672
        %v5674 = vand.u32 %v5673, 4294901760
        %5675 = vmatpush1.msra.mxu0 %v5674
        %v5676 = vand.u32 %v3422, 4294901760
        %v5677 = vsub.f32 %v3422, %v5676
        %v5678 = vand.u32 %v5677, 4294901760
        %5679 = vmatprep.subr.mxu0 %v5678
        %v5680 = vand.u32 %v3421, 4294901760
        %v5681 = vsub.f32 %v3421, %v5680
        %v5682 = vand.u32 %v5681, 4294901760
        %5683 = vmatpush1.msra.mxu0 %v5682
        %v5684 = vand.u32 %v3446, 4294901760
        %v5685 = vsub.f32 %v3446, %v5684
        %v5686 = vand.u32 %v5685, 4294901760
        %5687 = vmatprep.subr.mxu0 %v5686
        %v5688 = vand.u32 %v3443, 4294901760
        %v5689 = vsub.f32 %v3443, %v5688
        %v5690 = vand.u32 %v5689, 4294901760
        %5691 = vmatpush1.msra.mxu0 %v5690
        %5692 = vmatprep.subr.mxu0 0.0
        %5693 = vmatpush1.msra.mxu0 0.0
        %5694 = vmatprep.subr.mxu0 0.0
        %5695 = vmatpush1.msra.mxu0 0.0
        %5696 = vmatprep.subr.mxu0 0.0
        %5697 = vmatpush1.msra.mxu0 0.0
        %5698 = vmatprep.subr.mxu0 0.0
        %5699 = vmatpush1.msra.mxu0 0.0
        %5700 = vmatprep.subr.mxu0 0.0
        %5701 = vmatpush1.msra.mxu0 0.0
        %5702 = vmatprep.subr.mxu0 0.0
        %5703 = vmatpush1.msra.mxu0 0.0
        %5704 = vmatprep.subr.mxu0 0.0
        %5705 = vmatpush1.msra.mxu0 0.0
        %5706 = vmatprep.subr.mxu0 0.0
        %5707 = vmatpush1.msra.mxu0 0.0
        %5708 = vmatprep.subr.mxu0 0.0
        %5709 = vmatpush1.msra.mxu0 0.0
        %5710 = vmatprep.subr.mxu0 0.0
        %5711 = vmatpush1.msra.mxu0 0.0
        %5712 = vmatprep.subr.mxu0 0.0
        %5713 = vmatpush1.msra.mxu0 0.0
        %v5714 = vand.u32 %v3438, 4294901760
        %5715 = vmatprep.mubr.f32.mxu0 %v5714
        %v5716 = vand.u32 %v3317, 4294901760
        %5717 = vmatmul.mubr.f32.gmra.mrb[0].mxu0 %v5716
        %v5718 = vpop.f32.mrb[0].mxu0
        %v5719 = vadd.f32 %v5508, %v5718
        %v5720 = vpop.f32.mrb[0].mxu0
        %v5721 = vadd.f32 %v5510, %v5720
        %v5722 = vand.u32 %v3440, 4294901760
        %5723 = vmatprep.mubr.f32.mxu0 %v5722
        %v5724 = vand.u32 %v3318, 4294901760
        %5725 = vmatmul.mubr.f32.gmra.mrb[0].mxu0 %v5724
        %v5726 = vpop.f32.mrb[0].mxu0
        %v5727 = vadd.f32 %v5520, %v5726
        %v5728 = vpop.f32.mrb[0].mxu0
        %v5729 = vadd.f32 %v5522, %v5728
        %5730 = vdwg.mxu0
        %v5731 = vand.u32 %v3384, 4294901760
        %5732 = vmatprep.subr.mxu0 %v5731
        %v5733 = vand.u32 %v3383, 4294901760
        %5734 = vmatpush1.msra.mxu0 %v5733
        %v5735 = vand.u32 %v3386, 4294901760
        %5736 = vmatprep.subr.mxu0 %v5735
        %v5737 = vand.u32 %v3385, 4294901760
        %5738 = vmatpush1.msra.mxu0 %v5737
        %v5739 = vand.u32 %v3388, 4294901760
        %5740 = vmatprep.subr.mxu0 %v5739
        %v5741 = vand.u32 %v3387, 4294901760
        %5742 = vmatpush1.msra.mxu0 %v5741
        %v5743 = vand.u32 %v3390, 4294901760
        %5744 = vmatprep.subr.mxu0 %v5743
        %v5745 = vand.u32 %v3389, 4294901760
        %5746 = vmatpush1.msra.mxu0 %v5745
        %v5747 = vand.u32 %v3392, 4294901760
        %5748 = vmatprep.subr.mxu0 %v5747
        %v5749 = vand.u32 %v3391, 4294901760
        %5750 = vmatpush1.msra.mxu0 %v5749
        %v5751 = vand.u32 %v3394, 4294901760
        %5752 = vmatprep.subr.mxu0 %v5751
        %v5753 = vand.u32 %v3393, 4294901760
        %5754 = vmatpush1.msra.mxu0 %v5753
        %v5755 = vand.u32 %v3396, 4294901760
        %5756 = vmatprep.subr.mxu0 %v5755
        %v5757 = vand.u32 %v3395, 4294901760
        %5758 = vmatpush1.msra.mxu0 %v5757
        %v5759 = vand.u32 %v3398, 4294901760
        %5760 = vmatprep.subr.mxu0 %v5759
        %v5761 = vand.u32 %v3397, 4294901760
        %5762 = vmatpush1.msra.mxu0 %v5761
        %v5763 = vand.u32 %v3400, 4294901760
        %5764 = vmatprep.subr.mxu0 %v5763
        %v5765 = vand.u32 %v3399, 4294901760
        %5766 = vmatpush1.msra.mxu0 %v5765
        %v5767 = vand.u32 %v3402, 4294901760
        %5768 = vmatprep.subr.mxu0 %v5767
        %v5769 = vand.u32 %v3401, 4294901760
        %5770 = vmatpush1.msra.mxu0 %v5769
        %v5771 = vand.u32 %v3404, 4294901760
        %5772 = vmatprep.subr.mxu0 %v5771
        %v5773 = vand.u32 %v3403, 4294901760
        %5774 = vmatpush1.msra.mxu0 %v5773
        %v5775 = vand.u32 %v3406, 4294901760
        %5776 = vmatprep.subr.mxu0 %v5775
        %v5777 = vand.u32 %v3405, 4294901760
        %5778 = vmatpush1.msra.mxu0 %v5777
        %v5779 = vand.u32 %v3408, 4294901760
        %5780 = vmatprep.subr.mxu0 %v5779
        %v5781 = vand.u32 %v3407, 4294901760
        %5782 = vmatpush1.msra.mxu0 %v5781
        %v5783 = vand.u32 %v3410, 4294901760
        %5784 = vmatprep.subr.mxu0 %v5783
        %v5785 = vand.u32 %v3409, 4294901760
        %5786 = vmatpush1.msra.mxu0 %v5785
        %v5787 = vand.u32 %v3412, 4294901760
        %5788 = vmatprep.subr.mxu0 %v5787
        %v5789 = vand.u32 %v3411, 4294901760
        %5790 = vmatpush1.msra.mxu0 %v5789
        %v5791 = vand.u32 %v3414, 4294901760
        %5792 = vmatprep.subr.mxu0 %v5791
        %v5793 = vand.u32 %v3413, 4294901760
        %5794 = vmatpush1.msra.mxu0 %v5793
        %v5795 = vand.u32 %v3416, 4294901760
        %5796 = vmatprep.subr.mxu0 %v5795
        %v5797 = vand.u32 %v3415, 4294901760
        %5798 = vmatpush1.msra.mxu0 %v5797
        %v5799 = vand.u32 %v3418, 4294901760
        %5800 = vmatprep.subr.mxu0 %v5799
        %v5801 = vand.u32 %v3417, 4294901760
        %5802 = vmatpush1.msra.mxu0 %v5801
        %v5803 = vand.u32 %v3420, 4294901760
        %5804 = vmatprep.subr.mxu0 %v5803
        %v5805 = vand.u32 %v3419, 4294901760
        %5806 = vmatpush1.msra.mxu0 %v5805
        %v5807 = vand.u32 %v3422, 4294901760
        %5808 = vmatprep.subr.mxu0 %v5807
        %v5809 = vand.u32 %v3421, 4294901760
        %5810 = vmatpush1.msra.mxu0 %v5809
        %v5811 = vand.u32 %v3446, 4294901760
        %5812 = vmatprep.subr.mxu0 %v5811
        %v5813 = vand.u32 %v3443, 4294901760
        %5814 = vmatpush1.msra.mxu0 %v5813
        %5815 = vmatprep.subr.mxu0 0.0
        %5816 = vmatpush1.msra.mxu0 0.0
        %5817 = vmatprep.subr.mxu0 0.0
        %5818 = vmatpush1.msra.mxu0 0.0
        %5819 = vmatprep.subr.mxu0 0.0
        %5820 = vmatpush1.msra.mxu0 0.0
        %5821 = vmatprep.subr.mxu0 0.0
        %5822 = vmatpush1.msra.mxu0 0.0
        %5823 = vmatprep.subr.mxu0 0.0
        %5824 = vmatpush1.msra.mxu0 0.0
        %5825 = vmatprep.subr.mxu0 0.0
        %5826 = vmatpush1.msra.mxu0 0.0
        %5827 = vmatprep.subr.mxu0 0.0
        %5828 = vmatpush1.msra.mxu0 0.0
        %5829 = vmatprep.subr.mxu0 0.0
        %5830 = vmatpush1.msra.mxu0 0.0
        %5831 = vmatprep.subr.mxu0 0.0
        %5832 = vmatpush1.msra.mxu0 0.0
        %5833 = vmatprep.subr.mxu0 0.0
        %5834 = vmatpush1.msra.mxu0 0.0
        %5835 = vmatprep.subr.mxu0 0.0
        %5836 = vmatpush1.msra.mxu0 0.0
        %v5837 = vand.u32 %v3438, 4294901760
        %5838 = vmatprep.mubr.f32.mxu0 %v5837
        %v5839 = vand.u32 %v3317, 4294901760
        %5840 = vmatmul.mubr.f32.gmra.mrb[0].mxu0 %v5839
        %v5841 = vpop.f32.mrb[0].mxu0
        %v5842 = vadd.f32 %v5719, %v5841
        %v5843 = vpop.f32.mrb[0].mxu0
        %v5844 = vadd.f32 %v5721, %v5843
        %v5845 = vand.u32 %v3440, 4294901760
        %5846 = vmatprep.mubr.f32.mxu0 %v5845
        %v5847 = vand.u32 %v3318, 4294901760
        %5848 = vmatmul.mubr.f32.gmra.mrb[0].mxu0 %v5847
        %v5849 = vpop.f32.mrb[0].mxu0
        %v5850 = vadd.f32 %v5727, %v5849
        %v5851 = vpop.f32.mrb[0].mxu0
        %v5852 = vadd.f32 %v5729, %v5851
        %5853 = vdwg.mxu0
        %v5854 = vmax.f32 %v5842, 0.0
        %v5855 = vmax.f32 %v5844, 0.0
        %v5856 = vmax.f32 %v5850, 0.0
        %v5857 = vmax.f32 %v5852, 0.0
        %v5858 = vld [vmem:[%s8] sm:$0x1f]
        %v5859 = vld [vmem:[%s7] sm:$0xff]
        %v5860 = vld [vmem:[%s7 + $0x8] sm:$0xff]
        %v5861 = vld [vmem:[%s7 + $0x10] sm:$0xff]
        %v5862 = vld [vmem:[%s7 + $0x18] sm:$0xff]
        %v5863 = vld [vmem:[%s7 + $0x20] sm:$0xff]
        %v5864 = vld [vmem:[%s7 + $0x28] sm:$0xff]
        %v5865 = vld [vmem:[%s7 + $0x30] sm:$0xff]
        %v5866 = vld [vmem:[%s7 + $0x38] sm:$0xff]
        %v5867 = vld [vmem:[%s7 + $0x40] sm:$0xff]
        %v5868 = vld [vmem:[%s7 + $0x48] sm:$0xff]
        %v5869 = vld [vmem:[%s7 + $0x50] sm:$0xff]
        %v5870 = vld [vmem:[%s7 + $0x58] sm:$0xff]
        %v5871 = vld [vmem:[%s7 + $0x60] sm:$0xff]
        %v5872 = vld [vmem:[%s7 + $0x68] sm:$0xff]
        %v5873 = vld [vmem:[%s7 + $0x70] sm:$0xff]
        %v5874 = vld [vmem:[%s7 + $0x78] sm:$0xff]
        %v5875 = vld [vmem:[%s7 + $0x80] sm:$0xff]
        %v5876 = vld [vmem:[%s7 + $0x88] sm:$0xff]
        %v5877 = vld [vmem:[%s7 + $0x90] sm:$0xff]
        %v5878 = vld [vmem:[%s7 + $0x98] sm:$0xff]
        %v5880 = vsel %vm568, %v5855, 0
        %v5883 = vsel %vm568, %v5857, 0
        %5885 = vmatprep.subr.mxu0 0.0
        %v5886 = vand.u32 %v5859, 4294901760
        %5887 = vmatpush1.msra.mxu0 %v5886
        %5888 = vmatprep.subr.mxu0 0.0
        %v5889 = vand.u32 %v5860, 4294901760
        %5890 = vmatpush1.msra.mxu0 %v5889
        %5891 = vmatprep.subr.mxu0 0.0
        %v5892 = vand.u32 %v5861, 4294901760
        %5893 = vmatpush1.msra.mxu0 %v5892
        %5894 = vmatprep.subr.mxu0 0.0
        %v5895 = vand.u32 %v5862, 4294901760
        %5896 = vmatpush1.msra.mxu0 %v5895
        %5897 = vmatprep.subr.mxu0 0.0
        %v5898 = vand.u32 %v5863, 4294901760
        %5899 = vmatpush1.msra.mxu0 %v5898
        %5900 = vmatprep.subr.mxu0 0.0
        %v5901 = vand.u32 %v5864, 4294901760
        %5902 = vmatpush1.msra.mxu0 %v5901
        %5903 = vmatprep.subr.mxu0 0.0
        %v5904 = vand.u32 %v5865, 4294901760
        %5905 = vmatpush1.msra.mxu0 %v5904
        %5906 = vmatprep.subr.mxu0 0.0
        %v5907 = vand.u32 %v5866, 4294901760
        %5908 = vmatpush1.msra.mxu0 %v5907
        %5909 = vmatprep.subr.mxu0 0.0
        %v5910 = vand.u32 %v5867, 4294901760
        %5911 = vmatpush1.msra.mxu0 %v5910
        %5912 = vmatprep.subr.mxu0 0.0
        %v5913 = vand.u32 %v5868, 4294901760
        %5914 = vmatpush1.msra.mxu0 %v5913
        %5915 = vmatprep.subr.mxu0 0.0
        %v5916 = vand.u32 %v5869, 4294901760
        %5917 = vmatpush1.msra.mxu0 %v5916
        %5918 = vmatprep.subr.mxu0 0.0
        %v5919 = vand.u32 %v5870, 4294901760
        %5920 = vmatpush1.msra.mxu0 %v5919
        %5921 = vmatprep.subr.mxu0 0.0
        %v5922 = vand.u32 %v5871, 4294901760
        %5923 = vmatpush1.msra.mxu0 %v5922
        %5924 = vmatprep.subr.mxu0 0.0
        %v5925 = vand.u32 %v5872, 4294901760
        %5926 = vmatpush1.msra.mxu0 %v5925
        %5927 = vmatprep.subr.mxu0 0.0
        %v5928 = vand.u32 %v5873, 4294901760
        %5929 = vmatpush1.msra.mxu0 %v5928
        %5930 = vmatprep.subr.mxu0 0.0
        %v5931 = vand.u32 %v5874, 4294901760
        %5932 = vmatpush1.msra.mxu0 %v5931
        %5933 = vmatprep.subr.mxu0 0.0
        %v5934 = vand.u32 %v5875, 4294901760
        %5935 = vmatpush1.msra.mxu0 %v5934
        %5936 = vmatprep.subr.mxu0 0.0
        %v5937 = vand.u32 %v5876, 4294901760
        %5938 = vmatpush1.msra.mxu0 %v5937
        %5939 = vmatprep.subr.mxu0 0.0
        %v5940 = vand.u32 %v5877, 4294901760
        %5941 = vmatpush1.msra.mxu0 %v5940
        %5942 = vmatprep.subr.mxu0 0.0
        %v5943 = vand.u32 %v5878, 4294901760
        %5944 = vmatpush1.msra.mxu0 %v5943
        %5945 = vmatprep.subr.mxu0 0.0
        %5946 = vmatpush1.msra.mxu0 0.0
        %5947 = vmatprep.subr.mxu0 0.0
        %5948 = vmatpush1.msra.mxu0 0.0
        %5949 = vmatprep.subr.mxu0 0.0
        %5950 = vmatpush1.msra.mxu0 0.0
        %5951 = vmatprep.subr.mxu0 0.0
        %5952 = vmatpush1.msra.mxu0 0.0
        %5953 = vmatprep.subr.mxu0 0.0
        %5954 = vmatpush1.msra.mxu0 0.0
        %5955 = vmatprep.subr.mxu0 0.0
        %5956 = vmatpush1.msra.mxu0 0.0
        %5957 = vmatprep.subr.mxu0 0.0
        %5958 = vmatpush1.msra.mxu0 0.0
        %5959 = vmatprep.subr.mxu0 0.0
        %5960 = vmatpush1.msra.mxu0 0.0
        %5961 = vmatprep.subr.mxu0 0.0
        %5962 = vmatpush1.msra.mxu0 0.0
        %5963 = vmatprep.subr.mxu0 0.0
        %5964 = vmatpush1.msra.mxu0 0.0
        %5965 = vmatprep.subr.mxu0 0.0
        %5966 = vmatpush1.msra.mxu0 0.0
        %5967 = vmatprep.subr.mxu0 0.0
        %5968 = vmatpush1.msra.mxu0 0.0
        %v5969 = vand.u32 %v5880, 4294901760
        %v5970 = vsub.f32 %v5880, %v5969
        %v5971 = vand.u32 %v5970, 4294901760
        %v5972 = vsub.f32 %v5970, %v5971
        %v5973 = vand.u32 %v5972, 4294901760
        %5974 = vmatprep.mubr.f32.mxu0 %v5973
        %v5975 = vand.u32 %v5854, 4294901760
        %v5976 = vsub.f32 %v5854, %v5975
        %v5977 = vand.u32 %v5976, 4294901760
        %v5978 = vsub.f32 %v5976, %v5977
        %v5979 = vand.u32 %v5978, 4294901760
        %5980 = vmatmul.mubr.f32.gmra.mrb[0].mxu0 %v5979
        %v5981 = vpop.f32.mrb[0].mxu0
        %v5982 = vadd.f32 0.0, %v5981
        %v5983 = vpop.f32.mrb[0].mxu0
        %v5984 = vand.u32 %v5883, 4294901760
        %v5985 = vsub.f32 %v5883, %v5984
        %v5986 = vand.u32 %v5985, 4294901760
        %v5987 = vsub.f32 %v5985, %v5986
        %v5988 = vand.u32 %v5987, 4294901760
        %5989 = vmatprep.mubr.f32.mxu0 %v5988
        %v5990 = vand.u32 %v5856, 4294901760
        %v5991 = vsub.f32 %v5856, %v5990
        %v5992 = vand.u32 %v5991, 4294901760
        %v5993 = vsub.f32 %v5991, %v5992
        %v5994 = vand.u32 %v5993, 4294901760
        %5995 = vmatmul.mubr.f32.gmra.mrb[0].mxu0 %v5994
        %v5996 = vpop.f32.mrb[0].mxu0
        %v5997 = vadd.f32 0.0, %v5996
        %v5998 = vpop.f32.mrb[0].mxu0
        %5999 = vdwg.mxu0
        %6000 = vmatprep.subr.mxu0 0.0
        %v6001 = vand.u32 %v5859, 4294901760
        %v6002 = vsub.f32 %v5859, %v6001
        %v6003 = vand.u32 %v6002, 4294901760
        %v6004 = vsub.f32 %v6002, %v6003
        %v6005 = vand.u32 %v6004, 4294901760
        %6006 = vmatpush1.msra.mxu0 %v6005
        %6007 = vmatprep.subr.mxu0 0.0
        %v6008 = vand.u32 %v5860, 4294901760
        %v6009 = vsub.f32 %v5860, %v6008
        %v6010 = vand.u32 %v6009, 4294901760
        %v6011 = vsub.f32 %v6009, %v6010
        %v6012 = vand.u32 %v6011, 4294901760
        %6013 = vmatpush1.msra.mxu0 %v6012
        %6014 = vmatprep.subr.mxu0 0.0
        %v6015 = vand.u32 %v5861, 4294901760
        %v6016 = vsub.f32 %v5861, %v6015
        %v6017 = vand.u32 %v6016, 4294901760
        %v6018 = vsub.f32 %v6016, %v6017
        %v6019 = vand.u32 %v6018, 4294901760
        %6020 = vmatpush1.msra.mxu0 %v6019
        %6021 = vmatprep.subr.mxu0 0.0
        %v6022 = vand.u32 %v5862, 4294901760
        %v6023 = vsub.f32 %v5862, %v6022
        %v6024 = vand.u32 %v6023, 4294901760
        %v6025 = vsub.f32 %v6023, %v6024
        %v6026 = vand.u32 %v6025, 4294901760
        %6027 = vmatpush1.msra.mxu0 %v6026
        %6028 = vmatprep.subr.mxu0 0.0
        %v6029 = vand.u32 %v5863, 4294901760
        %v6030 = vsub.f32 %v5863, %v6029
        %v6031 = vand.u32 %v6030, 4294901760
        %v6032 = vsub.f32 %v6030, %v6031
        %v6033 = vand.u32 %v6032, 4294901760
        %6034 = vmatpush1.msra.mxu0 %v6033
        %6035 = vmatprep.subr.mxu0 0.0
        %v6036 = vand.u32 %v5864, 4294901760
        %v6037 = vsub.f32 %v5864, %v6036
        %v6038 = vand.u32 %v6037, 4294901760
        %v6039 = vsub.f32 %v6037, %v6038
        %v6040 = vand.u32 %v6039, 4294901760
        %6041 = vmatpush1.msra.mxu0 %v6040
        %6042 = vmatprep.subr.mxu0 0.0
        %v6043 = vand.u32 %v5865, 4294901760
        %v6044 = vsub.f32 %v5865, %v6043
        %v6045 = vand.u32 %v6044, 4294901760
        %v6046 = vsub.f32 %v6044, %v6045
        %v6047 = vand.u32 %v6046, 4294901760
        %6048 = vmatpush1.msra.mxu0 %v6047
        %6049 = vmatprep.subr.mxu0 0.0
        %v6050 = vand.u32 %v5866, 4294901760
        %v6051 = vsub.f32 %v5866, %v6050
        %v6052 = vand.u32 %v6051, 4294901760
        %v6053 = vsub.f32 %v6051, %v6052
        %v6054 = vand.u32 %v6053, 4294901760
        %6055 = vmatpush1.msra.mxu0 %v6054
        %6056 = vmatprep.subr.mxu0 0.0
        %v6057 = vand.u32 %v5867, 4294901760
        %v6058 = vsub.f32 %v5867, %v6057
        %v6059 = vand.u32 %v6058, 4294901760
        %v6060 = vsub.f32 %v6058, %v6059
        %v6061 = vand.u32 %v6060, 4294901760
        %6062 = vmatpush1.msra.mxu0 %v6061
        %6063 = vmatprep.subr.mxu0 0.0
        %v6064 = vand.u32 %v5868, 4294901760
        %v6065 = vsub.f32 %v5868, %v6064
        %v6066 = vand.u32 %v6065, 4294901760
        %v6067 = vsub.f32 %v6065, %v6066
        %v6068 = vand.u32 %v6067, 4294901760
        %6069 = vmatpush1.msra.mxu0 %v6068
        %6070 = vmatprep.subr.mxu0 0.0
        %v6071 = vand.u32 %v5869, 4294901760
        %v6072 = vsub.f32 %v5869, %v6071
        %v6073 = vand.u32 %v6072, 4294901760
        %v6074 = vsub.f32 %v6072, %v6073
        %v6075 = vand.u32 %v6074, 4294901760
        %6076 = vmatpush1.msra.mxu0 %v6075
        %6077 = vmatprep.subr.mxu0 0.0
        %v6078 = vand.u32 %v5870, 4294901760
        %v6079 = vsub.f32 %v5870, %v6078
        %v6080 = vand.u32 %v6079, 4294901760
        %v6081 = vsub.f32 %v6079, %v6080
        %v6082 = vand.u32 %v6081, 4294901760
        %6083 = vmatpush1.msra.mxu0 %v6082
        %6084 = vmatprep.subr.mxu0 0.0
        %v6085 = vand.u32 %v5871, 4294901760
        %v6086 = vsub.f32 %v5871, %v6085
        %v6087 = vand.u32 %v6086, 4294901760
        %v6088 = vsub.f32 %v6086, %v6087
        %v6089 = vand.u32 %v6088, 4294901760
        %6090 = vmatpush1.msra.mxu0 %v6089
        %6091 = vmatprep.subr.mxu0 0.0
        %v6092 = vand.u32 %v5872, 4294901760
        %v6093 = vsub.f32 %v5872, %v6092
        %v6094 = vand.u32 %v6093, 4294901760
        %v6095 = vsub.f32 %v6093, %v6094
        %v6096 = vand.u32 %v6095, 4294901760
        %6097 = vmatpush1.msra.mxu0 %v6096
        %6098 = vmatprep.subr.mxu0 0.0
        %v6099 = vand.u32 %v5873, 4294901760
        %v6100 = vsub.f32 %v5873, %v6099
        %v6101 = vand.u32 %v6100, 4294901760
        %v6102 = vsub.f32 %v6100, %v6101
        %v6103 = vand.u32 %v6102, 4294901760
        %6104 = vmatpush1.msra.mxu0 %v6103
        %6105 = vmatprep.subr.mxu0 0.0
        %v6106 = vand.u32 %v5874, 4294901760
        %v6107 = vsub.f32 %v5874, %v6106
        %v6108 = vand.u32 %v6107, 4294901760
        %v6109 = vsub.f32 %v6107, %v6108
        %v6110 = vand.u32 %v6109, 4294901760
        %6111 = vmatpush1.msra.mxu0 %v6110
        %6112 = vmatprep.subr.mxu0 0.0
        %v6113 = vand.u32 %v5875, 4294901760
        %v6114 = vsub.f32 %v5875, %v6113
        %v6115 = vand.u32 %v6114, 4294901760
        %v6116 = vsub.f32 %v6114, %v6115
        %v6117 = vand.u32 %v6116, 4294901760
        %6118 = vmatpush1.msra.mxu0 %v6117
        %6119 = vmatprep.subr.mxu0 0.0
        %v6120 = vand.u32 %v5876, 4294901760
        %v6121 = vsub.f32 %v5876, %v6120
        %v6122 = vand.u32 %v6121, 4294901760
        %v6123 = vsub.f32 %v6121, %v6122
        %v6124 = vand.u32 %v6123, 4294901760
        %6125 = vmatpush1.msra.mxu0 %v6124
        %6126 = vmatprep.subr.mxu0 0.0
        %v6127 = vand.u32 %v5877, 4294901760
        %v6128 = vsub.f32 %v5877, %v6127
        %v6129 = vand.u32 %v6128, 4294901760
        %v6130 = vsub.f32 %v6128, %v6129
        %v6131 = vand.u32 %v6130, 4294901760
        %6132 = vmatpush1.msra.mxu0 %v6131
        %6133 = vmatprep.subr.mxu0 0.0
        %v6134 = vand.u32 %v5878, 4294901760
        %v6135 = vsub.f32 %v5878, %v6134
        %v6136 = vand.u32 %v6135, 4294901760
        %v6137 = vsub.f32 %v6135, %v6136
        %v6138 = vand.u32 %v6137, 4294901760
        %6139 = vmatpush1.msra.mxu0 %v6138
        %6140 = vmatprep.subr.mxu0 0.0
        %6141 = vmatpush1.msra.mxu0 0.0
        %6142 = vmatprep.subr.mxu0 0.0
        %6143 = vmatpush1.msra.mxu0 0.0
        %6144 = vmatprep.subr.mxu0 0.0
        %6145 = vmatpush1.msra.mxu0 0.0
        %6146 = vmatprep.subr.mxu0 0.0
        %6147 = vmatpush1.msra.mxu0 0.0
        %6148 = vmatprep.subr.mxu0 0.0
        %6149 = vmatpush1.msra.mxu0 0.0
        %6150 = vmatprep.subr.mxu0 0.0
        %6151 = vmatpush1.msra.mxu0 0.0
        %6152 = vmatprep.subr.mxu0 0.0
        %6153 = vmatpush1.msra.mxu0 0.0
        %6154 = vmatprep.subr.mxu0 0.0
        %6155 = vmatpush1.msra.mxu0 0.0
        %6156 = vmatprep.subr.mxu0 0.0
        %6157 = vmatpush1.msra.mxu0 0.0
        %6158 = vmatprep.subr.mxu0 0.0
        %6159 = vmatpush1.msra.mxu0 0.0
        %6160 = vmatprep.subr.mxu0 0.0
        %6161 = vmatpush1.msra.mxu0 0.0
        %6162 = vmatprep.subr.mxu0 0.0
        %6163 = vmatpush1.msra.mxu0 0.0
        %v6164 = vand.u32 %v5880, 4294901760
        %6165 = vmatprep.mubr.f32.mxu0 %v6164
        %v6166 = vand.u32 %v5854, 4294901760
        %6167 = vmatmul.mubr.f32.gmra.mrb[0].mxu0 %v6166
        %v6168 = vpop.f32.mrb[0].mxu0
        %v6169 = vadd.f32 %v5982, %v6168
        %v6170 = vpop.f32.mrb[0].mxu0
        %v6171 = vand.u32 %v5883, 4294901760
        %6172 = vmatprep.mubr.f32.mxu0 %v6171
        %v6173 = vand.u32 %v5856, 4294901760
        %6174 = vmatmul.mubr.f32.gmra.mrb[0].mxu0 %v6173
        %v6175 = vpop.f32.mrb[0].mxu0
        %v6176 = vadd.f32 %v5997, %v6175
        %v6177 = vpop.f32.mrb[0].mxu0
        %6178 = vdwg.mxu0
        %6179 = vmatprep.subr.mxu0 0.0
        %v6180 = vand.u32 %v5859, 4294901760
        %v6181 = vsub.f32 %v5859, %v6180
        %6182 = vmatpush1.msra.mxu0 %v6181
        %6183 = vmatprep.subr.mxu0 0.0
        %v6184 = vand.u32 %v5860, 4294901760
        %v6185 = vsub.f32 %v5860, %v6184
        %6186 = vmatpush1.msra.mxu0 %v6185
        %6187 = vmatprep.subr.mxu0 0.0
        %v6188 = vand.u32 %v5861, 4294901760
        %v6189 = vsub.f32 %v5861, %v6188
        %6190 = vmatpush1.msra.mxu0 %v6189
        %6191 = vmatprep.subr.mxu0 0.0
        %v6192 = vand.u32 %v5862, 4294901760
        %v6193 = vsub.f32 %v5862, %v6192
        %6194 = vmatpush1.msra.mxu0 %v6193
        %6195 = vmatprep.subr.mxu0 0.0
        %v6196 = vand.u32 %v5863, 4294901760
        %v6197 = vsub.f32 %v5863, %v6196
        %6198 = vmatpush1.msra.mxu0 %v6197
        %6199 = vmatprep.subr.mxu0 0.0
        %v6200 = vand.u32 %v5864, 4294901760
        %v6201 = vsub.f32 %v5864, %v6200
        %6202 = vmatpush1.msra.mxu0 %v6201
        %6203 = vmatprep.subr.mxu0 0.0
        %v6204 = vand.u32 %v5865, 4294901760
        %v6205 = vsub.f32 %v5865, %v6204
        %6206 = vmatpush1.msra.mxu0 %v6205
        %6207 = vmatprep.subr.mxu0 0.0
        %v6208 = vand.u32 %v5866, 4294901760
        %v6209 = vsub.f32 %v5866, %v6208
        %6210 = vmatpush1.msra.mxu0 %v6209
        %6211 = vmatprep.subr.mxu0 0.0
        %v6212 = vand.u32 %v5867, 4294901760
        %v6213 = vsub.f32 %v5867, %v6212
        %6214 = vmatpush1.msra.mxu0 %v6213
        %6215 = vmatprep.subr.mxu0 0.0
        %v6216 = vand.u32 %v5868, 4294901760
        %v6217 = vsub.f32 %v5868, %v6216
        %6218 = vmatpush1.msra.mxu0 %v6217
        %6219 = vmatprep.subr.mxu0 0.0
        %v6220 = vand.u32 %v5869, 4294901760
        %v6221 = vsub.f32 %v5869, %v6220
        %6222 = vmatpush1.msra.mxu0 %v6221
        %6223 = vmatprep.subr.mxu0 0.0
        %v6224 = vand.u32 %v5870, 4294901760
        %v6225 = vsub.f32 %v5870, %v6224
        %6226 = vmatpush1.msra.mxu0 %v6225
        %6227 = vmatprep.subr.mxu0 0.0
        %v6228 = vand.u32 %v5871, 4294901760
        %v6229 = vsub.f32 %v5871, %v6228
        %6230 = vmatpush1.msra.mxu0 %v6229
        %6231 = vmatprep.subr.mxu0 0.0
        %v6232 = vand.u32 %v5872, 4294901760
        %v6233 = vsub.f32 %v5872, %v6232
        %6234 = vmatpush1.msra.mxu0 %v6233
        %6235 = vmatprep.subr.mxu0 0.0
        %v6236 = vand.u32 %v5873, 4294901760
        %v6237 = vsub.f32 %v5873, %v6236
        %6238 = vmatpush1.msra.mxu0 %v6237
        %6239 = vmatprep.subr.mxu0 0.0
        %v6240 = vand.u32 %v5874, 4294901760
        %v6241 = vsub.f32 %v5874, %v6240
        %6242 = vmatpush1.msra.mxu0 %v6241
        %6243 = vmatprep.subr.mxu0 0.0
        %v6244 = vand.u32 %v5875, 4294901760
        %v6245 = vsub.f32 %v5875, %v6244
        %6246 = vmatpush1.msra.mxu0 %v6245
        %6247 = vmatprep.subr.mxu0 0.0
        %v6248 = vand.u32 %v5876, 4294901760
        %v6249 = vsub.f32 %v5876, %v6248
        %6250 = vmatpush1.msra.mxu0 %v6249
        %6251 = vmatprep.subr.mxu0 0.0
        %v6252 = vand.u32 %v5877, 4294901760
        %v6253 = vsub.f32 %v5877, %v6252
        %6254 = vmatpush1.msra.mxu0 %v6253
        %6255 = vmatprep.subr.mxu0 0.0
        %v6256 = vand.u32 %v5878, 4294901760
        %v6257 = vsub.f32 %v5878, %v6256
        %6258 = vmatpush1.msra.mxu0 %v6257
        %6259 = vmatprep.subr.mxu0 0.0
        %6260 = vmatpush1.msra.mxu0 0.0
        %6261 = vmatprep.subr.mxu0 0.0
        %6262 = vmatpush1.msra.mxu0 0.0
        %6263 = vmatprep.subr.mxu0 0.0
        %6264 = vmatpush1.msra.mxu0 0.0
        %6265 = vmatprep.subr.mxu0 0.0
        %6266 = vmatpush1.msra.mxu0 0.0
        %6267 = vmatprep.subr.mxu0 0.0
        %6268 = vmatpush1.msra.mxu0 0.0
        %6269 = vmatprep.subr.mxu0 0.0
        %6270 = vmatpush1.msra.mxu0 0.0
        %6271 = vmatprep.subr.mxu0 0.0
        %6272 = vmatpush1.msra.mxu0 0.0
        %6273 = vmatprep.subr.mxu0 0.0
        %6274 = vmatpush1.msra.mxu0 0.0
        %6275 = vmatprep.subr.mxu0 0.0
        %6276 = vmatpush1.msra.mxu0 0.0
        %6277 = vmatprep.subr.mxu0 0.0
        %6278 = vmatpush1.msra.mxu0 0.0
        %6279 = vmatprep.subr.mxu0 0.0
        %6280 = vmatpush1.msra.mxu0 0.0
        %6281 = vmatprep.subr.mxu0 0.0
        %6282 = vmatpush1.msra.mxu0 0.0
        %v6283 = vand.u32 %v5880, 4294901760
        %v6284 = vsub.f32 %v5880, %v6283
        %6285 = vmatprep.mubr.f32.mxu0 %v6284
        %v6286 = vand.u32 %v5854, 4294901760
        %v6287 = vsub.f32 %v5854, %v6286
        %6288 = vmatmul.mubr.f32.gmra.mrb[0].mxu0 %v6287
        %v6289 = vpop.f32.mrb[0].mxu0
        %v6290 = vadd.f32 %v6169, %v6289
        %v6291 = vpop.f32.mrb[0].mxu0
        %v6292 = vand.u32 %v5883, 4294901760
        %v6293 = vsub.f32 %v5883, %v6292
        %6294 = vmatprep.mubr.f32.mxu0 %v6293
        %v6295 = vand.u32 %v5856, 4294901760
        %v6296 = vsub.f32 %v5856, %v6295
        %6297 = vmatmul.mubr.f32.gmra.mrb[0].mxu0 %v6296
        %v6298 = vpop.f32.mrb[0].mxu0
        %v6299 = vadd.f32 %v6176, %v6298
        %v6300 = vpop.f32.mrb[0].mxu0
        %6301 = vdwg.mxu0
        %6302 = vmatprep.subr.mxu0 0.0
        %v6303 = vand.u32 %v5859, 4294901760
        %6304 = vmatpush1.msra.mxu0 %v6303
        %6305 = vmatprep.subr.mxu0 0.0
        %v6306 = vand.u32 %v5860, 4294901760
        %6307 = vmatpush1.msra.mxu0 %v6306
        %6308 = vmatprep.subr.mxu0 0.0
        %v6309 = vand.u32 %v5861, 4294901760
        %6310 = vmatpush1.msra.mxu0 %v6309
        %6311 = vmatprep.subr.mxu0 0.0
        %v6312 = vand.u32 %v5862, 4294901760
        %6313 = vmatpush1.msra.mxu0 %v6312
        %6314 = vmatprep.subr.mxu0 0.0
        %v6315 = vand.u32 %v5863, 4294901760
        %6316 = vmatpush1.msra.mxu0 %v6315
        %6317 = vmatprep.subr.mxu0 0.0
        %v6318 = vand.u32 %v5864, 4294901760
        %6319 = vmatpush1.msra.mxu0 %v6318
        %6320 = vmatprep.subr.mxu0 0.0
        %v6321 = vand.u32 %v5865, 4294901760
        %6322 = vmatpush1.msra.mxu0 %v6321
        %6323 = vmatprep.subr.mxu0 0.0
        %v6324 = vand.u32 %v5866, 4294901760
        %6325 = vmatpush1.msra.mxu0 %v6324
        %6326 = vmatprep.subr.mxu0 0.0
        %v6327 = vand.u32 %v5867, 4294901760
        %6328 = vmatpush1.msra.mxu0 %v6327
        %6329 = vmatprep.subr.mxu0 0.0
        %v6330 = vand.u32 %v5868, 4294901760
        %6331 = vmatpush1.msra.mxu0 %v6330
        %6332 = vmatprep.subr.mxu0 0.0
        %v6333 = vand.u32 %v5869, 4294901760
        %6334 = vmatpush1.msra.mxu0 %v6333
        %6335 = vmatprep.subr.mxu0 0.0
        %v6336 = vand.u32 %v5870, 4294901760
        %6337 = vmatpush1.msra.mxu0 %v6336
        %6338 = vmatprep.subr.mxu0 0.0
        %v6339 = vand.u32 %v5871, 4294901760
        %6340 = vmatpush1.msra.mxu0 %v6339
        %6341 = vmatprep.subr.mxu0 0.0
        %v6342 = vand.u32 %v5872, 4294901760
        %6343 = vmatpush1.msra.mxu0 %v6342
        %6344 = vmatprep.subr.mxu0 0.0
        %v6345 = vand.u32 %v5873, 4294901760
        %6346 = vmatpush1.msra.mxu0 %v6345
        %6347 = vmatprep.subr.mxu0 0.0
        %v6348 = vand.u32 %v5874, 4294901760
        %6349 = vmatpush1.msra.mxu0 %v6348
        %6350 = vmatprep.subr.mxu0 0.0
        %v6351 = vand.u32 %v5875, 4294901760
        %6352 = vmatpush1.msra.mxu0 %v6351
        %6353 = vmatprep.subr.mxu0 0.0
        %v6354 = vand.u32 %v5876, 4294901760
        %6355 = vmatpush1.msra.mxu0 %v6354
        %6356 = vmatprep.subr.mxu0 0.0
        %v6357 = vand.u32 %v5877, 4294901760
        %6358 = vmatpush1.msra.mxu0 %v6357
        %6359 = vmatprep.subr.mxu0 0.0
        %v6360 = vand.u32 %v5878, 4294901760
        %6361 = vmatpush1.msra.mxu0 %v6360
        %6362 = vmatprep.subr.mxu0 0.0
        %6363 = vmatpush1.msra.mxu0 0.0
        %6364 = vmatprep.subr.mxu0 0.0
        %6365 = vmatpush1.msra.mxu0 0.0
        %6366 = vmatprep.subr.mxu0 0.0
        %6367 = vmatpush1.msra.mxu0 0.0
        %6368 = vmatprep.subr.mxu0 0.0
        %6369 = vmatpush1.msra.mxu0 0.0
        %6370 = vmatprep.subr.mxu0 0.0
        %6371 = vmatpush1.msra.mxu0 0.0
        %6372 = vmatprep.subr.mxu0 0.0
        %6373 = vmatpush1.msra.mxu0 0.0
        %6374 = vmatprep.subr.mxu0 0.0
        %6375 = vmatpush1.msra.mxu0 0.0
        %6376 = vmatprep.subr.mxu0 0.0
        %6377 = vmatpush1.msra.mxu0 0.0
        %6378 = vmatprep.subr.mxu0 0.0
        %6379 = vmatpush1.msra.mxu0 0.0
        %6380 = vmatprep.subr.mxu0 0.0
        %6381 = vmatpush1.msra.mxu0 0.0
        %6382 = vmatprep.subr.mxu0 0.0
        %6383 = vmatpush1.msra.mxu0 0.0
        %6384 = vmatprep.subr.mxu0 0.0
        %6385 = vmatpush1.msra.mxu0 0.0
        %v6386 = vand.u32 %v5880, 4294901760
        %v6387 = vsub.f32 %v5880, %v6386
        %v6388 = vand.u32 %v6387, 4294901760
        %6389 = vmatprep.mubr.f32.mxu0 %v6388
        %v6390 = vand.u32 %v5854, 4294901760
        %v6391 = vsub.f32 %v5854, %v6390
        %v6392 = vand.u32 %v6391, 4294901760
        %6393 = vmatmul.mubr.f32.gmra.mrb[0].mxu0 %v6392
        %v6394 = vpop.f32.mrb[0].mxu0
        %v6395 = vadd.f32 %v6290, %v6394
        %v6396 = vpop.f32.mrb[0].mxu0
        %v6397 = vand.u32 %v5883, 4294901760
        %v6398 = vsub.f32 %v5883, %v6397
        %v6399 = vand.u32 %v6398, 4294901760
        %6400 = vmatprep.mubr.f32.mxu0 %v6399
        %v6401 = vand.u32 %v5856, 4294901760
        %v6402 = vsub.f32 %v5856, %v6401
        %v6403 = vand.u32 %v6402, 4294901760
        %6404 = vmatmul.mubr.f32.gmra.mrb[0].mxu0 %v6403
        %v6405 = vpop.f32.mrb[0].mxu0
        %v6406 = vadd.f32 %v6299, %v6405
        %v6407 = vpop.f32.mrb[0].mxu0
        %6408 = vdwg.mxu0
        %6409 = vmatprep.subr.mxu0 0.0
        %v6410 = vand.u32 %v5859, 4294901760
        %v6411 = vsub.f32 %v5859, %v6410
        %v6412 = vand.u32 %v6411, 4294901760
        %6413 = vmatpush1.msra.mxu0 %v6412
        %6414 = vmatprep.subr.mxu0 0.0
        %v6415 = vand.u32 %v5860, 4294901760
        %v6416 = vsub.f32 %v5860, %v6415
        %v6417 = vand.u32 %v6416, 4294901760
        %6418 = vmatpush1.msra.mxu0 %v6417
        %6419 = vmatprep.subr.mxu0 0.0
        %v6420 = vand.u32 %v5861, 4294901760
        %v6421 = vsub.f32 %v5861, %v6420
        %v6422 = vand.u32 %v6421, 4294901760
        %6423 = vmatpush1.msra.mxu0 %v6422
        %6424 = vmatprep.subr.mxu0 0.0
        %v6425 = vand.u32 %v5862, 4294901760
        %v6426 = vsub.f32 %v5862, %v6425
        %v6427 = vand.u32 %v6426, 4294901760
        %6428 = vmatpush1.msra.mxu0 %v6427
        %6429 = vmatprep.subr.mxu0 0.0
        %v6430 = vand.u32 %v5863, 4294901760
        %v6431 = vsub.f32 %v5863, %v6430
        %v6432 = vand.u32 %v6431, 4294901760
        %6433 = vmatpush1.msra.mxu0 %v6432
        %6434 = vmatprep.subr.mxu0 0.0
        %v6435 = vand.u32 %v5864, 4294901760
        %v6436 = vsub.f32 %v5864, %v6435
        %v6437 = vand.u32 %v6436, 4294901760
        %6438 = vmatpush1.msra.mxu0 %v6437
        %6439 = vmatprep.subr.mxu0 0.0
        %v6440 = vand.u32 %v5865, 4294901760
        %v6441 = vsub.f32 %v5865, %v6440
        %v6442 = vand.u32 %v6441, 4294901760
        %6443 = vmatpush1.msra.mxu0 %v6442
        %6444 = vmatprep.subr.mxu0 0.0
        %v6445 = vand.u32 %v5866, 4294901760
        %v6446 = vsub.f32 %v5866, %v6445
        %v6447 = vand.u32 %v6446, 4294901760
        %6448 = vmatpush1.msra.mxu0 %v6447
        %6449 = vmatprep.subr.mxu0 0.0
        %v6450 = vand.u32 %v5867, 4294901760
        %v6451 = vsub.f32 %v5867, %v6450
        %v6452 = vand.u32 %v6451, 4294901760
        %6453 = vmatpush1.msra.mxu0 %v6452
        %6454 = vmatprep.subr.mxu0 0.0
        %v6455 = vand.u32 %v5868, 4294901760
        %v6456 = vsub.f32 %v5868, %v6455
        %v6457 = vand.u32 %v6456, 4294901760
        %6458 = vmatpush1.msra.mxu0 %v6457
        %6459 = vmatprep.subr.mxu0 0.0
        %v6460 = vand.u32 %v5869, 4294901760
        %v6461 = vsub.f32 %v5869, %v6460
        %v6462 = vand.u32 %v6461, 4294901760
        %6463 = vmatpush1.msra.mxu0 %v6462
        %6464 = vmatprep.subr.mxu0 0.0
        %v6465 = vand.u32 %v5870, 4294901760
        %v6466 = vsub.f32 %v5870, %v6465
        %v6467 = vand.u32 %v6466, 4294901760
        %6468 = vmatpush1.msra.mxu0 %v6467
        %6469 = vmatprep.subr.mxu0 0.0
        %v6470 = vand.u32 %v5871, 4294901760
        %v6471 = vsub.f32 %v5871, %v6470
        %v6472 = vand.u32 %v6471, 4294901760
        %6473 = vmatpush1.msra.mxu0 %v6472
        %6474 = vmatprep.subr.mxu0 0.0
        %v6475 = vand.u32 %v5872, 4294901760
        %v6476 = vsub.f32 %v5872, %v6475
        %v6477 = vand.u32 %v6476, 4294901760
        %6478 = vmatpush1.msra.mxu0 %v6477
        %6479 = vmatprep.subr.mxu0 0.0
        %v6480 = vand.u32 %v5873, 4294901760
        %v6481 = vsub.f32 %v5873, %v6480
        %v6482 = vand.u32 %v6481, 4294901760
        %6483 = vmatpush1.msra.mxu0 %v6482
        %6484 = vmatprep.subr.mxu0 0.0
        %v6485 = vand.u32 %v5874, 4294901760
        %v6486 = vsub.f32 %v5874, %v6485
        %v6487 = vand.u32 %v6486, 4294901760
        %6488 = vmatpush1.msra.mxu0 %v6487
        %6489 = vmatprep.subr.mxu0 0.0
        %v6490 = vand.u32 %v5875, 4294901760
        %v6491 = vsub.f32 %v5875, %v6490
        %v6492 = vand.u32 %v6491, 4294901760
        %6493 = vmatpush1.msra.mxu0 %v6492
        %6494 = vmatprep.subr.mxu0 0.0
        %v6495 = vand.u32 %v5876, 4294901760
        %v6496 = vsub.f32 %v5876, %v6495
        %v6497 = vand.u32 %v6496, 4294901760
        %6498 = vmatpush1.msra.mxu0 %v6497
        %6499 = vmatprep.subr.mxu0 0.0
        %v6500 = vand.u32 %v5877, 4294901760
        %v6501 = vsub.f32 %v5877, %v6500
        %v6502 = vand.u32 %v6501, 4294901760
        %6503 = vmatpush1.msra.mxu0 %v6502
        %6504 = vmatprep.subr.mxu0 0.0
        %v6505 = vand.u32 %v5878, 4294901760
        %v6506 = vsub.f32 %v5878, %v6505
        %v6507 = vand.u32 %v6506, 4294901760
        %6508 = vmatpush1.msra.mxu0 %v6507
        %6509 = vmatprep.subr.mxu0 0.0
        %6510 = vmatpush1.msra.mxu0 0.0
        %6511 = vmatprep.subr.mxu0 0.0
        %6512 = vmatpush1.msra.mxu0 0.0
        %6513 = vmatprep.subr.mxu0 0.0
        %6514 = vmatpush1.msra.mxu0 0.0
        %6515 = vmatprep.subr.mxu0 0.0
        %6516 = vmatpush1.msra.mxu0 0.0
        %6517 = vmatprep.subr.mxu0 0.0
        %6518 = vmatpush1.msra.mxu0 0.0
        %6519 = vmatprep.subr.mxu0 0.0
        %6520 = vmatpush1.msra.mxu0 0.0
        %6521 = vmatprep.subr.mxu0 0.0
        %6522 = vmatpush1.msra.mxu0 0.0
        %6523 = vmatprep.subr.mxu0 0.0
        %6524 = vmatpush1.msra.mxu0 0.0
        %6525 = vmatprep.subr.mxu0 0.0
        %6526 = vmatpush1.msra.mxu0 0.0
        %6527 = vmatprep.subr.mxu0 0.0
        %6528 = vmatpush1.msra.mxu0 0.0
        %6529 = vmatprep.subr.mxu0 0.0
        %6530 = vmatpush1.msra.mxu0 0.0
        %6531 = vmatprep.subr.mxu0 0.0
        %6532 = vmatpush1.msra.mxu0 0.0
        %v6533 = vand.u32 %v5880, 4294901760
        %6534 = vmatprep.mubr.f32.mxu0 %v6533
        %v6535 = vand.u32 %v5854, 4294901760
        %6536 = vmatmul.mubr.f32.gmra.mrb[0].mxu0 %v6535
        %v6537 = vpop.f32.mrb[0].mxu0
        %v6538 = vadd.f32 %v6395, %v6537
        %v6539 = vpop.f32.mrb[0].mxu0
        %v6540 = vand.u32 %v5883, 4294901760
        %6541 = vmatprep.mubr.f32.mxu0 %v6540
        %v6542 = vand.u32 %v5856, 4294901760
        %6543 = vmatmul.mubr.f32.gmra.mrb[0].mxu0 %v6542
        %v6544 = vpop.f32.mrb[0].mxu0
        %v6545 = vadd.f32 %v6406, %v6544
        %v6546 = vpop.f32.mrb[0].mxu0
        %6547 = vdwg.mxu0
        %6548 = vmatprep.subr.mxu0 0.0
        %v6549 = vand.u32 %v5859, 4294901760
        %6550 = vmatpush1.msra.mxu0 %v6549
        %6551 = vmatprep.subr.mxu0 0.0
        %v6552 = vand.u32 %v5860, 4294901760
        %6553 = vmatpush1.msra.mxu0 %v6552
        %6554 = vmatprep.subr.mxu0 0.0
        %v6555 = vand.u32 %v5861, 4294901760
        %6556 = vmatpush1.msra.mxu0 %v6555
        %6557 = vmatprep.subr.mxu0 0.0
        %v6558 = vand.u32 %v5862, 4294901760
        %6559 = vmatpush1.msra.mxu0 %v6558
        %6560 = vmatprep.subr.mxu0 0.0
        %v6561 = vand.u32 %v5863, 4294901760
        %6562 = vmatpush1.msra.mxu0 %v6561
        %6563 = vmatprep.subr.mxu0 0.0
        %v6564 = vand.u32 %v5864, 4294901760
        %6565 = vmatpush1.msra.mxu0 %v6564
        %6566 = vmatprep.subr.mxu0 0.0
        %v6567 = vand.u32 %v5865, 4294901760
        %6568 = vmatpush1.msra.mxu0 %v6567
        %6569 = vmatprep.subr.mxu0 0.0
        %v6570 = vand.u32 %v5866, 4294901760
        %6571 = vmatpush1.msra.mxu0 %v6570
        %6572 = vmatprep.subr.mxu0 0.0
        %v6573 = vand.u32 %v5867, 4294901760
        %6574 = vmatpush1.msra.mxu0 %v6573
        %6575 = vmatprep.subr.mxu0 0.0
        %v6576 = vand.u32 %v5868, 4294901760
        %6577 = vmatpush1.msra.mxu0 %v6576
        %6578 = vmatprep.subr.mxu0 0.0
        %v6579 = vand.u32 %v5869, 4294901760
        %6580 = vmatpush1.msra.mxu0 %v6579
        %6581 = vmatprep.subr.mxu0 0.0
        %v6582 = vand.u32 %v5870, 4294901760
        %6583 = vmatpush1.msra.mxu0 %v6582
        %6584 = vmatprep.subr.mxu0 0.0
        %v6585 = vand.u32 %v5871, 4294901760
        %6586 = vmatpush1.msra.mxu0 %v6585
        %6587 = vmatprep.subr.mxu0 0.0
        %v6588 = vand.u32 %v5872, 4294901760
        %6589 = vmatpush1.msra.mxu0 %v6588
        %6590 = vmatprep.subr.mxu0 0.0
        %v6591 = vand.u32 %v5873, 4294901760
        %6592 = vmatpush1.msra.mxu0 %v6591
        %6593 = vmatprep.subr.mxu0 0.0
        %v6594 = vand.u32 %v5874, 4294901760
        %6595 = vmatpush1.msra.mxu0 %v6594
        %6596 = vmatprep.subr.mxu0 0.0
        %v6597 = vand.u32 %v5875, 4294901760
        %6598 = vmatpush1.msra.mxu0 %v6597
        %6599 = vmatprep.subr.mxu0 0.0
        %v6600 = vand.u32 %v5876, 4294901760
        %6601 = vmatpush1.msra.mxu0 %v6600
        %6602 = vmatprep.subr.mxu0 0.0
        %v6603 = vand.u32 %v5877, 4294901760
        %6604 = vmatpush1.msra.mxu0 %v6603
        %6605 = vmatprep.subr.mxu0 0.0
        %v6606 = vand.u32 %v5878, 4294901760
        %6607 = vmatpush1.msra.mxu0 %v6606
        %6608 = vmatprep.subr.mxu0 0.0
        %6609 = vmatpush1.msra.mxu0 0.0
        %6610 = vmatprep.subr.mxu0 0.0
        %6611 = vmatpush1.msra.mxu0 0.0
        %6612 = vmatprep.subr.mxu0 0.0
        %6613 = vmatpush1.msra.mxu0 0.0
        %6614 = vmatprep.subr.mxu0 0.0
        %6615 = vmatpush1.msra.mxu0 0.0
        %6616 = vmatprep.subr.mxu0 0.0
        %6617 = vmatpush1.msra.mxu0 0.0
        %6618 = vmatprep.subr.mxu0 0.0
        %6619 = vmatpush1.msra.mxu0 0.0
        %6620 = vmatprep.subr.mxu0 0.0
        %6621 = vmatpush1.msra.mxu0 0.0
        %6622 = vmatprep.subr.mxu0 0.0
        %6623 = vmatpush1.msra.mxu0 0.0
        %6624 = vmatprep.subr.mxu0 0.0
        %6625 = vmatpush1.msra.mxu0 0.0
        %6626 = vmatprep.subr.mxu0 0.0
        %6627 = vmatpush1.msra.mxu0 0.0
        %6628 = vmatprep.subr.mxu0 0.0
        %6629 = vmatpush1.msra.mxu0 0.0
        %6630 = vmatprep.subr.mxu0 0.0
        %6631 = vmatpush1.msra.mxu0 0.0
        %v6632 = vand.u32 %v5880, 4294901760
        %6633 = vmatprep.mubr.f32.mxu0 %v6632
        %v6634 = vand.u32 %v5854, 4294901760
        %6635 = vmatmul.mubr.f32.gmra.mrb[0].mxu0 %v6634
        %v6636 = vpop.f32.mrb[0].mxu0
        %v6637 = vadd.f32 %v6538, %v6636
        %v6638 = vpop.f32.mrb[0].mxu0
        %v6639 = vand.u32 %v5883, 4294901760
        %6640 = vmatprep.mubr.f32.mxu0 %v6639
        %v6641 = vand.u32 %v5856, 4294901760
        %6642 = vmatmul.mubr.f32.gmra.mrb[0].mxu0 %v6641
        %v6643 = vpop.f32.mrb[0].mxu0
        %v6644 = vadd.f32 %v6545, %v6643
        %v6645 = vpop.f32.mrb[0].mxu0
        %6646 = vdwg.mxu0
        %vm6647 = vcmask 80896
        %v6649 = vsel %vm6647, %v5858, 0
        %vm6651 = vcmask 1041408
        %v6653 = vsel %vm6651, %v6644, 0
        %6655 = vmatprep.subr.mxu0 0.0
        %v6656 = vand.u32 %v6637, 4294901760
        %6657 = vmatpush1.msra.mxu0 %v6656
        %6658 = vmatprep.subr.mxu0 0.0
        %v6659 = vand.u32 %v6653, 4294901760
        %6660 = vmatpush1.msra.mxu0 %v6659
        %6661 = vmatprep.subr.mxu0 0.0
        %6662 = vmatpush1.msra.mxu0 0.0
        %6663 = vmatprep.subr.mxu0 0.0
        %6664 = vmatpush1.msra.mxu0 0.0
        %6665 = vmatprep.subr.mxu0 0.0
        %6666 = vmatpush1.msra.mxu0 0.0
        %6667 = vmatprep.subr.mxu0 0.0
        %6668 = vmatpush1.msra.mxu0 0.0
        %6669 = vmatprep.subr.mxu0 0.0
        %6670 = vmatpush1.msra.mxu0 0.0
        %6671 = vmatprep.subr.mxu0 0.0
        %6672 = vmatpush1.msra.mxu0 0.0
        %6673 = vmatprep.subr.mxu0 0.0
        %6674 = vmatpush1.msra.mxu0 0.0
        %6675 = vmatprep.subr.mxu0 0.0
        %6676 = vmatpush1.msra.mxu0 0.0
        %6677 = vmatprep.subr.mxu0 0.0
        %6678 = vmatpush1.msra.mxu0 0.0
        %6679 = vmatprep.subr.mxu0 0.0
        %6680 = vmatpush1.msra.mxu0 0.0
        %6681 = vmatprep.subr.mxu0 0.0
        %6682 = vmatpush1.msra.mxu0 0.0
        %6683 = vmatprep.subr.mxu0 0.0
        %6684 = vmatpush1.msra.mxu0 0.0
        %6685 = vmatprep.subr.mxu0 0.0
        %6686 = vmatpush1.msra.mxu0 0.0
        %6687 = vmatprep.subr.mxu0 0.0
        %6688 = vmatpush1.msra.mxu0 0.0
        %6689 = vmatprep.subr.mxu0 0.0
        %6690 = vmatpush1.msra.mxu0 0.0
        %6691 = vmatprep.subr.mxu0 0.0
        %6692 = vmatpush1.msra.mxu0 0.0
        %6693 = vmatprep.subr.mxu0 0.0
        %6694 = vmatpush1.msra.mxu0 0.0
        %6695 = vmatprep.subr.mxu0 0.0
        %6696 = vmatpush1.msra.mxu0 0.0
        %6697 = vmatprep.subr.mxu0 0.0
        %6698 = vmatpush1.msra.mxu0 0.0
        %6699 = vmatprep.subr.mxu0 0.0
        %6700 = vmatpush1.msra.mxu0 0.0
        %6701 = vmatprep.subr.mxu0 0.0
        %6702 = vmatpush1.msra.mxu0 0.0
        %6703 = vmatprep.subr.mxu0 0.0
        %6704 = vmatpush1.msra.mxu0 0.0
        %6705 = vmatprep.subr.mxu0 0.0
        %6706 = vmatpush1.msra.mxu0 0.0
        %6707 = vmatprep.subr.mxu0 0.0
        %6708 = vmatpush1.msra.mxu0 0.0
        %6709 = vmatprep.subr.mxu0 0.0
        %6710 = vmatpush1.msra.mxu0 0.0
        %6711 = vmatprep.subr.mxu0 0.0
        %6712 = vmatpush1.msra.mxu0 0.0
        %6713 = vmatprep.subr.mxu0 0.0
        %6714 = vmatpush1.msra.mxu0 0.0
        %6715 = vmatprep.subr.mxu0 0.0
        %6716 = vmatpush1.msra.mxu0 0.0
        %6717 = vmatprep.subr.mxu0 0.0
        %6718 = vmatpush1.msra.mxu0 0.0
        %6719 = vmatprep.subr.mxu0 0.0
        %6720 = vmatpush1.msra.mxu0 0.0
        %6721 = vmatprep.mubr.f32.mxu0 0.0
        %v6722 = vand.u32 %v6649, 4294901760
        %v6723 = vsub.f32 %v6649, %v6722
        %v6724 = vand.u32 %v6723, 4294901760
        %v6725 = vsub.f32 %v6723, %v6724
        %v6726 = vand.u32 %v6725, 4294901760
        %6727 = vmatmul.mubr.f32.gmra.mrb[0].mxu0 %v6726
        %v6728 = vpop.f32.mrb[0].mxu0
        %v6729 = vadd.f32 0.0, %v6728
        %v6730 = vpop.f32.mrb[0].mxu0
        %6731 = vdwg.mxu0
        %6732 = vmatprep.subr.mxu0 0.0
        %v6733 = vand.u32 %v6637, 4294901760
        %v6734 = vsub.f32 %v6637, %v6733
        %v6735 = vand.u32 %v6734, 4294901760
        %v6736 = vsub.f32 %v6734, %v6735
        %v6737 = vand.u32 %v6736, 4294901760
        %6738 = vmatpush1.msra.mxu0 %v6737
        %6739 = vmatprep.subr.mxu0 0.0
        %v6740 = vand.u32 %v6653, 4294901760
        %v6741 = vsub.f32 %v6653, %v6740
        %v6742 = vand.u32 %v6741, 4294901760
        %v6743 = vsub.f32 %v6741, %v6742
        %v6744 = vand.u32 %v6743, 4294901760
        %6745 = vmatpush1.msra.mxu0 %v6744
        %6746 = vmatprep.subr.mxu0 0.0
        %6747 = vmatpush1.msra.mxu0 0.0
        %6748 = vmatprep.subr.mxu0 0.0
        %6749 = vmatpush1.msra.mxu0 0.0
        %6750 = vmatprep.subr.mxu0 0.0
        %6751 = vmatpush1.msra.mxu0 0.0
        %6752 = vmatprep.subr.mxu0 0.0
        %6753 = vmatpush1.msra.mxu0 0.0
        %6754 = vmatprep.subr.mxu0 0.0
        %6755 = vmatpush1.msra.mxu0 0.0
        %6756 = vmatprep.subr.mxu0 0.0
        %6757 = vmatpush1.msra.mxu0 0.0
        %6758 = vmatprep.subr.mxu0 0.0
        %6759 = vmatpush1.msra.mxu0 0.0
        %6760 = vmatprep.subr.mxu0 0.0
        %6761 = vmatpush1.msra.mxu0 0.0
        %6762 = vmatprep.subr.mxu0 0.0
        %6763 = vmatpush1.msra.mxu0 0.0
        %6764 = vmatprep.subr.mxu0 0.0
        %6765 = vmatpush1.msra.mxu0 0.0
        %6766 = vmatprep.subr.mxu0 0.0
        %6767 = vmatpush1.msra.mxu0 0.0
        %6768 = vmatprep.subr.mxu0 0.0
        %6769 = vmatpush1.msra.mxu0 0.0
        %6770 = vmatprep.subr.mxu0 0.0
        %6771 = vmatpush1.msra.mxu0 0.0
        %6772 = vmatprep.subr.mxu0 0.0
        %6773 = vmatpush1.msra.mxu0 0.0
        %6774 = vmatprep.subr.mxu0 0.0
        %6775 = vmatpush1.msra.mxu0 0.0
        %6776 = vmatprep.subr.mxu0 0.0
        %6777 = vmatpush1.msra.mxu0 0.0
        %6778 = vmatprep.subr.mxu0 0.0
        %6779 = vmatpush1.msra.mxu0 0.0
        %6780 = vmatprep.subr.mxu0 0.0
        %6781 = vmatpush1.msra.mxu0 0.0
        %6782 = vmatprep.subr.mxu0 0.0
        %6783 = vmatpush1.msra.mxu0 0.0
        %6784 = vmatprep.subr.mxu0 0.0
        %6785 = vmatpush1.msra.mxu0 0.0
        %6786 = vmatprep.subr.mxu0 0.0
        %6787 = vmatpush1.msra.mxu0 0.0
        %6788 = vmatprep.subr.mxu0 0.0
        %6789 = vmatpush1.msra.mxu0 0.0
        %6790 = vmatprep.subr.mxu0 0.0
        %6791 = vmatpush1.msra.mxu0 0.0
        %6792 = vmatprep.subr.mxu0 0.0
        %6793 = vmatpush1.msra.mxu0 0.0
        %6794 = vmatprep.subr.mxu0 0.0
        %6795 = vmatpush1.msra.mxu0 0.0
        %6796 = vmatprep.subr.mxu0 0.0
        %6797 = vmatpush1.msra.mxu0 0.0
        %6798 = vmatprep.subr.mxu0 0.0
        %6799 = vmatpush1.msra.mxu0 0.0
        %6800 = vmatprep.subr.mxu0 0.0
        %6801 = vmatpush1.msra.mxu0 0.0
        %6802 = vmatprep.subr.mxu0 0.0
        %6803 = vmatpush1.msra.mxu0 0.0
        %6804 = vmatprep.subr.mxu0 0.0
        %6805 = vmatpush1.msra.mxu0 0.0
        %6806 = vmatprep.mubr.f32.mxu0 0.0
        %v6807 = vand.u32 %v6649, 4294901760
        %6808 = vmatmul.mubr.f32.gmra.mrb[0].mxu0 %v6807
        %v6809 = vpop.f32.mrb[0].mxu0
        %v6810 = vadd.f32 %v6729, %v6809
        %v6811 = vpop.f32.mrb[0].mxu0
        %6812 = vdwg.mxu0
        %6813 = vmatprep.subr.mxu0 0.0
        %v6814 = vand.u32 %v6637, 4294901760
        %v6815 = vsub.f32 %v6637, %v6814
        %6816 = vmatpush1.msra.mxu0 %v6815
        %6817 = vmatprep.subr.mxu0 0.0
        %v6818 = vand.u32 %v6653, 4294901760
        %v6819 = vsub.f32 %v6653, %v6818
        %6820 = vmatpush1.msra.mxu0 %v6819
        %6821 = vmatprep.subr.mxu0 0.0
        %6822 = vmatpush1.msra.mxu0 0.0
        %6823 = vmatprep.subr.mxu0 0.0
        %6824 = vmatpush1.msra.mxu0 0.0
        %6825 = vmatprep.subr.mxu0 0.0
        %6826 = vmatpush1.msra.mxu0 0.0
        %6827 = vmatprep.subr.mxu0 0.0
        %6828 = vmatpush1.msra.mxu0 0.0
        %6829 = vmatprep.subr.mxu0 0.0
        %6830 = vmatpush1.msra.mxu0 0.0
        %6831 = vmatprep.subr.mxu0 0.0
        %6832 = vmatpush1.msra.mxu0 0.0
        %6833 = vmatprep.subr.mxu0 0.0
        %6834 = vmatpush1.msra.mxu0 0.0
        %6835 = vmatprep.subr.mxu0 0.0
        %6836 = vmatpush1.msra.mxu0 0.0
        %6837 = vmatprep.subr.mxu0 0.0
        %6838 = vmatpush1.msra.mxu0 0.0
        %6839 = vmatprep.subr.mxu0 0.0
        %6840 = vmatpush1.msra.mxu0 0.0
        %6841 = vmatprep.subr.mxu0 0.0
        %6842 = vmatpush1.msra.mxu0 0.0
        %6843 = vmatprep.subr.mxu0 0.0
        %6844 = vmatpush1.msra.mxu0 0.0
        %6845 = vmatprep.subr.mxu0 0.0
        %6846 = vmatpush1.msra.mxu0 0.0
        %6847 = vmatprep.subr.mxu0 0.0
        %6848 = vmatpush1.msra.mxu0 0.0
        %6849 = vmatprep.subr.mxu0 0.0
        %6850 = vmatpush1.msra.mxu0 0.0
        %6851 = vmatprep.subr.mxu0 0.0
        %6852 = vmatpush1.msra.mxu0 0.0
        %6853 = vmatprep.subr.mxu0 0.0
        %6854 = vmatpush1.msra.mxu0 0.0
        %6855 = vmatprep.subr.mxu0 0.0
        %6856 = vmatpush1.msra.mxu0 0.0
        %6857 = vmatprep.subr.mxu0 0.0
        %6858 = vmatpush1.msra.mxu0 0.0
        %6859 = vmatprep.subr.mxu0 0.0
        %6860 = vmatpush1.msra.mxu0 0.0
        %6861 = vmatprep.subr.mxu0 0.0
        %6862 = vmatpush1.msra.mxu0 0.0
        %6863 = vmatprep.subr.mxu0 0.0
        %6864 = vmatpush1.msra.mxu0 0.0
        %6865 = vmatprep.subr.mxu0 0.0
        %6866 = vmatpush1.msra.mxu0 0.0
        %6867 = vmatprep.subr.mxu0 0.0
        %6868 = vmatpush1.msra.mxu0 0.0
        %6869 = vmatprep.subr.mxu0 0.0
        %6870 = vmatpush1.msra.mxu0 0.0
        %6871 = vmatprep.subr.mxu0 0.0
        %6872 = vmatpush1.msra.mxu0 0.0
        %6873 = vmatprep.subr.mxu0 0.0
        %6874 = vmatpush1.msra.mxu0 0.0
        %6875 = vmatprep.subr.mxu0 0.0
        %6876 = vmatpush1.msra.mxu0 0.0
        %6877 = vmatprep.subr.mxu0 0.0
        %6878 = vmatpush1.msra.mxu0 0.0
        %6879 = vmatprep.subr.mxu0 0.0
        %6880 = vmatpush1.msra.mxu0 0.0
        %6881 = vmatprep.mubr.f32.mxu0 0.0
        %v6882 = vand.u32 %v6649, 4294901760
        %v6883 = vsub.f32 %v6649, %v6882
        %6884 = vmatmul.mubr.f32.gmra.mrb[0].mxu0 %v6883
        %v6885 = vpop.f32.mrb[0].mxu0
        %v6886 = vadd.f32 %v6810, %v6885
        %v6887 = vpop.f32.mrb[0].mxu0
        %6888 = vdwg.mxu0
        %6889 = vmatprep.subr.mxu0 0.0
        %v6890 = vand.u32 %v6637, 4294901760
        %6891 = vmatpush1.msra.mxu0 %v6890
        %6892 = vmatprep.subr.mxu0 0.0
        %v6893 = vand.u32 %v6653, 4294901760
        %6894 = vmatpush1.msra.mxu0 %v6893
        %6895 = vmatprep.subr.mxu0 0.0
        %6896 = vmatpush1.msra.mxu0 0.0
        %6897 = vmatprep.subr.mxu0 0.0
        %6898 = vmatpush1.msra.mxu0 0.0
        %6899 = vmatprep.subr.mxu0 0.0
        %6900 = vmatpush1.msra.mxu0 0.0
        %6901 = vmatprep.subr.mxu0 0.0
        %6902 = vmatpush1.msra.mxu0 0.0
        %6903 = vmatprep.subr.mxu0 0.0
        %6904 = vmatpush1.msra.mxu0 0.0
        %6905 = vmatprep.subr.mxu0 0.0
        %6906 = vmatpush1.msra.mxu0 0.0
        %6907 = vmatprep.subr.mxu0 0.0
        %6908 = vmatpush1.msra.mxu0 0.0
        %6909 = vmatprep.subr.mxu0 0.0
        %6910 = vmatpush1.msra.mxu0 0.0
        %6911 = vmatprep.subr.mxu0 0.0
        %6912 = vmatpush1.msra.mxu0 0.0
        %6913 = vmatprep.subr.mxu0 0.0
        %6914 = vmatpush1.msra.mxu0 0.0
        %6915 = vmatprep.subr.mxu0 0.0
        %6916 = vmatpush1.msra.mxu0 0.0
        %6917 = vmatprep.subr.mxu0 0.0
        %6918 = vmatpush1.msra.mxu0 0.0
        %6919 = vmatprep.subr.mxu0 0.0
        %6920 = vmatpush1.msra.mxu0 0.0
        %6921 = vmatprep.subr.mxu0 0.0
        %6922 = vmatpush1.msra.mxu0 0.0
        %6923 = vmatprep.subr.mxu0 0.0
        %6924 = vmatpush1.msra.mxu0 0.0
        %6925 = vmatprep.subr.mxu0 0.0
        %6926 = vmatpush1.msra.mxu0 0.0
        %6927 = vmatprep.subr.mxu0 0.0
        %6928 = vmatpush1.msra.mxu0 0.0
        %6929 = vmatprep.subr.mxu0 0.0
        %6930 = vmatpush1.msra.mxu0 0.0
        %6931 = vmatprep.subr.mxu0 0.0
        %6932 = vmatpush1.msra.mxu0 0.0
        %6933 = vmatprep.subr.mxu0 0.0
        %6934 = vmatpush1.msra.mxu0 0.0
        %6935 = vmatprep.subr.mxu0 0.0
        %6936 = vmatpush1.msra.mxu0 0.0
        %6937 = vmatprep.subr.mxu0 0.0
        %6938 = vmatpush1.msra.mxu0 0.0
        %6939 = vmatprep.subr.mxu0 0.0
        %6940 = vmatpush1.msra.mxu0 0.0
        %6941 = vmatprep.subr.mxu0 0.0
        %6942 = vmatpush1.msra.mxu0 0.0
        %6943 = vmatprep.subr.mxu0 0.0
        %6944 = vmatpush1.msra.mxu0 0.0
        %6945 = vmatprep.subr.mxu0 0.0
        %6946 = vmatpush1.msra.mxu0 0.0
        %6947 = vmatprep.subr.mxu0 0.0
        %6948 = vmatpush1.msra.mxu0 0.0
        %6949 = vmatprep.subr.mxu0 0.0
        %6950 = vmatpush1.msra.mxu0 0.0
        %6951 = vmatprep.subr.mxu0 0.0
        %6952 = vmatpush1.msra.mxu0 0.0
        %6953 = vmatprep.subr.mxu0 0.0
        %6954 = vmatpush1.msra.mxu0 0.0
        %6955 = vmatprep.mubr.f32.mxu0 0.0
        %v6956 = vand.u32 %v6649, 4294901760
        %v6957 = vsub.f32 %v6649, %v6956
        %v6958 = vand.u32 %v6957, 4294901760
        %6959 = vmatmul.mubr.f32.gmra.mrb[0].mxu0 %v6958
        %v6960 = vpop.f32.mrb[0].mxu0
        %v6961 = vadd.f32 %v6886, %v6960
        %v6962 = vpop.f32.mrb[0].mxu0
        %6963 = vdwg.mxu0
        %6964 = vmatprep.subr.mxu0 0.0
        %v6965 = vand.u32 %v6637, 4294901760
        %v6966 = vsub.f32 %v6637, %v6965
        %v6967 = vand.u32 %v6966, 4294901760
        %6968 = vmatpush1.msra.mxu0 %v6967
        %6969 = vmatprep.subr.mxu0 0.0
        %v6970 = vand.u32 %v6653, 4294901760
        %v6971 = vsub.f32 %v6653, %v6970
        %v6972 = vand.u32 %v6971, 4294901760
        %6973 = vmatpush1.msra.mxu0 %v6972
        %6974 = vmatprep.subr.mxu0 0.0
        %6975 = vmatpush1.msra.mxu0 0.0
        %6976 = vmatprep.subr.mxu0 0.0
        %6977 = vmatpush1.msra.mxu0 0.0
        %6978 = vmatprep.subr.mxu0 0.0
        %6979 = vmatpush1.msra.mxu0 0.0
        %6980 = vmatprep.subr.mxu0 0.0
        %6981 = vmatpush1.msra.mxu0 0.0
        %6982 = vmatprep.subr.mxu0 0.0
        %6983 = vmatpush1.msra.mxu0 0.0
        %6984 = vmatprep.subr.mxu0 0.0
        %6985 = vmatpush1.msra.mxu0 0.0
        %6986 = vmatprep.subr.mxu0 0.0
        %6987 = vmatpush1.msra.mxu0 0.0
        %6988 = vmatprep.subr.mxu0 0.0
        %6989 = vmatpush1.msra.mxu0 0.0
        %6990 = vmatprep.subr.mxu0 0.0
        %6991 = vmatpush1.msra.mxu0 0.0
        %6992 = vmatprep.subr.mxu0 0.0
        %6993 = vmatpush1.msra.mxu0 0.0
        %6994 = vmatprep.subr.mxu0 0.0
        %6995 = vmatpush1.msra.mxu0 0.0
        %6996 = vmatprep.subr.mxu0 0.0
        %6997 = vmatpush1.msra.mxu0 0.0
        %6998 = vmatprep.subr.mxu0 0.0
        %6999 = vmatpush1.msra.mxu0 0.0
        %7000 = vmatprep.subr.mxu0 0.0
        %7001 = vmatpush1.msra.mxu0 0.0
        %7002 = vmatprep.subr.mxu0 0.0
        %7003 = vmatpush1.msra.mxu0 0.0
        %7004 = vmatprep.subr.mxu0 0.0
        %7005 = vmatpush1.msra.mxu0 0.0
        %7006 = vmatprep.subr.mxu0 0.0
        %7007 = vmatpush1.msra.mxu0 0.0
        %7008 = vmatprep.subr.mxu0 0.0
        %7009 = vmatpush1.msra.mxu0 0.0
        %7010 = vmatprep.subr.mxu0 0.0
        %7011 = vmatpush1.msra.mxu0 0.0
        %7012 = vmatprep.subr.mxu0 0.0
        %7013 = vmatpush1.msra.mxu0 0.0
        %7014 = vmatprep.subr.mxu0 0.0
        %7015 = vmatpush1.msra.mxu0 0.0
        %7016 = vmatprep.subr.mxu0 0.0
        %7017 = vmatpush1.msra.mxu0 0.0
        %7018 = vmatprep.subr.mxu0 0.0
        %7019 = vmatpush1.msra.mxu0 0.0
        %7020 = vmatprep.subr.mxu0 0.0
        %7021 = vmatpush1.msra.mxu0 0.0
        %7022 = vmatprep.subr.mxu0 0.0
        %7023 = vmatpush1.msra.mxu0 0.0
        %7024 = vmatprep.subr.mxu0 0.0
        %7025 = vmatpush1.msra.mxu0 0.0
        %7026 = vmatprep.subr.mxu0 0.0
        %7027 = vmatpush1.msra.mxu0 0.0
        %7028 = vmatprep.subr.mxu0 0.0
        %7029 = vmatpush1.msra.mxu0 0.0
        %7030 = vmatprep.subr.mxu0 0.0
        %7031 = vmatpush1.msra.mxu0 0.0
        %7032 = vmatprep.subr.mxu0 0.0
        %7033 = vmatpush1.msra.mxu0 0.0
        %7034 = vmatprep.mubr.f32.mxu0 0.0
        %v7035 = vand.u32 %v6649, 4294901760
        %7036 = vmatmul.mubr.f32.gmra.mrb[0].mxu0 %v7035
        %v7037 = vpop.f32.mrb[0].mxu0
        %v7038 = vadd.f32 %v6961, %v7037
        %v7039 = vpop.f32.mrb[0].mxu0
        %7040 = vdwg.mxu0
        %7041 = vmatprep.subr.mxu0 0.0
        %v7042 = vand.u32 %v6637, 4294901760
        %7043 = vmatpush1.msra.mxu0 %v7042
        %7044 = vmatprep.subr.mxu0 0.0
        %v7045 = vand.u32 %v6653, 4294901760
        %7046 = vmatpush1.msra.mxu0 %v7045
        %7047 = vmatprep.subr.mxu0 0.0
        %7048 = vmatpush1.msra.mxu0 0.0
        %7049 = vmatprep.subr.mxu0 0.0
        %7050 = vmatpush1.msra.mxu0 0.0
        %7051 = vmatprep.subr.mxu0 0.0
        %7052 = vmatpush1.msra.mxu0 0.0
        %7053 = vmatprep.subr.mxu0 0.0
        %7054 = vmatpush1.msra.mxu0 0.0
        %7055 = vmatprep.subr.mxu0 0.0
        %7056 = vmatpush1.msra.mxu0 0.0
        %7057 = vmatprep.subr.mxu0 0.0
        %7058 = vmatpush1.msra.mxu0 0.0
        %7059 = vmatprep.subr.mxu0 0.0
        %7060 = vmatpush1.msra.mxu0 0.0
        %7061 = vmatprep.subr.mxu0 0.0
        %7062 = vmatpush1.msra.mxu0 0.0
        %7063 = vmatprep.subr.mxu0 0.0
        %7064 = vmatpush1.msra.mxu0 0.0
        %7065 = vmatprep.subr.mxu0 0.0
        %7066 = vmatpush1.msra.mxu0 0.0
        %7067 = vmatprep.subr.mxu0 0.0
        %7068 = vmatpush1.msra.mxu0 0.0
        %7069 = vmatprep.subr.mxu0 0.0
        %7070 = vmatpush1.msra.mxu0 0.0
        %7071 = vmatprep.subr.mxu0 0.0
        %7072 = vmatpush1.msra.mxu0 0.0
        %7073 = vmatprep.subr.mxu0 0.0
        %7074 = vmatpush1.msra.mxu0 0.0
        %7075 = vmatprep.subr.mxu0 0.0
        %7076 = vmatpush1.msra.mxu0 0.0
        %7077 = vmatprep.subr.mxu0 0.0
        %7078 = vmatpush1.msra.mxu0 0.0
        %7079 = vmatprep.subr.mxu0 0.0
        %7080 = vmatpush1.msra.mxu0 0.0
        %7081 = vmatprep.subr.mxu0 0.0
        %7082 = vmatpush1.msra.mxu0 0.0
        %7083 = vmatprep.subr.mxu0 0.0
        %7084 = vmatpush1.msra.mxu0 0.0
        %7085 = vmatprep.subr.mxu0 0.0
        %7086 = vmatpush1.msra.mxu0 0.0
        %7087 = vmatprep.subr.mxu0 0.0
        %7088 = vmatpush1.msra.mxu0 0.0
        %7089 = vmatprep.subr.mxu0 0.0
        %7090 = vmatpush1.msra.mxu0 0.0
        %7091 = vmatprep.subr.mxu0 0.0
        %7092 = vmatpush1.msra.mxu0 0.0
        %7093 = vmatprep.subr.mxu0 0.0
        %7094 = vmatpush1.msra.mxu0 0.0
        %7095 = vmatprep.subr.mxu0 0.0
        %7096 = vmatpush1.msra.mxu0 0.0
        %7097 = vmatprep.subr.mxu0 0.0
        %7098 = vmatpush1.msra.mxu0 0.0
        %7099 = vmatprep.subr.mxu0 0.0
        %7100 = vmatpush1.msra.mxu0 0.0
        %7101 = vmatprep.subr.mxu0 0.0
        %7102 = vmatpush1.msra.mxu0 0.0
        %7103 = vmatprep.subr.mxu0 0.0
        %7104 = vmatpush1.msra.mxu0 0.0
        %7105 = vmatprep.subr.mxu0 0.0
        %7106 = vmatpush1.msra.mxu0 0.0
        %7107 = vmatprep.mubr.f32.mxu0 0.0
        %v7108 = vand.u32 %v6649, 4294901760
        %7109 = vmatmul.mubr.f32.gmra.mrb[0].mxu0 %v7108
        %v7110 = vpop.f32.mrb[0].mxu0
        %v7111 = vadd.f32 %v7038, %v7110
        %v7112 = vpop.f32.mrb[0].mxu0
        %7113 = vdwg.mxu0
        %v7115 = vrot.slane %v7111, 1
        %7116 = vrot.lane.b32.xlu0 %v7115, 80
        %v7117 = vpop.permute.xlu0 %7116
        %v7119 = vrot.slane %v7111, 2
        %7120 = vrot.lane.b32.xlu0 %v7119, 32
        %v7121 = vpop.permute.xlu0 %7120
        %v7123 = vrot.slane %v7111, 3
        %7124 = vrot.lane.b32.xlu0 %v7123, 112
        %v7125 = vpop.permute.xlu0 %7124
        %v7127 = vrot.slane %v7111, 4
        %7128 = vrot.lane.b32.xlu0 %v7127, 64
        %v7129 = vpop.permute.xlu0 %7128
        %v7131 = vsel %vm3316, %v7111, %v7117
        %v7132 = vsel %vm568, %v7117, %v7121
        %vm7133 = vcmask 916480
        %v7134 = vsel %vm7133, %v7132, %v7125
        %v7135 = vsel %vm573, %v7125, %v7129
        %v7136 = vld [vmem:[%s9] sm:$0xff]
        %v7137 = vld [vmem:[%s9 + $0x8] sm:$0xff]
        %v7138 = vld [vmem:[%s9 + $0x10] sm:$0xff]
        %v7139 = vld [vmem:[%s9 + $0x18] sm:$0xff]
        %v7140 = vld [vmem:[%s9 + $0x20] sm:$0xff]
        %v7141 = vld [vmem:[%s9 + $0x28] sm:$0xff]
        %v7142 = vld [vmem:[%s9 + $0x30] sm:$0xff]
        %v7143 = vld [vmem:[%s9 + $0x38] sm:$0xff]
        %v7144 = vld [vmem:[%s9 + $0x40] sm:$0xff]
        %v7145 = vld [vmem:[%s9 + $0x48] sm:$0xff]
        %v7146 = vld [vmem:[%s9 + $0x50] sm:$0xff]
        %v7147 = vld [vmem:[%s9 + $0x58] sm:$0xff]
        %v7148 = vld [vmem:[%s9 + $0x60] sm:$0xff]
        %v7149 = vld [vmem:[%s9 + $0x68] sm:$0xff]
        %v7150 = vld [vmem:[%s9 + $0x70] sm:$0xff]
        %v7151 = vld [vmem:[%s9 + $0x78] sm:$0xff]
        %v7152 = vld [vmem:[%s9 + $0x80] sm:$0xff]
        %v7153 = vld [vmem:[%s9 + $0x88] sm:$0xff]
        %v7154 = vld [vmem:[%s9 + $0x90] sm:$0xff]
        %v7155 = vld [vmem:[%s9 + $0x98] sm:$0xff]
        %v7156 = vld [vmem:[%s9 + $0xa0] sm:$0xff]
        %v7157 = vld [vmem:[%s9 + $0xa8] sm:$0xff]
        %v7158 = vld [vmem:[%s9 + $0xb0] sm:$0xff]
        %v7159 = vld [vmem:[%s9 + $0xb8] sm:$0xff]
        %v7160 = vld [vmem:[%s9 + $0xc0] sm:$0xff]
        %v7161 = vld [vmem:[%s9 + $0xc8] sm:$0xff]
        %v7162 = vld [vmem:[%s9 + $0xd0] sm:$0xff]
        %v7163 = vld [vmem:[%s9 + $0xd8] sm:$0xff]
        %v7164 = vld [vmem:[%s9 + $0xe0] sm:$0xff]
        %v7165 = vld [vmem:[%s9 + $0xe8] sm:$0xff]
        %v7166 = vld [vmem:[%s9 + $0xf0] sm:$0xff]
        %v7167 = vld [vmem:[%s9 + $0xf8] sm:$0xff]
        %v7168 = vld [vmem:[%s9 + $0x100] sm:$0xff]
        %v7169 = vld [vmem:[%s9 + $0x108] sm:$0xff]
        %v7170 = vld [vmem:[%s9 + $0x110] sm:$0xff]
        %v7171 = vld [vmem:[%s9 + $0x118] sm:$0xff]
        %v7172 = vld [vmem:[%s9 + $0x120] sm:$0xff]
        %v7173 = vld [vmem:[%s9 + $0x128] sm:$0xff]
        %v7174 = vld [vmem:[%s9 + $0x130] sm:$0xff]
        %v7175 = vld [vmem:[%s9 + $0x138] sm:$0xff]
        %v7176 = vld [vmem:[%s9 + $0x140] sm:$0xff]
        %v7177 = vld [vmem:[%s9 + $0x148] sm:$0xff]
        %v7178 = vld [vmem:[%s9 + $0x150] sm:$0xff]
        %v7179 = vld [vmem:[%s9 + $0x158] sm:$0xff]
        %v7180 = vld [vmem:[%s9 + $0x160] sm:$0xff]
        %v7181 = vld [vmem:[%s9 + $0x168] sm:$0xff]
        %v7182 = vld [vmem:[%s9 + $0x170] sm:$0xff]
        %v7183 = vld [vmem:[%s9 + $0x178] sm:$0xff]
        %v7184 = vld [vmem:[%s9 + $0x180] sm:$0xff]
        %v7185 = vld [vmem:[%s9 + $0x188] sm:$0xff]
        %v7186 = vld [vmem:[%s10] sm:$0x1]
        %vm7187 = vcmask 130048
        %v7188 = vsel %vm7187, %v7129, 0
        %7190 = vmatprep.subr.mxu0 0.0
        %v7191 = vand.u32 %v7136, 4294901760
        %7192 = vmatpush1.msra.mxu0 %v7191
        %7193 = vmatprep.subr.mxu0 0.0
        %v7194 = vand.u32 %v7137, 4294901760
        %7195 = vmatpush1.msra.mxu0 %v7194
        %7196 = vmatprep.subr.mxu0 0.0
        %v7197 = vand.u32 %v7138, 4294901760
        %7198 = vmatpush1.msra.mxu0 %v7197
        %7199 = vmatprep.subr.mxu0 0.0
        %v7200 = vand.u32 %v7139, 4294901760
        %7201 = vmatpush1.msra.mxu0 %v7200
        %7202 = vmatprep.subr.mxu0 0.0
        %v7203 = vand.u32 %v7140, 4294901760
        %7204 = vmatpush1.msra.mxu0 %v7203
        %7205 = vmatprep.subr.mxu0 0.0
        %v7206 = vand.u32 %v7141, 4294901760
        %7207 = vmatpush1.msra.mxu0 %v7206
        %7208 = vmatprep.subr.mxu0 0.0
        %v7209 = vand.u32 %v7142, 4294901760
        %7210 = vmatpush1.msra.mxu0 %v7209
        %7211 = vmatprep.subr.mxu0 0.0
        %v7212 = vand.u32 %v7143, 4294901760
        %7213 = vmatpush1.msra.mxu0 %v7212
        %7214 = vmatprep.subr.mxu0 0.0
        %v7215 = vand.u32 %v7144, 4294901760
        %7216 = vmatpush1.msra.mxu0 %v7215
        %7217 = vmatprep.subr.mxu0 0.0
        %v7218 = vand.u32 %v7145, 4294901760
        %7219 = vmatpush1.msra.mxu0 %v7218
        %7220 = vmatprep.subr.mxu0 0.0
        %v7221 = vand.u32 %v7146, 4294901760
        %7222 = vmatpush1.msra.mxu0 %v7221
        %7223 = vmatprep.subr.mxu0 0.0
        %v7224 = vand.u32 %v7147, 4294901760
        %7225 = vmatpush1.msra.mxu0 %v7224
        %7226 = vmatprep.subr.mxu0 0.0
        %v7227 = vand.u32 %v7148, 4294901760
        %7228 = vmatpush1.msra.mxu0 %v7227
        %7229 = vmatprep.subr.mxu0 0.0
        %v7230 = vand.u32 %v7149, 4294901760
        %7231 = vmatpush1.msra.mxu0 %v7230
        %7232 = vmatprep.subr.mxu0 0.0
        %v7233 = vand.u32 %v7150, 4294901760
        %7234 = vmatpush1.msra.mxu0 %v7233
        %7235 = vmatprep.subr.mxu0 0.0
        %v7236 = vand.u32 %v7151, 4294901760
        %7237 = vmatpush1.msra.mxu0 %v7236
        %7238 = vmatprep.subr.mxu0 0.0
        %v7239 = vand.u32 %v7152, 4294901760
        %7240 = vmatpush1.msra.mxu0 %v7239
        %7241 = vmatprep.subr.mxu0 0.0
        %v7242 = vand.u32 %v7153, 4294901760
        %7243 = vmatpush1.msra.mxu0 %v7242
        %7244 = vmatprep.subr.mxu0 0.0
        %v7245 = vand.u32 %v7154, 4294901760
        %7246 = vmatpush1.msra.mxu0 %v7245
        %7247 = vmatprep.subr.mxu0 0.0
        %v7248 = vand.u32 %v7155, 4294901760
        %7249 = vmatpush1.msra.mxu0 %v7248
        %7250 = vmatprep.subr.mxu0 0.0
        %v7251 = vand.u32 %v7156, 4294901760
        %7252 = vmatpush1.msra.mxu0 %v7251
        %7253 = vmatprep.subr.mxu0 0.0
        %v7254 = vand.u32 %v7157, 4294901760
        %7255 = vmatpush1.msra.mxu0 %v7254
        %7256 = vmatprep.subr.mxu0 0.0
        %v7257 = vand.u32 %v7158, 4294901760
        %7258 = vmatpush1.msra.mxu0 %v7257
        %7259 = vmatprep.subr.mxu0 0.0
        %v7260 = vand.u32 %v7159, 4294901760
        %7261 = vmatpush1.msra.mxu0 %v7260
        %7262 = vmatprep.subr.mxu0 0.0
        %v7263 = vand.u32 %v7160, 4294901760
        %7264 = vmatpush1.msra.mxu0 %v7263
        %7265 = vmatprep.subr.mxu0 0.0
        %v7266 = vand.u32 %v7161, 4294901760
        %7267 = vmatpush1.msra.mxu0 %v7266
        %7268 = vmatprep.subr.mxu0 0.0
        %v7269 = vand.u32 %v7162, 4294901760
        %7270 = vmatpush1.msra.mxu0 %v7269
        %7271 = vmatprep.subr.mxu0 0.0
        %v7272 = vand.u32 %v7163, 4294901760
        %7273 = vmatpush1.msra.mxu0 %v7272
        %7274 = vmatprep.subr.mxu0 0.0
        %v7275 = vand.u32 %v7164, 4294901760
        %7276 = vmatpush1.msra.mxu0 %v7275
        %7277 = vmatprep.subr.mxu0 0.0
        %v7278 = vand.u32 %v7165, 4294901760
        %7279 = vmatpush1.msra.mxu0 %v7278
        %7280 = vmatprep.subr.mxu0 0.0
        %v7281 = vand.u32 %v7166, 4294901760
        %7282 = vmatpush1.msra.mxu0 %v7281
        %7283 = vmatprep.subr.mxu0 0.0
        %v7284 = vand.u32 %v7167, 4294901760
        %7285 = vmatpush1.msra.mxu0 %v7284
        %v7286 = vand.u32 %v7134, 4294901760
        %v7287 = vsub.f32 %v7134, %v7286
        %v7288 = vand.u32 %v7287, 4294901760
        %v7289 = vsub.f32 %v7287, %v7288
        %v7290 = vand.u32 %v7289, 4294901760
        %7291 = vmatprep.mubr.f32.mxu0 %v7290
        %v7292 = vand.u32 %v7131, 4294901760
        %v7293 = vsub.f32 %v7131, %v7292
        %v7294 = vand.u32 %v7293, 4294901760
        %v7295 = vsub.f32 %v7293, %v7294
        %v7296 = vand.u32 %v7295, 4294901760
        %7297 = vmatmul.mubr.f32.gmra.mrb[0].mxu0 %v7296
        %v7298 = vpop.f32.mrb[0].mxu0
        %v7299 = vadd.f32 %v7186, %v7298
        %v7300 = vpop.f32.mrb[0].mxu0
        %7301 = vdwg.mxu0
        %7302 = vmatprep.subr.mxu0 0.0
        %v7303 = vand.u32 %v7136, 4294901760
        %v7304 = vsub.f32 %v7136, %v7303
        %v7305 = vand.u32 %v7304, 4294901760
        %v7306 = vsub.f32 %v7304, %v7305
        %v7307 = vand.u32 %v7306, 4294901760
        %7308 = vmatpush1.msra.mxu0 %v7307
        %7309 = vmatprep.subr.mxu0 0.0
        %v7310 = vand.u32 %v7137, 4294901760
        %v7311 = vsub.f32 %v7137, %v7310
        %v7312 = vand.u32 %v7311, 4294901760
        %v7313 = vsub.f32 %v7311, %v7312
        %v7314 = vand.u32 %v7313, 4294901760
        %7315 = vmatpush1.msra.mxu0 %v7314
        %7316 = vmatprep.subr.mxu0 0.0
        %v7317 = vand.u32 %v7138, 4294901760
        %v7318 = vsub.f32 %v7138, %v7317
        %v7319 = vand.u32 %v7318, 4294901760
        %v7320 = vsub.f32 %v7318, %v7319
        %v7321 = vand.u32 %v7320, 4294901760
        %7322 = vmatpush1.msra.mxu0 %v7321
        %7323 = vmatprep.subr.mxu0 0.0
        %v7324 = vand.u32 %v7139, 4294901760
        %v7325 = vsub.f32 %v7139, %v7324
        %v7326 = vand.u32 %v7325, 4294901760
        %v7327 = vsub.f32 %v7325, %v7326
        %v7328 = vand.u32 %v7327, 4294901760
        %7329 = vmatpush1.msra.mxu0 %v7328
        %7330 = vmatprep.subr.mxu0 0.0
        %v7331 = vand.u32 %v7140, 4294901760
        %v7332 = vsub.f32 %v7140, %v7331
        %v7333 = vand.u32 %v7332, 4294901760
        %v7334 = vsub.f32 %v7332, %v7333
        %v7335 = vand.u32 %v7334, 4294901760
        %7336 = vmatpush1.msra.mxu0 %v7335
        %7337 = vmatprep.subr.mxu0 0.0
        %v7338 = vand.u32 %v7141, 4294901760
        %v7339 = vsub.f32 %v7141, %v7338
        %v7340 = vand.u32 %v7339, 4294901760
        %v7341 = vsub.f32 %v7339, %v7340
        %v7342 = vand.u32 %v7341, 4294901760
        %7343 = vmatpush1.msra.mxu0 %v7342
        %7344 = vmatprep.subr.mxu0 0.0
        %v7345 = vand.u32 %v7142, 4294901760
        %v7346 = vsub.f32 %v7142, %v7345
        %v7347 = vand.u32 %v7346, 4294901760
        %v7348 = vsub.f32 %v7346, %v7347
        %v7349 = vand.u32 %v7348, 4294901760
        %7350 = vmatpush1.msra.mxu0 %v7349
        %7351 = vmatprep.subr.mxu0 0.0
        %v7352 = vand.u32 %v7143, 4294901760
        %v7353 = vsub.f32 %v7143, %v7352
        %v7354 = vand.u32 %v7353, 4294901760
        %v7355 = vsub.f32 %v7353, %v7354
        %v7356 = vand.u32 %v7355, 4294901760
        %7357 = vmatpush1.msra.mxu0 %v7356
        %7358 = vmatprep.subr.mxu0 0.0
        %v7359 = vand.u32 %v7144, 4294901760
        %v7360 = vsub.f32 %v7144, %v7359
        %v7361 = vand.u32 %v7360, 4294901760
        %v7362 = vsub.f32 %v7360, %v7361
        %v7363 = vand.u32 %v7362, 4294901760
        %7364 = vmatpush1.msra.mxu0 %v7363
        %7365 = vmatprep.subr.mxu0 0.0
        %v7366 = vand.u32 %v7145, 4294901760
        %v7367 = vsub.f32 %v7145, %v7366
        %v7368 = vand.u32 %v7367, 4294901760
        %v7369 = vsub.f32 %v7367, %v7368
        %v7370 = vand.u32 %v7369, 4294901760
        %7371 = vmatpush1.msra.mxu0 %v7370
        %7372 = vmatprep.subr.mxu0 0.0
        %v7373 = vand.u32 %v7146, 4294901760
        %v7374 = vsub.f32 %v7146, %v7373
        %v7375 = vand.u32 %v7374, 4294901760
        %v7376 = vsub.f32 %v7374, %v7375
        %v7377 = vand.u32 %v7376, 4294901760
        %7378 = vmatpush1.msra.mxu0 %v7377
        %7379 = vmatprep.subr.mxu0 0.0
        %v7380 = vand.u32 %v7147, 4294901760
        %v7381 = vsub.f32 %v7147, %v7380
        %v7382 = vand.u32 %v7381, 4294901760
        %v7383 = vsub.f32 %v7381, %v7382
        %v7384 = vand.u32 %v7383, 4294901760
        %7385 = vmatpush1.msra.mxu0 %v7384
        %7386 = vmatprep.subr.mxu0 0.0
        %v7387 = vand.u32 %v7148, 4294901760
        %v7388 = vsub.f32 %v7148, %v7387
        %v7389 = vand.u32 %v7388, 4294901760
        %v7390 = vsub.f32 %v7388, %v7389
        %v7391 = vand.u32 %v7390, 4294901760
        %7392 = vmatpush1.msra.mxu0 %v7391
        %7393 = vmatprep.subr.mxu0 0.0
        %v7394 = vand.u32 %v7149, 4294901760
        %v7395 = vsub.f32 %v7149, %v7394
        %v7396 = vand.u32 %v7395, 4294901760
        %v7397 = vsub.f32 %v7395, %v7396
        %v7398 = vand.u32 %v7397, 4294901760
        %7399 = vmatpush1.msra.mxu0 %v7398
        %7400 = vmatprep.subr.mxu0 0.0
        %v7401 = vand.u32 %v7150, 4294901760
        %v7402 = vsub.f32 %v7150, %v7401
        %v7403 = vand.u32 %v7402, 4294901760
        %v7404 = vsub.f32 %v7402, %v7403
        %v7405 = vand.u32 %v7404, 4294901760
        %7406 = vmatpush1.msra.mxu0 %v7405
        %7407 = vmatprep.subr.mxu0 0.0
        %v7408 = vand.u32 %v7151, 4294901760
        %v7409 = vsub.f32 %v7151, %v7408
        %v7410 = vand.u32 %v7409, 4294901760
        %v7411 = vsub.f32 %v7409, %v7410
        %v7412 = vand.u32 %v7411, 4294901760
        %7413 = vmatpush1.msra.mxu0 %v7412
        %7414 = vmatprep.subr.mxu0 0.0
        %v7415 = vand.u32 %v7152, 4294901760
        %v7416 = vsub.f32 %v7152, %v7415
        %v7417 = vand.u32 %v7416, 4294901760
        %v7418 = vsub.f32 %v7416, %v7417
        %v7419 = vand.u32 %v7418, 4294901760
        %7420 = vmatpush1.msra.mxu0 %v7419
        %7421 = vmatprep.subr.mxu0 0.0
        %v7422 = vand.u32 %v7153, 4294901760
        %v7423 = vsub.f32 %v7153, %v7422
        %v7424 = vand.u32 %v7423, 4294901760
        %v7425 = vsub.f32 %v7423, %v7424
        %v7426 = vand.u32 %v7425, 4294901760
        %7427 = vmatpush1.msra.mxu0 %v7426
        %7428 = vmatprep.subr.mxu0 0.0
        %v7429 = vand.u32 %v7154, 4294901760
        %v7430 = vsub.f32 %v7154, %v7429
        %v7431 = vand.u32 %v7430, 4294901760
        %v7432 = vsub.f32 %v7430, %v7431
        %v7433 = vand.u32 %v7432, 4294901760
        %7434 = vmatpush1.msra.mxu0 %v7433
        %7435 = vmatprep.subr.mxu0 0.0
        %v7436 = vand.u32 %v7155, 4294901760
        %v7437 = vsub.f32 %v7155, %v7436
        %v7438 = vand.u32 %v7437, 4294901760
        %v7439 = vsub.f32 %v7437, %v7438
        %v7440 = vand.u32 %v7439, 4294901760
        %7441 = vmatpush1.msra.mxu0 %v7440
        %7442 = vmatprep.subr.mxu0 0.0
        %v7443 = vand.u32 %v7156, 4294901760
        %v7444 = vsub.f32 %v7156, %v7443
        %v7445 = vand.u32 %v7444, 4294901760
        %v7446 = vsub.f32 %v7444, %v7445
        %v7447 = vand.u32 %v7446, 4294901760
        %7448 = vmatpush1.msra.mxu0 %v7447
        %7449 = vmatprep.subr.mxu0 0.0
        %v7450 = vand.u32 %v7157, 4294901760
        %v7451 = vsub.f32 %v7157, %v7450
        %v7452 = vand.u32 %v7451, 4294901760
        %v7453 = vsub.f32 %v7451, %v7452
        %v7454 = vand.u32 %v7453, 4294901760
        %7455 = vmatpush1.msra.mxu0 %v7454
        %7456 = vmatprep.subr.mxu0 0.0
        %v7457 = vand.u32 %v7158, 4294901760
        %v7458 = vsub.f32 %v7158, %v7457
        %v7459 = vand.u32 %v7458, 4294901760
        %v7460 = vsub.f32 %v7458, %v7459
        %v7461 = vand.u32 %v7460, 4294901760
        %7462 = vmatpush1.msra.mxu0 %v7461
        %7463 = vmatprep.subr.mxu0 0.0
        %v7464 = vand.u32 %v7159, 4294901760
        %v7465 = vsub.f32 %v7159, %v7464
        %v7466 = vand.u32 %v7465, 4294901760
        %v7467 = vsub.f32 %v7465, %v7466
        %v7468 = vand.u32 %v7467, 4294901760
        %7469 = vmatpush1.msra.mxu0 %v7468
        %7470 = vmatprep.subr.mxu0 0.0
        %v7471 = vand.u32 %v7160, 4294901760
        %v7472 = vsub.f32 %v7160, %v7471
        %v7473 = vand.u32 %v7472, 4294901760
        %v7474 = vsub.f32 %v7472, %v7473
        %v7475 = vand.u32 %v7474, 4294901760
        %7476 = vmatpush1.msra.mxu0 %v7475
        %7477 = vmatprep.subr.mxu0 0.0
        %v7478 = vand.u32 %v7161, 4294901760
        %v7479 = vsub.f32 %v7161, %v7478
        %v7480 = vand.u32 %v7479, 4294901760
        %v7481 = vsub.f32 %v7479, %v7480
        %v7482 = vand.u32 %v7481, 4294901760
        %7483 = vmatpush1.msra.mxu0 %v7482
        %7484 = vmatprep.subr.mxu0 0.0
        %v7485 = vand.u32 %v7162, 4294901760
        %v7486 = vsub.f32 %v7162, %v7485
        %v7487 = vand.u32 %v7486, 4294901760
        %v7488 = vsub.f32 %v7486, %v7487
        %v7489 = vand.u32 %v7488, 4294901760
        %7490 = vmatpush1.msra.mxu0 %v7489
        %7491 = vmatprep.subr.mxu0 0.0
        %v7492 = vand.u32 %v7163, 4294901760
        %v7493 = vsub.f32 %v7163, %v7492
        %v7494 = vand.u32 %v7493, 4294901760
        %v7495 = vsub.f32 %v7493, %v7494
        %v7496 = vand.u32 %v7495, 4294901760
        %7497 = vmatpush1.msra.mxu0 %v7496
        %7498 = vmatprep.subr.mxu0 0.0
        %v7499 = vand.u32 %v7164, 4294901760
        %v7500 = vsub.f32 %v7164, %v7499
        %v7501 = vand.u32 %v7500, 4294901760
        %v7502 = vsub.f32 %v7500, %v7501
        %v7503 = vand.u32 %v7502, 4294901760
        %7504 = vmatpush1.msra.mxu0 %v7503
        %7505 = vmatprep.subr.mxu0 0.0
        %v7506 = vand.u32 %v7165, 4294901760
        %v7507 = vsub.f32 %v7165, %v7506
        %v7508 = vand.u32 %v7507, 4294901760
        %v7509 = vsub.f32 %v7507, %v7508
        %v7510 = vand.u32 %v7509, 4294901760
        %7511 = vmatpush1.msra.mxu0 %v7510
        %7512 = vmatprep.subr.mxu0 0.0
        %v7513 = vand.u32 %v7166, 4294901760
        %v7514 = vsub.f32 %v7166, %v7513
        %v7515 = vand.u32 %v7514, 4294901760
        %v7516 = vsub.f32 %v7514, %v7515
        %v7517 = vand.u32 %v7516, 4294901760
        %7518 = vmatpush1.msra.mxu0 %v7517
        %7519 = vmatprep.subr.mxu0 0.0
        %v7520 = vand.u32 %v7167, 4294901760
        %v7521 = vsub.f32 %v7167, %v7520
        %v7522 = vand.u32 %v7521, 4294901760
        %v7523 = vsub.f32 %v7521, %v7522
        %v7524 = vand.u32 %v7523, 4294901760
        %7525 = vmatpush1.msra.mxu0 %v7524
        %v7526 = vand.u32 %v7134, 4294901760
        %7527 = vmatprep.mubr.f32.mxu0 %v7526
        %v7528 = vand.u32 %v7131, 4294901760
        %7529 = vmatmul.mubr.f32.gmra.mrb[0].mxu0 %v7528
        %v7530 = vpop.f32.mrb[0].mxu0
        %v7531 = vadd.f32 %v7299, %v7530
        %v7532 = vpop.f32.mrb[0].mxu0
        %7533 = vdwg.mxu0
        %7534 = vmatprep.subr.mxu0 0.0
        %v7535 = vand.u32 %v7136, 4294901760
        %v7536 = vsub.f32 %v7136, %v7535
        %7537 = vmatpush1.msra.mxu0 %v7536
        %7538 = vmatprep.subr.mxu0 0.0
        %v7539 = vand.u32 %v7137, 4294901760
        %v7540 = vsub.f32 %v7137, %v7539
        %7541 = vmatpush1.msra.mxu0 %v7540
        %7542 = vmatprep.subr.mxu0 0.0
        %v7543 = vand.u32 %v7138, 4294901760
        %v7544 = vsub.f32 %v7138, %v7543
        %7545 = vmatpush1.msra.mxu0 %v7544
        %7546 = vmatprep.subr.mxu0 0.0
        %v7547 = vand.u32 %v7139, 4294901760
        %v7548 = vsub.f32 %v7139, %v7547
        %7549 = vmatpush1.msra.mxu0 %v7548
        %7550 = vmatprep.subr.mxu0 0.0
        %v7551 = vand.u32 %v7140, 4294901760
        %v7552 = vsub.f32 %v7140, %v7551
        %7553 = vmatpush1.msra.mxu0 %v7552
        %7554 = vmatprep.subr.mxu0 0.0
        %v7555 = vand.u32 %v7141, 4294901760
        %v7556 = vsub.f32 %v7141, %v7555
        %7557 = vmatpush1.msra.mxu0 %v7556
        %7558 = vmatprep.subr.mxu0 0.0
        %v7559 = vand.u32 %v7142, 4294901760
        %v7560 = vsub.f32 %v7142, %v7559
        %7561 = vmatpush1.msra.mxu0 %v7560
        %7562 = vmatprep.subr.mxu0 0.0
        %v7563 = vand.u32 %v7143, 4294901760
        %v7564 = vsub.f32 %v7143, %v7563
        %7565 = vmatpush1.msra.mxu0 %v7564
        %7566 = vmatprep.subr.mxu0 0.0
        %v7567 = vand.u32 %v7144, 4294901760
        %v7568 = vsub.f32 %v7144, %v7567
        %7569 = vmatpush1.msra.mxu0 %v7568
        %7570 = vmatprep.subr.mxu0 0.0
        %v7571 = vand.u32 %v7145, 4294901760
        %v7572 = vsub.f32 %v7145, %v7571
        %7573 = vmatpush1.msra.mxu0 %v7572
        %7574 = vmatprep.subr.mxu0 0.0
        %v7575 = vand.u32 %v7146, 4294901760
        %v7576 = vsub.f32 %v7146, %v7575
        %7577 = vmatpush1.msra.mxu0 %v7576
        %7578 = vmatprep.subr.mxu0 0.0
        %v7579 = vand.u32 %v7147, 4294901760
        %v7580 = vsub.f32 %v7147, %v7579
        %7581 = vmatpush1.msra.mxu0 %v7580
        %7582 = vmatprep.subr.mxu0 0.0
        %v7583 = vand.u32 %v7148, 4294901760
        %v7584 = vsub.f32 %v7148, %v7583
        %7585 = vmatpush1.msra.mxu0 %v7584
        %7586 = vmatprep.subr.mxu0 0.0
        %v7587 = vand.u32 %v7149, 4294901760
        %v7588 = vsub.f32 %v7149, %v7587
        %7589 = vmatpush1.msra.mxu0 %v7588
        %7590 = vmatprep.subr.mxu0 0.0
        %v7591 = vand.u32 %v7150, 4294901760
        %v7592 = vsub.f32 %v7150, %v7591
        %7593 = vmatpush1.msra.mxu0 %v7592
        %7594 = vmatprep.subr.mxu0 0.0
        %v7595 = vand.u32 %v7151, 4294901760
        %v7596 = vsub.f32 %v7151, %v7595
        %7597 = vmatpush1.msra.mxu0 %v7596
        %7598 = vmatprep.subr.mxu0 0.0
        %v7599 = vand.u32 %v7152, 4294901760
        %v7600 = vsub.f32 %v7152, %v7599
        %7601 = vmatpush1.msra.mxu0 %v7600
        %7602 = vmatprep.subr.mxu0 0.0
        %v7603 = vand.u32 %v7153, 4294901760
        %v7604 = vsub.f32 %v7153, %v7603
        %7605 = vmatpush1.msra.mxu0 %v7604
        %7606 = vmatprep.subr.mxu0 0.0
        %v7607 = vand.u32 %v7154, 4294901760
        %v7608 = vsub.f32 %v7154, %v7607
        %7609 = vmatpush1.msra.mxu0 %v7608
        %7610 = vmatprep.subr.mxu0 0.0
        %v7611 = vand.u32 %v7155, 4294901760
        %v7612 = vsub.f32 %v7155, %v7611
        %7613 = vmatpush1.msra.mxu0 %v7612
        %7614 = vmatprep.subr.mxu0 0.0
        %v7615 = vand.u32 %v7156, 4294901760
        %v7616 = vsub.f32 %v7156, %v7615
        %7617 = vmatpush1.msra.mxu0 %v7616
        %7618 = vmatprep.subr.mxu0 0.0
        %v7619 = vand.u32 %v7157, 4294901760
        %v7620 = vsub.f32 %v7157, %v7619
        %7621 = vmatpush1.msra.mxu0 %v7620
        %7622 = vmatprep.subr.mxu0 0.0
        %v7623 = vand.u32 %v7158, 4294901760
        %v7624 = vsub.f32 %v7158, %v7623
        %7625 = vmatpush1.msra.mxu0 %v7624
        %7626 = vmatprep.subr.mxu0 0.0
        %v7627 = vand.u32 %v7159, 4294901760
        %v7628 = vsub.f32 %v7159, %v7627
        %7629 = vmatpush1.msra.mxu0 %v7628
        %7630 = vmatprep.subr.mxu0 0.0
        %v7631 = vand.u32 %v7160, 4294901760
        %v7632 = vsub.f32 %v7160, %v7631
        %7633 = vmatpush1.msra.mxu0 %v7632
        %7634 = vmatprep.subr.mxu0 0.0
        %v7635 = vand.u32 %v7161, 4294901760
        %v7636 = vsub.f32 %v7161, %v7635
        %7637 = vmatpush1.msra.mxu0 %v7636
        %7638 = vmatprep.subr.mxu0 0.0
        %v7639 = vand.u32 %v7162, 4294901760
        %v7640 = vsub.f32 %v7162, %v7639
        %7641 = vmatpush1.msra.mxu0 %v7640
        %7642 = vmatprep.subr.mxu0 0.0
        %v7643 = vand.u32 %v7163, 4294901760
        %v7644 = vsub.f32 %v7163, %v7643
        %7645 = vmatpush1.msra.mxu0 %v7644
        %7646 = vmatprep.subr.mxu0 0.0
        %v7647 = vand.u32 %v7164, 4294901760
        %v7648 = vsub.f32 %v7164, %v7647
        %7649 = vmatpush1.msra.mxu0 %v7648
        %7650 = vmatprep.subr.mxu0 0.0
        %v7651 = vand.u32 %v7165, 4294901760
        %v7652 = vsub.f32 %v7165, %v7651
        %7653 = vmatpush1.msra.mxu0 %v7652
        %7654 = vmatprep.subr.mxu0 0.0
        %v7655 = vand.u32 %v7166, 4294901760
        %v7656 = vsub.f32 %v7166, %v7655
        %7657 = vmatpush1.msra.mxu0 %v7656
        %7658 = vmatprep.subr.mxu0 0.0
        %v7659 = vand.u32 %v7167, 4294901760
        %v7660 = vsub.f32 %v7167, %v7659
        %7661 = vmatpush1.msra.mxu0 %v7660
        %v7662 = vand.u32 %v7134, 4294901760
        %v7663 = vsub.f32 %v7134, %v7662
        %7664 = vmatprep.mubr.f32.mxu0 %v7663
        %v7665 = vand.u32 %v7131, 4294901760
        %v7666 = vsub.f32 %v7131, %v7665
        %7667 = vmatmul.mubr.f32.gmra.mrb[0].mxu0 %v7666
        %v7668 = vpop.f32.mrb[0].mxu0
        %v7669 = vadd.f32 %v7531, %v7668
        %v7670 = vpop.f32.mrb[0].mxu0
        %7671 = vdwg.mxu0
        %7672 = vmatprep.subr.mxu0 0.0
        %v7673 = vand.u32 %v7136, 4294901760
        %7674 = vmatpush1.msra.mxu0 %v7673
        %7675 = vmatprep.subr.mxu0 0.0
        %v7676 = vand.u32 %v7137, 4294901760
        %7677 = vmatpush1.msra.mxu0 %v7676
        %7678 = vmatprep.subr.mxu0 0.0
        %v7679 = vand.u32 %v7138, 4294901760
        %7680 = vmatpush1.msra.mxu0 %v7679
        %7681 = vmatprep.subr.mxu0 0.0
        %v7682 = vand.u32 %v7139, 4294901760
        %7683 = vmatpush1.msra.mxu0 %v7682
        %7684 = vmatprep.subr.mxu0 0.0
        %v7685 = vand.u32 %v7140, 4294901760
        %7686 = vmatpush1.msra.mxu0 %v7685
        %7687 = vmatprep.subr.mxu0 0.0
        %v7688 = vand.u32 %v7141, 4294901760
        %7689 = vmatpush1.msra.mxu0 %v7688
        %7690 = vmatprep.subr.mxu0 0.0
        %v7691 = vand.u32 %v7142, 4294901760
        %7692 = vmatpush1.msra.mxu0 %v7691
        %7693 = vmatprep.subr.mxu0 0.0
        %v7694 = vand.u32 %v7143, 4294901760
        %7695 = vmatpush1.msra.mxu0 %v7694
        %7696 = vmatprep.subr.mxu0 0.0
        %v7697 = vand.u32 %v7144, 4294901760
        %7698 = vmatpush1.msra.mxu0 %v7697
        %7699 = vmatprep.subr.mxu0 0.0
        %v7700 = vand.u32 %v7145, 4294901760
        %7701 = vmatpush1.msra.mxu0 %v7700
        %7702 = vmatprep.subr.mxu0 0.0
        %v7703 = vand.u32 %v7146, 4294901760
        %7704 = vmatpush1.msra.mxu0 %v7703
        %7705 = vmatprep.subr.mxu0 0.0
        %v7706 = vand.u32 %v7147, 4294901760
        %7707 = vmatpush1.msra.mxu0 %v7706
        %7708 = vmatprep.subr.mxu0 0.0
        %v7709 = vand.u32 %v7148, 4294901760
        %7710 = vmatpush1.msra.mxu0 %v7709
        %7711 = vmatprep.subr.mxu0 0.0
        %v7712 = vand.u32 %v7149, 4294901760
        %7713 = vmatpush1.msra.mxu0 %v7712
        %7714 = vmatprep.subr.mxu0 0.0
        %v7715 = vand.u32 %v7150, 4294901760
        %7716 = vmatpush1.msra.mxu0 %v7715
        %7717 = vmatprep.subr.mxu0 0.0
        %v7718 = vand.u32 %v7151, 4294901760
        %7719 = vmatpush1.msra.mxu0 %v7718
        %7720 = vmatprep.subr.mxu0 0.0
        %v7721 = vand.u32 %v7152, 4294901760
        %7722 = vmatpush1.msra.mxu0 %v7721
        %7723 = vmatprep.subr.mxu0 0.0
        %v7724 = vand.u32 %v7153, 4294901760
        %7725 = vmatpush1.msra.mxu0 %v7724
        %7726 = vmatprep.subr.mxu0 0.0
        %v7727 = vand.u32 %v7154, 4294901760
        %7728 = vmatpush1.msra.mxu0 %v7727
        %7729 = vmatprep.subr.mxu0 0.0
        %v7730 = vand.u32 %v7155, 4294901760
        %7731 = vmatpush1.msra.mxu0 %v7730
        %7732 = vmatprep.subr.mxu0 0.0
        %v7733 = vand.u32 %v7156, 4294901760
        %7734 = vmatpush1.msra.mxu0 %v7733
        %7735 = vmatprep.subr.mxu0 0.0
        %v7736 = vand.u32 %v7157, 4294901760
        %7737 = vmatpush1.msra.mxu0 %v7736
        %7738 = vmatprep.subr.mxu0 0.0
        %v7739 = vand.u32 %v7158, 4294901760
        %7740 = vmatpush1.msra.mxu0 %v7739
        %7741 = vmatprep.subr.mxu0 0.0
        %v7742 = vand.u32 %v7159, 4294901760
        %7743 = vmatpush1.msra.mxu0 %v7742
        %7744 = vmatprep.subr.mxu0 0.0
        %v7745 = vand.u32 %v7160, 4294901760
        %7746 = vmatpush1.msra.mxu0 %v7745
        %7747 = vmatprep.subr.mxu0 0.0
        %v7748 = vand.u32 %v7161, 4294901760
        %7749 = vmatpush1.msra.mxu0 %v7748
        %7750 = vmatprep.subr.mxu0 0.0
        %v7751 = vand.u32 %v7162, 4294901760
        %7752 = vmatpush1.msra.mxu0 %v7751
        %7753 = vmatprep.subr.mxu0 0.0
        %v7754 = vand.u32 %v7163, 4294901760
        %7755 = vmatpush1.msra.mxu0 %v7754
        %7756 = vmatprep.subr.mxu0 0.0
        %v7757 = vand.u32 %v7164, 4294901760
        %7758 = vmatpush1.msra.mxu0 %v7757
        %7759 = vmatprep.subr.mxu0 0.0
        %v7760 = vand.u32 %v7165, 4294901760
        %7761 = vmatpush1.msra.mxu0 %v7760
        %7762 = vmatprep.subr.mxu0 0.0
        %v7763 = vand.u32 %v7166, 4294901760
        %7764 = vmatpush1.msra.mxu0 %v7763
        %7765 = vmatprep.subr.mxu0 0.0
        %v7766 = vand.u32 %v7167, 4294901760
        %7767 = vmatpush1.msra.mxu0 %v7766
        %v7768 = vand.u32 %v7134, 4294901760
        %v7769 = vsub.f32 %v7134, %v7768
        %v7770 = vand.u32 %v7769, 4294901760
        %7771 = vmatprep.mubr.f32.mxu0 %v7770
        %v7772 = vand.u32 %v7131, 4294901760
        %v7773 = vsub.f32 %v7131, %v7772
        %v7774 = vand.u32 %v7773, 4294901760
        %7775 = vmatmul.mubr.f32.gmra.mrb[0].mxu0 %v7774
        %v7776 = vpop.f32.mrb[0].mxu0
        %v7777 = vadd.f32 %v7669, %v7776
        %v7778 = vpop.f32.mrb[0].mxu0
        %7779 = vdwg.mxu0
        %7780 = vmatprep.subr.mxu0 0.0
        %v7781 = vand.u32 %v7136, 4294901760
        %v7782 = vsub.f32 %v7136, %v7781
        %v7783 = vand.u32 %v7782, 4294901760
        %7784 = vmatpush1.msra.mxu0 %v7783
        %7785 = vmatprep.subr.mxu0 0.0
        %v7786 = vand.u32 %v7137, 4294901760
        %v7787 = vsub.f32 %v7137, %v7786
        %v7788 = vand.u32 %v7787, 4294901760
        %7789 = vmatpush1.msra.mxu0 %v7788
        %7790 = vmatprep.subr.mxu0 0.0
        %v7791 = vand.u32 %v7138, 4294901760
        %v7792 = vsub.f32 %v7138, %v7791
        %v7793 = vand.u32 %v7792, 4294901760
        %7794 = vmatpush1.msra.mxu0 %v7793
        %7795 = vmatprep.subr.mxu0 0.0
        %v7796 = vand.u32 %v7139, 4294901760
        %v7797 = vsub.f32 %v7139, %v7796
        %v7798 = vand.u32 %v7797, 4294901760
        %7799 = vmatpush1.msra.mxu0 %v7798
        %7800 = vmatprep.subr.mxu0 0.0
        %v7801 = vand.u32 %v7140, 4294901760
        %v7802 = vsub.f32 %v7140, %v7801
        %v7803 = vand.u32 %v7802, 4294901760
        %7804 = vmatpush1.msra.mxu0 %v7803
        %7805 = vmatprep.subr.mxu0 0.0
        %v7806 = vand.u32 %v7141, 4294901760
        %v7807 = vsub.f32 %v7141, %v7806
        %v7808 = vand.u32 %v7807, 4294901760
        %7809 = vmatpush1.msra.mxu0 %v7808
        %7810 = vmatprep.subr.mxu0 0.0
        %v7811 = vand.u32 %v7142, 4294901760
        %v7812 = vsub.f32 %v7142, %v7811
        %v7813 = vand.u32 %v7812, 4294901760
        %7814 = vmatpush1.msra.mxu0 %v7813
        %7815 = vmatprep.subr.mxu0 0.0
        %v7816 = vand.u32 %v7143, 4294901760
        %v7817 = vsub.f32 %v7143, %v7816
        %v7818 = vand.u32 %v7817, 4294901760
        %7819 = vmatpush1.msra.mxu0 %v7818
        %7820 = vmatprep.subr.mxu0 0.0
        %v7821 = vand.u32 %v7144, 4294901760
        %v7822 = vsub.f32 %v7144, %v7821
        %v7823 = vand.u32 %v7822, 4294901760
        %7824 = vmatpush1.msra.mxu0 %v7823
        %7825 = vmatprep.subr.mxu0 0.0
        %v7826 = vand.u32 %v7145, 4294901760
        %v7827 = vsub.f32 %v7145, %v7826
        %v7828 = vand.u32 %v7827, 4294901760
        %7829 = vmatpush1.msra.mxu0 %v7828
        %7830 = vmatprep.subr.mxu0 0.0
        %v7831 = vand.u32 %v7146, 4294901760
        %v7832 = vsub.f32 %v7146, %v7831
        %v7833 = vand.u32 %v7832, 4294901760
        %7834 = vmatpush1.msra.mxu0 %v7833
        %7835 = vmatprep.subr.mxu0 0.0
        %v7836 = vand.u32 %v7147, 4294901760
        %v7837 = vsub.f32 %v7147, %v7836
        %v7838 = vand.u32 %v7837, 4294901760
        %7839 = vmatpush1.msra.mxu0 %v7838
        %7840 = vmatprep.subr.mxu0 0.0
        %v7841 = vand.u32 %v7148, 4294901760
        %v7842 = vsub.f32 %v7148, %v7841
        %v7843 = vand.u32 %v7842, 4294901760
        %7844 = vmatpush1.msra.mxu0 %v7843
        %7845 = vmatprep.subr.mxu0 0.0
        %v7846 = vand.u32 %v7149, 4294901760
        %v7847 = vsub.f32 %v7149, %v7846
        %v7848 = vand.u32 %v7847, 4294901760
        %7849 = vmatpush1.msra.mxu0 %v7848
        %7850 = vmatprep.subr.mxu0 0.0
        %v7851 = vand.u32 %v7150, 4294901760
        %v7852 = vsub.f32 %v7150, %v7851
        %v7853 = vand.u32 %v7852, 4294901760
        %7854 = vmatpush1.msra.mxu0 %v7853
        %7855 = vmatprep.subr.mxu0 0.0
        %v7856 = vand.u32 %v7151, 4294901760
        %v7857 = vsub.f32 %v7151, %v7856
        %v7858 = vand.u32 %v7857, 4294901760
        %7859 = vmatpush1.msra.mxu0 %v7858
        %7860 = vmatprep.subr.mxu0 0.0
        %v7861 = vand.u32 %v7152, 4294901760
        %v7862 = vsub.f32 %v7152, %v7861
        %v7863 = vand.u32 %v7862, 4294901760
        %7864 = vmatpush1.msra.mxu0 %v7863
        %7865 = vmatprep.subr.mxu0 0.0
        %v7866 = vand.u32 %v7153, 4294901760
        %v7867 = vsub.f32 %v7153, %v7866
        %v7868 = vand.u32 %v7867, 4294901760
        %7869 = vmatpush1.msra.mxu0 %v7868
        %7870 = vmatprep.subr.mxu0 0.0
        %v7871 = vand.u32 %v7154, 4294901760
        %v7872 = vsub.f32 %v7154, %v7871
        %v7873 = vand.u32 %v7872, 4294901760
        %7874 = vmatpush1.msra.mxu0 %v7873
        %7875 = vmatprep.subr.mxu0 0.0
        %v7876 = vand.u32 %v7155, 4294901760
        %v7877 = vsub.f32 %v7155, %v7876
        %v7878 = vand.u32 %v7877, 4294901760
        %7879 = vmatpush1.msra.mxu0 %v7878
        %7880 = vmatprep.subr.mxu0 0.0
        %v7881 = vand.u32 %v7156, 4294901760
        %v7882 = vsub.f32 %v7156, %v7881
        %v7883 = vand.u32 %v7882, 4294901760
        %7884 = vmatpush1.msra.mxu0 %v7883
        %7885 = vmatprep.subr.mxu0 0.0
        %v7886 = vand.u32 %v7157, 4294901760
        %v7887 = vsub.f32 %v7157, %v7886
        %v7888 = vand.u32 %v7887, 4294901760
        %7889 = vmatpush1.msra.mxu0 %v7888
        %7890 = vmatprep.subr.mxu0 0.0
        %v7891 = vand.u32 %v7158, 4294901760
        %v7892 = vsub.f32 %v7158, %v7891
        %v7893 = vand.u32 %v7892, 4294901760
        %7894 = vmatpush1.msra.mxu0 %v7893
        %7895 = vmatprep.subr.mxu0 0.0
        %v7896 = vand.u32 %v7159, 4294901760
        %v7897 = vsub.f32 %v7159, %v7896
        %v7898 = vand.u32 %v7897, 4294901760
        %7899 = vmatpush1.msra.mxu0 %v7898
        %7900 = vmatprep.subr.mxu0 0.0
        %v7901 = vand.u32 %v7160, 4294901760
        %v7902 = vsub.f32 %v7160, %v7901
        %v7903 = vand.u32 %v7902, 4294901760
        %7904 = vmatpush1.msra.mxu0 %v7903
        %7905 = vmatprep.subr.mxu0 0.0
        %v7906 = vand.u32 %v7161, 4294901760
        %v7907 = vsub.f32 %v7161, %v7906
        %v7908 = vand.u32 %v7907, 4294901760
        %7909 = vmatpush1.msra.mxu0 %v7908
        %7910 = vmatprep.subr.mxu0 0.0
        %v7911 = vand.u32 %v7162, 4294901760
        %v7912 = vsub.f32 %v7162, %v7911
        %v7913 = vand.u32 %v7912, 4294901760
        %7914 = vmatpush1.msra.mxu0 %v7913
        %7915 = vmatprep.subr.mxu0 0.0
        %v7916 = vand.u32 %v7163, 4294901760
        %v7917 = vsub.f32 %v7163, %v7916
        %v7918 = vand.u32 %v7917, 4294901760
        %7919 = vmatpush1.msra.mxu0 %v7918
        %7920 = vmatprep.subr.mxu0 0.0
        %v7921 = vand.u32 %v7164, 4294901760
        %v7922 = vsub.f32 %v7164, %v7921
        %v7923 = vand.u32 %v7922, 4294901760
        %7924 = vmatpush1.msra.mxu0 %v7923
        %7925 = vmatprep.subr.mxu0 0.0
        %v7926 = vand.u32 %v7165, 4294901760
        %v7927 = vsub.f32 %v7165, %v7926
        %v7928 = vand.u32 %v7927, 4294901760
        %7929 = vmatpush1.msra.mxu0 %v7928
        %7930 = vmatprep.subr.mxu0 0.0
        %v7931 = vand.u32 %v7166, 4294901760
        %v7932 = vsub.f32 %v7166, %v7931
        %v7933 = vand.u32 %v7932, 4294901760
        %7934 = vmatpush1.msra.mxu0 %v7933
        %7935 = vmatprep.subr.mxu0 0.0
        %v7936 = vand.u32 %v7167, 4294901760
        %v7937 = vsub.f32 %v7167, %v7936
        %v7938 = vand.u32 %v7937, 4294901760
        %7939 = vmatpush1.msra.mxu0 %v7938
        %v7940 = vand.u32 %v7134, 4294901760
        %7941 = vmatprep.mubr.f32.mxu0 %v7940
        %v7942 = vand.u32 %v7131, 4294901760
        %7943 = vmatmul.mubr.f32.gmra.mrb[0].mxu0 %v7942
        %v7944 = vpop.f32.mrb[0].mxu0
        %v7945 = vadd.f32 %v7777, %v7944
        %v7946 = vpop.f32.mrb[0].mxu0
        %7947 = vdwg.mxu0
        %7948 = vmatprep.subr.mxu0 0.0
        %v7949 = vand.u32 %v7136, 4294901760
        %7950 = vmatpush1.msra.mxu0 %v7949
        %7951 = vmatprep.subr.mxu0 0.0
        %v7952 = vand.u32 %v7137, 4294901760
        %7953 = vmatpush1.msra.mxu0 %v7952
        %7954 = vmatprep.subr.mxu0 0.0
        %v7955 = vand.u32 %v7138, 4294901760
        %7956 = vmatpush1.msra.mxu0 %v7955
        %7957 = vmatprep.subr.mxu0 0.0
        %v7958 = vand.u32 %v7139, 4294901760
        %7959 = vmatpush1.msra.mxu0 %v7958
        %7960 = vmatprep.subr.mxu0 0.0
        %v7961 = vand.u32 %v7140, 4294901760
        %7962 = vmatpush1.msra.mxu0 %v7961
        %7963 = vmatprep.subr.mxu0 0.0
        %v7964 = vand.u32 %v7141, 4294901760
        %7965 = vmatpush1.msra.mxu0 %v7964
        %7966 = vmatprep.subr.mxu0 0.0
        %v7967 = vand.u32 %v7142, 4294901760
        %7968 = vmatpush1.msra.mxu0 %v7967
        %7969 = vmatprep.subr.mxu0 0.0
        %v7970 = vand.u32 %v7143, 4294901760
        %7971 = vmatpush1.msra.mxu0 %v7970
        %7972 = vmatprep.subr.mxu0 0.0
        %v7973 = vand.u32 %v7144, 4294901760
        %7974 = vmatpush1.msra.mxu0 %v7973
        %7975 = vmatprep.subr.mxu0 0.0
        %v7976 = vand.u32 %v7145, 4294901760
        %7977 = vmatpush1.msra.mxu0 %v7976
        %7978 = vmatprep.subr.mxu0 0.0
        %v7979 = vand.u32 %v7146, 4294901760
        %7980 = vmatpush1.msra.mxu0 %v7979
        %7981 = vmatprep.subr.mxu0 0.0
        %v7982 = vand.u32 %v7147, 4294901760
        %7983 = vmatpush1.msra.mxu0 %v7982
        %7984 = vmatprep.subr.mxu0 0.0
        %v7985 = vand.u32 %v7148, 4294901760
        %7986 = vmatpush1.msra.mxu0 %v7985
        %7987 = vmatprep.subr.mxu0 0.0
        %v7988 = vand.u32 %v7149, 4294901760
        %7989 = vmatpush1.msra.mxu0 %v7988
        %7990 = vmatprep.subr.mxu0 0.0
        %v7991 = vand.u32 %v7150, 4294901760
        %7992 = vmatpush1.msra.mxu0 %v7991
        %7993 = vmatprep.subr.mxu0 0.0
        %v7994 = vand.u32 %v7151, 4294901760
        %7995 = vmatpush1.msra.mxu0 %v7994
        %7996 = vmatprep.subr.mxu0 0.0
        %v7997 = vand.u32 %v7152, 4294901760
        %7998 = vmatpush1.msra.mxu0 %v7997
        %7999 = vmatprep.subr.mxu0 0.0
        %v8000 = vand.u32 %v7153, 4294901760
        %8001 = vmatpush1.msra.mxu0 %v8000
        %8002 = vmatprep.subr.mxu0 0.0
        %v8003 = vand.u32 %v7154, 4294901760
        %8004 = vmatpush1.msra.mxu0 %v8003
        %8005 = vmatprep.subr.mxu0 0.0
        %v8006 = vand.u32 %v7155, 4294901760
        %8007 = vmatpush1.msra.mxu0 %v8006
        %8008 = vmatprep.subr.mxu0 0.0
        %v8009 = vand.u32 %v7156, 4294901760
        %8010 = vmatpush1.msra.mxu0 %v8009
        %8011 = vmatprep.subr.mxu0 0.0
        %v8012 = vand.u32 %v7157, 4294901760
        %8013 = vmatpush1.msra.mxu0 %v8012
        %8014 = vmatprep.subr.mxu0 0.0
        %v8015 = vand.u32 %v7158, 4294901760
        %8016 = vmatpush1.msra.mxu0 %v8015
        %8017 = vmatprep.subr.mxu0 0.0
        %v8018 = vand.u32 %v7159, 4294901760
        %8019 = vmatpush1.msra.mxu0 %v8018
        %8020 = vmatprep.subr.mxu0 0.0
        %v8021 = vand.u32 %v7160, 4294901760
        %8022 = vmatpush1.msra.mxu0 %v8021
        %8023 = vmatprep.subr.mxu0 0.0
        %v8024 = vand.u32 %v7161, 4294901760
        %8025 = vmatpush1.msra.mxu0 %v8024
        %8026 = vmatprep.subr.mxu0 0.0
        %v8027 = vand.u32 %v7162, 4294901760
        %8028 = vmatpush1.msra.mxu0 %v8027
        %8029 = vmatprep.subr.mxu0 0.0
        %v8030 = vand.u32 %v7163, 4294901760
        %8031 = vmatpush1.msra.mxu0 %v8030
        %8032 = vmatprep.subr.mxu0 0.0
        %v8033 = vand.u32 %v7164, 4294901760
        %8034 = vmatpush1.msra.mxu0 %v8033
        %8035 = vmatprep.subr.mxu0 0.0
        %v8036 = vand.u32 %v7165, 4294901760
        %8037 = vmatpush1.msra.mxu0 %v8036
        %8038 = vmatprep.subr.mxu0 0.0
        %v8039 = vand.u32 %v7166, 4294901760
        %8040 = vmatpush1.msra.mxu0 %v8039
        %8041 = vmatprep.subr.mxu0 0.0
        %v8042 = vand.u32 %v7167, 4294901760
        %8043 = vmatpush1.msra.mxu0 %v8042
        %v8044 = vand.u32 %v7134, 4294901760
        %8045 = vmatprep.mubr.f32.mxu0 %v8044
        %v8046 = vand.u32 %v7131, 4294901760
        %8047 = vmatmul.mubr.f32.gmra.mrb[0].mxu0 %v8046
        %v8048 = vpop.f32.mrb[0].mxu0
        %v8049 = vadd.f32 %v7945, %v8048
        %v8050 = vpop.f32.mrb[0].mxu0
        %8051 = vdwg.mxu0
        %8052 = vmatprep.subr.mxu0 0.0
        %v8053 = vand.u32 %v7168, 4294901760
        %8054 = vmatpush1.msra.mxu0 %v8053
        %8055 = vmatprep.subr.mxu0 0.0
        %v8056 = vand.u32 %v7169, 4294901760
        %8057 = vmatpush1.msra.mxu0 %v8056
        %8058 = vmatprep.subr.mxu0 0.0
        %v8059 = vand.u32 %v7170, 4294901760
        %8060 = vmatpush1.msra.mxu0 %v8059
        %8061 = vmatprep.subr.mxu0 0.0
        %v8062 = vand.u32 %v7171, 4294901760
        %8063 = vmatpush1.msra.mxu0 %v8062
        %8064 = vmatprep.subr.mxu0 0.0
        %v8065 = vand.u32 %v7172, 4294901760
        %8066 = vmatpush1.msra.mxu0 %v8065
        %8067 = vmatprep.subr.mxu0 0.0
        %v8068 = vand.u32 %v7173, 4294901760
        %8069 = vmatpush1.msra.mxu0 %v8068
        %8070 = vmatprep.subr.mxu0 0.0
        %v8071 = vand.u32 %v7174, 4294901760
        %8072 = vmatpush1.msra.mxu0 %v8071
        %8073 = vmatprep.subr.mxu0 0.0
        %v8074 = vand.u32 %v7175, 4294901760
        %8075 = vmatpush1.msra.mxu0 %v8074
        %8076 = vmatprep.subr.mxu0 0.0
        %v8077 = vand.u32 %v7176, 4294901760
        %8078 = vmatpush1.msra.mxu0 %v8077
        %8079 = vmatprep.subr.mxu0 0.0
        %v8080 = vand.u32 %v7177, 4294901760
        %8081 = vmatpush1.msra.mxu0 %v8080
        %8082 = vmatprep.subr.mxu0 0.0
        %v8083 = vand.u32 %v7178, 4294901760
        %8084 = vmatpush1.msra.mxu0 %v8083
        %8085 = vmatprep.subr.mxu0 0.0
        %v8086 = vand.u32 %v7179, 4294901760
        %8087 = vmatpush1.msra.mxu0 %v8086
        %8088 = vmatprep.subr.mxu0 0.0
        %v8089 = vand.u32 %v7180, 4294901760
        %8090 = vmatpush1.msra.mxu0 %v8089
        %8091 = vmatprep.subr.mxu0 0.0
        %v8092 = vand.u32 %v7181, 4294901760
        %8093 = vmatpush1.msra.mxu0 %v8092
        %8094 = vmatprep.subr.mxu0 0.0
        %v8095 = vand.u32 %v7182, 4294901760
        %8096 = vmatpush1.msra.mxu0 %v8095
        %8097 = vmatprep.subr.mxu0 0.0
        %v8098 = vand.u32 %v7183, 4294901760
        %8099 = vmatpush1.msra.mxu0 %v8098
        %8100 = vmatprep.subr.mxu0 0.0
        %v8101 = vand.u32 %v7184, 4294901760
        %8102 = vmatpush1.msra.mxu0 %v8101
        %8103 = vmatprep.subr.mxu0 0.0
        %v8104 = vand.u32 %v7185, 4294901760
        %8105 = vmatpush1.msra.mxu0 %v8104
        %8106 = vmatprep.subr.mxu0 0.0
        %8107 = vmatpush1.msra.mxu0 0.0
        %8108 = vmatprep.subr.mxu0 0.0
        %8109 = vmatpush1.msra.mxu0 0.0
        %8110 = vmatprep.subr.mxu0 0.0
        %8111 = vmatpush1.msra.mxu0 0.0
        %8112 = vmatprep.subr.mxu0 0.0
        %8113 = vmatpush1.msra.mxu0 0.0
        %8114 = vmatprep.subr.mxu0 0.0
        %8115 = vmatpush1.msra.mxu0 0.0
        %8116 = vmatprep.subr.mxu0 0.0
        %8117 = vmatpush1.msra.mxu0 0.0
        %8118 = vmatprep.subr.mxu0 0.0
        %8119 = vmatpush1.msra.mxu0 0.0
        %8120 = vmatprep.subr.mxu0 0.0
        %8121 = vmatpush1.msra.mxu0 0.0
        %8122 = vmatprep.subr.mxu0 0.0
        %8123 = vmatpush1.msra.mxu0 0.0
        %8124 = vmatprep.subr.mxu0 0.0
        %8125 = vmatpush1.msra.mxu0 0.0
        %8126 = vmatprep.subr.mxu0 0.0
        %8127 = vmatpush1.msra.mxu0 0.0
        %8128 = vmatprep.subr.mxu0 0.0
        %8129 = vmatpush1.msra.mxu0 0.0
        %8130 = vmatprep.subr.mxu0 0.0
        %8131 = vmatpush1.msra.mxu0 0.0
        %8132 = vmatprep.subr.mxu0 0.0
        %8133 = vmatpush1.msra.mxu0 0.0
        %v8134 = vand.u32 %v7188, 4294901760
        %v8135 = vsub.f32 %v7188, %v8134
        %v8136 = vand.u32 %v8135, 4294901760
        %v8137 = vsub.f32 %v8135, %v8136
        %v8138 = vand.u32 %v8137, 4294901760
        %8139 = vmatprep.mubr.f32.mxu0 %v8138
        %v8140 = vand.u32 %v7135, 4294901760
        %v8141 = vsub.f32 %v7135, %v8140
        %v8142 = vand.u32 %v8141, 4294901760
        %v8143 = vsub.f32 %v8141, %v8142
        %v8144 = vand.u32 %v8143, 4294901760
        %8145 = vmatmul.mubr.f32.gmra.mrb[0].mxu0 %v8144
        %v8146 = vpop.f32.mrb[0].mxu0
        %v8147 = vadd.f32 %v8049, %v8146
        %v8148 = vpop.f32.mrb[0].mxu0
        %8149 = vdwg.mxu0
        %8150 = vmatprep.subr.mxu0 0.0
        %v8151 = vand.u32 %v7168, 4294901760
        %v8152 = vsub.f32 %v7168, %v8151
        %v8153 = vand.u32 %v8152, 4294901760
        %v8154 = vsub.f32 %v8152, %v8153
        %v8155 = vand.u32 %v8154, 4294901760
        %8156 = vmatpush1.msra.mxu0 %v8155
        %8157 = vmatprep.subr.mxu0 0.0
        %v8158 = vand.u32 %v7169, 4294901760
        %v8159 = vsub.f32 %v7169, %v8158
        %v8160 = vand.u32 %v8159, 4294901760
        %v8161 = vsub.f32 %v8159, %v8160
        %v8162 = vand.u32 %v8161, 4294901760
        %8163 = vmatpush1.msra.mxu0 %v8162
        %8164 = vmatprep.subr.mxu0 0.0
        %v8165 = vand.u32 %v7170, 4294901760
        %v8166 = vsub.f32 %v7170, %v8165
        %v8167 = vand.u32 %v8166, 4294901760
        %v8168 = vsub.f32 %v8166, %v8167
        %v8169 = vand.u32 %v8168, 4294901760
        %8170 = vmatpush1.msra.mxu0 %v8169
        %8171 = vmatprep.subr.mxu0 0.0
        %v8172 = vand.u32 %v7171, 4294901760
        %v8173 = vsub.f32 %v7171, %v8172
        %v8174 = vand.u32 %v8173, 4294901760
        %v8175 = vsub.f32 %v8173, %v8174
        %v8176 = vand.u32 %v8175, 4294901760
        %8177 = vmatpush1.msra.mxu0 %v8176
        %8178 = vmatprep.subr.mxu0 0.0
        %v8179 = vand.u32 %v7172, 4294901760
        %v8180 = vsub.f32 %v7172, %v8179
        %v8181 = vand.u32 %v8180, 4294901760
        %v8182 = vsub.f32 %v8180, %v8181
        %v8183 = vand.u32 %v8182, 4294901760
        %8184 = vmatpush1.msra.mxu0 %v8183
        %8185 = vmatprep.subr.mxu0 0.0
        %v8186 = vand.u32 %v7173, 4294901760
        %v8187 = vsub.f32 %v7173, %v8186
        %v8188 = vand.u32 %v8187, 4294901760
        %v8189 = vsub.f32 %v8187, %v8188
        %v8190 = vand.u32 %v8189, 4294901760
        %8191 = vmatpush1.msra.mxu0 %v8190
        %8192 = vmatprep.subr.mxu0 0.0
        %v8193 = vand.u32 %v7174, 4294901760
        %v8194 = vsub.f32 %v7174, %v8193
        %v8195 = vand.u32 %v8194, 4294901760
        %v8196 = vsub.f32 %v8194, %v8195
        %v8197 = vand.u32 %v8196, 4294901760
        %8198 = vmatpush1.msra.mxu0 %v8197
        %8199 = vmatprep.subr.mxu0 0.0
        %v8200 = vand.u32 %v7175, 4294901760
        %v8201 = vsub.f32 %v7175, %v8200
        %v8202 = vand.u32 %v8201, 4294901760
        %v8203 = vsub.f32 %v8201, %v8202
        %v8204 = vand.u32 %v8203, 4294901760
        %8205 = vmatpush1.msra.mxu0 %v8204
        %8206 = vmatprep.subr.mxu0 0.0
        %v8207 = vand.u32 %v7176, 4294901760
        %v8208 = vsub.f32 %v7176, %v8207
        %v8209 = vand.u32 %v8208, 4294901760
        %v8210 = vsub.f32 %v8208, %v8209
        %v8211 = vand.u32 %v8210, 4294901760
        %8212 = vmatpush1.msra.mxu0 %v8211
        %8213 = vmatprep.subr.mxu0 0.0
        %v8214 = vand.u32 %v7177, 4294901760
        %v8215 = vsub.f32 %v7177, %v8214
        %v8216 = vand.u32 %v8215, 4294901760
        %v8217 = vsub.f32 %v8215, %v8216
        %v8218 = vand.u32 %v8217, 4294901760
        %8219 = vmatpush1.msra.mxu0 %v8218
        %8220 = vmatprep.subr.mxu0 0.0
        %v8221 = vand.u32 %v7178, 4294901760
        %v8222 = vsub.f32 %v7178, %v8221
        %v8223 = vand.u32 %v8222, 4294901760
        %v8224 = vsub.f32 %v8222, %v8223
        %v8225 = vand.u32 %v8224, 4294901760
        %8226 = vmatpush1.msra.mxu0 %v8225
        %8227 = vmatprep.subr.mxu0 0.0
        %v8228 = vand.u32 %v7179, 4294901760
        %v8229 = vsub.f32 %v7179, %v8228
        %v8230 = vand.u32 %v8229, 4294901760
        %v8231 = vsub.f32 %v8229, %v8230
        %v8232 = vand.u32 %v8231, 4294901760
        %8233 = vmatpush1.msra.mxu0 %v8232
        %8234 = vmatprep.subr.mxu0 0.0
        %v8235 = vand.u32 %v7180, 4294901760
        %v8236 = vsub.f32 %v7180, %v8235
        %v8237 = vand.u32 %v8236, 4294901760
        %v8238 = vsub.f32 %v8236, %v8237
        %v8239 = vand.u32 %v8238, 4294901760
        %8240 = vmatpush1.msra.mxu0 %v8239
        %8241 = vmatprep.subr.mxu0 0.0
        %v8242 = vand.u32 %v7181, 4294901760
        %v8243 = vsub.f32 %v7181, %v8242
        %v8244 = vand.u32 %v8243, 4294901760
        %v8245 = vsub.f32 %v8243, %v8244
        %v8246 = vand.u32 %v8245, 4294901760
        %8247 = vmatpush1.msra.mxu0 %v8246
        %8248 = vmatprep.subr.mxu0 0.0
        %v8249 = vand.u32 %v7182, 4294901760
        %v8250 = vsub.f32 %v7182, %v8249
        %v8251 = vand.u32 %v8250, 4294901760
        %v8252 = vsub.f32 %v8250, %v8251
        %v8253 = vand.u32 %v8252, 4294901760
        %8254 = vmatpush1.msra.mxu0 %v8253
        %8255 = vmatprep.subr.mxu0 0.0
        %v8256 = vand.u32 %v7183, 4294901760
        %v8257 = vsub.f32 %v7183, %v8256
        %v8258 = vand.u32 %v8257, 4294901760
        %v8259 = vsub.f32 %v8257, %v8258
        %v8260 = vand.u32 %v8259, 4294901760
        %8261 = vmatpush1.msra.mxu0 %v8260
        %8262 = vmatprep.subr.mxu0 0.0
        %v8263 = vand.u32 %v7184, 4294901760
        %v8264 = vsub.f32 %v7184, %v8263
        %v8265 = vand.u32 %v8264, 4294901760
        %v8266 = vsub.f32 %v8264, %v8265
        %v8267 = vand.u32 %v8266, 4294901760
        %8268 = vmatpush1.msra.mxu0 %v8267
        %8269 = vmatprep.subr.mxu0 0.0
        %v8270 = vand.u32 %v7185, 4294901760
        %v8271 = vsub.f32 %v7185, %v8270
        %v8272 = vand.u32 %v8271, 4294901760
        %v8273 = vsub.f32 %v8271, %v8272
        %v8274 = vand.u32 %v8273, 4294901760
        %8275 = vmatpush1.msra.mxu0 %v8274
        %8276 = vmatprep.subr.mxu0 0.0
        %8277 = vmatpush1.msra.mxu0 0.0
        %8278 = vmatprep.subr.mxu0 0.0
        %8279 = vmatpush1.msra.mxu0 0.0
        %8280 = vmatprep.subr.mxu0 0.0
        %8281 = vmatpush1.msra.mxu0 0.0
        %8282 = vmatprep.subr.mxu0 0.0
        %8283 = vmatpush1.msra.mxu0 0.0
        %8284 = vmatprep.subr.mxu0 0.0
        %8285 = vmatpush1.msra.mxu0 0.0
        %8286 = vmatprep.subr.mxu0 0.0
        %8287 = vmatpush1.msra.mxu0 0.0
        %8288 = vmatprep.subr.mxu0 0.0
        %8289 = vmatpush1.msra.mxu0 0.0
        %8290 = vmatprep.subr.mxu0 0.0
        %8291 = vmatpush1.msra.mxu0 0.0
        %8292 = vmatprep.subr.mxu0 0.0
        %8293 = vmatpush1.msra.mxu0 0.0
        %8294 = vmatprep.subr.mxu0 0.0
        %8295 = vmatpush1.msra.mxu0 0.0
        %8296 = vmatprep.subr.mxu0 0.0
        %8297 = vmatpush1.msra.mxu0 0.0
        %8298 = vmatprep.subr.mxu0 0.0
        %8299 = vmatpush1.msra.mxu0 0.0
        %8300 = vmatprep.subr.mxu0 0.0
        %8301 = vmatpush1.msra.mxu0 0.0
        %8302 = vmatprep.subr.mxu0 0.0
        %8303 = vmatpush1.msra.mxu0 0.0
        %v8304 = vand.u32 %v7188, 4294901760
        %8305 = vmatprep.mubr.f32.mxu0 %v8304
        %v8306 = vand.u32 %v7135, 4294901760
        %8307 = vmatmul.mubr.f32.gmra.mrb[0].mxu0 %v8306
        %v8308 = vpop.f32.mrb[0].mxu0
        %v8309 = vadd.f32 %v8147, %v8308
        %v8310 = vpop.f32.mrb[0].mxu0
        %8311 = vdwg.mxu0
        %8312 = vmatprep.subr.mxu0 0.0
        %v8313 = vand.u32 %v7168, 4294901760
        %v8314 = vsub.f32 %v7168, %v8313
        %8315 = vmatpush1.msra.mxu0 %v8314
        %8316 = vmatprep.subr.mxu0 0.0
        %v8317 = vand.u32 %v7169, 4294901760
        %v8318 = vsub.f32 %v7169, %v8317
        %8319 = vmatpush1.msra.mxu0 %v8318
        %8320 = vmatprep.subr.mxu0 0.0
        %v8321 = vand.u32 %v7170, 4294901760
        %v8322 = vsub.f32 %v7170, %v8321
        %8323 = vmatpush1.msra.mxu0 %v8322
        %8324 = vmatprep.subr.mxu0 0.0
        %v8325 = vand.u32 %v7171, 4294901760
        %v8326 = vsub.f32 %v7171, %v8325
        %8327 = vmatpush1.msra.mxu0 %v8326
        %8328 = vmatprep.subr.mxu0 0.0
        %v8329 = vand.u32 %v7172, 4294901760
        %v8330 = vsub.f32 %v7172, %v8329
        %8331 = vmatpush1.msra.mxu0 %v8330
        %8332 = vmatprep.subr.mxu0 0.0
        %v8333 = vand.u32 %v7173, 4294901760
        %v8334 = vsub.f32 %v7173, %v8333
        %8335 = vmatpush1.msra.mxu0 %v8334
        %8336 = vmatprep.subr.mxu0 0.0
        %v8337 = vand.u32 %v7174, 4294901760
        %v8338 = vsub.f32 %v7174, %v8337
        %8339 = vmatpush1.msra.mxu0 %v8338
        %8340 = vmatprep.subr.mxu0 0.0
        %v8341 = vand.u32 %v7175, 4294901760
        %v8342 = vsub.f32 %v7175, %v8341
        %8343 = vmatpush1.msra.mxu0 %v8342
        %8344 = vmatprep.subr.mxu0 0.0
        %v8345 = vand.u32 %v7176, 4294901760
        %v8346 = vsub.f32 %v7176, %v8345
        %8347 = vmatpush1.msra.mxu0 %v8346
        %8348 = vmatprep.subr.mxu0 0.0
        %v8349 = vand.u32 %v7177, 4294901760
        %v8350 = vsub.f32 %v7177, %v8349
        %8351 = vmatpush1.msra.mxu0 %v8350
        %8352 = vmatprep.subr.mxu0 0.0
        %v8353 = vand.u32 %v7178, 4294901760
        %v8354 = vsub.f32 %v7178, %v8353
        %8355 = vmatpush1.msra.mxu0 %v8354
        %8356 = vmatprep.subr.mxu0 0.0
        %v8357 = vand.u32 %v7179, 4294901760
        %v8358 = vsub.f32 %v7179, %v8357
        %8359 = vmatpush1.msra.mxu0 %v8358
        %8360 = vmatprep.subr.mxu0 0.0
        %v8361 = vand.u32 %v7180, 4294901760
        %v8362 = vsub.f32 %v7180, %v8361
        %8363 = vmatpush1.msra.mxu0 %v8362
        %8364 = vmatprep.subr.mxu0 0.0
        %v8365 = vand.u32 %v7181, 4294901760
        %v8366 = vsub.f32 %v7181, %v8365
        %8367 = vmatpush1.msra.mxu0 %v8366
        %8368 = vmatprep.subr.mxu0 0.0
        %v8369 = vand.u32 %v7182, 4294901760
        %v8370 = vsub.f32 %v7182, %v8369
        %8371 = vmatpush1.msra.mxu0 %v8370
        %8372 = vmatprep.subr.mxu0 0.0
        %v8373 = vand.u32 %v7183, 4294901760
        %v8374 = vsub.f32 %v7183, %v8373
        %8375 = vmatpush1.msra.mxu0 %v8374
        %8376 = vmatprep.subr.mxu0 0.0
        %v8377 = vand.u32 %v7184, 4294901760
        %v8378 = vsub.f32 %v7184, %v8377
        %8379 = vmatpush1.msra.mxu0 %v8378
        %8380 = vmatprep.subr.mxu0 0.0
        %v8381 = vand.u32 %v7185, 4294901760
        %v8382 = vsub.f32 %v7185, %v8381
        %8383 = vmatpush1.msra.mxu0 %v8382
        %8384 = vmatprep.subr.mxu0 0.0
        %8385 = vmatpush1.msra.mxu0 0.0
        %8386 = vmatprep.subr.mxu0 0.0
        %8387 = vmatpush1.msra.mxu0 0.0
        %8388 = vmatprep.subr.mxu0 0.0
        %8389 = vmatpush1.msra.mxu0 0.0
        %8390 = vmatprep.subr.mxu0 0.0
        %8391 = vmatpush1.msra.mxu0 0.0
        %8392 = vmatprep.subr.mxu0 0.0
        %8393 = vmatpush1.msra.mxu0 0.0
        %8394 = vmatprep.subr.mxu0 0.0
        %8395 = vmatpush1.msra.mxu0 0.0
        %8396 = vmatprep.subr.mxu0 0.0
        %8397 = vmatpush1.msra.mxu0 0.0
        %8398 = vmatprep.subr.mxu0 0.0
        %8399 = vmatpush1.msra.mxu0 0.0
        %8400 = vmatprep.subr.mxu0 0.0
        %8401 = vmatpush1.msra.mxu0 0.0
        %8402 = vmatprep.subr.mxu0 0.0
        %8403 = vmatpush1.msra.mxu0 0.0
        %8404 = vmatprep.subr.mxu0 0.0
        %8405 = vmatpush1.msra.mxu0 0.0
        %8406 = vmatprep.subr.mxu0 0.0
        %8407 = vmatpush1.msra.mxu0 0.0
        %8408 = vmatprep.subr.mxu0 0.0
        %8409 = vmatpush1.msra.mxu0 0.0
        %8410 = vmatprep.subr.mxu0 0.0
        %8411 = vmatpush1.msra.mxu0 0.0
        %v8412 = vand.u32 %v7188, 4294901760
        %v8413 = vsub.f32 %v7188, %v8412
        %8414 = vmatprep.mubr.f32.mxu0 %v8413
        %v8415 = vand.u32 %v7135, 4294901760
        %v8416 = vsub.f32 %v7135, %v8415
        %8417 = vmatmul.mubr.f32.gmra.mrb[0].mxu0 %v8416
        %v8418 = vpop.f32.mrb[0].mxu0
        %v8419 = vadd.f32 %v8309, %v8418
        %v8420 = vpop.f32.mrb[0].mxu0
        %8421 = vdwg.mxu0
        %8422 = vmatprep.subr.mxu0 0.0
        %v8423 = vand.u32 %v7168, 4294901760
        %8424 = vmatpush1.msra.mxu0 %v8423
        %8425 = vmatprep.subr.mxu0 0.0
        %v8426 = vand.u32 %v7169, 4294901760
        %8427 = vmatpush1.msra.mxu0 %v8426
        %8428 = vmatprep.subr.mxu0 0.0
        %v8429 = vand.u32 %v7170, 4294901760
        %8430 = vmatpush1.msra.mxu0 %v8429
        %8431 = vmatprep.subr.mxu0 0.0
        %v8432 = vand.u32 %v7171, 4294901760
        %8433 = vmatpush1.msra.mxu0 %v8432
        %8434 = vmatprep.subr.mxu0 0.0
        %v8435 = vand.u32 %v7172, 4294901760
        %8436 = vmatpush1.msra.mxu0 %v8435
        %8437 = vmatprep.subr.mxu0 0.0
        %v8438 = vand.u32 %v7173, 4294901760
        %8439 = vmatpush1.msra.mxu0 %v8438
        %8440 = vmatprep.subr.mxu0 0.0
        %v8441 = vand.u32 %v7174, 4294901760
        %8442 = vmatpush1.msra.mxu0 %v8441
        %8443 = vmatprep.subr.mxu0 0.0
        %v8444 = vand.u32 %v7175, 4294901760
        %8445 = vmatpush1.msra.mxu0 %v8444
        %8446 = vmatprep.subr.mxu0 0.0
        %v8447 = vand.u32 %v7176, 4294901760
        %8448 = vmatpush1.msra.mxu0 %v8447
        %8449 = vmatprep.subr.mxu0 0.0
        %v8450 = vand.u32 %v7177, 4294901760
        %8451 = vmatpush1.msra.mxu0 %v8450
        %8452 = vmatprep.subr.mxu0 0.0
        %v8453 = vand.u32 %v7178, 4294901760
        %8454 = vmatpush1.msra.mxu0 %v8453
        %8455 = vmatprep.subr.mxu0 0.0
        %v8456 = vand.u32 %v7179, 4294901760
        %8457 = vmatpush1.msra.mxu0 %v8456
        %8458 = vmatprep.subr.mxu0 0.0
        %v8459 = vand.u32 %v7180, 4294901760
        %8460 = vmatpush1.msra.mxu0 %v8459
        %8461 = vmatprep.subr.mxu0 0.0
        %v8462 = vand.u32 %v7181, 4294901760
        %8463 = vmatpush1.msra.mxu0 %v8462
        %8464 = vmatprep.subr.mxu0 0.0
        %v8465 = vand.u32 %v7182, 4294901760
        %8466 = vmatpush1.msra.mxu0 %v8465
        %8467 = vmatprep.subr.mxu0 0.0
        %v8468 = vand.u32 %v7183, 4294901760
        %8469 = vmatpush1.msra.mxu0 %v8468
        %8470 = vmatprep.subr.mxu0 0.0
        %v8471 = vand.u32 %v7184, 4294901760
        %8472 = vmatpush1.msra.mxu0 %v8471
        %8473 = vmatprep.subr.mxu0 0.0
        %v8474 = vand.u32 %v7185, 4294901760
        %8475 = vmatpush1.msra.mxu0 %v8474
        %8476 = vmatprep.subr.mxu0 0.0
        %8477 = vmatpush1.msra.mxu0 0.0
        %8478 = vmatprep.subr.mxu0 0.0
        %8479 = vmatpush1.msra.mxu0 0.0
        %8480 = vmatprep.subr.mxu0 0.0
        %8481 = vmatpush1.msra.mxu0 0.0
        %8482 = vmatprep.subr.mxu0 0.0
        %8483 = vmatpush1.msra.mxu0 0.0
        %8484 = vmatprep.subr.mxu0 0.0
        %8485 = vmatpush1.msra.mxu0 0.0
        %8486 = vmatprep.subr.mxu0 0.0
        %8487 = vmatpush1.msra.mxu0 0.0
        %8488 = vmatprep.subr.mxu0 0.0
        %8489 = vmatpush1.msra.mxu0 0.0
        %8490 = vmatprep.subr.mxu0 0.0
        %8491 = vmatpush1.msra.mxu0 0.0
        %8492 = vmatprep.subr.mxu0 0.0
        %8493 = vmatpush1.msra.mxu0 0.0
        %8494 = vmatprep.subr.mxu0 0.0
        %8495 = vmatpush1.msra.mxu0 0.0
        %8496 = vmatprep.subr.mxu0 0.0
        %8497 = vmatpush1.msra.mxu0 0.0
        %8498 = vmatprep.subr.mxu0 0.0
        %8499 = vmatpush1.msra.mxu0 0.0
        %8500 = vmatprep.subr.mxu0 0.0
        %8501 = vmatpush1.msra.mxu0 0.0
        %8502 = vmatprep.subr.mxu0 0.0
        %8503 = vmatpush1.msra.mxu0 0.0
        %v8504 = vand.u32 %v7188, 4294901760
        %v8505 = vsub.f32 %v7188, %v8504
        %v8506 = vand.u32 %v8505, 4294901760
        %8507 = vmatprep.mubr.f32.mxu0 %v8506
        %v8508 = vand.u32 %v7135, 4294901760
        %v8509 = vsub.f32 %v7135, %v8508
        %v8510 = vand.u32 %v8509, 4294901760
        %8511 = vmatmul.mubr.f32.gmra.mrb[0].mxu0 %v8510
        %v8512 = vpop.f32.mrb[0].mxu0
        %v8513 = vadd.f32 %v8419, %v8512
        %v8514 = vpop.f32.mrb[0].mxu0
        %8515 = vdwg.mxu0
        %8516 = vmatprep.subr.mxu0 0.0
        %v8517 = vand.u32 %v7168, 4294901760
        %v8518 = vsub.f32 %v7168, %v8517
        %v8519 = vand.u32 %v8518, 4294901760
        %8520 = vmatpush1.msra.mxu0 %v8519
        %8521 = vmatprep.subr.mxu0 0.0
        %v8522 = vand.u32 %v7169, 4294901760
        %v8523 = vsub.f32 %v7169, %v8522
        %v8524 = vand.u32 %v8523, 4294901760
        %8525 = vmatpush1.msra.mxu0 %v8524
        %8526 = vmatprep.subr.mxu0 0.0
        %v8527 = vand.u32 %v7170, 4294901760
        %v8528 = vsub.f32 %v7170, %v8527
        %v8529 = vand.u32 %v8528, 4294901760
        %8530 = vmatpush1.msra.mxu0 %v8529
        %8531 = vmatprep.subr.mxu0 0.0
        %v8532 = vand.u32 %v7171, 4294901760
        %v8533 = vsub.f32 %v7171, %v8532
        %v8534 = vand.u32 %v8533, 4294901760
        %8535 = vmatpush1.msra.mxu0 %v8534
        %8536 = vmatprep.subr.mxu0 0.0
        %v8537 = vand.u32 %v7172, 4294901760
        %v8538 = vsub.f32 %v7172, %v8537
        %v8539 = vand.u32 %v8538, 4294901760
        %8540 = vmatpush1.msra.mxu0 %v8539
        %8541 = vmatprep.subr.mxu0 0.0
        %v8542 = vand.u32 %v7173, 4294901760
        %v8543 = vsub.f32 %v7173, %v8542
        %v8544 = vand.u32 %v8543, 4294901760
        %8545 = vmatpush1.msra.mxu0 %v8544
        %8546 = vmatprep.subr.mxu0 0.0
        %v8547 = vand.u32 %v7174, 4294901760
        %v8548 = vsub.f32 %v7174, %v8547
        %v8549 = vand.u32 %v8548, 4294901760
        %8550 = vmatpush1.msra.mxu0 %v8549
        %8551 = vmatprep.subr.mxu0 0.0
        %v8552 = vand.u32 %v7175, 4294901760
        %v8553 = vsub.f32 %v7175, %v8552
        %v8554 = vand.u32 %v8553, 4294901760
        %8555 = vmatpush1.msra.mxu0 %v8554
        %8556 = vmatprep.subr.mxu0 0.0
        %v8557 = vand.u32 %v7176, 4294901760
        %v8558 = vsub.f32 %v7176, %v8557
        %v8559 = vand.u32 %v8558, 4294901760
        %8560 = vmatpush1.msra.mxu0 %v8559
        %8561 = vmatprep.subr.mxu0 0.0
        %v8562 = vand.u32 %v7177, 4294901760
        %v8563 = vsub.f32 %v7177, %v8562
        %v8564 = vand.u32 %v8563, 4294901760
        %8565 = vmatpush1.msra.mxu0 %v8564
        %8566 = vmatprep.subr.mxu0 0.0
        %v8567 = vand.u32 %v7178, 4294901760
        %v8568 = vsub.f32 %v7178, %v8567
        %v8569 = vand.u32 %v8568, 4294901760
        %8570 = vmatpush1.msra.mxu0 %v8569
        %8571 = vmatprep.subr.mxu0 0.0
        %v8572 = vand.u32 %v7179, 4294901760
        %v8573 = vsub.f32 %v7179, %v8572
        %v8574 = vand.u32 %v8573, 4294901760
        %8575 = vmatpush1.msra.mxu0 %v8574
        %8576 = vmatprep.subr.mxu0 0.0
        %v8577 = vand.u32 %v7180, 4294901760
        %v8578 = vsub.f32 %v7180, %v8577
        %v8579 = vand.u32 %v8578, 4294901760
        %8580 = vmatpush1.msra.mxu0 %v8579
        %8581 = vmatprep.subr.mxu0 0.0
        %v8582 = vand.u32 %v7181, 4294901760
        %v8583 = vsub.f32 %v7181, %v8582
        %v8584 = vand.u32 %v8583, 4294901760
        %8585 = vmatpush1.msra.mxu0 %v8584
        %8586 = vmatprep.subr.mxu0 0.0
        %v8587 = vand.u32 %v7182, 4294901760
        %v8588 = vsub.f32 %v7182, %v8587
        %v8589 = vand.u32 %v8588, 4294901760
        %8590 = vmatpush1.msra.mxu0 %v8589
        %8591 = vmatprep.subr.mxu0 0.0
        %v8592 = vand.u32 %v7183, 4294901760
        %v8593 = vsub.f32 %v7183, %v8592
        %v8594 = vand.u32 %v8593, 4294901760
        %8595 = vmatpush1.msra.mxu0 %v8594
        %8596 = vmatprep.subr.mxu0 0.0
        %v8597 = vand.u32 %v7184, 4294901760
        %v8598 = vsub.f32 %v7184, %v8597
        %v8599 = vand.u32 %v8598, 4294901760
        %8600 = vmatpush1.msra.mxu0 %v8599
        %8601 = vmatprep.subr.mxu0 0.0
        %v8602 = vand.u32 %v7185, 4294901760
        %v8603 = vsub.f32 %v7185, %v8602
        %v8604 = vand.u32 %v8603, 4294901760
        %8605 = vmatpush1.msra.mxu0 %v8604
        %8606 = vmatprep.subr.mxu0 0.0
        %8607 = vmatpush1.msra.mxu0 0.0
        %8608 = vmatprep.subr.mxu0 0.0
        %8609 = vmatpush1.msra.mxu0 0.0
        %8610 = vmatprep.subr.mxu0 0.0
        %8611 = vmatpush1.msra.mxu0 0.0
        %8612 = vmatprep.subr.mxu0 0.0
        %8613 = vmatpush1.msra.mxu0 0.0
        %8614 = vmatprep.subr.mxu0 0.0
        %8615 = vmatpush1.msra.mxu0 0.0
        %8616 = vmatprep.subr.mxu0 0.0
        %8617 = vmatpush1.msra.mxu0 0.0
        %8618 = vmatprep.subr.mxu0 0.0
        %8619 = vmatpush1.msra.mxu0 0.0
        %8620 = vmatprep.subr.mxu0 0.0
        %8621 = vmatpush1.msra.mxu0 0.0
        %8622 = vmatprep.subr.mxu0 0.0
        %8623 = vmatpush1.msra.mxu0 0.0
        %8624 = vmatprep.subr.mxu0 0.0
        %8625 = vmatpush1.msra.mxu0 0.0
        %8626 = vmatprep.subr.mxu0 0.0
        %8627 = vmatpush1.msra.mxu0 0.0
        %8628 = vmatprep.subr.mxu0 0.0
        %8629 = vmatpush1.msra.mxu0 0.0
        %8630 = vmatprep.subr.mxu0 0.0
        %8631 = vmatpush1.msra.mxu0 0.0
        %8632 = vmatprep.subr.mxu0 0.0
        %8633 = vmatpush1.msra.mxu0 0.0
        %v8634 = vand.u32 %v7188, 4294901760
        %8635 = vmatprep.mubr.f32.mxu0 %v8634
        %v8636 = vand.u32 %v7135, 4294901760
        %8637 = vmatmul.mubr.f32.gmra.mrb[0].mxu0 %v8636
        %v8638 = vpop.f32.mrb[0].mxu0
        %v8639 = vadd.f32 %v8513, %v8638
        %v8640 = vpop.f32.mrb[0].mxu0
        %8641 = vdwg.mxu0
        %8642 = vmatprep.subr.mxu0 0.0
        %v8643 = vand.u32 %v7168, 4294901760
        %8644 = vmatpush1.msra.mxu0 %v8643
        %8645 = vmatprep.subr.mxu0 0.0
        %v8646 = vand.u32 %v7169, 4294901760
        %8647 = vmatpush1.msra.mxu0 %v8646
        %8648 = vmatprep.subr.mxu0 0.0
        %v8649 = vand.u32 %v7170, 4294901760
        %8650 = vmatpush1.msra.mxu0 %v8649
        %8651 = vmatprep.subr.mxu0 0.0
        %v8652 = vand.u32 %v7171, 4294901760
        %8653 = vmatpush1.msra.mxu0 %v8652
        %8654 = vmatprep.subr.mxu0 0.0
        %v8655 = vand.u32 %v7172, 4294901760
        %8656 = vmatpush1.msra.mxu0 %v8655
        %8657 = vmatprep.subr.mxu0 0.0
        %v8658 = vand.u32 %v7173, 4294901760
        %8659 = vmatpush1.msra.mxu0 %v8658
        %8660 = vmatprep.subr.mxu0 0.0
        %v8661 = vand.u32 %v7174, 4294901760
        %8662 = vmatpush1.msra.mxu0 %v8661
        %8663 = vmatprep.subr.mxu0 0.0
        %v8664 = vand.u32 %v7175, 4294901760
        %8665 = vmatpush1.msra.mxu0 %v8664
        %8666 = vmatprep.subr.mxu0 0.0
        %v8667 = vand.u32 %v7176, 4294901760
        %8668 = vmatpush1.msra.mxu0 %v8667
        %8669 = vmatprep.subr.mxu0 0.0
        %v8670 = vand.u32 %v7177, 4294901760
        %8671 = vmatpush1.msra.mxu0 %v8670
        %8672 = vmatprep.subr.mxu0 0.0
        %v8673 = vand.u32 %v7178, 4294901760
        %8674 = vmatpush1.msra.mxu0 %v8673
        %8675 = vmatprep.subr.mxu0 0.0
        %v8676 = vand.u32 %v7179, 4294901760
        %8677 = vmatpush1.msra.mxu0 %v8676
        %8678 = vmatprep.subr.mxu0 0.0
        %v8679 = vand.u32 %v7180, 4294901760
        %8680 = vmatpush1.msra.mxu0 %v8679
        %8681 = vmatprep.subr.mxu0 0.0
        %v8682 = vand.u32 %v7181, 4294901760
        %8683 = vmatpush1.msra.mxu0 %v8682
        %8684 = vmatprep.subr.mxu0 0.0
        %v8685 = vand.u32 %v7182, 4294901760
        %8686 = vmatpush1.msra.mxu0 %v8685
        %8687 = vmatprep.subr.mxu0 0.0
        %v8688 = vand.u32 %v7183, 4294901760
        %8689 = vmatpush1.msra.mxu0 %v8688
        %8690 = vmatprep.subr.mxu0 0.0
        %v8691 = vand.u32 %v7184, 4294901760
        %8692 = vmatpush1.msra.mxu0 %v8691
        %8693 = vmatprep.subr.mxu0 0.0
        %v8694 = vand.u32 %v7185, 4294901760
        %8695 = vmatpush1.msra.mxu0 %v8694
        %8696 = vmatprep.subr.mxu0 0.0
        %8697 = vmatpush1.msra.mxu0 0.0
        %8698 = vmatprep.subr.mxu0 0.0
        %8699 = vmatpush1.msra.mxu0 0.0
        %8700 = vmatprep.subr.mxu0 0.0
        %8701 = vmatpush1.msra.mxu0 0.0
        %8702 = vmatprep.subr.mxu0 0.0
        %8703 = vmatpush1.msra.mxu0 0.0
        %8704 = vmatprep.subr.mxu0 0.0
        %8705 = vmatpush1.msra.mxu0 0.0
        %8706 = vmatprep.subr.mxu0 0.0
        %8707 = vmatpush1.msra.mxu0 0.0
        %8708 = vmatprep.subr.mxu0 0.0
        %8709 = vmatpush1.msra.mxu0 0.0
        %8710 = vmatprep.subr.mxu0 0.0
        %8711 = vmatpush1.msra.mxu0 0.0
        %8712 = vmatprep.subr.mxu0 0.0
        %8713 = vmatpush1.msra.mxu0 0.0
        %8714 = vmatprep.subr.mxu0 0.0
        %8715 = vmatpush1.msra.mxu0 0.0
        %8716 = vmatprep.subr.mxu0 0.0
        %8717 = vmatpush1.msra.mxu0 0.0
        %8718 = vmatprep.subr.mxu0 0.0
        %8719 = vmatpush1.msra.mxu0 0.0
        %8720 = vmatprep.subr.mxu0 0.0
        %8721 = vmatpush1.msra.mxu0 0.0
        %8722 = vmatprep.subr.mxu0 0.0
        %8723 = vmatpush1.msra.mxu0 0.0
        %v8724 = vand.u32 %v7188, 4294901760
        %8725 = vmatprep.mubr.f32.mxu0 %v8724
        %v8726 = vand.u32 %v7135, 4294901760
        %8727 = vmatmul.mubr.f32.gmra.mrb[0].mxu0 %v8726
        %v8728 = vpop.f32.mrb[0].mxu0
        %v8729 = vadd.f32 %v8639, %v8728
        %v8730 = vpop.f32.mrb[0].mxu0
        %8731 = vdwg.mxu0
        %v8732 = vmax.f32 %v8729, 0.0
        %v8733 = vld [vmem:[%s11] sm:$0xff]
        %v8734 = vld [vmem:[%s11 + $0x8] sm:$0xff]
        %v8735 = vld [vmem:[%s11 + $0x10] sm:$0xff]
        %v8736 = vld [vmem:[%s11 + $0x18] sm:$0xff]
        %v8737 = vld [vmem:[%s11 + $0x20] sm:$0xff]
        %v8738 = vld [vmem:[%s11 + $0x28] sm:$0xff]
        %v8739 = vld [vmem:[%s11 + $0x30] sm:$0xff]
        %v8740 = vld [vmem:[%s11 + $0x38] sm:$0xff]
        %v8741 = vld [vmem:[%s11 + $0x40] sm:$0xff]
        %v8742 = vld [vmem:[%s11 + $0x48] sm:$0xff]
        %v8743 = vld [vmem:[%s11 + $0x50] sm:$0xff]
        %v8744 = vld [vmem:[%s11 + $0x58] sm:$0xff]
        %v8745 = vld [vmem:[%s11 + $0x60] sm:$0xff]
        %v8746 = vld [vmem:[%s11 + $0x68] sm:$0xff]
        %v8747 = vld [vmem:[%s11 + $0x70] sm:$0xff]
        %v8748 = vld [vmem:[%s11 + $0x78] sm:$0xff]
        %v8749 = vld [vmem:[%s12] sm:$0x1]
        %8750 = vmatprep.subr.mxu0 0.0
        %v8751 = vand.u32 %v8733, 4294901760
        %8752 = vmatpush1.msra.mxu0 %v8751
        %8753 = vmatprep.subr.mxu0 0.0
        %v8754 = vand.u32 %v8734, 4294901760
        %8755 = vmatpush1.msra.mxu0 %v8754
        %8756 = vmatprep.subr.mxu0 0.0
        %v8757 = vand.u32 %v8735, 4294901760
        %8758 = vmatpush1.msra.mxu0 %v8757
        %8759 = vmatprep.subr.mxu0 0.0
        %v8760 = vand.u32 %v8736, 4294901760
        %8761 = vmatpush1.msra.mxu0 %v8760
        %8762 = vmatprep.subr.mxu0 0.0
        %v8763 = vand.u32 %v8737, 4294901760
        %8764 = vmatpush1.msra.mxu0 %v8763
        %8765 = vmatprep.subr.mxu0 0.0
        %v8766 = vand.u32 %v8738, 4294901760
        %8767 = vmatpush1.msra.mxu0 %v8766
        %8768 = vmatprep.subr.mxu0 0.0
        %v8769 = vand.u32 %v8739, 4294901760
        %8770 = vmatpush1.msra.mxu0 %v8769
        %8771 = vmatprep.subr.mxu0 0.0
        %v8772 = vand.u32 %v8740, 4294901760
        %8773 = vmatpush1.msra.mxu0 %v8772
        %8774 = vmatprep.subr.mxu0 0.0
        %v8775 = vand.u32 %v8741, 4294901760
        %8776 = vmatpush1.msra.mxu0 %v8775
        %8777 = vmatprep.subr.mxu0 0.0
        %v8778 = vand.u32 %v8742, 4294901760
        %8779 = vmatpush1.msra.mxu0 %v8778
        %8780 = vmatprep.subr.mxu0 0.0
        %v8781 = vand.u32 %v8743, 4294901760
        %8782 = vmatpush1.msra.mxu0 %v8781
        %8783 = vmatprep.subr.mxu0 0.0
        %v8784 = vand.u32 %v8744, 4294901760
        %8785 = vmatpush1.msra.mxu0 %v8784
        %8786 = vmatprep.subr.mxu0 0.0
        %v8787 = vand.u32 %v8745, 4294901760
        %8788 = vmatpush1.msra.mxu0 %v8787
        %8789 = vmatprep.subr.mxu0 0.0
        %v8790 = vand.u32 %v8746, 4294901760
        %8791 = vmatpush1.msra.mxu0 %v8790
        %8792 = vmatprep.subr.mxu0 0.0
        %v8793 = vand.u32 %v8747, 4294901760
        %8794 = vmatpush1.msra.mxu0 %v8793
        %8795 = vmatprep.subr.mxu0 0.0
        %v8796 = vand.u32 %v8748, 4294901760
        %8797 = vmatpush1.msra.mxu0 %v8796
        %8798 = vmatprep.subr.mxu0 0.0
        %8799 = vmatpush1.msra.mxu0 0.0
        %8800 = vmatprep.subr.mxu0 0.0
        %8801 = vmatpush1.msra.mxu0 0.0
        %8802 = vmatprep.subr.mxu0 0.0
        %8803 = vmatpush1.msra.mxu0 0.0
        %8804 = vmatprep.subr.mxu0 0.0
        %8805 = vmatpush1.msra.mxu0 0.0
        %8806 = vmatprep.subr.mxu0 0.0
        %8807 = vmatpush1.msra.mxu0 0.0
        %8808 = vmatprep.subr.mxu0 0.0
        %8809 = vmatpush1.msra.mxu0 0.0
        %8810 = vmatprep.subr.mxu0 0.0
        %8811 = vmatpush1.msra.mxu0 0.0
        %8812 = vmatprep.subr.mxu0 0.0
        %8813 = vmatpush1.msra.mxu0 0.0
        %8814 = vmatprep.subr.mxu0 0.0
        %8815 = vmatpush1.msra.mxu0 0.0
        %8816 = vmatprep.subr.mxu0 0.0
        %8817 = vmatpush1.msra.mxu0 0.0
        %8818 = vmatprep.subr.mxu0 0.0
        %8819 = vmatpush1.msra.mxu0 0.0
        %8820 = vmatprep.subr.mxu0 0.0
        %8821 = vmatpush1.msra.mxu0 0.0
        %8822 = vmatprep.subr.mxu0 0.0
        %8823 = vmatpush1.msra.mxu0 0.0
        %8824 = vmatprep.subr.mxu0 0.0
        %8825 = vmatpush1.msra.mxu0 0.0
        %8826 = vmatprep.subr.mxu0 0.0
        %8827 = vmatpush1.msra.mxu0 0.0
        %8828 = vmatprep.subr.mxu0 0.0
        %8829 = vmatpush1.msra.mxu0 0.0
        %8830 = vmatprep.mubr.f32.mxu0 0.0
        %v8831 = vand.u32 %v8732, 4294901760
        %v8832 = vsub.f32 %v8732, %v8831
        %v8833 = vand.u32 %v8832, 4294901760
        %v8834 = vsub.f32 %v8832, %v8833
        %v8835 = vand.u32 %v8834, 4294901760
        %8836 = vmatmul.mubr.f32.gmra.mrb[0].mxu0 %v8835
        %v8837 = vpop.f32.mrb[0].mxu0
        %v8838 = vadd.f32 %v8749, %v8837
        %v8839 = vpop.f32.mrb[0].mxu0
        %8840 = vdwg.mxu0
        %8841 = vmatprep.subr.mxu0 0.0
        %v8842 = vand.u32 %v8733, 4294901760
        %v8843 = vsub.f32 %v8733, %v8842
        %v8844 = vand.u32 %v8843, 4294901760
        %v8845 = vsub.f32 %v8843, %v8844
        %v8846 = vand.u32 %v8845, 4294901760
        %8847 = vmatpush1.msra.mxu0 %v8846
        %8848 = vmatprep.subr.mxu0 0.0
        %v8849 = vand.u32 %v8734, 4294901760
        %v8850 = vsub.f32 %v8734, %v8849
        %v8851 = vand.u32 %v8850, 4294901760
        %v8852 = vsub.f32 %v8850, %v8851
        %v8853 = vand.u32 %v8852, 4294901760
        %8854 = vmatpush1.msra.mxu0 %v8853
        %8855 = vmatprep.subr.mxu0 0.0
        %v8856 = vand.u32 %v8735, 4294901760
        %v8857 = vsub.f32 %v8735, %v8856
        %v8858 = vand.u32 %v8857, 4294901760
        %v8859 = vsub.f32 %v8857, %v8858
        %v8860 = vand.u32 %v8859, 4294901760
        %8861 = vmatpush1.msra.mxu0 %v8860
        %8862 = vmatprep.subr.mxu0 0.0
        %v8863 = vand.u32 %v8736, 4294901760
        %v8864 = vsub.f32 %v8736, %v8863
        %v8865 = vand.u32 %v8864, 4294901760
        %v8866 = vsub.f32 %v8864, %v8865
        %v8867 = vand.u32 %v8866, 4294901760
        %8868 = vmatpush1.msra.mxu0 %v8867
        %8869 = vmatprep.subr.mxu0 0.0
        %v8870 = vand.u32 %v8737, 4294901760
        %v8871 = vsub.f32 %v8737, %v8870
        %v8872 = vand.u32 %v8871, 4294901760
        %v8873 = vsub.f32 %v8871, %v8872
        %v8874 = vand.u32 %v8873, 4294901760
        %8875 = vmatpush1.msra.mxu0 %v8874
        %8876 = vmatprep.subr.mxu0 0.0
        %v8877 = vand.u32 %v8738, 4294901760
        %v8878 = vsub.f32 %v8738, %v8877
        %v8879 = vand.u32 %v8878, 4294901760
        %v8880 = vsub.f32 %v8878, %v8879
        %v8881 = vand.u32 %v8880, 4294901760
        %8882 = vmatpush1.msra.mxu0 %v8881
        %8883 = vmatprep.subr.mxu0 0.0
        %v8884 = vand.u32 %v8739, 4294901760
        %v8885 = vsub.f32 %v8739, %v8884
        %v8886 = vand.u32 %v8885, 4294901760
        %v8887 = vsub.f32 %v8885, %v8886
        %v8888 = vand.u32 %v8887, 4294901760
        %8889 = vmatpush1.msra.mxu0 %v8888
        %8890 = vmatprep.subr.mxu0 0.0
        %v8891 = vand.u32 %v8740, 4294901760
        %v8892 = vsub.f32 %v8740, %v8891
        %v8893 = vand.u32 %v8892, 4294901760
        %v8894 = vsub.f32 %v8892, %v8893
        %v8895 = vand.u32 %v8894, 4294901760
        %8896 = vmatpush1.msra.mxu0 %v8895
        %8897 = vmatprep.subr.mxu0 0.0
        %v8898 = vand.u32 %v8741, 4294901760
        %v8899 = vsub.f32 %v8741, %v8898
        %v8900 = vand.u32 %v8899, 4294901760
        %v8901 = vsub.f32 %v8899, %v8900
        %v8902 = vand.u32 %v8901, 4294901760
        %8903 = vmatpush1.msra.mxu0 %v8902
        %8904 = vmatprep.subr.mxu0 0.0
        %v8905 = vand.u32 %v8742, 4294901760
        %v8906 = vsub.f32 %v8742, %v8905
        %v8907 = vand.u32 %v8906, 4294901760
        %v8908 = vsub.f32 %v8906, %v8907
        %v8909 = vand.u32 %v8908, 4294901760
        %8910 = vmatpush1.msra.mxu0 %v8909
        %8911 = vmatprep.subr.mxu0 0.0
        %v8912 = vand.u32 %v8743, 4294901760
        %v8913 = vsub.f32 %v8743, %v8912
        %v8914 = vand.u32 %v8913, 4294901760
        %v8915 = vsub.f32 %v8913, %v8914
        %v8916 = vand.u32 %v8915, 4294901760
        %8917 = vmatpush1.msra.mxu0 %v8916
        %8918 = vmatprep.subr.mxu0 0.0
        %v8919 = vand.u32 %v8744, 4294901760
        %v8920 = vsub.f32 %v8744, %v8919
        %v8921 = vand.u32 %v8920, 4294901760
        %v8922 = vsub.f32 %v8920, %v8921
        %v8923 = vand.u32 %v8922, 4294901760
        %8924 = vmatpush1.msra.mxu0 %v8923
        %8925 = vmatprep.subr.mxu0 0.0
        %v8926 = vand.u32 %v8745, 4294901760
        %v8927 = vsub.f32 %v8745, %v8926
        %v8928 = vand.u32 %v8927, 4294901760
        %v8929 = vsub.f32 %v8927, %v8928
        %v8930 = vand.u32 %v8929, 4294901760
        %8931 = vmatpush1.msra.mxu0 %v8930
        %8932 = vmatprep.subr.mxu0 0.0
        %v8933 = vand.u32 %v8746, 4294901760
        %v8934 = vsub.f32 %v8746, %v8933
        %v8935 = vand.u32 %v8934, 4294901760
        %v8936 = vsub.f32 %v8934, %v8935
        %v8937 = vand.u32 %v8936, 4294901760
        %8938 = vmatpush1.msra.mxu0 %v8937
        %8939 = vmatprep.subr.mxu0 0.0
        %v8940 = vand.u32 %v8747, 4294901760
        %v8941 = vsub.f32 %v8747, %v8940
        %v8942 = vand.u32 %v8941, 4294901760
        %v8943 = vsub.f32 %v8941, %v8942
        %v8944 = vand.u32 %v8943, 4294901760
        %8945 = vmatpush1.msra.mxu0 %v8944
        %8946 = vmatprep.subr.mxu0 0.0
        %v8947 = vand.u32 %v8748, 4294901760
        %v8948 = vsub.f32 %v8748, %v8947
        %v8949 = vand.u32 %v8948, 4294901760
        %v8950 = vsub.f32 %v8948, %v8949
        %v8951 = vand.u32 %v8950, 4294901760
        %8952 = vmatpush1.msra.mxu0 %v8951
        %8953 = vmatprep.subr.mxu0 0.0
        %8954 = vmatpush1.msra.mxu0 0.0
        %8955 = vmatprep.subr.mxu0 0.0
        %8956 = vmatpush1.msra.mxu0 0.0
        %8957 = vmatprep.subr.mxu0 0.0
        %8958 = vmatpush1.msra.mxu0 0.0
        %8959 = vmatprep.subr.mxu0 0.0
        %8960 = vmatpush1.msra.mxu0 0.0
        %8961 = vmatprep.subr.mxu0 0.0
        %8962 = vmatpush1.msra.mxu0 0.0
        %8963 = vmatprep.subr.mxu0 0.0
        %8964 = vmatpush1.msra.mxu0 0.0
        %8965 = vmatprep.subr.mxu0 0.0
        %8966 = vmatpush1.msra.mxu0 0.0
        %8967 = vmatprep.subr.mxu0 0.0
        %8968 = vmatpush1.msra.mxu0 0.0
        %8969 = vmatprep.subr.mxu0 0.0
        %8970 = vmatpush1.msra.mxu0 0.0
        %8971 = vmatprep.subr.mxu0 0.0
        %8972 = vmatpush1.msra.mxu0 0.0
        %8973 = vmatprep.subr.mxu0 0.0
        %8974 = vmatpush1.msra.mxu0 0.0
        %8975 = vmatprep.subr.mxu0 0.0
        %8976 = vmatpush1.msra.mxu0 0.0
        %8977 = vmatprep.subr.mxu0 0.0
        %8978 = vmatpush1.msra.mxu0 0.0
        %8979 = vmatprep.subr.mxu0 0.0
        %8980 = vmatpush1.msra.mxu0 0.0
        %8981 = vmatprep.subr.mxu0 0.0
        %8982 = vmatpush1.msra.mxu0 0.0
        %8983 = vmatprep.subr.mxu0 0.0
        %8984 = vmatpush1.msra.mxu0 0.0
        %8985 = vmatprep.mubr.f32.mxu0 0.0
        %v8986 = vand.u32 %v8732, 4294901760
        %8987 = vmatmul.mubr.f32.gmra.mrb[0].mxu0 %v8986
        %v8988 = vpop.f32.mrb[0].mxu0
        %v8989 = vadd.f32 %v8838, %v8988
        %v8990 = vpop.f32.mrb[0].mxu0
        %8991 = vdwg.mxu0
        %8992 = vmatprep.subr.mxu0 0.0
        %v8993 = vand.u32 %v8733, 4294901760
        %v8994 = vsub.f32 %v8733, %v8993
        %8995 = vmatpush1.msra.mxu0 %v8994
        %8996 = vmatprep.subr.mxu0 0.0
        %v8997 = vand.u32 %v8734, 4294901760
        %v8998 = vsub.f32 %v8734, %v8997
        %8999 = vmatpush1.msra.mxu0 %v8998
        %9000 = vmatprep.subr.mxu0 0.0
        %v9001 = vand.u32 %v8735, 4294901760
        %v9002 = vsub.f32 %v8735, %v9001
        %9003 = vmatpush1.msra.mxu0 %v9002
        %9004 = vmatprep.subr.mxu0 0.0
        %v9005 = vand.u32 %v8736, 4294901760
        %v9006 = vsub.f32 %v8736, %v9005
        %9007 = vmatpush1.msra.mxu0 %v9006
        %9008 = vmatprep.subr.mxu0 0.0
        %v9009 = vand.u32 %v8737, 4294901760
        %v9010 = vsub.f32 %v8737, %v9009
        %9011 = vmatpush1.msra.mxu0 %v9010
        %9012 = vmatprep.subr.mxu0 0.0
        %v9013 = vand.u32 %v8738, 4294901760
        %v9014 = vsub.f32 %v8738, %v9013
        %9015 = vmatpush1.msra.mxu0 %v9014
        %9016 = vmatprep.subr.mxu0 0.0
        %v9017 = vand.u32 %v8739, 4294901760
        %v9018 = vsub.f32 %v8739, %v9017
        %9019 = vmatpush1.msra.mxu0 %v9018
        %9020 = vmatprep.subr.mxu0 0.0
        %v9021 = vand.u32 %v8740, 4294901760
        %v9022 = vsub.f32 %v8740, %v9021
        %9023 = vmatpush1.msra.mxu0 %v9022
        %9024 = vmatprep.subr.mxu0 0.0
        %v9025 = vand.u32 %v8741, 4294901760
        %v9026 = vsub.f32 %v8741, %v9025
        %9027 = vmatpush1.msra.mxu0 %v9026
        %9028 = vmatprep.subr.mxu0 0.0
        %v9029 = vand.u32 %v8742, 4294901760
        %v9030 = vsub.f32 %v8742, %v9029
        %9031 = vmatpush1.msra.mxu0 %v9030
        %9032 = vmatprep.subr.mxu0 0.0
        %v9033 = vand.u32 %v8743, 4294901760
        %v9034 = vsub.f32 %v8743, %v9033
        %9035 = vmatpush1.msra.mxu0 %v9034
        %9036 = vmatprep.subr.mxu0 0.0
        %v9037 = vand.u32 %v8744, 4294901760
        %v9038 = vsub.f32 %v8744, %v9037
        %9039 = vmatpush1.msra.mxu0 %v9038
        %9040 = vmatprep.subr.mxu0 0.0
        %v9041 = vand.u32 %v8745, 4294901760
        %v9042 = vsub.f32 %v8745, %v9041
        %9043 = vmatpush1.msra.mxu0 %v9042
        %9044 = vmatprep.subr.mxu0 0.0
        %v9045 = vand.u32 %v8746, 4294901760
        %v9046 = vsub.f32 %v8746, %v9045
        %9047 = vmatpush1.msra.mxu0 %v9046
        %9048 = vmatprep.subr.mxu0 0.0
        %v9049 = vand.u32 %v8747, 4294901760
        %v9050 = vsub.f32 %v8747, %v9049
        %9051 = vmatpush1.msra.mxu0 %v9050
        %9052 = vmatprep.subr.mxu0 0.0
        %v9053 = vand.u32 %v8748, 4294901760
        %v9054 = vsub.f32 %v8748, %v9053
        %9055 = vmatpush1.msra.mxu0 %v9054
        %9056 = vmatprep.subr.mxu0 0.0
        %9057 = vmatpush1.msra.mxu0 0.0
        %9058 = vmatprep.subr.mxu0 0.0
        %9059 = vmatpush1.msra.mxu0 0.0
        %9060 = vmatprep.subr.mxu0 0.0
        %9061 = vmatpush1.msra.mxu0 0.0
        %9062 = vmatprep.subr.mxu0 0.0
        %9063 = vmatpush1.msra.mxu0 0.0
        %9064 = vmatprep.subr.mxu0 0.0
        %9065 = vmatpush1.msra.mxu0 0.0
        %9066 = vmatprep.subr.mxu0 0.0
        %9067 = vmatpush1.msra.mxu0 0.0
        %9068 = vmatprep.subr.mxu0 0.0
        %9069 = vmatpush1.msra.mxu0 0.0
        %9070 = vmatprep.subr.mxu0 0.0
        %9071 = vmatpush1.msra.mxu0 0.0
        %9072 = vmatprep.subr.mxu0 0.0
        %9073 = vmatpush1.msra.mxu0 0.0
        %9074 = vmatprep.subr.mxu0 0.0
        %9075 = vmatpush1.msra.mxu0 0.0
        %9076 = vmatprep.subr.mxu0 0.0
        %9077 = vmatpush1.msra.mxu0 0.0
        %9078 = vmatprep.subr.mxu0 0.0
        %9079 = vmatpush1.msra.mxu0 0.0
        %9080 = vmatprep.subr.mxu0 0.0
        %9081 = vmatpush1.msra.mxu0 0.0
        %9082 = vmatprep.subr.mxu0 0.0
        %9083 = vmatpush1.msra.mxu0 0.0
        %9084 = vmatprep.subr.mxu0 0.0
        %9085 = vmatpush1.msra.mxu0 0.0
        %9086 = vmatprep.subr.mxu0 0.0
        %9087 = vmatpush1.msra.mxu0 0.0
        %9088 = vmatprep.mubr.f32.mxu0 0.0
        %v9089 = vand.u32 %v8732, 4294901760
        %v9090 = vsub.f32 %v8732, %v9089
        %9091 = vmatmul.mubr.f32.gmra.mrb[0].mxu0 %v9090
        %v9092 = vpop.f32.mrb[0].mxu0
        %v9093 = vadd.f32 %v8989, %v9092
        %v9094 = vpop.f32.mrb[0].mxu0
        %9095 = vdwg.mxu0
        %9096 = vmatprep.subr.mxu0 0.0
        %v9097 = vand.u32 %v8733, 4294901760
        %9098 = vmatpush1.msra.mxu0 %v9097
        %9099 = vmatprep.subr.mxu0 0.0
        %v9100 = vand.u32 %v8734, 4294901760
        %9101 = vmatpush1.msra.mxu0 %v9100
        %9102 = vmatprep.subr.mxu0 0.0
        %v9103 = vand.u32 %v8735, 4294901760
        %9104 = vmatpush1.msra.mxu0 %v9103
        %9105 = vmatprep.subr.mxu0 0.0
        %v9106 = vand.u32 %v8736, 4294901760
        %9107 = vmatpush1.msra.mxu0 %v9106
        %9108 = vmatprep.subr.mxu0 0.0
        %v9109 = vand.u32 %v8737, 4294901760
        %9110 = vmatpush1.msra.mxu0 %v9109
        %9111 = vmatprep.subr.mxu0 0.0
        %v9112 = vand.u32 %v8738, 4294901760
        %9113 = vmatpush1.msra.mxu0 %v9112
        %9114 = vmatprep.subr.mxu0 0.0
        %v9115 = vand.u32 %v8739, 4294901760
        %9116 = vmatpush1.msra.mxu0 %v9115
        %9117 = vmatprep.subr.mxu0 0.0
        %v9118 = vand.u32 %v8740, 4294901760
        %9119 = vmatpush1.msra.mxu0 %v9118
        %9120 = vmatprep.subr.mxu0 0.0
        %v9121 = vand.u32 %v8741, 4294901760
        %9122 = vmatpush1.msra.mxu0 %v9121
        %9123 = vmatprep.subr.mxu0 0.0
        %v9124 = vand.u32 %v8742, 4294901760
        %9125 = vmatpush1.msra.mxu0 %v9124
        %9126 = vmatprep.subr.mxu0 0.0
        %v9127 = vand.u32 %v8743, 4294901760
        %9128 = vmatpush1.msra.mxu0 %v9127
        %9129 = vmatprep.subr.mxu0 0.0
        %v9130 = vand.u32 %v8744, 4294901760
        %9131 = vmatpush1.msra.mxu0 %v9130
        %9132 = vmatprep.subr.mxu0 0.0
        %v9133 = vand.u32 %v8745, 4294901760
        %9134 = vmatpush1.msra.mxu0 %v9133
        %9135 = vmatprep.subr.mxu0 0.0
        %v9136 = vand.u32 %v8746, 4294901760
        %9137 = vmatpush1.msra.mxu0 %v9136
        %9138 = vmatprep.subr.mxu0 0.0
        %v9139 = vand.u32 %v8747, 4294901760
        %9140 = vmatpush1.msra.mxu0 %v9139
        %9141 = vmatprep.subr.mxu0 0.0
        %v9142 = vand.u32 %v8748, 4294901760
        %9143 = vmatpush1.msra.mxu0 %v9142
        %9144 = vmatprep.subr.mxu0 0.0
        %9145 = vmatpush1.msra.mxu0 0.0
        %9146 = vmatprep.subr.mxu0 0.0
        %9147 = vmatpush1.msra.mxu0 0.0
        %9148 = vmatprep.subr.mxu0 0.0
        %9149 = vmatpush1.msra.mxu0 0.0
        %9150 = vmatprep.subr.mxu0 0.0
        %9151 = vmatpush1.msra.mxu0 0.0
        %9152 = vmatprep.subr.mxu0 0.0
        %9153 = vmatpush1.msra.mxu0 0.0
        %9154 = vmatprep.subr.mxu0 0.0
        %9155 = vmatpush1.msra.mxu0 0.0
        %9156 = vmatprep.subr.mxu0 0.0
        %9157 = vmatpush1.msra.mxu0 0.0
        %9158 = vmatprep.subr.mxu0 0.0
        %9159 = vmatpush1.msra.mxu0 0.0
        %9160 = vmatprep.subr.mxu0 0.0
        %9161 = vmatpush1.msra.mxu0 0.0
        %9162 = vmatprep.subr.mxu0 0.0
        %9163 = vmatpush1.msra.mxu0 0.0
        %9164 = vmatprep.subr.mxu0 0.0
        %9165 = vmatpush1.msra.mxu0 0.0
        %9166 = vmatprep.subr.mxu0 0.0
        %9167 = vmatpush1.msra.mxu0 0.0
        %9168 = vmatprep.subr.mxu0 0.0
        %9169 = vmatpush1.msra.mxu0 0.0
        %9170 = vmatprep.subr.mxu0 0.0
        %9171 = vmatpush1.msra.mxu0 0.0
        %9172 = vmatprep.subr.mxu0 0.0
        %9173 = vmatpush1.msra.mxu0 0.0
        %9174 = vmatprep.subr.mxu0 0.0
        %9175 = vmatpush1.msra.mxu0 0.0
        %9176 = vmatprep.mubr.f32.mxu0 0.0
        %v9177 = vand.u32 %v8732, 4294901760
        %v9178 = vsub.f32 %v8732, %v9177
        %v9179 = vand.u32 %v9178, 4294901760
        %9180 = vmatmul.mubr.f32.gmra.mrb[0].mxu0 %v9179
        %v9181 = vpop.f32.mrb[0].mxu0
        %v9182 = vadd.f32 %v9093, %v9181
        %v9183 = vpop.f32.mrb[0].mxu0
        %9184 = vdwg.mxu0
        %9185 = vmatprep.subr.mxu0 0.0
        %v9186 = vand.u32 %v8733, 4294901760
        %v9187 = vsub.f32 %v8733, %v9186
        %v9188 = vand.u32 %v9187, 4294901760
        %9189 = vmatpush1.msra.mxu0 %v9188
        %9190 = vmatprep.subr.mxu0 0.0
        %v9191 = vand.u32 %v8734, 4294901760
        %v9192 = vsub.f32 %v8734, %v9191
        %v9193 = vand.u32 %v9192, 4294901760
        %9194 = vmatpush1.msra.mxu0 %v9193
        %9195 = vmatprep.subr.mxu0 0.0
        %v9196 = vand.u32 %v8735, 4294901760
        %v9197 = vsub.f32 %v8735, %v9196
        %v9198 = vand.u32 %v9197, 4294901760
        %9199 = vmatpush1.msra.mxu0 %v9198
        %9200 = vmatprep.subr.mxu0 0.0
        %v9201 = vand.u32 %v8736, 4294901760
        %v9202 = vsub.f32 %v8736, %v9201
        %v9203 = vand.u32 %v9202, 4294901760
        %9204 = vmatpush1.msra.mxu0 %v9203
        %9205 = vmatprep.subr.mxu0 0.0
        %v9206 = vand.u32 %v8737, 4294901760
        %v9207 = vsub.f32 %v8737, %v9206
        %v9208 = vand.u32 %v9207, 4294901760
        %9209 = vmatpush1.msra.mxu0 %v9208
        %9210 = vmatprep.subr.mxu0 0.0
        %v9211 = vand.u32 %v8738, 4294901760
        %v9212 = vsub.f32 %v8738, %v9211
        %v9213 = vand.u32 %v9212, 4294901760
        %9214 = vmatpush1.msra.mxu0 %v9213
        %9215 = vmatprep.subr.mxu0 0.0
        %v9216 = vand.u32 %v8739, 4294901760
        %v9217 = vsub.f32 %v8739, %v9216
        %v9218 = vand.u32 %v9217, 4294901760
        %9219 = vmatpush1.msra.mxu0 %v9218
        %9220 = vmatprep.subr.mxu0 0.0
        %v9221 = vand.u32 %v8740, 4294901760
        %v9222 = vsub.f32 %v8740, %v9221
        %v9223 = vand.u32 %v9222, 4294901760
        %9224 = vmatpush1.msra.mxu0 %v9223
        %9225 = vmatprep.subr.mxu0 0.0
        %v9226 = vand.u32 %v8741, 4294901760
        %v9227 = vsub.f32 %v8741, %v9226
        %v9228 = vand.u32 %v9227, 4294901760
        %9229 = vmatpush1.msra.mxu0 %v9228
        %9230 = vmatprep.subr.mxu0 0.0
        %v9231 = vand.u32 %v8742, 4294901760
        %v9232 = vsub.f32 %v8742, %v9231
        %v9233 = vand.u32 %v9232, 4294901760
        %9234 = vmatpush1.msra.mxu0 %v9233
        %9235 = vmatprep.subr.mxu0 0.0
        %v9236 = vand.u32 %v8743, 4294901760
        %v9237 = vsub.f32 %v8743, %v9236
        %v9238 = vand.u32 %v9237, 4294901760
        %9239 = vmatpush1.msra.mxu0 %v9238
        %9240 = vmatprep.subr.mxu0 0.0
        %v9241 = vand.u32 %v8744, 4294901760
        %v9242 = vsub.f32 %v8744, %v9241
        %v9243 = vand.u32 %v9242, 4294901760
        %9244 = vmatpush1.msra.mxu0 %v9243
        %9245 = vmatprep.subr.mxu0 0.0
        %v9246 = vand.u32 %v8745, 4294901760
        %v9247 = vsub.f32 %v8745, %v9246
        %v9248 = vand.u32 %v9247, 4294901760
        %9249 = vmatpush1.msra.mxu0 %v9248
        %9250 = vmatprep.subr.mxu0 0.0
        %v9251 = vand.u32 %v8746, 4294901760
        %v9252 = vsub.f32 %v8746, %v9251
        %v9253 = vand.u32 %v9252, 4294901760
        %9254 = vmatpush1.msra.mxu0 %v9253
        %9255 = vmatprep.subr.mxu0 0.0
        %v9256 = vand.u32 %v8747, 4294901760
        %v9257 = vsub.f32 %v8747, %v9256
        %v9258 = vand.u32 %v9257, 4294901760
        %9259 = vmatpush1.msra.mxu0 %v9258
        %9260 = vmatprep.subr.mxu0 0.0
        %v9261 = vand.u32 %v8748, 4294901760
        %v9262 = vsub.f32 %v8748, %v9261
        %v9263 = vand.u32 %v9262, 4294901760
        %9264 = vmatpush1.msra.mxu0 %v9263
        %9265 = vmatprep.subr.mxu0 0.0
        %9266 = vmatpush1.msra.mxu0 0.0
        %9267 = vmatprep.subr.mxu0 0.0
        %9268 = vmatpush1.msra.mxu0 0.0
        %9269 = vmatprep.subr.mxu0 0.0
        %9270 = vmatpush1.msra.mxu0 0.0
        %9271 = vmatprep.subr.mxu0 0.0
        %9272 = vmatpush1.msra.mxu0 0.0
        %9273 = vmatprep.subr.mxu0 0.0
        %9274 = vmatpush1.msra.mxu0 0.0
        %9275 = vmatprep.subr.mxu0 0.0
        %9276 = vmatpush1.msra.mxu0 0.0
        %9277 = vmatprep.subr.mxu0 0.0
        %9278 = vmatpush1.msra.mxu0 0.0
        %9279 = vmatprep.subr.mxu0 0.0
        %9280 = vmatpush1.msra.mxu0 0.0
        %9281 = vmatprep.subr.mxu0 0.0
        %9282 = vmatpush1.msra.mxu0 0.0
        %9283 = vmatprep.subr.mxu0 0.0
        %9284 = vmatpush1.msra.mxu0 0.0
        %9285 = vmatprep.subr.mxu0 0.0
        %9286 = vmatpush1.msra.mxu0 0.0
        %9287 = vmatprep.subr.mxu0 0.0
        %9288 = vmatpush1.msra.mxu0 0.0
        %9289 = vmatprep.subr.mxu0 0.0
        %9290 = vmatpush1.msra.mxu0 0.0
        %9291 = vmatprep.subr.mxu0 0.0
        %9292 = vmatpush1.msra.mxu0 0.0
        %9293 = vmatprep.subr.mxu0 0.0
        %9294 = vmatpush1.msra.mxu0 0.0
        %9295 = vmatprep.subr.mxu0 0.0
        %9296 = vmatpush1.msra.mxu0 0.0
        %9297 = vmatprep.mubr.f32.mxu0 0.0
        %v9298 = vand.u32 %v8732, 4294901760
        %9299 = vmatmul.mubr.f32.gmra.mrb[0].mxu0 %v9298
        %v9300 = vpop.f32.mrb[0].mxu0
        %v9301 = vadd.f32 %v9182, %v9300
        %v9302 = vpop.f32.mrb[0].mxu0
        %9303 = vdwg.mxu0
        %9304 = vmatprep.subr.mxu0 0.0
        %v9305 = vand.u32 %v8733, 4294901760
        %9306 = vmatpush1.msra.mxu0 %v9305
        %9307 = vmatprep.subr.mxu0 0.0
        %v9308 = vand.u32 %v8734, 4294901760
        %9309 = vmatpush1.msra.mxu0 %v9308
        %9310 = vmatprep.subr.mxu0 0.0
        %v9311 = vand.u32 %v8735, 4294901760
        %9312 = vmatpush1.msra.mxu0 %v9311
        %9313 = vmatprep.subr.mxu0 0.0
        %v9314 = vand.u32 %v8736, 4294901760
        %9315 = vmatpush1.msra.mxu0 %v9314
        %9316 = vmatprep.subr.mxu0 0.0
        %v9317 = vand.u32 %v8737, 4294901760
        %9318 = vmatpush1.msra.mxu0 %v9317
        %9319 = vmatprep.subr.mxu0 0.0
        %v9320 = vand.u32 %v8738, 4294901760
        %9321 = vmatpush1.msra.mxu0 %v9320
        %9322 = vmatprep.subr.mxu0 0.0
        %v9323 = vand.u32 %v8739, 4294901760
        %9324 = vmatpush1.msra.mxu0 %v9323
        %9325 = vmatprep.subr.mxu0 0.0
        %v9326 = vand.u32 %v8740, 4294901760
        %9327 = vmatpush1.msra.mxu0 %v9326
        %9328 = vmatprep.subr.mxu0 0.0
        %v9329 = vand.u32 %v8741, 4294901760
        %9330 = vmatpush1.msra.mxu0 %v9329
        %9331 = vmatprep.subr.mxu0 0.0
        %v9332 = vand.u32 %v8742, 4294901760
        %9333 = vmatpush1.msra.mxu0 %v9332
        %9334 = vmatprep.subr.mxu0 0.0
        %v9335 = vand.u32 %v8743, 4294901760
        %9336 = vmatpush1.msra.mxu0 %v9335
        %9337 = vmatprep.subr.mxu0 0.0
        %v9338 = vand.u32 %v8744, 4294901760
        %9339 = vmatpush1.msra.mxu0 %v9338
        %9340 = vmatprep.subr.mxu0 0.0
        %v9341 = vand.u32 %v8745, 4294901760
        %9342 = vmatpush1.msra.mxu0 %v9341
        %9343 = vmatprep.subr.mxu0 0.0
        %v9344 = vand.u32 %v8746, 4294901760
        %9345 = vmatpush1.msra.mxu0 %v9344
        %9346 = vmatprep.subr.mxu0 0.0
        %v9347 = vand.u32 %v8747, 4294901760
        %9348 = vmatpush1.msra.mxu0 %v9347
        %9349 = vmatprep.subr.mxu0 0.0
        %v9350 = vand.u32 %v8748, 4294901760
        %9351 = vmatpush1.msra.mxu0 %v9350
        %9352 = vmatprep.subr.mxu0 0.0
        %9353 = vmatpush1.msra.mxu0 0.0
        %9354 = vmatprep.subr.mxu0 0.0
        %9355 = vmatpush1.msra.mxu0 0.0
        %9356 = vmatprep.subr.mxu0 0.0
        %9357 = vmatpush1.msra.mxu0 0.0
        %9358 = vmatprep.subr.mxu0 0.0
        %9359 = vmatpush1.msra.mxu0 0.0
        %9360 = vmatprep.subr.mxu0 0.0
        %9361 = vmatpush1.msra.mxu0 0.0
        %9362 = vmatprep.subr.mxu0 0.0
        %9363 = vmatpush1.msra.mxu0 0.0
        %9364 = vmatprep.subr.mxu0 0.0
        %9365 = vmatpush1.msra.mxu0 0.0
        %9366 = vmatprep.subr.mxu0 0.0
        %9367 = vmatpush1.msra.mxu0 0.0
        %9368 = vmatprep.subr.mxu0 0.0
        %9369 = vmatpush1.msra.mxu0 0.0
        %9370 = vmatprep.subr.mxu0 0.0
        %9371 = vmatpush1.msra.mxu0 0.0
        %9372 = vmatprep.subr.mxu0 0.0
        %9373 = vmatpush1.msra.mxu0 0.0
        %9374 = vmatprep.subr.mxu0 0.0
        %9375 = vmatpush1.msra.mxu0 0.0
        %9376 = vmatprep.subr.mxu0 0.0
        %9377 = vmatpush1.msra.mxu0 0.0
        %9378 = vmatprep.subr.mxu0 0.0
        %9379 = vmatpush1.msra.mxu0 0.0
        %9380 = vmatprep.subr.mxu0 0.0
        %9381 = vmatpush1.msra.mxu0 0.0
        %9382 = vmatprep.subr.mxu0 0.0
        %9383 = vmatpush1.msra.mxu0 0.0
        %9384 = vmatprep.mubr.f32.mxu0 0.0
        %v9385 = vand.u32 %v8732, 4294901760
        %9386 = vmatmul.mubr.f32.gmra.mrb[0].mxu0 %v9385
        %v9387 = vpop.f32.mrb[0].mxu0
        %v9388 = vadd.f32 %v9301, %v9387
        %v9389 = vpop.f32.mrb[0].mxu0
        %9390 = vdwg.mxu0
        %v9391 = vmax.f32 %v9388, 0.0
        %v9392 = vld [vmem:[%s13] sm:$0xff]
        %v9393 = vld [vmem:[%s13 + $0x8] sm:$0xff]
        %v9394 = vld [vmem:[%s13 + $0x10] sm:$0xff]
        %v9395 = vld [vmem:[%s13 + $0x18] sm:$0xff]
        %v9396 = vld [vmem:[%s13 + $0x20] sm:$0xff]
        %v9397 = vld [vmem:[%s13 + $0x28] sm:$0xff]
        %v9398 = vld [vmem:[%s13 + $0x30] sm:$0xff]
        %v9399 = vld [vmem:[%s13 + $0x38] sm:$0xff]
        %v9400 = vld [vmem:[%s13 + $0x40] sm:$0xff]
        %v9401 = vld [vmem:[%s13 + $0x48] sm:$0xff]
        %v9402 = vld [vmem:[%s13 + $0x50] sm:$0xff]
        %v9403 = vld [vmem:[%s13 + $0x58] sm:$0xff]
        %v9404 = vld [vmem:[%s13 + $0x60] sm:$0xff]
        %v9405 = vld [vmem:[%s13 + $0x68] sm:$0xff]
        %v9406 = vld [vmem:[%s13 + $0x70] sm:$0xff]
        %v9407 = vld [vmem:[%s13 + $0x78] sm:$0xff]
        %v9408 = vld [vmem:[%s14] sm:$0x1]
        %9409 = vmatprep.subr.mxu0 0.0
        %v9410 = vand.u32 %v9392, 4294901760
        %9411 = vmatpush1.msra.mxu0 %v9410
        %9412 = vmatprep.subr.mxu0 0.0
        %v9413 = vand.u32 %v9393, 4294901760
        %9414 = vmatpush1.msra.mxu0 %v9413
        %9415 = vmatprep.subr.mxu0 0.0
        %v9416 = vand.u32 %v9394, 4294901760
        %9417 = vmatpush1.msra.mxu0 %v9416
        %9418 = vmatprep.subr.mxu0 0.0
        %v9419 = vand.u32 %v9395, 4294901760
        %9420 = vmatpush1.msra.mxu0 %v9419
        %9421 = vmatprep.subr.mxu0 0.0
        %v9422 = vand.u32 %v9396, 4294901760
        %9423 = vmatpush1.msra.mxu0 %v9422
        %9424 = vmatprep.subr.mxu0 0.0
        %v9425 = vand.u32 %v9397, 4294901760
        %9426 = vmatpush1.msra.mxu0 %v9425
        %9427 = vmatprep.subr.mxu0 0.0
        %v9428 = vand.u32 %v9398, 4294901760
        %9429 = vmatpush1.msra.mxu0 %v9428
        %9430 = vmatprep.subr.mxu0 0.0
        %v9431 = vand.u32 %v9399, 4294901760
        %9432 = vmatpush1.msra.mxu0 %v9431
        %9433 = vmatprep.subr.mxu0 0.0
        %v9434 = vand.u32 %v9400, 4294901760
        %9435 = vmatpush1.msra.mxu0 %v9434
        %9436 = vmatprep.subr.mxu0 0.0
        %v9437 = vand.u32 %v9401, 4294901760
        %9438 = vmatpush1.msra.mxu0 %v9437
        %9439 = vmatprep.subr.mxu0 0.0
        %v9440 = vand.u32 %v9402, 4294901760
        %9441 = vmatpush1.msra.mxu0 %v9440
        %9442 = vmatprep.subr.mxu0 0.0
        %v9443 = vand.u32 %v9403, 4294901760
        %9444 = vmatpush1.msra.mxu0 %v9443
        %9445 = vmatprep.subr.mxu0 0.0
        %v9446 = vand.u32 %v9404, 4294901760
        %9447 = vmatpush1.msra.mxu0 %v9446
        %9448 = vmatprep.subr.mxu0 0.0
        %v9449 = vand.u32 %v9405, 4294901760
        %9450 = vmatpush1.msra.mxu0 %v9449
        %9451 = vmatprep.subr.mxu0 0.0
        %v9452 = vand.u32 %v9406, 4294901760
        %9453 = vmatpush1.msra.mxu0 %v9452
        %9454 = vmatprep.subr.mxu0 0.0
        %v9455 = vand.u32 %v9407, 4294901760
        %9456 = vmatpush1.msra.mxu0 %v9455
        %9457 = vmatprep.subr.mxu0 0.0
        %9458 = vmatpush1.msra.mxu0 0.0
        %9459 = vmatprep.subr.mxu0 0.0
        %9460 = vmatpush1.msra.mxu0 0.0
        %9461 = vmatprep.subr.mxu0 0.0
        %9462 = vmatpush1.msra.mxu0 0.0
        %9463 = vmatprep.subr.mxu0 0.0
        %9464 = vmatpush1.msra.mxu0 0.0
        %9465 = vmatprep.subr.mxu0 0.0
        %9466 = vmatpush1.msra.mxu0 0.0
        %9467 = vmatprep.subr.mxu0 0.0
        %9468 = vmatpush1.msra.mxu0 0.0
        %9469 = vmatprep.subr.mxu0 0.0
        %9470 = vmatpush1.msra.mxu0 0.0
        %9471 = vmatprep.subr.mxu0 0.0
        %9472 = vmatpush1.msra.mxu0 0.0
        %9473 = vmatprep.subr.mxu0 0.0
        %9474 = vmatpush1.msra.mxu0 0.0
        %9475 = vmatprep.subr.mxu0 0.0
        %9476 = vmatpush1.msra.mxu0 0.0
        %9477 = vmatprep.subr.mxu0 0.0
        %9478 = vmatpush1.msra.mxu0 0.0
        %9479 = vmatprep.subr.mxu0 0.0
        %9480 = vmatpush1.msra.mxu0 0.0
        %9481 = vmatprep.subr.mxu0 0.0
        %9482 = vmatpush1.msra.mxu0 0.0
        %9483 = vmatprep.subr.mxu0 0.0
        %9484 = vmatpush1.msra.mxu0 0.0
        %9485 = vmatprep.subr.mxu0 0.0
        %9486 = vmatpush1.msra.mxu0 0.0
        %9487 = vmatprep.subr.mxu0 0.0
        %9488 = vmatpush1.msra.mxu0 0.0
        %9489 = vmatprep.mubr.f32.mxu0 0.0
        %v9490 = vand.u32 %v9391, 4294901760
        %v9491 = vsub.f32 %v9391, %v9490
        %v9492 = vand.u32 %v9491, 4294901760
        %v9493 = vsub.f32 %v9491, %v9492
        %v9494 = vand.u32 %v9493, 4294901760
        %9495 = vmatmul.mubr.f32.gmra.mrb[0].mxu0 %v9494
        %v9496 = vpop.f32.mrb[0].mxu0
        %v9497 = vadd.f32 %v9408, %v9496
        %v9498 = vpop.f32.mrb[0].mxu0
        %9499 = vdwg.mxu0
        %9500 = vmatprep.subr.mxu0 0.0
        %v9501 = vand.u32 %v9392, 4294901760
        %v9502 = vsub.f32 %v9392, %v9501
        %v9503 = vand.u32 %v9502, 4294901760
        %v9504 = vsub.f32 %v9502, %v9503
        %v9505 = vand.u32 %v9504, 4294901760
        %9506 = vmatpush1.msra.mxu0 %v9505
        %9507 = vmatprep.subr.mxu0 0.0
        %v9508 = vand.u32 %v9393, 4294901760
        %v9509 = vsub.f32 %v9393, %v9508
        %v9510 = vand.u32 %v9509, 4294901760
        %v9511 = vsub.f32 %v9509, %v9510
        %v9512 = vand.u32 %v9511, 4294901760
        %9513 = vmatpush1.msra.mxu0 %v9512
        %9514 = vmatprep.subr.mxu0 0.0
        %v9515 = vand.u32 %v9394, 4294901760
        %v9516 = vsub.f32 %v9394, %v9515
        %v9517 = vand.u32 %v9516, 4294901760
        %v9518 = vsub.f32 %v9516, %v9517
        %v9519 = vand.u32 %v9518, 4294901760
        %9520 = vmatpush1.msra.mxu0 %v9519
        %9521 = vmatprep.subr.mxu0 0.0
        %v9522 = vand.u32 %v9395, 4294901760
        %v9523 = vsub.f32 %v9395, %v9522
        %v9524 = vand.u32 %v9523, 4294901760
        %v9525 = vsub.f32 %v9523, %v9524
        %v9526 = vand.u32 %v9525, 4294901760
        %9527 = vmatpush1.msra.mxu0 %v9526
        %9528 = vmatprep.subr.mxu0 0.0
        %v9529 = vand.u32 %v9396, 4294901760
        %v9530 = vsub.f32 %v9396, %v9529
        %v9531 = vand.u32 %v9530, 4294901760
        %v9532 = vsub.f32 %v9530, %v9531
        %v9533 = vand.u32 %v9532, 4294901760
        %9534 = vmatpush1.msra.mxu0 %v9533
        %9535 = vmatprep.subr.mxu0 0.0
        %v9536 = vand.u32 %v9397, 4294901760
        %v9537 = vsub.f32 %v9397, %v9536
        %v9538 = vand.u32 %v9537, 4294901760
        %v9539 = vsub.f32 %v9537, %v9538
        %v9540 = vand.u32 %v9539, 4294901760
        %9541 = vmatpush1.msra.mxu0 %v9540
        %9542 = vmatprep.subr.mxu0 0.0
        %v9543 = vand.u32 %v9398, 4294901760
        %v9544 = vsub.f32 %v9398, %v9543
        %v9545 = vand.u32 %v9544, 4294901760
        %v9546 = vsub.f32 %v9544, %v9545
        %v9547 = vand.u32 %v9546, 4294901760
        %9548 = vmatpush1.msra.mxu0 %v9547
        %9549 = vmatprep.subr.mxu0 0.0
        %v9550 = vand.u32 %v9399, 4294901760
        %v9551 = vsub.f32 %v9399, %v9550
        %v9552 = vand.u32 %v9551, 4294901760
        %v9553 = vsub.f32 %v9551, %v9552
        %v9554 = vand.u32 %v9553, 4294901760
        %9555 = vmatpush1.msra.mxu0 %v9554
        %9556 = vmatprep.subr.mxu0 0.0
        %v9557 = vand.u32 %v9400, 4294901760
        %v9558 = vsub.f32 %v9400, %v9557
        %v9559 = vand.u32 %v9558, 4294901760
        %v9560 = vsub.f32 %v9558, %v9559
        %v9561 = vand.u32 %v9560, 4294901760
        %9562 = vmatpush1.msra.mxu0 %v9561
        %9563 = vmatprep.subr.mxu0 0.0
        %v9564 = vand.u32 %v9401, 4294901760
        %v9565 = vsub.f32 %v9401, %v9564
        %v9566 = vand.u32 %v9565, 4294901760
        %v9567 = vsub.f32 %v9565, %v9566
        %v9568 = vand.u32 %v9567, 4294901760
        %9569 = vmatpush1.msra.mxu0 %v9568
        %9570 = vmatprep.subr.mxu0 0.0
        %v9571 = vand.u32 %v9402, 4294901760
        %v9572 = vsub.f32 %v9402, %v9571
        %v9573 = vand.u32 %v9572, 4294901760
        %v9574 = vsub.f32 %v9572, %v9573
        %v9575 = vand.u32 %v9574, 4294901760
        %9576 = vmatpush1.msra.mxu0 %v9575
        %9577 = vmatprep.subr.mxu0 0.0
        %v9578 = vand.u32 %v9403, 4294901760
        %v9579 = vsub.f32 %v9403, %v9578
        %v9580 = vand.u32 %v9579, 4294901760
        %v9581 = vsub.f32 %v9579, %v9580
        %v9582 = vand.u32 %v9581, 4294901760
        %9583 = vmatpush1.msra.mxu0 %v9582
        %9584 = vmatprep.subr.mxu0 0.0
        %v9585 = vand.u32 %v9404, 4294901760
        %v9586 = vsub.f32 %v9404, %v9585
        %v9587 = vand.u32 %v9586, 4294901760
        %v9588 = vsub.f32 %v9586, %v9587
        %v9589 = vand.u32 %v9588, 4294901760
        %9590 = vmatpush1.msra.mxu0 %v9589
        %9591 = vmatprep.subr.mxu0 0.0
        %v9592 = vand.u32 %v9405, 4294901760
        %v9593 = vsub.f32 %v9405, %v9592
        %v9594 = vand.u32 %v9593, 4294901760
        %v9595 = vsub.f32 %v9593, %v9594
        %v9596 = vand.u32 %v9595, 4294901760
        %9597 = vmatpush1.msra.mxu0 %v9596
        %9598 = vmatprep.subr.mxu0 0.0
        %v9599 = vand.u32 %v9406, 4294901760
        %v9600 = vsub.f32 %v9406, %v9599
        %v9601 = vand.u32 %v9600, 4294901760
        %v9602 = vsub.f32 %v9600, %v9601
        %v9603 = vand.u32 %v9602, 4294901760
        %9604 = vmatpush1.msra.mxu0 %v9603
        %9605 = vmatprep.subr.mxu0 0.0
        %v9606 = vand.u32 %v9407, 4294901760
        %v9607 = vsub.f32 %v9407, %v9606
        %v9608 = vand.u32 %v9607, 4294901760
        %v9609 = vsub.f32 %v9607, %v9608
        %v9610 = vand.u32 %v9609, 4294901760
        %9611 = vmatpush1.msra.mxu0 %v9610
        %9612 = vmatprep.subr.mxu0 0.0
        %9613 = vmatpush1.msra.mxu0 0.0
        %9614 = vmatprep.subr.mxu0 0.0
        %9615 = vmatpush1.msra.mxu0 0.0
        %9616 = vmatprep.subr.mxu0 0.0
        %9617 = vmatpush1.msra.mxu0 0.0
        %9618 = vmatprep.subr.mxu0 0.0
        %9619 = vmatpush1.msra.mxu0 0.0
        %9620 = vmatprep.subr.mxu0 0.0
        %9621 = vmatpush1.msra.mxu0 0.0
        %9622 = vmatprep.subr.mxu0 0.0
        %9623 = vmatpush1.msra.mxu0 0.0
        %9624 = vmatprep.subr.mxu0 0.0
        %9625 = vmatpush1.msra.mxu0 0.0
        %9626 = vmatprep.subr.mxu0 0.0
        %9627 = vmatpush1.msra.mxu0 0.0
        %9628 = vmatprep.subr.mxu0 0.0
        %9629 = vmatpush1.msra.mxu0 0.0
        %9630 = vmatprep.subr.mxu0 0.0
        %9631 = vmatpush1.msra.mxu0 0.0
        %9632 = vmatprep.subr.mxu0 0.0
        %9633 = vmatpush1.msra.mxu0 0.0
        %9634 = vmatprep.subr.mxu0 0.0
        %9635 = vmatpush1.msra.mxu0 0.0
        %9636 = vmatprep.subr.mxu0 0.0
        %9637 = vmatpush1.msra.mxu0 0.0
        %9638 = vmatprep.subr.mxu0 0.0
        %9639 = vmatpush1.msra.mxu0 0.0
        %9640 = vmatprep.subr.mxu0 0.0
        %9641 = vmatpush1.msra.mxu0 0.0
        %9642 = vmatprep.subr.mxu0 0.0
        %9643 = vmatpush1.msra.mxu0 0.0
        %9644 = vmatprep.mubr.f32.mxu0 0.0
        %v9645 = vand.u32 %v9391, 4294901760
        %9646 = vmatmul.mubr.f32.gmra.mrb[0].mxu0 %v9645
        %v9647 = vpop.f32.mrb[0].mxu0
        %v9648 = vadd.f32 %v9497, %v9647
        %v9649 = vpop.f32.mrb[0].mxu0
        %9650 = vdwg.mxu0
        %9651 = vmatprep.subr.mxu0 0.0
        %v9652 = vand.u32 %v9392, 4294901760
        %v9653 = vsub.f32 %v9392, %v9652
        %9654 = vmatpush1.msra.mxu0 %v9653
        %9655 = vmatprep.subr.mxu0 0.0
        %v9656 = vand.u32 %v9393, 4294901760
        %v9657 = vsub.f32 %v9393, %v9656
        %9658 = vmatpush1.msra.mxu0 %v9657
        %9659 = vmatprep.subr.mxu0 0.0
        %v9660 = vand.u32 %v9394, 4294901760
        %v9661 = vsub.f32 %v9394, %v9660
        %9662 = vmatpush1.msra.mxu0 %v9661
        %9663 = vmatprep.subr.mxu0 0.0
        %v9664 = vand.u32 %v9395, 4294901760
        %v9665 = vsub.f32 %v9395, %v9664
        %9666 = vmatpush1.msra.mxu0 %v9665
        %9667 = vmatprep.subr.mxu0 0.0
        %v9668 = vand.u32 %v9396, 4294901760
        %v9669 = vsub.f32 %v9396, %v9668
        %9670 = vmatpush1.msra.mxu0 %v9669
        %9671 = vmatprep.subr.mxu0 0.0
        %v9672 = vand.u32 %v9397, 4294901760
        %v9673 = vsub.f32 %v9397, %v9672
        %9674 = vmatpush1.msra.mxu0 %v9673
        %9675 = vmatprep.subr.mxu0 0.0
        %v9676 = vand.u32 %v9398, 4294901760
        %v9677 = vsub.f32 %v9398, %v9676
        %9678 = vmatpush1.msra.mxu0 %v9677
        %9679 = vmatprep.subr.mxu0 0.0
        %v9680 = vand.u32 %v9399, 4294901760
        %v9681 = vsub.f32 %v9399, %v9680
        %9682 = vmatpush1.msra.mxu0 %v9681
        %9683 = vmatprep.subr.mxu0 0.0
        %v9684 = vand.u32 %v9400, 4294901760
        %v9685 = vsub.f32 %v9400, %v9684
        %9686 = vmatpush1.msra.mxu0 %v9685
        %9687 = vmatprep.subr.mxu0 0.0
        %v9688 = vand.u32 %v9401, 4294901760
        %v9689 = vsub.f32 %v9401, %v9688
        %9690 = vmatpush1.msra.mxu0 %v9689
        %9691 = vmatprep.subr.mxu0 0.0
        %v9692 = vand.u32 %v9402, 4294901760
        %v9693 = vsub.f32 %v9402, %v9692
        %9694 = vmatpush1.msra.mxu0 %v9693
        %9695 = vmatprep.subr.mxu0 0.0
        %v9696 = vand.u32 %v9403, 4294901760
        %v9697 = vsub.f32 %v9403, %v9696
        %9698 = vmatpush1.msra.mxu0 %v9697
        %9699 = vmatprep.subr.mxu0 0.0
        %v9700 = vand.u32 %v9404, 4294901760
        %v9701 = vsub.f32 %v9404, %v9700
        %9702 = vmatpush1.msra.mxu0 %v9701
        %9703 = vmatprep.subr.mxu0 0.0
        %v9704 = vand.u32 %v9405, 4294901760
        %v9705 = vsub.f32 %v9405, %v9704
        %9706 = vmatpush1.msra.mxu0 %v9705
        %9707 = vmatprep.subr.mxu0 0.0
        %v9708 = vand.u32 %v9406, 4294901760
        %v9709 = vsub.f32 %v9406, %v9708
        %9710 = vmatpush1.msra.mxu0 %v9709
        %9711 = vmatprep.subr.mxu0 0.0
        %v9712 = vand.u32 %v9407, 4294901760
        %v9713 = vsub.f32 %v9407, %v9712
        %9714 = vmatpush1.msra.mxu0 %v9713
        %9715 = vmatprep.subr.mxu0 0.0
        %9716 = vmatpush1.msra.mxu0 0.0
        %9717 = vmatprep.subr.mxu0 0.0
        %9718 = vmatpush1.msra.mxu0 0.0
        %9719 = vmatprep.subr.mxu0 0.0
        %9720 = vmatpush1.msra.mxu0 0.0
        %9721 = vmatprep.subr.mxu0 0.0
        %9722 = vmatpush1.msra.mxu0 0.0
        %9723 = vmatprep.subr.mxu0 0.0
        %9724 = vmatpush1.msra.mxu0 0.0
        %9725 = vmatprep.subr.mxu0 0.0
        %9726 = vmatpush1.msra.mxu0 0.0
        %9727 = vmatprep.subr.mxu0 0.0
        %9728 = vmatpush1.msra.mxu0 0.0
        %9729 = vmatprep.subr.mxu0 0.0
        %9730 = vmatpush1.msra.mxu0 0.0
        %9731 = vmatprep.subr.mxu0 0.0
        %9732 = vmatpush1.msra.mxu0 0.0
        %9733 = vmatprep.subr.mxu0 0.0
        %9734 = vmatpush1.msra.mxu0 0.0
        %9735 = vmatprep.subr.mxu0 0.0
        %9736 = vmatpush1.msra.mxu0 0.0
        %9737 = vmatprep.subr.mxu0 0.0
        %9738 = vmatpush1.msra.mxu0 0.0
        %9739 = vmatprep.subr.mxu0 0.0
        %9740 = vmatpush1.msra.mxu0 0.0
        %9741 = vmatprep.subr.mxu0 0.0
        %9742 = vmatpush1.msra.mxu0 0.0
        %9743 = vmatprep.subr.mxu0 0.0
        %9744 = vmatpush1.msra.mxu0 0.0
        %9745 = vmatprep.subr.mxu0 0.0
        %9746 = vmatpush1.msra.mxu0 0.0
        %9747 = vmatprep.mubr.f32.mxu0 0.0
        %v9748 = vand.u32 %v9391, 4294901760
        %v9749 = vsub.f32 %v9391, %v9748
        %9750 = vmatmul.mubr.f32.gmra.mrb[0].mxu0 %v9749
        %v9751 = vpop.f32.mrb[0].mxu0
        %v9752 = vadd.f32 %v9648, %v9751
        %v9753 = vpop.f32.mrb[0].mxu0
        %9754 = vdwg.mxu0
        %9755 = vmatprep.subr.mxu0 0.0
        %v9756 = vand.u32 %v9392, 4294901760
        %9757 = vmatpush1.msra.mxu0 %v9756
        %9758 = vmatprep.subr.mxu0 0.0
        %v9759 = vand.u32 %v9393, 4294901760
        %9760 = vmatpush1.msra.mxu0 %v9759
        %9761 = vmatprep.subr.mxu0 0.0
        %v9762 = vand.u32 %v9394, 4294901760
        %9763 = vmatpush1.msra.mxu0 %v9762
        %9764 = vmatprep.subr.mxu0 0.0
        %v9765 = vand.u32 %v9395, 4294901760
        %9766 = vmatpush1.msra.mxu0 %v9765
        %9767 = vmatprep.subr.mxu0 0.0
        %v9768 = vand.u32 %v9396, 4294901760
        %9769 = vmatpush1.msra.mxu0 %v9768
        %9770 = vmatprep.subr.mxu0 0.0
        %v9771 = vand.u32 %v9397, 4294901760
        %9772 = vmatpush1.msra.mxu0 %v9771
        %9773 = vmatprep.subr.mxu0 0.0
        %v9774 = vand.u32 %v9398, 4294901760
        %9775 = vmatpush1.msra.mxu0 %v9774
        %9776 = vmatprep.subr.mxu0 0.0
        %v9777 = vand.u32 %v9399, 4294901760
        %9778 = vmatpush1.msra.mxu0 %v9777
        %9779 = vmatprep.subr.mxu0 0.0
        %v9780 = vand.u32 %v9400, 4294901760
        %9781 = vmatpush1.msra.mxu0 %v9780
        %9782 = vmatprep.subr.mxu0 0.0
        %v9783 = vand.u32 %v9401, 4294901760
        %9784 = vmatpush1.msra.mxu0 %v9783
        %9785 = vmatprep.subr.mxu0 0.0
        %v9786 = vand.u32 %v9402, 4294901760
        %9787 = vmatpush1.msra.mxu0 %v9786
        %9788 = vmatprep.subr.mxu0 0.0
        %v9789 = vand.u32 %v9403, 4294901760
        %9790 = vmatpush1.msra.mxu0 %v9789
        %9791 = vmatprep.subr.mxu0 0.0
        %v9792 = vand.u32 %v9404, 4294901760
        %9793 = vmatpush1.msra.mxu0 %v9792
        %9794 = vmatprep.subr.mxu0 0.0
        %v9795 = vand.u32 %v9405, 4294901760
        %9796 = vmatpush1.msra.mxu0 %v9795
        %9797 = vmatprep.subr.mxu0 0.0
        %v9798 = vand.u32 %v9406, 4294901760
        %9799 = vmatpush1.msra.mxu0 %v9798
        %9800 = vmatprep.subr.mxu0 0.0
        %v9801 = vand.u32 %v9407, 4294901760
        %9802 = vmatpush1.msra.mxu0 %v9801
        %9803 = vmatprep.subr.mxu0 0.0
        %9804 = vmatpush1.msra.mxu0 0.0
        %9805 = vmatprep.subr.mxu0 0.0
        %9806 = vmatpush1.msra.mxu0 0.0
        %9807 = vmatprep.subr.mxu0 0.0
        %9808 = vmatpush1.msra.mxu0 0.0
        %9809 = vmatprep.subr.mxu0 0.0
        %9810 = vmatpush1.msra.mxu0 0.0
        %9811 = vmatprep.subr.mxu0 0.0
        %9812 = vmatpush1.msra.mxu0 0.0
        %9813 = vmatprep.subr.mxu0 0.0
        %9814 = vmatpush1.msra.mxu0 0.0
        %9815 = vmatprep.subr.mxu0 0.0
        %9816 = vmatpush1.msra.mxu0 0.0
        %9817 = vmatprep.subr.mxu0 0.0
        %9818 = vmatpush1.msra.mxu0 0.0
        %9819 = vmatprep.subr.mxu0 0.0
        %9820 = vmatpush1.msra.mxu0 0.0
        %9821 = vmatprep.subr.mxu0 0.0
        %9822 = vmatpush1.msra.mxu0 0.0
        %9823 = vmatprep.subr.mxu0 0.0
        %9824 = vmatpush1.msra.mxu0 0.0
        %9825 = vmatprep.subr.mxu0 0.0
        %9826 = vmatpush1.msra.mxu0 0.0
        %9827 = vmatprep.subr.mxu0 0.0
        %9828 = vmatpush1.msra.mxu0 0.0
        %9829 = vmatprep.subr.mxu0 0.0
        %9830 = vmatpush1.msra.mxu0 0.0
        %9831 = vmatprep.subr.mxu0 0.0
        %9832 = vmatpush1.msra.mxu0 0.0
        %9833 = vmatprep.subr.mxu0 0.0
        %9834 = vmatpush1.msra.mxu0 0.0
        %9835 = vmatprep.mubr.f32.mxu0 0.0
        %v9836 = vand.u32 %v9391, 4294901760
        %v9837 = vsub.f32 %v9391, %v9836
        %v9838 = vand.u32 %v9837, 4294901760
        %9839 = vmatmul.mubr.f32.gmra.mrb[0].mxu0 %v9838
        %v9840 = vpop.f32.mrb[0].mxu0
        %v9841 = vadd.f32 %v9752, %v9840
        %v9842 = vpop.f32.mrb[0].mxu0
        %9843 = vdwg.mxu0
        %9844 = vmatprep.subr.mxu0 0.0
        %v9845 = vand.u32 %v9392, 4294901760
        %v9846 = vsub.f32 %v9392, %v9845
        %v9847 = vand.u32 %v9846, 4294901760
        %9848 = vmatpush1.msra.mxu0 %v9847
        %9849 = vmatprep.subr.mxu0 0.0
        %v9850 = vand.u32 %v9393, 4294901760
        %v9851 = vsub.f32 %v9393, %v9850
        %v9852 = vand.u32 %v9851, 4294901760
        %9853 = vmatpush1.msra.mxu0 %v9852
        %9854 = vmatprep.subr.mxu0 0.0
        %v9855 = vand.u32 %v9394, 4294901760
        %v9856 = vsub.f32 %v9394, %v9855
        %v9857 = vand.u32 %v9856, 4294901760
        %9858 = vmatpush1.msra.mxu0 %v9857
        %9859 = vmatprep.subr.mxu0 0.0
        %v9860 = vand.u32 %v9395, 4294901760
        %v9861 = vsub.f32 %v9395, %v9860
        %v9862 = vand.u32 %v9861, 4294901760
        %9863 = vmatpush1.msra.mxu0 %v9862
        %9864 = vmatprep.subr.mxu0 0.0
        %v9865 = vand.u32 %v9396, 4294901760
        %v9866 = vsub.f32 %v9396, %v9865
        %v9867 = vand.u32 %v9866, 4294901760
        %9868 = vmatpush1.msra.mxu0 %v9867
        %9869 = vmatprep.subr.mxu0 0.0
        %v9870 = vand.u32 %v9397, 4294901760
        %v9871 = vsub.f32 %v9397, %v9870
        %v9872 = vand.u32 %v9871, 4294901760
        %9873 = vmatpush1.msra.mxu0 %v9872
        %9874 = vmatprep.subr.mxu0 0.0
        %v9875 = vand.u32 %v9398, 4294901760
        %v9876 = vsub.f32 %v9398, %v9875
        %v9877 = vand.u32 %v9876, 4294901760
        %9878 = vmatpush1.msra.mxu0 %v9877
        %9879 = vmatprep.subr.mxu0 0.0
        %v9880 = vand.u32 %v9399, 4294901760
        %v9881 = vsub.f32 %v9399, %v9880
        %v9882 = vand.u32 %v9881, 4294901760
        %9883 = vmatpush1.msra.mxu0 %v9882
        %9884 = vmatprep.subr.mxu0 0.0
        %v9885 = vand.u32 %v9400, 4294901760
        %v9886 = vsub.f32 %v9400, %v9885
        %v9887 = vand.u32 %v9886, 4294901760
        %9888 = vmatpush1.msra.mxu0 %v9887
        %9889 = vmatprep.subr.mxu0 0.0
        %v9890 = vand.u32 %v9401, 4294901760
        %v9891 = vsub.f32 %v9401, %v9890
        %v9892 = vand.u32 %v9891, 4294901760
        %9893 = vmatpush1.msra.mxu0 %v9892
        %9894 = vmatprep.subr.mxu0 0.0
        %v9895 = vand.u32 %v9402, 4294901760
        %v9896 = vsub.f32 %v9402, %v9895
        %v9897 = vand.u32 %v9896, 4294901760
        %9898 = vmatpush1.msra.mxu0 %v9897
        %9899 = vmatprep.subr.mxu0 0.0
        %v9900 = vand.u32 %v9403, 4294901760
        %v9901 = vsub.f32 %v9403, %v9900
        %v9902 = vand.u32 %v9901, 4294901760
        %9903 = vmatpush1.msra.mxu0 %v9902
        %9904 = vmatprep.subr.mxu0 0.0
        %v9905 = vand.u32 %v9404, 4294901760
        %v9906 = vsub.f32 %v9404, %v9905
        %v9907 = vand.u32 %v9906, 4294901760
        %9908 = vmatpush1.msra.mxu0 %v9907
        %9909 = vmatprep.subr.mxu0 0.0
        %v9910 = vand.u32 %v9405, 4294901760
        %v9911 = vsub.f32 %v9405, %v9910
        %v9912 = vand.u32 %v9911, 4294901760
        %9913 = vmatpush1.msra.mxu0 %v9912
        %9914 = vmatprep.subr.mxu0 0.0
        %v9915 = vand.u32 %v9406, 4294901760
        %v9916 = vsub.f32 %v9406, %v9915
        %v9917 = vand.u32 %v9916, 4294901760
        %9918 = vmatpush1.msra.mxu0 %v9917
        %9919 = vmatprep.subr.mxu0 0.0
        %v9920 = vand.u32 %v9407, 4294901760
        %v9921 = vsub.f32 %v9407, %v9920
        %v9922 = vand.u32 %v9921, 4294901760
        %9923 = vmatpush1.msra.mxu0 %v9922
        %9924 = vmatprep.subr.mxu0 0.0
        %9925 = vmatpush1.msra.mxu0 0.0
        %9926 = vmatprep.subr.mxu0 0.0
        %9927 = vmatpush1.msra.mxu0 0.0
        %9928 = vmatprep.subr.mxu0 0.0
        %9929 = vmatpush1.msra.mxu0 0.0
        %9930 = vmatprep.subr.mxu0 0.0
        %9931 = vmatpush1.msra.mxu0 0.0
        %9932 = vmatprep.subr.mxu0 0.0
        %9933 = vmatpush1.msra.mxu0 0.0
        %9934 = vmatprep.subr.mxu0 0.0
        %9935 = vmatpush1.msra.mxu0 0.0
        %9936 = vmatprep.subr.mxu0 0.0
        %9937 = vmatpush1.msra.mxu0 0.0
        %9938 = vmatprep.subr.mxu0 0.0
        %9939 = vmatpush1.msra.mxu0 0.0
        %9940 = vmatprep.subr.mxu0 0.0
        %9941 = vmatpush1.msra.mxu0 0.0
        %9942 = vmatprep.subr.mxu0 0.0
        %9943 = vmatpush1.msra.mxu0 0.0
        %9944 = vmatprep.subr.mxu0 0.0
        %9945 = vmatpush1.msra.mxu0 0.0
        %9946 = vmatprep.subr.mxu0 0.0
        %9947 = vmatpush1.msra.mxu0 0.0
        %9948 = vmatprep.subr.mxu0 0.0
        %9949 = vmatpush1.msra.mxu0 0.0
        %9950 = vmatprep.subr.mxu0 0.0
        %9951 = vmatpush1.msra.mxu0 0.0
        %9952 = vmatprep.subr.mxu0 0.0
        %9953 = vmatpush1.msra.mxu0 0.0
        %9954 = vmatprep.subr.mxu0 0.0
        %9955 = vmatpush1.msra.mxu0 0.0
        %9956 = vmatprep.mubr.f32.mxu0 0.0
        %v9957 = vand.u32 %v9391, 4294901760
        %9958 = vmatmul.mubr.f32.gmra.mrb[0].mxu0 %v9957
        %v9959 = vpop.f32.mrb[0].mxu0
        %v9960 = vadd.f32 %v9841, %v9959
        %v9961 = vpop.f32.mrb[0].mxu0
        %9962 = vdwg.mxu0
        %9963 = vmatprep.subr.mxu0 0.0
        %v9964 = vand.u32 %v9392, 4294901760
        %9965 = vmatpush1.msra.mxu0 %v9964
        %9966 = vmatprep.subr.mxu0 0.0
        %v9967 = vand.u32 %v9393, 4294901760
        %9968 = vmatpush1.msra.mxu0 %v9967
        %9969 = vmatprep.subr.mxu0 0.0
        %v9970 = vand.u32 %v9394, 4294901760
        %9971 = vmatpush1.msra.mxu0 %v9970
        %9972 = vmatprep.subr.mxu0 0.0
        %v9973 = vand.u32 %v9395, 4294901760
        %9974 = vmatpush1.msra.mxu0 %v9973
        %9975 = vmatprep.subr.mxu0 0.0
        %v9976 = vand.u32 %v9396, 4294901760
        %9977 = vmatpush1.msra.mxu0 %v9976
        %9978 = vmatprep.subr.mxu0 0.0
        %v9979 = vand.u32 %v9397, 4294901760
        %9980 = vmatpush1.msra.mxu0 %v9979
        %9981 = vmatprep.subr.mxu0 0.0
        %v9982 = vand.u32 %v9398, 4294901760
        %9983 = vmatpush1.msra.mxu0 %v9982
        %9984 = vmatprep.subr.mxu0 0.0
        %v9985 = vand.u32 %v9399, 4294901760
        %9986 = vmatpush1.msra.mxu0 %v9985
        %9987 = vmatprep.subr.mxu0 0.0
        %v9988 = vand.u32 %v9400, 4294901760
        %9989 = vmatpush1.msra.mxu0 %v9988
        %9990 = vmatprep.subr.mxu0 0.0
        %v9991 = vand.u32 %v9401, 4294901760
        %9992 = vmatpush1.msra.mxu0 %v9991
        %9993 = vmatprep.subr.mxu0 0.0
        %v9994 = vand.u32 %v9402, 4294901760
        %9995 = vmatpush1.msra.mxu0 %v9994
        %9996 = vmatprep.subr.mxu0 0.0
        %v9997 = vand.u32 %v9403, 4294901760
        %9998 = vmatpush1.msra.mxu0 %v9997
        %9999 = vmatprep.subr.mxu0 0.0
        %v10000 = vand.u32 %v9404, 4294901760
        %10001 = vmatpush1.msra.mxu0 %v10000
        %10002 = vmatprep.subr.mxu0 0.0
        %v10003 = vand.u32 %v9405, 4294901760
        %10004 = vmatpush1.msra.mxu0 %v10003
        %10005 = vmatprep.subr.mxu0 0.0
        %v10006 = vand.u32 %v9406, 4294901760
        %10007 = vmatpush1.msra.mxu0 %v10006
        %10008 = vmatprep.subr.mxu0 0.0
        %v10009 = vand.u32 %v9407, 4294901760
        %10010 = vmatpush1.msra.mxu0 %v10009
        %10011 = vmatprep.subr.mxu0 0.0
        %10012 = vmatpush1.msra.mxu0 0.0
        %10013 = vmatprep.subr.mxu0 0.0
        %10014 = vmatpush1.msra.mxu0 0.0
        %10015 = vmatprep.subr.mxu0 0.0
        %10016 = vmatpush1.msra.mxu0 0.0
        %10017 = vmatprep.subr.mxu0 0.0
        %10018 = vmatpush1.msra.mxu0 0.0
        %10019 = vmatprep.subr.mxu0 0.0
        %10020 = vmatpush1.msra.mxu0 0.0
        %10021 = vmatprep.subr.mxu0 0.0
        %10022 = vmatpush1.msra.mxu0 0.0
        %10023 = vmatprep.subr.mxu0 0.0
        %10024 = vmatpush1.msra.mxu0 0.0
        %10025 = vmatprep.subr.mxu0 0.0
        %10026 = vmatpush1.msra.mxu0 0.0
        %10027 = vmatprep.subr.mxu0 0.0
        %10028 = vmatpush1.msra.mxu0 0.0
        %10029 = vmatprep.subr.mxu0 0.0
        %10030 = vmatpush1.msra.mxu0 0.0
        %10031 = vmatprep.subr.mxu0 0.0
        %10032 = vmatpush1.msra.mxu0 0.0
        %10033 = vmatprep.subr.mxu0 0.0
        %10034 = vmatpush1.msra.mxu0 0.0
        %10035 = vmatprep.subr.mxu0 0.0
        %10036 = vmatpush1.msra.mxu0 0.0
        %10037 = vmatprep.subr.mxu0 0.0
        %10038 = vmatpush1.msra.mxu0 0.0
        %10039 = vmatprep.subr.mxu0 0.0
        %10040 = vmatpush1.msra.mxu0 0.0
        %10041 = vmatprep.subr.mxu0 0.0
        %10042 = vmatpush1.msra.mxu0 0.0
        %10043 = vmatprep.mubr.f32.mxu0 0.0
        %v10044 = vand.u32 %v9391, 4294901760
        %10045 = vmatmul.mubr.f32.gmra.mrb[0].mxu0 %v10044
        %v10046 = vpop.f32.mrb[0].mxu0
        %v10047 = vadd.f32 %v9960, %v10046
        %v10048 = vpop.f32.mrb[0].mxu0
        %10049 = vdwg.mxu0
        %v10050 = vlaneseq
        %v10051 = vand.u32 %v10050, 127
        %vm10052 = vcmp.lt.s32.totalorder %v10051, 10
        %v10053 = vsel %vm10052, %v10047, -1e+30
        %vm10054 = vcmask 1040384
        %v10055 = vsel %vm10054, %v10053, -inf
        %10056 = vmax.xlane.f32.xlu0 %v10055
        %v10057 = vpop.xlane.xlu0 %10056
        %v10058 = vsub.f32 %v10053, %v10057
        %v10059 = vmul.f32 %v10058, 1.442695
        %v10060 = vpow.pop %v10059
        %v10061 = vsel %vm10054, %v10060, 0.0
        %10062 = vadd.xlane.f32.xlu0 %v10061
        %v10063 = vpop.xlane.xlu0 %10062
        %v10064 = vlog2.pop %v10063
        %v10065 = vmul.f32 %v10064, 0.6931472
        %v10066 = vsub.f32 %v10058, %v10065
        %10067 = vst [vmem:[%s486] sm:$0x1] %v10066
        %s10068 = sand.u32 %s357, 1
        %s10069 = scalar_lea.sflag [#allocation3], %s10068
        %s10070 = sand.u32 %s357, 1
        %s10071 = scalar_lea.vmem [#allocation2], %s10070
        // Predicated region
        $region81: #{_lambda_.1} parent=79 // pred_check
          %p10072 = pneg %p367
        $region82: #{_lambda_.1} parent=79 // pred_check_branch
          %10074 = sbr.rel (%p10072) target = $region84
        $region83: #{_lambda_.1} parent=79 // pred_region
          %s10076 = ssub.s32 16, 16
          %10077 = vsyncadd %s10069, %s10076
          %s10078 = smul.addr %s29, 16
          %s10079 = scalar_lea.hbm %s15, %s10078
          %s10081 = sshll.u32 %s10071, 4
          %s10082 = int_to_ptr.vmem [resolvable:$true] %s10081
          %10084 = dma.vmem_to_hbm [thread:$0]  %s10082, 16, %s10079, %s10069
        $region84: #{_lambda_.1} parent=79 // pred_fallthru
          _
      $region80: #{_lambda_.1} parent=5 // pred_fallthru
        _
      %p10085 = scmp.le.s32.totalorder 2, %s24
      // Predicated region
      $region85: #{_lambda_.1} parent=5 // pred_check
        %p10086 = pneg %p10085
      $region86: #{_lambda_.1} parent=5 // pred_check_branch
        %10088 = sbr.rel (%p10086) target = $region88
      $region87: #{_lambda_.1} parent=5 // pred_region
        %s10089 = ssub.s32 %s24, 2
        // Predicated region
        $region89: #{_lambda_.1} parent=87 // pred_check
          %p10090 = pneg %p373
        $region90: #{_lambda_.1} parent=87 // pred_check_branch
          %10092 = sbr.rel (%p10090) target = $region92
        $region91: #{_lambda_.1} parent=87 // pred_region
          %s10093 = sand.u32 %s358, 1
          %s10094 = scalar_lea.sflag [#allocation3], %s10093
          %s10095 = sand.u32 %s358, 1
          %s10096 = scalar_lea.vmem [#allocation2], %s10095
          %10097 = dma.done %s10094, 16
        $region92: #{_lambda_.1} parent=87 // pred_fallthru
          _
      $region88: #{_lambda_.1} parent=5 // pred_fallthru
        _
    $region6: #{_lambda_.1} parent=1 // loop_footer
      %s28 = sadd.s32 1, %s24
    $region7: #{_lambda_.1} parent=1 // loop_footer_branch
      %23 = sbr.rel target = $region3
    $region8: #{_lambda_.1} parent=1 // loop_exit
      _
    %10098 = vsyncpa [#allocation3], 1
    %s10099 = scalar_lea.sflag [#allocation3], 1
    %10100 = vsyncpa %s10099, 1

</llo_original>
